<compile_context>
chip_gen: v6e
topology: v6e:2x2x1
jax: 0.10.0
libtpu: 0.0.40
codegen_flags: <defaults>
</compile_context>

<pallas_src>
import functools

import jax
import jax.numpy as jnp
from jax.experimental import pallas as pl
from jax.experimental.pallas import tpu as pltpu

NUM_KEYPOINTS = 8  # stand-in for len(ground_keypoints[0]) in the reference code
BACKBONE_OUT_CHANNELS = [64, 128, 256, 512]
FPN_DIM = 256

_TM = 256        # row tile for the generic matmul (>=2 grid steps for 2-TC v7x,
                 # fits comfortably in v5e's 16 MiB default scoped VMEM in bf16)
_TM_PRED = 128   # row tile for the level-batched fused pred+head matmul


def _cdiv(a, b):
    return -(-a // b)


# ---------------------------------------------------------------------------
# Kernel 1: fused (X @ W) + bias (+ optional ReLU).
# X/W arrive in bf16, accumulate + bias in f32.
# ---------------------------------------------------------------------------
def _matmul_bias_kernel(x_ref, w_ref, b_ref, o_ref, *, apply_relu):
    acc = jnp.dot(x_ref[...], w_ref[...], preferred_element_type=jnp.float32)
    acc = acc + b_ref[...]
    if apply_relu:
        acc = jnp.maximum(acc, 0.0)
    o_ref[...] = acc.astype(o_ref.dtype)


def pallas_matmul_bias(x, w, b, apply_relu=False):
    """x: (M, K), w: (K, Cout), b: (Cout,) -> (M, Cout) float32."""
    M, K = x.shape
    Cout = w.shape[1]
    xb = x.astype(jnp.bfloat16)
    wb = w.astype(jnp.bfloat16)
    bf = b.reshape(1, Cout).astype(jnp.float32)

    # Small M: one full-extent block (exempt from the (8,128) rule).
    # Large M: fixed row tile; Pallas masks any ragged tail block, so no
    # wrapper-side pad/slice copies.  Weights/bias use a constant block index
    # and stay VMEM-resident across the grid.
    tm = M if M <= _TM else _TM
    grid_m = _cdiv(M, tm)
    return pl.pallas_call(
        functools.partial(_matmul_bias_kernel, apply_relu=apply_relu),
        out_shape=jax.ShapeDtypeStruct((M, Cout), jnp.float32),
        grid=(grid_m,),
        in_specs=[
            pl.BlockSpec((tm, K), lambda i: (i, 0)),     # row tile of X
            pl.BlockSpec((K, Cout), lambda i: (0, 0)),   # full weights (resident)
            pl.BlockSpec((1, Cout), lambda i: (0, 0)),   # bias
        ],
        out_specs=pl.BlockSpec((tm, Cout), lambda i: (i, 0)),
        compiler_params=pltpu.CompilerParams(dimension_semantics=("parallel",)),
    )(xb, wb, bf)


# ---------------------------------------------------------------------------
# Kernel 2: per-level 3x3 pred conv (as im2col matmul) fused with the shared
# 1x1 keypoint head, batched over ALL pyramid levels in one pallas_call.
# The level id of each row tile is scalar-prefetched and drives the weight /
# bias index_maps.  Only the lane-dense head output is written back to HBM.
# ---------------------------------------------------------------------------
def _pred_head_kernel(lvl_ref, x_ref, wp_ref, bp_ref, wh_ref, bh_ref, o_ref):
    del lvl_ref  # consumed by the index_maps only
    feat = jnp.dot(x_ref[...], wp_ref[0], preferred_element_type=jnp.float32)
    feat = feat + bp_ref[0]                              # pred conv bias (f32)
    out = jnp.dot(feat.astype(jnp.bfloat16), wh_ref[...],
                  preferred_element_type=jnp.float32)
    o_ref[...] = (out + bh_ref[...]).astype(o_ref.dtype)


def fused_pred_head(level_inputs, pred_params, head_w_pad, head_b_pad):
    """level_inputs: list of NHWC tensors (FPN_DIM channels each).

    Returns one NHWC tensor per level with head_w_pad.shape[1] channels
    (lane-dense; caller slices down to num_keypoints)."""
    tm = _TM_PRED
    Kp = 9 * FPN_DIM
    HO = head_w_pad.shape[1]
    n_lvl = len(level_inputs)

    patches, metas, tile_levels = [], [], []
    offset = 0
    for lvl, x in enumerate(level_inputs):
        p, ho, wo = _im2col3x3(x.astype(jnp.bfloat16), stride=1)
        m = p.shape[0]
        m_pad = _cdiv(m, tm) * tm            # pad each level to whole row tiles
        if m_pad != m:
            p = jnp.pad(p, ((0, m_pad - m), (0, 0)))
        patches.append(p)
        metas.append((offset, m, x.shape[0], ho, wo))
        tile_levels += [lvl] * (m_pad // tm)
        offset += m_pad

    x_cat = jnp.concatenate(patches, axis=0)                       # (Mtot, Kp) bf16
    wp = jnp.stack([w.reshape(Kp, FPN_DIM) for w, _ in pred_params]
                   ).astype(jnp.bfloat16)                          # (L, Kp, 256)
    bp = jnp.stack([b for _, b in pred_params]
                   ).reshape(n_lvl, 1, FPN_DIM).astype(jnp.float32)
    tile_level = jnp.asarray(tile_levels, dtype=jnp.int32)
    m_tot = x_cat.shape[0]

    grid_spec = pltpu.PrefetchScalarGridSpec(
        num_scalar_prefetch=1,
        grid=(m_tot // tm,),
        in_specs=[
            pl.BlockSpec((tm, Kp), lambda i, lvl: (i, 0)),
            pl.BlockSpec((1, Kp, FPN_DIM), lambda i, lvl: (lvl[i], 0, 0)),
            pl.BlockSpec((1, 1, FPN_DIM), lambda i, lvl: (lvl[i], 0, 0)),
            pl.BlockSpec((FPN_DIM, HO), lambda i, lvl: (0, 0)),
            pl.BlockSpec((1, HO), lambda i, lvl: (0, 0)),
        ],
        out_specs=pl.BlockSpec((tm, HO), lambda i, lvl: (i, 0)),
    )
    out = pl.pallas_call(
        _pred_head_kernel,
        grid_spec=grid_spec,
        out_shape=jax.ShapeDtypeStruct((m_tot, HO), jnp.float32),
        compiler_params=pltpu.CompilerParams(dimension_semantics=("parallel",)),
    )(tile_level, x_cat, wp, bp,
      head_w_pad.astype(jnp.bfloat16), head_b_pad.astype(jnp.float32))

    results = []
    for off, m, n, ho, wo in metas:
        results.append(out[off:off + m].reshape(n, ho, wo, HO))
    return results


# ---------------------------------------------------------------------------
# Convolution glue (im2col / reshape in JAX, matmuls in Pallas)
# ---------------------------------------------------------------------------
def _im2col3x3(x, stride=1):
    """3x3, padding=1 patches. x: (N,H,W,Cin) -> ((N*Ho*Wo, 9*Cin), Ho, Wo)."""
    n, h, w, cin = x.shape
    xp = jnp.pad(x, ((0, 0), (1, 1), (1, 1), (0, 0)))
    ho = (h + 2 - 3) // stride + 1
    wo = (w + 2 - 3) // stride + 1
    cols = []
    for dy in range(3):
        for dx in range(3):
            cols.append(xp[:, dy:dy + (ho - 1) * stride + 1:stride,
                              dx:dx + (wo - 1) * stride + 1:stride, :])
    patches = jnp.concatenate(cols, axis=-1)        # (N, Ho, Wo, 9*Cin)
    return patches.reshape(n * ho * wo, 9 * cin), ho, wo


def conv1x1(x, w, b, relu=False):
    """x: (N,H,W,Cin), w: (Cin,Cout), b: (Cout,)."""
    n, h, wd, cin = x.shape
    y = pallas_matmul_bias(x.reshape(n * h * wd, cin).astype(jnp.bfloat16),
                           w, b, apply_relu=relu)
    return y.reshape(n, h, wd, -1)


def conv3x3(x, w, b, stride=1, relu=False):
    """x: (N,H,W,Cin), w: (3,3,Cin,Cout), b: (Cout,)."""
    n = x.shape[0]
    cin = x.shape[-1]
    cout = w.shape[-1]
    patches, ho, wo = _im2col3x3(x.astype(jnp.bfloat16), stride=stride)
    y = pallas_matmul_bias(patches, w.reshape(9 * cin, cout), b, apply_relu=relu)
    return y.reshape(n, ho, wo, cout)


def upsample2x(x):
    """nn.Upsample(scale_factor=2, mode='nearest') on NHWC."""
    return jnp.repeat(jnp.repeat(x, 2, axis=1), 2, axis=2)


# ---------------------------------------------------------------------------
# Parameters (deterministic synthetic init)
# ---------------------------------------------------------------------------
def _conv_init(key, shape):
    fan_in = 1
    for d in shape[:-1]:
        fan_in *= d
    return jax.random.normal(key, shape, jnp.float32) / jnp.sqrt(float(fan_in))


def init_params(key, num_keypoints):
    keys = iter(jax.random.split(key, 64))
    params = {}

    # TODO(synk): the resnet34(pretrained=True)[:-3] backbone is replaced by a
    # deterministic 4-stage stride-2 3x3-conv backbone producing the same
    # [64, 128, 256, 512] multi-scale feature contract the FPN consumes;
    # pretrained checkpoint loading has no in-script equivalent.
    backbone = []
    cin = 3
    for cout in BACKBONE_OUT_CHANNELS:
        backbone.append((_conv_init(next(keys), (3, 3, cin, cout)),
                         jnp.zeros((cout,), jnp.float32)))
        cin = cout
    params["backbone"] = backbone

    params["lat"] = [(_conv_init(next(keys), (c, FPN_DIM)),
                      jnp.zeros((FPN_DIM,), jnp.float32))
                     for c in BACKBONE_OUT_CHANNELS]
    params["pred"] = [(_conv_init(next(keys), (3, 3, FPN_DIM, FPN_DIM)),
                       jnp.zeros((FPN_DIM,), jnp.float32))
                      for _ in BACKBONE_OUT_CHANNELS]
    params["head"] = (_conv_init(next(keys), (FPN_DIM, num_keypoints)),
                      jnp.zeros((num_keypoints,), jnp.float32))
    return params


# ---------------------------------------------------------------------------
# Forward pass
# ---------------------------------------------------------------------------
def backbone_forward(backbone_params, x):
    feats = []
    h = x
    for w, b in backbone_params:
        cin = w.shape[2]
        pad = (-cin) % 8
        if pad:  # sublane-align the only non-multiple-of-8 contraction (Cin=3)
            h = jnp.pad(h, ((0, 0), (0, 0), (0, 0), (0, pad)))
            w = jnp.pad(w, ((0, 0), (0, 0), (0, pad), (0, 0)))
        h = conv3x3(h, w, b, stride=2, relu=True)
        feats.append(h)
    return feats  # strides 2,4,8,16 ; channels 64,128,256,512


def fpn_head_forward(params, x):
    """x: NHWC. Returns the per-level keypoint heatmaps (NHWC) in the exact
    order produced by the reference FPN + prediction head."""
    feats = backbone_forward(params["backbone"], x)
    latents = [conv1x1(f, w, b) for (w, b), f in zip(params["lat"], feats)]

    # Top-down pathway (nearest upsample + lateral add: cheap XLA glue).
    n_lvl = len(latents)
    lat_sums = [None] * n_lvl
    lat_sums[-1] = latents[-1]
    prev = latents[-1]
    for lvl in range(n_lvl - 2, -1, -1):
        prev = upsample2x(prev) + latents[lvl]
        lat_sums[lvl] = prev

    # Shared 1x1 head, lane-padded to 128 output channels (lane-dense stores).
    hw, hb = params["head"]
    nk = hw.shape[1]
    ho_pad = _cdiv(nk, 128) * 128
    hw_pad = jnp.pad(hw, ((0, 0), (0, ho_pad - nk)))
    hb_pad = jnp.pad(hb, ((0, ho_pad - nk),)).reshape(1, ho_pad)

    level_outs = fused_pred_head(lat_sums, params["pred"], hw_pad, hb_pad)
    level_outs = [o[..., :nk] for o in level_outs]

    # Reference ordering: outputs (pre-reverse) = [pred2(sum2), pred1(sum1),
    # pred0(sum0), pred3(lat3)]; list(reversed(outputs)) = levels [3,0,1,2].
    order = [n_lvl - 1] + list(range(n_lvl - 1))
    return [level_outs[i] for i in order]


def point_correspondence_forward(params, ground_photo, satellite_image):
    """Inputs NCHW; outputs two lists of NCHW keypoint heatmaps (one per FPN
    level, in the reference module's output order)."""
    if ground_photo.shape == satellite_image.shape:
        # Batch ground + satellite through one FPN pass.
        n_g = ground_photo.shape[0]
        x = jnp.transpose(
            jnp.concatenate([ground_photo, satellite_image], axis=0), (0, 2, 3, 1))
        preds = fpn_head_forward(params, x)
        ground_predictions = [jnp.transpose(p[:n_g], (0, 3, 1, 2)) for p in preds]
        satellite_predictions = [jnp.transpose(p[n_g:], (0, 3, 1, 2)) for p in preds]
    else:
        g = fpn_head_forward(params, jnp.transpose(ground_photo, (0, 2, 3, 1)))
        s = fpn_head_forward(params, jnp.transpose(satellite_image, (0, 2, 3, 1)))
        ground_predictions = [jnp.transpose(p, (0, 3, 1, 2)) for p in g]
        satellite_predictions = [jnp.transpose(p, (0, 3, 1, 2)) for p in s]
    return ground_predictions, satellite_predictions


# ---------------------------------------------------------------------------
if __name__ == "__main__":
    num_keypoints = NUM_KEYPOINTS
    params = init_params(jax.random.PRNGKey(42), num_keypoints)

    key = jax.random.PRNGKey(0)
    kg, ks = jax.random.split(key)
    N, C, H, W = 2, 3, 32, 32
    ground_photo = jax.random.normal(kg, (N, C, H, W), jnp.float32)
    satellite_image = jax.random.normal(ks, (N, C, H, W), jnp.float32)

    fwd = jax.jit(point_correspondence_forward)
    ground_preds, satellite_preds = fwd(params, ground_photo, satellite_image)
    jax.block_until_ready((ground_preds, satellite_preds))

    # The reference FPN appends the coarsest-level prediction LAST before
    # list(reversed(...)), so the returned order is [2x2, 16x16, 8x8, 4x4].
    expected = [(N, num_keypoints, 2, 2), (N, num_keypoints, 16, 16),
                (N, num_keypoints, 8, 8), (N, num_keypoints, 4, 4)]
    assert [tuple(p.shape) for p in ground_preds] == expected
    assert [tuple(p.shape) for p in satellite_preds] == expected
    assert all(bool(jnp.all(jnp.isfinite(p))) for p in ground_preds + satellite_preds)

    print("KERNEL_OK")
</pallas_src>

<mosaic_0001>
module attributes {stable_mosaic.version = 11 : i64} {
  func.func @_matmul_bias_kernel(%arg0: i32, %arg1: memref<256x72xbf16, #tpu.memory_space<vmem>>, %arg2: memref<72x64xbf16, #tpu.memory_space<vmem>>, %arg3: memref<1x64xf32, #tpu.memory_space<vmem>>, %arg4: memref<256x64xf32, #tpu.memory_space<vmem>>) attributes {dimension_semantics = [#tpu.dimension_semantics<parallel>], iteration_bounds = array<i64: 4>, scalar_prefetch = 0 : i64, scratch_operands = 0 : i64, tpu.core_type = #tpu.core_type<tc>, window_params = [{transform_indices = @transform_0, window_bounds = array<i64: 256, 72>}, {pipeline_mode = #tpu.pipeline_mode<synchronous>, transform_indices = @transform_1, window_bounds = array<i64: 72, 64>}, {pipeline_mode = #tpu.pipeline_mode<synchronous>, transform_indices = @transform_2, window_bounds = array<i64: 1, 64>}, {transform_indices = @transform_3, window_bounds = array<i64: 256, 64>}]} {
    %c0 = arith.constant 0 : index
    %c0_0 = arith.constant 0 : index
    %0 = vector.load %arg1[%c0, %c0_0] : memref<256x72xbf16, #tpu.memory_space<vmem>>, vector<256x72xbf16>
    %c0_1 = arith.constant 0 : index
    %c0_2 = arith.constant 0 : index
    %1 = vector.load %arg2[%c0_1, %c0_2] : memref<72x64xbf16, #tpu.memory_space<vmem>>, vector<72x64xbf16>
    %cst = arith.constant dense<0.000000e+00> : vector<256x64xf32>
    %2 = tpu.matmul %0, %1, %cst {dimension_numbers = #tpu.dot_dimension_numbers<[1], [0], [0], [1], [0, 0, 1, 1], [], []>} : vector<256x72xbf16>, vector<72x64xbf16>, vector<256x64xf32> -> vector<256x64xf32>
    %c0_3 = arith.constant 0 : index
    %c0_4 = arith.constant 0 : index
    %3 = vector.load %arg3[%c0_3, %c0_4] : memref<1x64xf32, #tpu.memory_space<vmem>>, vector<1x64xf32>
    %4 = vector.broadcast %3 : vector<1x64xf32> to vector<256x64xf32>
    %5 = arith.addf %2, %4 : vector<256x64xf32>
    %cst_5 = arith.constant 0.000000e+00 : f32
    %6 = vector.broadcast %cst_5 : f32 to vector<256x64xf32>
    %7 = arith.maximumf %5, %6 : vector<256x64xf32>
    %c0_6 = arith.constant 0 : index
    %c0_7 = arith.constant 0 : index
    %8 = vector.load %arg4[%c0_6, %c0_7] : memref<256x64xf32, #tpu.memory_space<vmem>>, vector<256x64xf32>
    tpu.vector_store %arg4[%c0_6, %c0_7], %7 {strides = array<i32>} : memref<256x64xf32, #tpu.memory_space<vmem>>, vector<256x64xf32>,
    return
  }
  func.func @transform_0(%arg0: i32) -> (i32, i32) {
    %c0_i32 = arith.constant 0 : i32
    %c0_i32_0 = arith.constant 0 : i32
    return %arg0, %c0_i32 : i32, i32
  }
  func.func @transform_1(%arg0: i32) -> (i32, i32) {
    %c0_i32 = arith.constant 0 : i32
    %c0_i32_0 = arith.constant 0 : i32
    %c0_i32_1 = arith.constant 0 : i32
    return %c0_i32, %c0_i32_0 : i32, i32
  }
  func.func @transform_2(%arg0: i32) -> (i32, i32) {
    %c0_i32 = arith.constant 0 : i32
    %c0_i32_0 = arith.constant 0 : i32
    %c0_i32_1 = arith.constant 0 : i32
    return %c0_i32, %c0_i32_0 : i32, i32
  }
  func.func @transform_3(%arg0: i32) -> (i32, i32) {
    %c0_i32 = arith.constant 0 : i32
    %c0_i32_0 = arith.constant 0 : i32
    return %arg0, %c0_i32 : i32, i32
  }
}

module attributes {stable_mosaic.version = 11 : i64} {
  func.func @_matmul_bias_kernel(%arg0: i32, %arg1: memref<256x576xbf16, #tpu.memory_space<vmem>>, %arg2: memref<576x128xbf16, #tpu.memory_space<vmem>>, %arg3: memref<1x128xf32, #tpu.memory_space<vmem>>, %arg4: memref<256x128xf32, #tpu.memory_space<vmem>>) attributes {dimension_semantics = [#tpu.dimension_semantics<parallel>], iteration_bounds = array<i64: 1>, scalar_prefetch = 0 : i64, scratch_operands = 0 : i64, tpu.core_type = #tpu.core_type<tc>, window_params = [{transform_indices = @transform_0, window_bounds = array<i64: 256, 576>}, {pipeline_mode = #tpu.pipeline_mode<synchronous>, transform_indices = @transform_1, window_bounds = array<i64: 576, 128>}, {pipeline_mode = #tpu.pipeline_mode<synchronous>, transform_indices = @transform_2, window_bounds = array<i64: 1, 128>}, {transform_indices = @transform_3, window_bounds = array<i64: 256, 128>}]} {
    %c0 = arith.constant 0 : index
    %c0_0 = arith.constant 0 : index
    %0 = vector.load %arg1[%c0, %c0_0] : memref<256x576xbf16, #tpu.memory_space<vmem>>, vector<256x576xbf16>
    %c0_1 = arith.constant 0 : index
    %c0_2 = arith.constant 0 : index
    %1 = vector.load %arg2[%c0_1, %c0_2] : memref<576x128xbf16, #tpu.memory_space<vmem>>, vector<576x128xbf16>
    %cst = arith.constant dense<0.000000e+00> : vector<256x128xf32>
    %2 = tpu.matmul %0, %1, %cst {dimension_numbers = #tpu.dot_dimension_numbers<[1], [0], [0], [1], [0, 0, 1, 1], [], []>} : vector<256x576xbf16>, vector<576x128xbf16>, vector<256x128xf32> -> vector<256x128xf32>
    %c0_3 = arith.constant 0 : index
    %c0_4 = arith.constant 0 : index
    %3 = vector.load %arg3[%c0_3, %c0_4] : memref<1x128xf32, #tpu.memory_space<vmem>>, vector<1x128xf32>
    %4 = vector.broadcast %3 : vector<1x128xf32> to vector<256x128xf32>
    %5 = arith.addf %2, %4 : vector<256x128xf32>
    %cst_5 = arith.constant 0.000000e+00 : f32
    %6 = vector.broadcast %cst_5 : f32 to vector<256x128xf32>
    %7 = arith.maximumf %5, %6 : vector<256x128xf32>
    %c0_6 = arith.constant 0 : index
    %c0_7 = arith.constant 0 : index
    %8 = vector.load %arg4[%c0_6, %c0_7] : memref<256x128xf32, #tpu.memory_space<vmem>>, vector<256x128xf32>
    tpu.vector_store %arg4[%c0_6, %c0_7], %7 {strides = array<i32>} : memref<256x128xf32, #tpu.memory_space<vmem>>, vector<256x128xf32>,
    return
  }
  func.func @transform_0(%arg0: i32) -> (i32, i32) {
    %c0_i32 = arith.constant 0 : i32
    %c0_i32_0 = arith.constant 0 : i32
    return %arg0, %c0_i32 : i32, i32
  }
  func.func @transform_1(%arg0: i32) -> (i32, i32) {
    %c0_i32 = arith.constant 0 : i32
    %c0_i32_0 = arith.constant 0 : i32
    %c0_i32_1 = arith.constant 0 : i32
    return %c0_i32, %c0_i32_0 : i32, i32
  }
  func.func @transform_2(%arg0: i32) -> (i32, i32) {
    %c0_i32 = arith.constant 0 : i32
    %c0_i32_0 = arith.constant 0 : i32
    %c0_i32_1 = arith.constant 0 : i32
    return %c0_i32, %c0_i32_0 : i32, i32
  }
  func.func @transform_3(%arg0: i32) -> (i32, i32) {
    %c0_i32 = arith.constant 0 : i32
    %c0_i32_0 = arith.constant 0 : i32
    return %arg0, %c0_i32 : i32, i32
  }
}

module attributes {stable_mosaic.version = 11 : i64} {
  func.func @_matmul_bias_kernel(%arg0: i32, %arg1: memref<64x1152xbf16, #tpu.memory_space<vmem>>, %arg2: memref<1152x256xbf16, #tpu.memory_space<vmem>>, %arg3: memref<1x256xf32, #tpu.memory_space<vmem>>, %arg4: memref<64x256xf32, #tpu.memory_space<vmem>>) attributes {dimension_semantics = [#tpu.dimension_semantics<parallel>], iteration_bounds = array<i64: 1>, scalar_prefetch = 0 : i64, scratch_operands = 0 : i64, tpu.core_type = #tpu.core_type<tc>, window_params = [{transform_indices = @transform_0, window_bounds = array<i64: 64, 1152>}, {pipeline_mode = #tpu.pipeline_mode<synchronous>, transform_indices = @transform_1, window_bounds = array<i64: 1152, 256>}, {pipeline_mode = #tpu.pipeline_mode<synchronous>, transform_indices = @transform_2, window_bounds = array<i64: 1, 256>}, {transform_indices = @transform_3, window_bounds = array<i64: 64, 256>}]} {
    %c0 = arith.constant 0 : index
    %c0_0 = arith.constant 0 : index
    %0 = vector.load %arg1[%c0, %c0_0] : memref<64x1152xbf16, #tpu.memory_space<vmem>>, vector<64x1152xbf16>
    %c0_1 = arith.constant 0 : index
    %c0_2 = arith.constant 0 : index
    %1 = vector.load %arg2[%c0_1, %c0_2] : memref<1152x256xbf16, #tpu.memory_space<vmem>>, vector<1152x256xbf16>
    %cst = arith.constant dense<0.000000e+00> : vector<64x256xf32>
    %2 = tpu.matmul %0, %1, %cst {dimension_numbers = #tpu.dot_dimension_numbers<[1], [0], [0], [1], [0, 0, 1, 1], [], []>} : vector<64x1152xbf16>, vector<1152x256xbf16>, vector<64x256xf32> -> vector<64x256xf32>
    %c0_3 = arith.constant 0 : index
    %c0_4 = arith.constant 0 : index
    %3 = vector.load %arg3[%c0_3, %c0_4] : memref<1x256xf32, #tpu.memory_space<vmem>>, vector<1x256xf32>
    %4 = vector.broadcast %3 : vector<1x256xf32> to vector<64x256xf32>
    %5 = arith.addf %2, %4 : vector<64x256xf32>
    %cst_5 = arith.constant 0.000000e+00 : f32
    %6 = vector.broadcast %cst_5 : f32 to vector<64x256xf32>
    %7 = arith.maximumf %5, %6 : vector<64x256xf32>
    %c0_6 = arith.constant 0 : index
    %c0_7 = arith.constant 0 : index
    %8 = vector.load %arg4[%c0_6, %c0_7] : memref<64x256xf32, #tpu.memory_space<vmem>>, vector<64x256xf32>
    tpu.vector_store %arg4[%c0_6, %c0_7], %7 {strides = array<i32>} : memref<64x256xf32, #tpu.memory_space<vmem>>, vector<64x256xf32>,
    return
  }
  func.func @transform_0(%arg0: i32) -> (i32, i32) {
    %c0_i32 = arith.constant 0 : i32
    %c0_i32_0 = arith.constant 0 : i32
    return %arg0, %c0_i32 : i32, i32
  }
  func.func @transform_1(%arg0: i32) -> (i32, i32) {
    %c0_i32 = arith.constant 0 : i32
    %c0_i32_0 = arith.constant 0 : i32
    %c0_i32_1 = arith.constant 0 : i32
    return %c0_i32, %c0_i32_0 : i32, i32
  }
  func.func @transform_2(%arg0: i32) -> (i32, i32) {
    %c0_i32 = arith.constant 0 : i32
    %c0_i32_0 = arith.constant 0 : i32
    %c0_i32_1 = arith.constant 0 : i32
    return %c0_i32, %c0_i32_0 : i32, i32
  }
  func.func @transform_3(%arg0: i32) -> (i32, i32) {
    %c0_i32 = arith.constant 0 : i32
    %c0_i32_0 = arith.constant 0 : i32
    return %arg0, %c0_i32 : i32, i32
  }
}

module attributes {stable_mosaic.version = 11 : i64} {
  func.func @_matmul_bias_kernel(%arg0: i32, %arg1: memref<16x2304xbf16, #tpu.memory_space<vmem>>, %arg2: memref<2304x512xbf16, #tpu.memory_space<vmem>>, %arg3: memref<1x512xf32, #tpu.memory_space<vmem>>, %arg4: memref<16x512xf32, #tpu.memory_space<vmem>>) attributes {dimension_semantics = [#tpu.dimension_semantics<parallel>], iteration_bounds = array<i64: 1>, scalar_prefetch = 0 : i64, scratch_operands = 0 : i64, tpu.core_type = #tpu.core_type<tc>, window_params = [{transform_indices = @transform_0, window_bounds = array<i64: 16, 2304>}, {pipeline_mode = #tpu.pipeline_mode<synchronous>, transform_indices = @transform_1, window_bounds = array<i64: 2304, 512>}, {pipeline_mode = #tpu.pipeline_mode<synchronous>, transform_indices = @transform_2, window_bounds = array<i64: 1, 512>}, {transform_indices = @transform_3, window_bounds = array<i64: 16, 512>}]} {
    %c0 = arith.constant 0 : index
    %c0_0 = arith.constant 0 : index
    %0 = vector.load %arg1[%c0, %c0_0] : memref<16x2304xbf16, #tpu.memory_space<vmem>>, vector<16x2304xbf16>
    %c0_1 = arith.constant 0 : index
    %c0_2 = arith.constant 0 : index
    %1 = vector.load %arg2[%c0_1, %c0_2] : memref<2304x512xbf16, #tpu.memory_space<vmem>>, vector<2304x512xbf16>
    %cst = arith.constant dense<0.000000e+00> : vector<16x512xf32>
    %2 = tpu.matmul %0, %1, %cst {dimension_numbers = #tpu.dot_dimension_numbers<[1], [0], [0], [1], [0, 0, 1, 1], [], []>} : vector<16x2304xbf16>, vector<2304x512xbf16>, vector<16x512xf32> -> vector<16x512xf32>
    %c0_3 = arith.constant 0 : index
    %c0_4 = arith.constant 0 : index
    %3 = vector.load %arg3[%c0_3, %c0_4] : memref<1x512xf32, #tpu.memory_space<vmem>>, vector<1x512xf32>
    %4 = vector.broadcast %3 : vector<1x512xf32> to vector<16x512xf32>
    %5 = arith.addf %2, %4 : vector<16x512xf32>
    %cst_5 = arith.constant 0.000000e+00 : f32
    %6 = vector.broadcast %cst_5 : f32 to vector<16x512xf32>
    %7 = arith.maximumf %5, %6 : vector<16x512xf32>
    %c0_6 = arith.constant 0 : index
    %c0_7 = arith.constant 0 : index
    %8 = vector.load %arg4[%c0_6, %c0_7] : memref<16x512xf32, #tpu.memory_space<vmem>>, vector<16x512xf32>
    tpu.vector_store %arg4[%c0_6, %c0_7], %7 {strides = array<i32>} : memref<16x512xf32, #tpu.memory_space<vmem>>, vector<16x512xf32>,
    return
  }
  func.func @transform_0(%arg0: i32) -> (i32, i32) {
    %c0_i32 = arith.constant 0 : i32
    %c0_i32_0 = arith.constant 0 : i32
    return %arg0, %c0_i32 : i32, i32
  }
  func.func @transform_1(%arg0: i32) -> (i32, i32) {
    %c0_i32 = arith.constant 0 : i32
    %c0_i32_0 = arith.constant 0 : i32
    %c0_i32_1 = arith.constant 0 : i32
    return %c0_i32, %c0_i32_0 : i32, i32
  }
  func.func @transform_2(%arg0: i32) -> (i32, i32) {
    %c0_i32 = arith.constant 0 : i32
    %c0_i32_0 = arith.constant 0 : i32
    %c0_i32_1 = arith.constant 0 : i32
    return %c0_i32, %c0_i32_0 : i32, i32
  }
  func.func @transform_3(%arg0: i32) -> (i32, i32) {
    %c0_i32 = arith.constant 0 : i32
    %c0_i32_0 = arith.constant 0 : i32
    return %arg0, %c0_i32 : i32, i32
  }
}

module attributes {stable_mosaic.version = 11 : i64} {
  func.func @_matmul_bias_kernel(%arg0: i32, %arg1: memref<16x512xbf16, #tpu.memory_space<vmem>>, %arg2: memref<512x256xbf16, #tpu.memory_space<vmem>>, %arg3: memref<1x256xf32, #tpu.memory_space<vmem>>, %arg4: memref<16x256xf32, #tpu.memory_space<vmem>>) attributes {dimension_semantics = [#tpu.dimension_semantics<parallel>], iteration_bounds = array<i64: 1>, scalar_prefetch = 0 : i64, scratch_operands = 0 : i64, tpu.core_type = #tpu.core_type<tc>, window_params = [{transform_indices = @transform_0, window_bounds = array<i64: 16, 512>}, {pipeline_mode = #tpu.pipeline_mode<synchronous>, transform_indices = @transform_1, window_bounds = array<i64: 512, 256>}, {pipeline_mode = #tpu.pipeline_mode<synchronous>, transform_indices = @transform_2, window_bounds = array<i64: 1, 256>}, {transform_indices = @transform_3, window_bounds = array<i64: 16, 256>}]} {
    %c0 = arith.constant 0 : index
    %c0_0 = arith.constant 0 : index
    %0 = vector.load %arg1[%c0, %c0_0] : memref<16x512xbf16, #tpu.memory_space<vmem>>, vector<16x512xbf16>
    %c0_1 = arith.constant 0 : index
    %c0_2 = arith.constant 0 : index
    %1 = vector.load %arg2[%c0_1, %c0_2] : memref<512x256xbf16, #tpu.memory_space<vmem>>, vector<512x256xbf16>
    %cst = arith.constant dense<0.000000e+00> : vector<16x256xf32>
    %2 = tpu.matmul %0, %1, %cst {dimension_numbers = #tpu.dot_dimension_numbers<[1], [0], [0], [1], [0, 0, 1, 1], [], []>} : vector<16x512xbf16>, vector<512x256xbf16>, vector<16x256xf32> -> vector<16x256xf32>
    %c0_3 = arith.constant 0 : index
    %c0_4 = arith.constant 0 : index
    %3 = vector.load %arg3[%c0_3, %c0_4] : memref<1x256xf32, #tpu.memory_space<vmem>>, vector<1x256xf32>
    %4 = vector.broadcast %3 : vector<1x256xf32> to vector<16x256xf32>
    %5 = arith.addf %2, %4 : vector<16x256xf32>
    %c0_5 = arith.constant 0 : index
    %c0_6 = arith.constant 0 : index
    %6 = vector.load %arg4[%c0_5, %c0_6] : memref<16x256xf32, #tpu.memory_space<vmem>>, vector<16x256xf32>
    tpu.vector_store %arg4[%c0_5, %c0_6], %5 {strides = array<i32>} : memref<16x256xf32, #tpu.memory_space<vmem>>, vector<16x256xf32>,
    return
  }
  func.func @transform_0(%arg0: i32) -> (i32, i32) {
    %c0_i32 = arith.constant 0 : i32
    %c0_i32_0 = arith.constant 0 : i32
    return %arg0, %c0_i32 : i32, i32
  }
  func.func @transform_1(%arg0: i32) -> (i32, i32) {
    %c0_i32 = arith.constant 0 : i32
    %c0_i32_0 = arith.constant 0 : i32
    %c0_i32_1 = arith.constant 0 : i32
    return %c0_i32, %c0_i32_0 : i32, i32
  }
  func.func @transform_2(%arg0: i32) -> (i32, i32) {
    %c0_i32 = arith.constant 0 : i32
    %c0_i32_0 = arith.constant 0 : i32
    %c0_i32_1 = arith.constant 0 : i32
    return %c0_i32, %c0_i32_0 : i32, i32
  }
  func.func @transform_3(%arg0: i32) -> (i32, i32) {
    %c0_i32 = arith.constant 0 : i32
    %c0_i32_0 = arith.constant 0 : i32
    return %arg0, %c0_i32 : i32, i32
  }
}

module attributes {stable_mosaic.version = 11 : i64} {
  func.func @_matmul_bias_kernel(%arg0: i32, %arg1: memref<64x256xbf16, #tpu.memory_space<vmem>>, %arg2: memref<256x256xbf16, #tpu.memory_space<vmem>>, %arg3: memref<1x256xf32, #tpu.memory_space<vmem>>, %arg4: memref<64x256xf32, #tpu.memory_space<vmem>>) attributes {dimension_semantics = [#tpu.dimension_semantics<parallel>], iteration_bounds = array<i64: 1>, scalar_prefetch = 0 : i64, scratch_operands = 0 : i64, tpu.core_type = #tpu.core_type<tc>, window_params = [{transform_indices = @transform_0, window_bounds = array<i64: 64, 256>}, {pipeline_mode = #tpu.pipeline_mode<synchronous>, transform_indices = @transform_1, window_bounds = array<i64: 256, 256>}, {pipeline_mode = #tpu.pipeline_mode<synchronous>, transform_indices = @transform_2, window_bounds = array<i64: 1, 256>}, {transform_indices = @transform_3, window_bounds = array<i64: 64, 256>}]} {
    %c0 = arith.constant 0 : index
    %c0_0 = arith.constant 0 : index
    %0 = vector.load %arg1[%c0, %c0_0] : memref<64x256xbf16, #tpu.memory_space<vmem>>, vector<64x256xbf16>
    %c0_1 = arith.constant 0 : index
    %c0_2 = arith.constant 0 : index
    %1 = vector.load %arg2[%c0_1, %c0_2] : memref<256x256xbf16, #tpu.memory_space<vmem>>, vector<256x256xbf16>
    %cst = arith.constant dense<0.000000e+00> : vector<64x256xf32>
    %2 = tpu.matmul %0, %1, %cst {dimension_numbers = #tpu.dot_dimension_numbers<[1], [0], [0], [1], [0, 0, 1, 1], [], []>} : vector<64x256xbf16>, vector<256x256xbf16>, vector<64x256xf32> -> vector<64x256xf32>
    %c0_3 = arith.constant 0 : index
    %c0_4 = arith.constant 0 : index
    %3 = vector.load %arg3[%c0_3, %c0_4] : memref<1x256xf32, #tpu.memory_space<vmem>>, vector<1x256xf32>
    %4 = vector.broadcast %3 : vector<1x256xf32> to vector<64x256xf32>
    %5 = arith.addf %2, %4 : vector<64x256xf32>
    %c0_5 = arith.constant 0 : index
    %c0_6 = arith.constant 0 : index
    %6 = vector.load %arg4[%c0_5, %c0_6] : memref<64x256xf32, #tpu.memory_space<vmem>>, vector<64x256xf32>
    tpu.vector_store %arg4[%c0_5, %c0_6], %5 {strides = array<i32>} : memref<64x256xf32, #tpu.memory_space<vmem>>, vector<64x256xf32>,
    return
  }
  func.func @transform_0(%arg0: i32) -> (i32, i32) {
    %c0_i32 = arith.constant 0 : i32
    %c0_i32_0 = arith.constant 0 : i32
    return %arg0, %c0_i32 : i32, i32
  }
  func.func @transform_1(%arg0: i32) -> (i32, i32) {
    %c0_i32 = arith.constant 0 : i32
    %c0_i32_0 = arith.constant 0 : i32
    %c0_i32_1 = arith.constant 0 : i32
    return %c0_i32, %c0_i32_0 : i32, i32
  }
  func.func @transform_2(%arg0: i32) -> (i32, i32) {
    %c0_i32 = arith.constant 0 : i32
    %c0_i32_0 = arith.constant 0 : i32
    %c0_i32_1 = arith.constant 0 : i32
    return %c0_i32, %c0_i32_0 : i32, i32
  }
  func.func @transform_3(%arg0: i32) -> (i32, i32) {
    %c0_i32 = arith.constant 0 : i32
    %c0_i32_0 = arith.constant 0 : i32
    return %arg0, %c0_i32 : i32, i32
  }
}

module attributes {stable_mosaic.version = 11 : i64} {
  func.func @_matmul_bias_kernel(%arg0: i32, %arg1: memref<256x128xbf16, #tpu.memory_space<vmem>>, %arg2: memref<128x256xbf16, #tpu.memory_space<vmem>>, %arg3: memref<1x256xf32, #tpu.memory_space<vmem>>, %arg4: memref<256x256xf32, #tpu.memory_space<vmem>>) attributes {dimension_semantics = [#tpu.dimension_semantics<parallel>], iteration_bounds = array<i64: 1>, scalar_prefetch = 0 : i64, scratch_operands = 0 : i64, tpu.core_type = #tpu.core_type<tc>, window_params = [{transform_indices = @transform_0, window_bounds = array<i64: 256, 128>}, {pipeline_mode = #tpu.pipeline_mode<synchronous>, transform_indices = @transform_1, window_bounds = array<i64: 128, 256>}, {pipeline_mode = #tpu.pipeline_mode<synchronous>, transform_indices = @transform_2, window_bounds = array<i64: 1, 256>}, {transform_indices = @transform_3, window_bounds = array<i64: 256, 256>}]} {
    %c0 = arith.constant 0 : index
    %c0_0 = arith.constant 0 : index
    %0 = vector.load %arg1[%c0, %c0_0] : memref<256x128xbf16, #tpu.memory_space<vmem>>, vector<256x128xbf16>
    %c0_1 = arith.constant 0 : index
    %c0_2 = arith.constant 0 : index
    %1 = vector.load %arg2[%c0_1, %c0_2] : memref<128x256xbf16, #tpu.memory_space<vmem>>, vector<128x256xbf16>
    %cst = arith.constant dense<0.000000e+00> : vector<256x256xf32>
    %2 = tpu.matmul %0, %1, %cst {dimension_numbers = #tpu.dot_dimension_numbers<[1], [0], [0], [1], [0, 0, 1, 1], [], []>} : vector<256x128xbf16>, vector<128x256xbf16>, vector<256x256xf32> -> vector<256x256xf32>
    %c0_3 = arith.constant 0 : index
    %c0_4 = arith.constant 0 : index
    %3 = vector.load %arg3[%c0_3, %c0_4] : memref<1x256xf32, #tpu.memory_space<vmem>>, vector<1x256xf32>
    %4 = vector.broadcast %3 : vector<1x256xf32> to vector<256x256xf32>
    %5 = arith.addf %2, %4 : vector<256x256xf32>
    %c0_5 = arith.constant 0 : index
    %c0_6 = arith.constant 0 : index
    %6 = vector.load %arg4[%c0_5, %c0_6] : memref<256x256xf32, #tpu.memory_space<vmem>>, vector<256x256xf32>
    tpu.vector_store %arg4[%c0_5, %c0_6], %5 {strides = array<i32>} : memref<256x256xf32, #tpu.memory_space<vmem>>, vector<256x256xf32>,
    return
  }
  func.func @transform_0(%arg0: i32) -> (i32, i32) {
    %c0_i32 = arith.constant 0 : i32
    %c0_i32_0 = arith.constant 0 : i32
    return %arg0, %c0_i32 : i32, i32
  }
  func.func @transform_1(%arg0: i32) -> (i32, i32) {
    %c0_i32 = arith.constant 0 : i32
    %c0_i32_0 = arith.constant 0 : i32
    %c0_i32_1 = arith.constant 0 : i32
    return %c0_i32, %c0_i32_0 : i32, i32
  }
  func.func @transform_2(%arg0: i32) -> (i32, i32) {
    %c0_i32 = arith.constant 0 : i32
    %c0_i32_0 = arith.constant 0 : i32
    %c0_i32_1 = arith.constant 0 : i32
    return %c0_i32, %c0_i32_0 : i32, i32
  }
  func.func @transform_3(%arg0: i32) -> (i32, i32) {
    %c0_i32 = arith.constant 0 : i32
    %c0_i32_0 = arith.constant 0 : i32
    return %arg0, %c0_i32 : i32, i32
  }
}

module attributes {stable_mosaic.version = 11 : i64} {
  func.func @_matmul_bias_kernel(%arg0: i32, %arg1: memref<256x64xbf16, #tpu.memory_space<vmem>>, %arg2: memref<64x256xbf16, #tpu.memory_space<vmem>>, %arg3: memref<1x256xf32, #tpu.memory_space<vmem>>, %arg4: memref<256x256xf32, #tpu.memory_space<vmem>>) attributes {dimension_semantics = [#tpu.dimension_semantics<parallel>], iteration_bounds = array<i64: 4>, scalar_prefetch = 0 : i64, scratch_operands = 0 : i64, tpu.core_type = #tpu.core_type<tc>, window_params = [{transform_indices = @transform_0, window_bounds = array<i64: 256, 64>}, {pipeline_mode = #tpu.pipeline_mode<synchronous>, transform_indices = @transform_1, window_bounds = array<i64: 64, 256>}, {pipeline_mode = #tpu.pipeline_mode<synchronous>, transform_indices = @transform_2, window_bounds = array<i64: 1, 256>}, {transform_indices = @transform_3, window_bounds = array<i64: 256, 256>}]} {
    %c0 = arith.constant 0 : index
    %c0_0 = arith.constant 0 : index
    %0 = vector.load %arg1[%c0, %c0_0] : memref<256x64xbf16, #tpu.memory_space<vmem>>, vector<256x64xbf16>
    %c0_1 = arith.constant 0 : index
    %c0_2 = arith.constant 0 : index
    %1 = vector.load %arg2[%c0_1, %c0_2] : memref<64x256xbf16, #tpu.memory_space<vmem>>, vector<64x256xbf16>
    %cst = arith.constant dense<0.000000e+00> : vector<256x256xf32>
    %2 = tpu.matmul %0, %1, %cst {dimension_numbers = #tpu.dot_dimension_numbers<[1], [0], [0], [1], [0, 0, 1, 1], [], []>} : vector<256x64xbf16>, vector<64x256xbf16>, vector<256x256xf32> -> vector<256x256xf32>
    %c0_3 = arith.constant 0 : index
    %c0_4 = arith.constant 0 : index
    %3 = vector.load %arg3[%c0_3, %c0_4] : memref<1x256xf32, #tpu.memory_space<vmem>>, vector<1x256xf32>
    %4 = vector.broadcast %3 : vector<1x256xf32> to vector<256x256xf32>
    %5 = arith.addf %2, %4 : vector<256x256xf32>
    %c0_5 = arith.constant 0 : index
    %c0_6 = arith.constant 0 : index
    %6 = vector.load %arg4[%c0_5, %c0_6] : memref<256x256xf32, #tpu.memory_space<vmem>>, vector<256x256xf32>
    tpu.vector_store %arg4[%c0_5, %c0_6], %5 {strides = array<i32>} : memref<256x256xf32, #tpu.memory_space<vmem>>, vector<256x256xf32>,
    return
  }
  func.func @transform_0(%arg0: i32) -> (i32, i32) {
    %c0_i32 = arith.constant 0 : i32
    %c0_i32_0 = arith.constant 0 : i32
    return %arg0, %c0_i32 : i32, i32
  }
  func.func @transform_1(%arg0: i32) -> (i32, i32) {
    %c0_i32 = arith.constant 0 : i32
    %c0_i32_0 = arith.constant 0 : i32
    %c0_i32_1 = arith.constant 0 : i32
    return %c0_i32, %c0_i32_0 : i32, i32
  }
  func.func @transform_2(%arg0: i32) -> (i32, i32) {
    %c0_i32 = arith.constant 0 : i32
    %c0_i32_0 = arith.constant 0 : i32
    %c0_i32_1 = arith.constant 0 : i32
    return %c0_i32, %c0_i32_0 : i32, i32
  }
  func.func @transform_3(%arg0: i32) -> (i32, i32) {
    %c0_i32 = arith.constant 0 : i32
    %c0_i32_0 = arith.constant 0 : i32
    return %arg0, %c0_i32 : i32, i32
  }
}

module attributes {stable_mosaic.version = 11 : i64} {
  func.func @_pred_head_kernel(%arg0: i32, %arg1: memref<12xi32, #tpu.memory_space<smem>>, %arg2: memref<128x2304xbf16, #tpu.memory_space<vmem>>, %arg3: memref<1x2304x256xbf16, #tpu.memory_space<vmem>>, %arg4: memref<1x1x256xf32, #tpu.memory_space<vmem>>, %arg5: memref<256x128xbf16, #tpu.memory_space<vmem>>, %arg6: memref<1x128xf32, #tpu.memory_space<vmem>>, %arg7: memref<128x128xf32, #tpu.memory_space<vmem>>) attributes {dimension_semantics = [#tpu.dimension_semantics<parallel>], iteration_bounds = array<i64: 12>, scalar_prefetch = 1 : i64, scratch_operands = 0 : i64, tpu.core_type = #tpu.core_type<tc>, window_params = [{transform_indices = @transform_0, window_bounds = array<i64: 128, 2304>}, {transform_indices = @transform_1, window_bounds = array<i64: 1, 2304, 256>}, {transform_indices = @transform_2, window_bounds = array<i64: 1, 1, 256>}, {pipeline_mode = #tpu.pipeline_mode<synchronous>, transform_indices = @transform_3, window_bounds = array<i64: 256, 128>}, {pipeline_mode = #tpu.pipeline_mode<synchronous>, transform_indices = @transform_4, window_bounds = array<i64: 1, 128>}, {transform_indices = @transform_5, window_bounds = array<i64: 128, 128>}]} {
    %c0 = arith.constant 0 : index
    %c0_0 = arith.constant 0 : index
    %0 = vector.load %arg2[%c0, %c0_0] : memref<128x2304xbf16, #tpu.memory_space<vmem>>, vector<128x2304xbf16>
    %c0_1 = arith.constant 0 : index
    %c0_2 = arith.constant 0 : index
    %c0_3 = arith.constant 0 : index
    %1 = vector.load %arg3[%c0_1, %c0_2, %c0_3] : memref<1x2304x256xbf16, #tpu.memory_space<vmem>>, vector<1x2304x256xbf16>
    %2 = vector.shape_cast %1 : vector<1x2304x256xbf16> to vector<2304x256xbf16>
    %cst = arith.constant dense<0.000000e+00> : vector<128x256xf32>
    %3 = tpu.matmul %0, %2, %cst {dimension_numbers = #tpu.dot_dimension_numbers<[1], [0], [0], [1], [0, 0, 1, 1], [], []>} : vector<128x2304xbf16>, vector<2304x256xbf16>, vector<128x256xf32> -> vector<128x256xf32>
    %c0_4 = arith.constant 0 : index
    %c0_5 = arith.constant 0 : index
    %c0_6 = arith.constant 0 : index
    %4 = vector.load %arg4[%c0_4, %c0_5, %c0_6] : memref<1x1x256xf32, #tpu.memory_space<vmem>>, vector<1x1x256xf32>
    %5 = vector.shape_cast %4 : vector<1x1x256xf32> to vector<1x256xf32>
    %6 = vector.broadcast %5 : vector<1x256xf32> to vector<128x256xf32>
    %7 = arith.addf %3, %6 : vector<128x256xf32>
    %8 = arith.truncf %7 : vector<128x256xf32> to vector<128x256xbf16>
    %c0_7 = arith.constant 0 : index
    %c0_8 = arith.constant 0 : index
    %9 = vector.load %arg5[%c0_7, %c0_8] : memref<256x128xbf16, #tpu.memory_space<vmem>>, vector<256x128xbf16>
    %cst_9 = arith.constant dense<0.000000e+00> : vector<128x128xf32>
    %10 = tpu.matmul %8, %9, %cst_9 {dimension_numbers = #tpu.dot_dimension_numbers<[1], [0], [0], [1], [0, 0, 1, 1], [], []>} : vector<128x256xbf16>, vector<256x128xbf16>, vector<128x128xf32> -> vector<128x128xf32>
    %c0_10 = arith.constant 0 : index
    %c0_11 = arith.constant 0 : index
    %11 = vector.load %arg6[%c0_10, %c0_11] : memref<1x128xf32, #tpu.memory_space<vmem>>, vector<1x128xf32>
    %12 = vector.broadcast %11 : vector<1x128xf32> to vector<128x128xf32>
    %13 = arith.addf %10, %12 : vector<128x128xf32>
    %c0_12 = arith.constant 0 : index
    %c0_13 = arith.constant 0 : index
    %14 = vector.load %arg7[%c0_12, %c0_13] : memref<128x128xf32, #tpu.memory_space<vmem>>, vector<128x128xf32>
    tpu.vector_store %arg7[%c0_12, %c0_13], %13 {strides = array<i32>} : memref<128x128xf32, #tpu.memory_space<vmem>>, vector<128x128xf32>,
    return
  }
  func.func @transform_0(%arg0: i32, %arg1: memref<12xi32, #tpu.memory_space<smem>>) -> (i32, i32) {
    %c0_i32 = arith.constant 0 : i32
    %c0_i32_0 = arith.constant 0 : i32
    return %arg0, %c0_i32 : i32, i32
  }
  func.func @transform_1(%arg0: i32, %arg1: memref<12xi32, #tpu.memory_space<smem>>) -> (i32, i32, i32) {
    %0 = arith.index_cast %arg0 : i32 to index
    %1 = memref.load %arg1[%0] : memref<12xi32, #tpu.memory_space<smem>>
    %c0_i32 = arith.constant 0 : i32
    %c0_i32_0 = arith.constant 0 : i32
    %c0_i32_1 = arith.constant 0 : i32
    return %1, %c0_i32, %c0_i32_0 : i32, i32, i32
  }
  func.func @transform_2(%arg0: i32, %arg1: memref<12xi32, #tpu.memory_space<smem>>) -> (i32, i32, i32) {
    %0 = arith.index_cast %arg0 : i32 to index
    %1 = memref.load %arg1[%0] : memref<12xi32, #tpu.memory_space<smem>>
    %c0_i32 = arith.constant 0 : i32
    %c0_i32_0 = arith.constant 0 : i32
    %c0_i32_1 = arith.constant 0 : i32
    return %1, %c0_i32, %c0_i32_0 : i32, i32, i32
  }
  func.func @transform_3(%arg0: i32, %arg1: memref<12xi32, #tpu.memory_space<smem>>) -> (i32, i32) {
    %c0_i32 = arith.constant 0 : i32
    %c0_i32_0 = arith.constant 0 : i32
    %c0_i32_1 = arith.constant 0 : i32
    return %c0_i32, %c0_i32_0 : i32, i32
  }
  func.func @transform_4(%arg0: i32, %arg1: memref<12xi32, #tpu.memory_space<smem>>) -> (i32, i32) {
    %c0_i32 = arith.constant 0 : i32
    %c0_i32_0 = arith.constant 0 : i32
    %c0_i32_1 = arith.constant 0 : i32
    return %c0_i32, %c0_i32_0 : i32, i32
  }
  func.func @transform_5(%arg0: i32, %arg1: memref<12xi32, #tpu.memory_space<smem>>) -> (i32, i32) {
    %c0_i32 = arith.constant 0 : i32
    %c0_i32_0 = arith.constant 0 : i32
    return %arg0, %c0_i32 : i32, i32
  }
}

</mosaic_0001>

<llo_original>
// kernel: point_correspondence_forward.9
$region0: #{point_correspondence_forward.9}
  #allocation0 [shape = 'u32[]', space=smem, size = 0x4, offset = 0x4, fixed_abs, tag = 'smem constant byte address 0x4 - core index']
  #allocation1 [shape = 'u32[144,128]{1,0:T(1,128)}', space=vmem, size = 0x12000, scoped, tag = 'internal scratch']
  %s0 = inlined_call_operand.vmem [shape: bf16[1024,72], index: 0, kind: input, shape index: {}]
  %s1 = inlined_call_operand.vmem [shape: bf16[72,64], index: 1, kind: input, shape index: {}]
  %s2 = inlined_call_operand.vmem [shape: f32[1,64], index: 2, kind: input, shape index: {}]
  %s3 = inlined_call_operand.vmem [shape: f32[1024,64], index: 3, kind: output, shape index: {}]
  %s4 = sld [smem:[#allocation0]]
  $region45: #{point_correspondence_forward.9} parent=0
    _
  %s6 = ssub.s32 1, %s4
  %s7 = scalar_select 0, %s6, %s4
  loop: start=0, step=1, limit=6
  $region2: #{point_correspondence_forward.9} parent=0 // loop_pre_header
    _
  $region3: #{point_correspondence_forward.9} parent=0 // loop_header
    %s9 = sphi 0, %s13
    %p10 = scmp.ge.s32.totalorder %s9, 6
    %s19 = sphi 0, %s21
    %s22 = sphi 0, %s19
    %s23 = sphi 0, %s22
    %s39 = sphi 0, %s23
    %s43 = sphi 0, %s43
    %s45 = sphi 0, %s43
    %s46 = sphi 0, %s45
    %s60 = sphi 0, %s46
    %s64 = sphi 0, %s64
    %s66 = sphi 0, %s64
    %s67 = sphi 0, %s66
    %s81 = sphi 0, %s67
    %s87 = sphi 0, %s89
    %s90 = sphi 0, %s87
    %s91 = sphi 0, %s90
    %s107 = sphi 0, %s91
  $region4: #{point_correspondence_forward.9} parent=0 // loop_header_branch
    %12 = sbr.rel (%p10) target = $region8
  $region5: #{point_correspondence_forward.9} parent=0 // loop_body
    %s14 = ssub.s32 %s9, 1
    %s15 = ssub.s32 %s9, 2
    %s16 = sadd.s32 %s9, 1
    %s17 = ssub.s32 %s9, %s16
    %p18 = scmp.eq.s32.totalorder %s17, 0
    %s20 = sadd.s32 %s19, 1
    %s21 = scalar_select %p18, %s19, %s20
    %p24 = pneg %p18
    %p25 = scmp.eq.s32.totalorder %s9, 3
    %p26 = por %p24, %p25
    %p27 = scmp.ne.s32.totalorder %s19, %s22
    %p28 = scmp.eq.s32.totalorder %s9, 0
    %p29 = por %p27, %p28
    %p30 = scmp.ne.s32.totalorder %s19, %s22
    %p31 = scmp.eq.s32.totalorder %s14, 3
    %p32 = por %p30, %p31
    %p33 = scmp.ne.s32.totalorder %s22, %s23
    %p34 = scmp.eq.s32.totalorder %s14, 0
    %p35 = por %p33, %p34
    %p36 = scmp.ne.s32.totalorder %s22, %s23
    %p37 = scmp.eq.s32.totalorder %s15, 3
    %p38 = por %p36, %p37
    %p40 = scmp.ne.s32.totalorder %s23, %s39
    %p41 = scmp.eq.s32.totalorder %s15, 0
    %p42 = por %p40, %p41
    %s44 = sadd.s32 %s43, 1
    %p47 = scmp.eq.s32.totalorder %s9, 3
    %p48 = scmp.ne.s32.totalorder %s43, %s45
    %p49 = scmp.eq.s32.totalorder %s9, 0
    %p50 = por %p48, %p49
    %p51 = scmp.ne.s32.totalorder %s43, %s45
    %p52 = scmp.eq.s32.totalorder %s14, 3
    %p53 = por %p51, %p52
    %p54 = scmp.ne.s32.totalorder %s45, %s46
    %p55 = scmp.eq.s32.totalorder %s14, 0
    %p56 = por %p54, %p55
    %p57 = scmp.ne.s32.totalorder %s45, %s46
    %p58 = scmp.eq.s32.totalorder %s15, 3
    %p59 = por %p57, %p58
    %p61 = scmp.ne.s32.totalorder %s46, %s60
    %p62 = scmp.eq.s32.totalorder %s15, 0
    %p63 = por %p61, %p62
    %s65 = sadd.s32 %s64, 1
    %p68 = scmp.eq.s32.totalorder %s9, 3
    %p69 = scmp.ne.s32.totalorder %s64, %s66
    %p70 = scmp.eq.s32.totalorder %s9, 0
    %p71 = por %p69, %p70
    %p72 = scmp.ne.s32.totalorder %s64, %s66
    %p73 = scmp.eq.s32.totalorder %s14, 3
    %p74 = por %p72, %p73
    %p75 = scmp.ne.s32.totalorder %s66, %s67
    %p76 = scmp.eq.s32.totalorder %s14, 0
    %p77 = por %p75, %p76
    %p78 = scmp.ne.s32.totalorder %s66, %s67
    %p79 = scmp.eq.s32.totalorder %s15, 3
    %p80 = por %p78, %p79
    %p82 = scmp.ne.s32.totalorder %s67, %s81
    %p83 = scmp.eq.s32.totalorder %s15, 0
    %p84 = por %p82, %p83
    %s85 = ssub.s32 %s9, %s16
    %p86 = scmp.eq.s32.totalorder %s85, 0
    %s88 = sadd.s32 %s87, 1
    %s89 = scalar_select %p86, %s87, %s88
    %p92 = pneg %p86
    %p93 = scmp.eq.s32.totalorder %s9, 3
    %p94 = por %p92, %p93
    %p95 = scmp.ne.s32.totalorder %s87, %s90
    %p96 = scmp.eq.s32.totalorder %s9, 0
    %p97 = por %p95, %p96
    %p98 = scmp.ne.s32.totalorder %s87, %s90
    %p99 = scmp.eq.s32.totalorder %s14, 3
    %p100 = por %p98, %p99
    %p101 = scmp.ne.s32.totalorder %s90, %s91
    %p102 = scmp.eq.s32.totalorder %s14, 0
    %p103 = por %p101, %p102
    %p104 = scmp.ne.s32.totalorder %s90, %s91
    %p105 = scmp.eq.s32.totalorder %s15, 3
    %p106 = por %p104, %p105
    %p108 = scmp.ne.s32.totalorder %s91, %s107
    %p109 = scmp.eq.s32.totalorder %s15, 0
    %p110 = por %p108, %p109
    %p111 = scmp.le.s32.totalorder 1, %s9
    %p112 = scmp.lt.s32.totalorder %s9, 5
    %p113 = pnand %p111, %p112
    %p114 = pneg %p113
    // Predicated region
    $region9: #{point_correspondence_forward.9} parent=5 // pred_check
      _
    $region10: #{point_correspondence_forward.9} parent=5 // pred_check_branch
      %116 = sbr.rel (%p113) target = $region12
    $region11: #{point_correspondence_forward.9} parent=5 // pred_region
      %s117 = ssub.s32 %s9, 1
      // Predicated region
      $region13: #{point_correspondence_forward.9} parent=11 // pred_check
        %p118 = pneg %p56
      $region14: #{point_correspondence_forward.9} parent=11 // pred_check_branch
        %120 = sbr.rel (%p118) target = $region16
      $region15: #{point_correspondence_forward.9} parent=11 // pred_region
        _
      $region16: #{point_correspondence_forward.9} parent=11 // pred_fallthru
        _
      // Predicated region
      $region17: #{point_correspondence_forward.9} parent=11 // pred_check
        %p121 = pneg %p77
      $region18: #{point_correspondence_forward.9} parent=11 // pred_check_branch
        %123 = sbr.rel (%p121) target = $region20
      $region19: #{point_correspondence_forward.9} parent=11 // pred_region
        _
      $region20: #{point_correspondence_forward.9} parent=11 // pred_fallthru
        _
    $region12: #{point_correspondence_forward.9} parent=5 // pred_fallthru
      _
    %p124 = scmp.lt.s32.totalorder %s9, 4
    // Predicated region
    $region21: #{point_correspondence_forward.9} parent=5 // pred_check
      %p125 = pneg %p124
    $region22: #{point_correspondence_forward.9} parent=5 // pred_check_branch
      %127 = sbr.rel (%p125) target = $region24
    $region23: #{point_correspondence_forward.9} parent=5 // pred_region
      // Predicated region
      $region25: #{point_correspondence_forward.9} parent=23 // pred_check
        %p128 = pneg %p29
      $region26: #{point_correspondence_forward.9} parent=23 // pred_check_branch
        %130 = sbr.rel (%p128) target = $region28
      $region27: #{point_correspondence_forward.9} parent=23 // pred_region
        %s131 = smul.u32 32, %s9
        %p132 = scmp.lt.s32.totalorder %s131, 127
        %s133 = scalar_select %p132, %s131, 127
        %s134 = smul.addr %s133, 4
        %s135 = scalar_lea.vmem %s0, %s134
        %s136 = smul.u32 32, %s9
      $region28: #{point_correspondence_forward.9} parent=23 // pred_fallthru
        _
    $region24: #{point_correspondence_forward.9} parent=5 // pred_fallthru
      _
    %p137 = scmp.le.s32.totalorder 1, %s9
    %p138 = scmp.lt.s32.totalorder %s9, 5
    %p139 = pnand %p137, %p138
    %p140 = pneg %p139
    // Predicated region
    $region29: #{point_correspondence_forward.9} parent=5 // pred_check
      _
    $region30: #{point_correspondence_forward.9} parent=5 // pred_check_branch
      %142 = sbr.rel (%p139) target = $region32
    $region31: #{point_correspondence_forward.9} parent=5 // pred_region
      %s143 = ssub.s32 %s9, 1
      %s144 = smul.u32 32, %s14
      %p145 = scmp.lt.s32.totalorder %s144, 127
      %s146 = scalar_select %p145, %s144, 127
      %s147 = smul.addr %s146, 4
      %s148 = scalar_lea.vmem %s0, %s147
      %p149 = pneg %p35
      %p150 = pneg %p32
      %p151 = pneg %p56
      %p152 = pneg %p53
      %p153 = pneg %p77
      %p154 = pneg %p74
      %p155 = pneg %p103
      %p156 = pneg %p100
      %s157 = smul.u32 32, %s14
      %p158 = scmp.lt.s32.totalorder %s157, 127
      %s159 = scalar_select %p158, %s157, 127
      %s160 = smul.addr %s159, 8
      %s161 = scalar_lea.vmem %s3, %s160
      %s162 = smul.u32 32, %s14
      %p163 = scmp.lt.s32.totalorder %s162, 127
      %s164 = scalar_select %p163, %s162, 127
      %s165 = smul.addr %s164, 4
      %s166 = scalar_lea.vmem %s0, %s165
      %s167 = smul.u32 32, %s14
      %s168 = smul.u32 32, %s14
      %p169 = scmp.lt.s32.totalorder %s168, 127
      %s170 = scalar_select %p169, %s168, 127
      %s171 = smul.addr %s170, 8
      %s172 = scalar_lea.vmem %s3, %s171
      %s173 = smul.u32 32, %s14
      %v175 = vld [vmem:[%s166] sm:$0xf]
      %v176 = vld [vmem:[%s166 + $0x4] sm:$0xf]
      %v177 = vld [vmem:[%s166 + $0x8] sm:$0xf]
      %v178 = vld [vmem:[%s166 + $0xc] sm:$0xf]
      %v179 = vld [vmem:[%s166 + $0x10] sm:$0xf]
      %v180 = vld [vmem:[%s166 + $0x14] sm:$0xf]
      %v181 = vld [vmem:[%s166 + $0x18] sm:$0xf]
      %v182 = vld [vmem:[%s166 + $0x1c] sm:$0xf]
      %v183 = vld [vmem:[%s166 + $0x20] sm:$0xf]
      %v184 = vld [vmem:[%s166 + $0x24] sm:$0xf]
      %v185 = vld [vmem:[%s166 + $0x28] sm:$0xf]
      %v186 = vld [vmem:[%s166 + $0x2c] sm:$0xf]
      %v187 = vld [vmem:[%s166 + $0x30] sm:$0xf]
      %v188 = vld [vmem:[%s166 + $0x34] sm:$0xf]
      %v189 = vld [vmem:[%s166 + $0x38] sm:$0xf]
      %v190 = vld [vmem:[%s166 + $0x3c] sm:$0xf]
      %v191 = vld [vmem:[%s166 + $0x40] sm:$0xf]
      %v192 = vld [vmem:[%s166 + $0x44] sm:$0xf]
      %v193 = vld [vmem:[%s166 + $0x48] sm:$0xf]
      %v194 = vld [vmem:[%s166 + $0x4c] sm:$0xf]
      %v195 = vld [vmem:[%s166 + $0x50] sm:$0xf]
      %v196 = vld [vmem:[%s166 + $0x54] sm:$0xf]
      %v197 = vld [vmem:[%s166 + $0x58] sm:$0xf]
      %v198 = vld [vmem:[%s166 + $0x5c] sm:$0xf]
      %v199 = vld [vmem:[%s166 + $0x60] sm:$0xf]
      %v200 = vld [vmem:[%s166 + $0x64] sm:$0xf]
      %v201 = vld [vmem:[%s166 + $0x68] sm:$0xf]
      %v202 = vld [vmem:[%s166 + $0x6c] sm:$0xf]
      %v203 = vld [vmem:[%s166 + $0x70] sm:$0xf]
      %v204 = vld [vmem:[%s166 + $0x74] sm:$0xf]
      %v205 = vld [vmem:[%s166 + $0x78] sm:$0xf]
      %v206 = vld [vmem:[%s166 + $0x7c] sm:$0xf]
      %v207 = vld [vmem:[%s1] sm:$0xf]
      %v208 = vld [vmem:[%s1 + $0x4] sm:$0xf]
      %v209 = vld [vmem:[%s1 + $0x8] sm:$0xf]
      %v210 = vld [vmem:[%s1 + $0xc] sm:$0xf]
      %v211 = vld [vmem:[%s1 + $0x10] sm:$0xf]
      %v212 = vld [vmem:[%s1 + $0x14] sm:$0xf]
      %v213 = vld [vmem:[%s1 + $0x18] sm:$0xf]
      %v214 = vld [vmem:[%s1 + $0x1c] sm:$0xf]
      %v215 = vld [vmem:[%s1 + $0x20] sm:$0xf]
      %v216 = vld [vmem:[%s2] sm:$0x1]
      %v218 = vlaneseq
      %v219 = vshrl.u32 %v218, 7
      %v220 = vsub.s32 0, %v219
      %v221 = vrot.slane %v216, %v220
      %v255 = vunpack.c.l.b16 %v175
      %v256 = vunpack.c.l.b16 %v176
      %v257 = vunpack.c.l.b16 %v177
      %v258 = vunpack.c.l.b16 %v178
      %v259 = vunpack.c.l.b16 %v179
      %v260 = vunpack.c.l.b16 %v180
      %v261 = vunpack.c.l.b16 %v181
      %v262 = vunpack.c.l.b16 %v182
      %v263 = vunpack.c.l.b16 %v183
      %v264 = vunpack.c.l.b16 %v184
      %v265 = vunpack.c.l.b16 %v185
      %v266 = vunpack.c.l.b16 %v186
      %v267 = vunpack.c.l.b16 %v187
      %v268 = vunpack.c.l.b16 %v188
      %v269 = vunpack.c.l.b16 %v189
      %v270 = vunpack.c.l.b16 %v190
      %v271 = vunpack.c.l.b16 %v191
      %v272 = vunpack.c.l.b16 %v192
      %v273 = vunpack.c.l.b16 %v193
      %v274 = vunpack.c.l.b16 %v194
      %v275 = vunpack.c.l.b16 %v195
      %v276 = vunpack.c.l.b16 %v196
      %v277 = vunpack.c.l.b16 %v197
      %v278 = vunpack.c.l.b16 %v198
      %v279 = vunpack.c.l.b16 %v199
      %v280 = vunpack.c.l.b16 %v200
      %v281 = vunpack.c.l.b16 %v201
      %v282 = vunpack.c.l.b16 %v202
      %v283 = vunpack.c.l.b16 %v203
      %v284 = vunpack.c.l.b16 %v204
      %v285 = vunpack.c.l.b16 %v205
      %v286 = vunpack.c.l.b16 %v206
      %v287 = vpack.c.b16 %v256, %v255
      %v288 = vpack.c.b16 %v258, %v257
      %v289 = vpack.c.b16 %v260, %v259
      %v290 = vpack.c.b16 %v262, %v261
      %v291 = vpack.c.b16 %v264, %v263
      %v292 = vpack.c.b16 %v266, %v265
      %v293 = vpack.c.b16 %v268, %v267
      %v294 = vpack.c.b16 %v270, %v269
      %v295 = vpack.c.b16 %v272, %v271
      %v296 = vpack.c.b16 %v274, %v273
      %v297 = vpack.c.b16 %v276, %v275
      %v298 = vpack.c.b16 %v278, %v277
      %v299 = vpack.c.b16 %v280, %v279
      %v300 = vpack.c.b16 %v282, %v281
      %v301 = vpack.c.b16 %v284, %v283
      %v302 = vpack.c.b16 %v286, %v285
      %v312 = vunpack.c.l.b16 %v207
      %v313 = vunpack.c.l.b16 %v208
      %v314 = vunpack.c.l.b16 %v209
      %v315 = vunpack.c.l.b16 %v210
      %v316 = vunpack.c.l.b16 %v211
      %v317 = vunpack.c.l.b16 %v212
      %v318 = vunpack.c.l.b16 %v213
      %v319 = vunpack.c.l.b16 %v214
      %v320 = vunpack.c.l.b16 %v215
      %v321 = vpack.c.b16 %v313, %v312
      %v322 = vpack.c.b16 %v315, %v314
      %v323 = vpack.c.b16 %v317, %v316
      %v324 = vpack.c.b16 %v319, %v318
      %v325 = vpack.c.b16 %v320, %v320
      %vm330 = vcmask 588800
      %v332 = vsel %vm330, %v287, 0
      %v335 = vsel %vm330, %v288, 0
      %v338 = vsel %vm330, %v289, 0
      %v341 = vsel %vm330, %v290, 0
      %v344 = vsel %vm330, %v291, 0
      %v347 = vsel %vm330, %v292, 0
      %v350 = vsel %vm330, %v293, 0
      %v353 = vsel %vm330, %v294, 0
      %v356 = vsel %vm330, %v295, 0
      %v359 = vsel %vm330, %v296, 0
      %v362 = vsel %vm330, %v297, 0
      %v365 = vsel %vm330, %v298, 0
      %v368 = vsel %vm330, %v299, 0
      %v371 = vsel %vm330, %v300, 0
      %v374 = vsel %vm330, %v301, 0
      %v377 = vsel %vm330, %v302, 0
      %vm379 = vcmask 1043456
      %v381 = vsel %vm379, %v325, 0
      %383 = vmatprep.subr.bf16.mxu0 0
      %384 = vmatpush1.bf16.msra.mxu0 0
      %385 = vmatprep.subr.bf16.mxu0 0
      %386 = vmatpush1.bf16.msra.mxu0 0
      %387 = vmatprep.subr.bf16.mxu0 0
      %388 = vmatpush1.bf16.msra.mxu0 0
      %389 = vmatprep.subr.bf16.mxu0 0
      %390 = vmatpush1.bf16.msra.mxu0 %v381
      %391 = vmatprep.subr.bf16.mxu0 0
      %392 = vmatpush1.bf16.msra.mxu0 %v324
      %393 = vmatprep.subr.bf16.mxu0 0
      %394 = vmatpush1.bf16.msra.mxu0 %v323
      %395 = vmatprep.subr.bf16.mxu0 0
      %396 = vmatpush1.bf16.msra.mxu0 %v322
      %397 = vmatprep.subr.bf16.mxu0 0
      %398 = vmatpush1.bf16.msra.mxu0 %v321
      %399 = vmatprep.subr.bf16.mxu0 0
      %400 = vmatpush2.bf16.msra.mxu0 0
      %401 = vmatprep.subr.bf16.mxu0 0
      %402 = vmatpush2.bf16.msra.mxu0 0
      %403 = vmatprep.subr.bf16.mxu0 0
      %404 = vmatpush2.bf16.msra.mxu0 0
      %405 = vmatprep.subr.bf16.mxu0 0
      %406 = vmatpush2.bf16.msra.mxu0 0
      %407 = vmatprep.subr.bf16.mxu0 0
      %408 = vmatpush2.bf16.msra.mxu0 0
      %409 = vmatprep.subr.bf16.mxu0 0
      %410 = vmatpush2.bf16.msra.mxu0 0
      %411 = vmatprep.subr.bf16.mxu0 0
      %412 = vmatpush2.bf16.msra.mxu0 0
      %413 = vmatprep.subr.bf16.mxu0 0
      %414 = vmatpush2.bf16.msra.mxu0 0
      %415 = vmatprep.mubr.bf16.mxu0 0
      %416 = vmatmul.mubr.bf16.gmra.mxu0 %v332
      %v417 = vpop.f32.mrf.mxu0
      %v418 = vadd.f32 %v221, %v417
      %v419 = vpop.f32.mrf.mxu0
      %v420 = vpop.f32.mrf.mxu0
      %v421 = vadd.f32 %v221, %v420
      %v422 = vpop.f32.mrf.mxu0
      %423 = vmatprep.mubr.bf16.mxu0 0
      %424 = vmatmul.mubr.bf16.gmra.mxu0 %v335
      %v425 = vpop.f32.mrf.mxu0
      %v426 = vadd.f32 %v221, %v425
      %v427 = vpop.f32.mrf.mxu0
      %v428 = vpop.f32.mrf.mxu0
      %v429 = vadd.f32 %v221, %v428
      %v430 = vpop.f32.mrf.mxu0
      %431 = vmatprep.mubr.bf16.mxu0 0
      %432 = vmatmul.mubr.bf16.gmra.mxu0 %v338
      %v433 = vpop.f32.mrf.mxu0
      %v434 = vadd.f32 %v221, %v433
      %v435 = vpop.f32.mrf.mxu0
      %v436 = vpop.f32.mrf.mxu0
      %v437 = vadd.f32 %v221, %v436
      %v438 = vpop.f32.mrf.mxu0
      %439 = vmatprep.mubr.bf16.mxu0 0
      %440 = vmatmul.mubr.bf16.gmra.mxu0 %v341
      %v441 = vpop.f32.mrf.mxu0
      %v442 = vadd.f32 %v221, %v441
      %v443 = vpop.f32.mrf.mxu0
      %v444 = vpop.f32.mrf.mxu0
      %v445 = vadd.f32 %v221, %v444
      %v446 = vpop.f32.mrf.mxu0
      %447 = vmatprep.mubr.bf16.mxu0 0
      %448 = vmatmul.mubr.bf16.gmra.mxu0 %v344
      %v449 = vpop.f32.mrf.mxu0
      %v450 = vadd.f32 %v221, %v449
      %v451 = vpop.f32.mrf.mxu0
      %v452 = vpop.f32.mrf.mxu0
      %v453 = vadd.f32 %v221, %v452
      %v454 = vpop.f32.mrf.mxu0
      %455 = vmatprep.mubr.bf16.mxu0 0
      %456 = vmatmul.mubr.bf16.gmra.mxu0 %v347
      %v457 = vpop.f32.mrf.mxu0
      %v458 = vadd.f32 %v221, %v457
      %v459 = vpop.f32.mrf.mxu0
      %v460 = vpop.f32.mrf.mxu0
      %v461 = vadd.f32 %v221, %v460
      %v462 = vpop.f32.mrf.mxu0
      %463 = vmatprep.mubr.bf16.mxu0 0
      %464 = vmatmul.mubr.bf16.gmra.mxu0 %v350
      %v465 = vpop.f32.mrf.mxu0
      %v466 = vadd.f32 %v221, %v465
      %v467 = vpop.f32.mrf.mxu0
      %v468 = vpop.f32.mrf.mxu0
      %v469 = vadd.f32 %v221, %v468
      %v470 = vpop.f32.mrf.mxu0
      %471 = vmatprep.mubr.bf16.mxu0 0
      %472 = vmatmul.mubr.bf16.gmra.mxu0 %v353
      %v473 = vpop.f32.mrf.mxu0
      %v474 = vadd.f32 %v221, %v473
      %v475 = vpop.f32.mrf.mxu0
      %v476 = vpop.f32.mrf.mxu0
      %v477 = vadd.f32 %v221, %v476
      %v478 = vpop.f32.mrf.mxu0
      %479 = vmatprep.mubr.bf16.mxu0 0
      %480 = vmatmul.mubr.bf16.gmra.mxu0 %v356
      %v481 = vpop.f32.mrf.mxu0
      %v482 = vadd.f32 %v221, %v481
      %v483 = vpop.f32.mrf.mxu0
      %v484 = vpop.f32.mrf.mxu0
      %v485 = vadd.f32 %v221, %v484
      %v486 = vpop.f32.mrf.mxu0
      %487 = vmatprep.mubr.bf16.mxu0 0
      %488 = vmatmul.mubr.bf16.gmra.mxu0 %v359
      %v489 = vpop.f32.mrf.mxu0
      %v490 = vadd.f32 %v221, %v489
      %v491 = vpop.f32.mrf.mxu0
      %v492 = vpop.f32.mrf.mxu0
      %v493 = vadd.f32 %v221, %v492
      %v494 = vpop.f32.mrf.mxu0
      %495 = vmatprep.mubr.bf16.mxu0 0
      %496 = vmatmul.mubr.bf16.gmra.mxu0 %v362
      %v497 = vpop.f32.mrf.mxu0
      %v498 = vadd.f32 %v221, %v497
      %v499 = vpop.f32.mrf.mxu0
      %v500 = vpop.f32.mrf.mxu0
      %v501 = vadd.f32 %v221, %v500
      %v502 = vpop.f32.mrf.mxu0
      %503 = vmatprep.mubr.bf16.mxu0 0
      %504 = vmatmul.mubr.bf16.gmra.mxu0 %v365
      %v505 = vpop.f32.mrf.mxu0
      %v506 = vadd.f32 %v221, %v505
      %v507 = vpop.f32.mrf.mxu0
      %v508 = vpop.f32.mrf.mxu0
      %v509 = vadd.f32 %v221, %v508
      %v510 = vpop.f32.mrf.mxu0
      %511 = vmatprep.mubr.bf16.mxu0 0
      %512 = vmatmul.mubr.bf16.gmra.mxu0 %v368
      %v513 = vpop.f32.mrf.mxu0
      %v514 = vadd.f32 %v221, %v513
      %v515 = vpop.f32.mrf.mxu0
      %v516 = vpop.f32.mrf.mxu0
      %v517 = vadd.f32 %v221, %v516
      %v518 = vpop.f32.mrf.mxu0
      %519 = vmatprep.mubr.bf16.mxu0 0
      %520 = vmatmul.mubr.bf16.gmra.mxu0 %v371
      %v521 = vpop.f32.mrf.mxu0
      %v522 = vadd.f32 %v221, %v521
      %v523 = vpop.f32.mrf.mxu0
      %v524 = vpop.f32.mrf.mxu0
      %v525 = vadd.f32 %v221, %v524
      %v526 = vpop.f32.mrf.mxu0
      %527 = vmatprep.mubr.bf16.mxu0 0
      %528 = vmatmul.mubr.bf16.gmra.mxu0 %v374
      %v529 = vpop.f32.mrf.mxu0
      %v530 = vadd.f32 %v221, %v529
      %v531 = vpop.f32.mrf.mxu0
      %v532 = vpop.f32.mrf.mxu0
      %v533 = vadd.f32 %v221, %v532
      %v534 = vpop.f32.mrf.mxu0
      %535 = vmatprep.mubr.bf16.mxu0 0
      %536 = vmatmul.mubr.bf16.gmra.mxu0 %v377
      %v537 = vpop.f32.mrf.mxu0
      %v538 = vadd.f32 %v221, %v537
      %v539 = vpop.f32.mrf.mxu0
      %v540 = vpop.f32.mrf.mxu0
      %v541 = vadd.f32 %v221, %v540
      %v542 = vpop.f32.mrf.mxu0
      %543 = vdwg.mxu0
      %v544 = vmax.f32 %v418, 0.0
      %v545 = vmax.f32 %v421, 0.0
      %v546 = vmax.f32 %v426, 0.0
      %v547 = vmax.f32 %v429, 0.0
      %v548 = vmax.f32 %v434, 0.0
      %v549 = vmax.f32 %v437, 0.0
      %v550 = vmax.f32 %v442, 0.0
      %v551 = vmax.f32 %v445, 0.0
      %v552 = vmax.f32 %v450, 0.0
      %v553 = vmax.f32 %v453, 0.0
      %v554 = vmax.f32 %v458, 0.0
      %v555 = vmax.f32 %v461, 0.0
      %v556 = vmax.f32 %v466, 0.0
      %v557 = vmax.f32 %v469, 0.0
      %v558 = vmax.f32 %v474, 0.0
      %v559 = vmax.f32 %v477, 0.0
      %v560 = vmax.f32 %v482, 0.0
      %v561 = vmax.f32 %v485, 0.0
      %v562 = vmax.f32 %v490, 0.0
      %v563 = vmax.f32 %v493, 0.0
      %v564 = vmax.f32 %v498, 0.0
      %v565 = vmax.f32 %v501, 0.0
      %v566 = vmax.f32 %v506, 0.0
      %v567 = vmax.f32 %v509, 0.0
      %v568 = vmax.f32 %v514, 0.0
      %v569 = vmax.f32 %v517, 0.0
      %v570 = vmax.f32 %v522, 0.0
      %v571 = vmax.f32 %v525, 0.0
      %v572 = vmax.f32 %v530, 0.0
      %v573 = vmax.f32 %v533, 0.0
      %v574 = vmax.f32 %v538, 0.0
      %v575 = vmax.f32 %v541, 0.0
      %vm576 = vcmask 523264
      %577 = vst.msk [vmem:[%s172] sm:$0xff] %vm576, %v544
      %578 = vst.msk [vmem:[%s172 + $0x8] sm:$0xff] %vm576, %v545
      %579 = vst.msk [vmem:[%s172 + $0x10] sm:$0xff] %vm576, %v546
      %580 = vst.msk [vmem:[%s172 + $0x18] sm:$0xff] %vm576, %v547
      %581 = vst.msk [vmem:[%s172 + $0x20] sm:$0xff] %vm576, %v548
      %582 = vst.msk [vmem:[%s172 + $0x28] sm:$0xff] %vm576, %v549
      %583 = vst.msk [vmem:[%s172 + $0x30] sm:$0xff] %vm576, %v550
      %584 = vst.msk [vmem:[%s172 + $0x38] sm:$0xff] %vm576, %v551
      %585 = vst.msk [vmem:[%s172 + $0x40] sm:$0xff] %vm576, %v552
      %586 = vst.msk [vmem:[%s172 + $0x48] sm:$0xff] %vm576, %v553
      %587 = vst.msk [vmem:[%s172 + $0x50] sm:$0xff] %vm576, %v554
      %588 = vst.msk [vmem:[%s172 + $0x58] sm:$0xff] %vm576, %v555
      %589 = vst.msk [vmem:[%s172 + $0x60] sm:$0xff] %vm576, %v556
      %590 = vst.msk [vmem:[%s172 + $0x68] sm:$0xff] %vm576, %v557
      %591 = vst.msk [vmem:[%s172 + $0x70] sm:$0xff] %vm576, %v558
      %592 = vst.msk [vmem:[%s172 + $0x78] sm:$0xff] %vm576, %v559
      %593 = vst.msk [vmem:[%s172 + $0x80] sm:$0xff] %vm576, %v560
      %594 = vst.msk [vmem:[%s172 + $0x88] sm:$0xff] %vm576, %v561
      %595 = vst.msk [vmem:[%s172 + $0x90] sm:$0xff] %vm576, %v562
      %596 = vst.msk [vmem:[%s172 + $0x98] sm:$0xff] %vm576, %v563
      %597 = vst.msk [vmem:[%s172 + $0xa0] sm:$0xff] %vm576, %v564
      %598 = vst.msk [vmem:[%s172 + $0xa8] sm:$0xff] %vm576, %v565
      %599 = vst.msk [vmem:[%s172 + $0xb0] sm:$0xff] %vm576, %v566
      %600 = vst.msk [vmem:[%s172 + $0xb8] sm:$0xff] %vm576, %v567
      %601 = vst.msk [vmem:[%s172 + $0xc0] sm:$0xff] %vm576, %v568
      %602 = vst.msk [vmem:[%s172 + $0xc8] sm:$0xff] %vm576, %v569
      %603 = vst.msk [vmem:[%s172 + $0xd0] sm:$0xff] %vm576, %v570
      %604 = vst.msk [vmem:[%s172 + $0xd8] sm:$0xff] %vm576, %v571
      %605 = vst.msk [vmem:[%s172 + $0xe0] sm:$0xff] %vm576, %v572
      %606 = vst.msk [vmem:[%s172 + $0xe8] sm:$0xff] %vm576, %v573
      %607 = vst.msk [vmem:[%s172 + $0xf0] sm:$0xff] %vm576, %v574
      %608 = vst.msk [vmem:[%s172 + $0xf8] sm:$0xff] %vm576, %v575
      %s609 = smul.u32 32, %s14
      %p610 = scmp.lt.s32.totalorder %s609, 127
      %s611 = scalar_select %p610, %s609, 127
      %s612 = smul.addr %s611, 8
      %s613 = scalar_lea.vmem %s3, %s612
      // Predicated region
      $region33: #{point_correspondence_forward.9} parent=31 // pred_check
        %p614 = pneg %p100
      $region34: #{point_correspondence_forward.9} parent=31 // pred_check_branch
        %616 = sbr.rel (%p614) target = $region36
      $region35: #{point_correspondence_forward.9} parent=31 // pred_region
        %s617 = smul.u32 32, %s14
      $region36: #{point_correspondence_forward.9} parent=31 // pred_fallthru
        _
    $region32: #{point_correspondence_forward.9} parent=5 // pred_fallthru
      _
    %p618 = scmp.le.s32.totalorder 2, %s9
    // Predicated region
    $region37: #{point_correspondence_forward.9} parent=5 // pred_check
      %p619 = pneg %p618
    $region38: #{point_correspondence_forward.9} parent=5 // pred_check_branch
      %621 = sbr.rel (%p619) target = $region40
    $region39: #{point_correspondence_forward.9} parent=5 // pred_region
      %s622 = ssub.s32 %s9, 2
      // Predicated region
      $region41: #{point_correspondence_forward.9} parent=39 // pred_check
        %p623 = pneg %p106
      $region42: #{point_correspondence_forward.9} parent=39 // pred_check_branch
        %625 = sbr.rel (%p623) target = $region44
      $region43: #{point_correspondence_forward.9} parent=39 // pred_region
        %s626 = smul.u32 32, %s15
        %p627 = scmp.lt.s32.totalorder %s626, 127
        %s628 = scalar_select %p627, %s626, 127
        %s629 = smul.addr %s628, 8
        %s630 = scalar_lea.vmem %s3, %s629
      $region44: #{point_correspondence_forward.9} parent=39 // pred_fallthru
        _
    $region40: #{point_correspondence_forward.9} parent=5 // pred_fallthru
      _
  $region6: #{point_correspondence_forward.9} parent=0 // loop_footer
    %s13 = sadd.s32 1, %s9
  $region7: #{point_correspondence_forward.9} parent=0 // loop_footer_branch
    %8 = sbr.rel target = $region3
  $region8: #{point_correspondence_forward.9} parent=0 // loop_exit
    _

// kernel: point_correspondence_forward.10
$region0: #{point_correspondence_forward.10}
  #allocation0 [shape = 'u32[]', space=smem, size = 0x4, offset = 0x4, fixed_abs, tag = 'smem constant byte address 0x4 - core index']
  #allocation1 [shape = 'u32[144,128]{1,0:T(1,128)}', space=vmem, size = 0x12000, scoped, tag = 'internal scratch']
  %s0 = inlined_call_operand.vmem [shape: bf16[256,576], index: 0, kind: input, shape index: {}]
  %s1 = inlined_call_operand.vmem [shape: bf16[576,128], index: 1, kind: input, shape index: {}]
  %s2 = inlined_call_operand.vmem [shape: f32[1,128], index: 2, kind: input, shape index: {}]
  %s3 = inlined_call_operand.vmem [shape: f32[256,128], index: 3, kind: output, shape index: {}]
  %s4 = sld [smem:[#allocation0]]
  $region22: #{point_correspondence_forward.10} parent=0
    _
  %s6 = ssub.s32 1, %s4
  %s7 = scalar_select 0, %s6, %s4
  // Predicated region
  $region2: #{point_correspondence_forward.10} parent=0 // pred_check
    _
  $region3: #{point_correspondence_forward.10} parent=0 // pred_check_branch
    %9 = sbr.rel (0) target = $region5
  $region4: #{point_correspondence_forward.10} parent=0 // pred_region
    _
  $region5: #{point_correspondence_forward.10} parent=0 // pred_fallthru
    _
  // Predicated region
  $region6: #{point_correspondence_forward.10} parent=0 // pred_check
    _
  $region7: #{point_correspondence_forward.10} parent=0 // pred_check_branch
    %11 = sbr.rel (0) target = $region9
  $region8: #{point_correspondence_forward.10} parent=0 // pred_region
    _
  $region9: #{point_correspondence_forward.10} parent=0 // pred_fallthru
    _
  // Predicated region
  $region10: #{point_correspondence_forward.10} parent=0 // pred_check
    _
  $region11: #{point_correspondence_forward.10} parent=0 // pred_check_branch
    %13 = sbr.rel (0) target = $region13
  $region12: #{point_correspondence_forward.10} parent=0 // pred_region
    _
  $region13: #{point_correspondence_forward.10} parent=0 // pred_fallthru
    _
  %v15 = vld [vmem:[%s0] sm:$0xff]
  %v16 = vld [vmem:[%s0 + $0x8] sm:$0xff]
  %v17 = vld [vmem:[%s0 + $0x10] sm:$0xf]
  %v18 = vld [vmem:[%s0 + $0x14] sm:$0xff]
  %v19 = vld [vmem:[%s0 + $0x1c] sm:$0xff]
  %v20 = vld [vmem:[%s0 + $0x24] sm:$0xf]
  %v21 = vld [vmem:[%s0 + $0x28] sm:$0xff]
  %v22 = vld [vmem:[%s0 + $0x30] sm:$0xff]
  %v23 = vld [vmem:[%s0 + $0x38] sm:$0xf]
  %v24 = vld [vmem:[%s0 + $0x3c] sm:$0xff]
  %v25 = vld [vmem:[%s0 + $0x44] sm:$0xff]
  %v26 = vld [vmem:[%s0 + $0x4c] sm:$0xf]
  %v27 = vld [vmem:[%s0 + $0x50] sm:$0xff]
  %v28 = vld [vmem:[%s0 + $0x58] sm:$0xff]
  %v29 = vld [vmem:[%s0 + $0x60] sm:$0xf]
  %v30 = vld [vmem:[%s0 + $0x64] sm:$0xff]
  %v31 = vld [vmem:[%s0 + $0x6c] sm:$0xff]
  %v32 = vld [vmem:[%s0 + $0x74] sm:$0xf]
  %v33 = vld [vmem:[%s0 + $0x78] sm:$0xff]
  %v34 = vld [vmem:[%s0 + $0x80] sm:$0xff]
  %v35 = vld [vmem:[%s0 + $0x88] sm:$0xf]
  %v36 = vld [vmem:[%s0 + $0x8c] sm:$0xff]
  %v37 = vld [vmem:[%s0 + $0x94] sm:$0xff]
  %v38 = vld [vmem:[%s0 + $0x9c] sm:$0xf]
  %v39 = vld [vmem:[%s0 + $0xa0] sm:$0xff]
  %v40 = vld [vmem:[%s0 + $0xa8] sm:$0xff]
  %v41 = vld [vmem:[%s0 + $0xb0] sm:$0xf]
  %v42 = vld [vmem:[%s0 + $0xb4] sm:$0xff]
  %v43 = vld [vmem:[%s0 + $0xbc] sm:$0xff]
  %v44 = vld [vmem:[%s0 + $0xc4] sm:$0xf]
  %v45 = vld [vmem:[%s0 + $0xc8] sm:$0xff]
  %v46 = vld [vmem:[%s0 + $0xd0] sm:$0xff]
  %v47 = vld [vmem:[%s0 + $0xd8] sm:$0xf]
  %v48 = vld [vmem:[%s0 + $0xdc] sm:$0xff]
  %v49 = vld [vmem:[%s0 + $0xe4] sm:$0xff]
  %v50 = vld [vmem:[%s0 + $0xec] sm:$0xf]
  %v51 = vld [vmem:[%s0 + $0xf0] sm:$0xff]
  %v52 = vld [vmem:[%s0 + $0xf8] sm:$0xff]
  %v53 = vld [vmem:[%s0 + $0x100] sm:$0xf]
  %v54 = vld [vmem:[%s0 + $0x104] sm:$0xff]
  %v55 = vld [vmem:[%s0 + $0x10c] sm:$0xff]
  %v56 = vld [vmem:[%s0 + $0x114] sm:$0xf]
  %v57 = vld [vmem:[%s0 + $0x118] sm:$0xff]
  %v58 = vld [vmem:[%s0 + $0x120] sm:$0xff]
  %v59 = vld [vmem:[%s0 + $0x128] sm:$0xf]
  %v60 = vld [vmem:[%s0 + $0x12c] sm:$0xff]
  %v61 = vld [vmem:[%s0 + $0x134] sm:$0xff]
  %v62 = vld [vmem:[%s0 + $0x13c] sm:$0xf]
  %v63 = vld [vmem:[%s0 + $0x140] sm:$0xff]
  %v64 = vld [vmem:[%s0 + $0x148] sm:$0xff]
  %v65 = vld [vmem:[%s0 + $0x150] sm:$0xf]
  %v66 = vld [vmem:[%s0 + $0x154] sm:$0xff]
  %v67 = vld [vmem:[%s0 + $0x15c] sm:$0xff]
  %v68 = vld [vmem:[%s0 + $0x164] sm:$0xf]
  %v69 = vld [vmem:[%s0 + $0x168] sm:$0xff]
  %v70 = vld [vmem:[%s0 + $0x170] sm:$0xff]
  %v71 = vld [vmem:[%s0 + $0x178] sm:$0xf]
  %v72 = vld [vmem:[%s0 + $0x17c] sm:$0xff]
  %v73 = vld [vmem:[%s0 + $0x184] sm:$0xff]
  %v74 = vld [vmem:[%s0 + $0x18c] sm:$0xf]
  %v75 = vld [vmem:[%s0 + $0x190] sm:$0xff]
  %v76 = vld [vmem:[%s0 + $0x198] sm:$0xff]
  %v77 = vld [vmem:[%s0 + $0x1a0] sm:$0xf]
  %v78 = vld [vmem:[%s0 + $0x1a4] sm:$0xff]
  %v79 = vld [vmem:[%s0 + $0x1ac] sm:$0xff]
  %v80 = vld [vmem:[%s0 + $0x1b4] sm:$0xf]
  %v81 = vld [vmem:[%s0 + $0x1b8] sm:$0xff]
  %v82 = vld [vmem:[%s0 + $0x1c0] sm:$0xff]
  %v83 = vld [vmem:[%s0 + $0x1c8] sm:$0xf]
  %v84 = vld [vmem:[%s0 + $0x1cc] sm:$0xff]
  %v85 = vld [vmem:[%s0 + $0x1d4] sm:$0xff]
  %v86 = vld [vmem:[%s0 + $0x1dc] sm:$0xf]
  %v87 = vld [vmem:[%s0 + $0x1e0] sm:$0xff]
  %v88 = vld [vmem:[%s0 + $0x1e8] sm:$0xff]
  %v89 = vld [vmem:[%s0 + $0x1f0] sm:$0xf]
  %v90 = vld [vmem:[%s0 + $0x1f4] sm:$0xff]
  %v91 = vld [vmem:[%s0 + $0x1fc] sm:$0xff]
  %v92 = vld [vmem:[%s0 + $0x204] sm:$0xf]
  %v93 = vld [vmem:[%s0 + $0x208] sm:$0xff]
  %v94 = vld [vmem:[%s0 + $0x210] sm:$0xff]
  %v95 = vld [vmem:[%s0 + $0x218] sm:$0xf]
  %v96 = vld [vmem:[%s0 + $0x21c] sm:$0xff]
  %v97 = vld [vmem:[%s0 + $0x224] sm:$0xff]
  %v98 = vld [vmem:[%s0 + $0x22c] sm:$0xf]
  %v99 = vld [vmem:[%s0 + $0x230] sm:$0xff]
  %v100 = vld [vmem:[%s0 + $0x238] sm:$0xff]
  %v101 = vld [vmem:[%s0 + $0x240] sm:$0xf]
  %v102 = vld [vmem:[%s0 + $0x244] sm:$0xff]
  %v103 = vld [vmem:[%s0 + $0x24c] sm:$0xff]
  %v104 = vld [vmem:[%s0 + $0x254] sm:$0xf]
  %v105 = vld [vmem:[%s0 + $0x258] sm:$0xff]
  %v106 = vld [vmem:[%s0 + $0x260] sm:$0xff]
  %v107 = vld [vmem:[%s0 + $0x268] sm:$0xf]
  %v108 = vld [vmem:[%s0 + $0x26c] sm:$0xff]
  %v109 = vld [vmem:[%s0 + $0x274] sm:$0xff]
  %v110 = vld [vmem:[%s0 + $0x27c] sm:$0xf]
  %v111 = vld [vmem:[%s1] sm:$0xf]
  %v112 = vld [vmem:[%s1 + $0x4] sm:$0xf]
  %v113 = vld [vmem:[%s1 + $0x8] sm:$0xf]
  %v114 = vld [vmem:[%s1 + $0xc] sm:$0xf]
  %v115 = vld [vmem:[%s1 + $0x10] sm:$0xf]
  %v116 = vld [vmem:[%s1 + $0x14] sm:$0xf]
  %v117 = vld [vmem:[%s1 + $0x18] sm:$0xf]
  %v118 = vld [vmem:[%s1 + $0x1c] sm:$0xf]
  %v119 = vld [vmem:[%s1 + $0x20] sm:$0xf]
  %v120 = vld [vmem:[%s1 + $0x24] sm:$0xf]
  %v121 = vld [vmem:[%s1 + $0x28] sm:$0xf]
  %v122 = vld [vmem:[%s1 + $0x2c] sm:$0xf]
  %v123 = vld [vmem:[%s1 + $0x30] sm:$0xf]
  %v124 = vld [vmem:[%s1 + $0x34] sm:$0xf]
  %v125 = vld [vmem:[%s1 + $0x38] sm:$0xf]
  %v126 = vld [vmem:[%s1 + $0x3c] sm:$0xf]
  %v127 = vld [vmem:[%s1 + $0x40] sm:$0xf]
  %v128 = vld [vmem:[%s1 + $0x44] sm:$0xf]
  %v129 = vld [vmem:[%s1 + $0x48] sm:$0xf]
  %v130 = vld [vmem:[%s1 + $0x4c] sm:$0xf]
  %v131 = vld [vmem:[%s1 + $0x50] sm:$0xf]
  %v132 = vld [vmem:[%s1 + $0x54] sm:$0xf]
  %v133 = vld [vmem:[%s1 + $0x58] sm:$0xf]
  %v134 = vld [vmem:[%s1 + $0x5c] sm:$0xf]
  %v135 = vld [vmem:[%s1 + $0x60] sm:$0xf]
  %v136 = vld [vmem:[%s1 + $0x64] sm:$0xf]
  %v137 = vld [vmem:[%s1 + $0x68] sm:$0xf]
  %v138 = vld [vmem:[%s1 + $0x6c] sm:$0xf]
  %v139 = vld [vmem:[%s1 + $0x70] sm:$0xf]
  %v140 = vld [vmem:[%s1 + $0x74] sm:$0xf]
  %v141 = vld [vmem:[%s1 + $0x78] sm:$0xf]
  %v142 = vld [vmem:[%s1 + $0x7c] sm:$0xf]
  %v143 = vld [vmem:[%s1 + $0x80] sm:$0xf]
  %v144 = vld [vmem:[%s1 + $0x84] sm:$0xf]
  %v145 = vld [vmem:[%s1 + $0x88] sm:$0xf]
  %v146 = vld [vmem:[%s1 + $0x8c] sm:$0xf]
  %v147 = vld [vmem:[%s1 + $0x90] sm:$0xf]
  %v148 = vld [vmem:[%s1 + $0x94] sm:$0xf]
  %v149 = vld [vmem:[%s1 + $0x98] sm:$0xf]
  %v150 = vld [vmem:[%s1 + $0x9c] sm:$0xf]
  %v151 = vld [vmem:[%s1 + $0xa0] sm:$0xf]
  %v152 = vld [vmem:[%s1 + $0xa4] sm:$0xf]
  %v153 = vld [vmem:[%s1 + $0xa8] sm:$0xf]
  %v154 = vld [vmem:[%s1 + $0xac] sm:$0xf]
  %v155 = vld [vmem:[%s1 + $0xb0] sm:$0xf]
  %v156 = vld [vmem:[%s1 + $0xb4] sm:$0xf]
  %v157 = vld [vmem:[%s1 + $0xb8] sm:$0xf]
  %v158 = vld [vmem:[%s1 + $0xbc] sm:$0xf]
  %v159 = vld [vmem:[%s1 + $0xc0] sm:$0xf]
  %v160 = vld [vmem:[%s1 + $0xc4] sm:$0xf]
  %v161 = vld [vmem:[%s1 + $0xc8] sm:$0xf]
  %v162 = vld [vmem:[%s1 + $0xcc] sm:$0xf]
  %v163 = vld [vmem:[%s1 + $0xd0] sm:$0xf]
  %v164 = vld [vmem:[%s1 + $0xd4] sm:$0xf]
  %v165 = vld [vmem:[%s1 + $0xd8] sm:$0xf]
  %v166 = vld [vmem:[%s1 + $0xdc] sm:$0xf]
  %v167 = vld [vmem:[%s1 + $0xe0] sm:$0xf]
  %v168 = vld [vmem:[%s1 + $0xe4] sm:$0xf]
  %v169 = vld [vmem:[%s1 + $0xe8] sm:$0xf]
  %v170 = vld [vmem:[%s1 + $0xec] sm:$0xf]
  %v171 = vld [vmem:[%s1 + $0xf0] sm:$0xf]
  %v172 = vld [vmem:[%s1 + $0xf4] sm:$0xf]
  %v173 = vld [vmem:[%s1 + $0xf8] sm:$0xf]
  %v174 = vld [vmem:[%s1 + $0xfc] sm:$0xf]
  %v175 = vld [vmem:[%s1 + $0x100] sm:$0xf]
  %v176 = vld [vmem:[%s1 + $0x104] sm:$0xf]
  %v177 = vld [vmem:[%s1 + $0x108] sm:$0xf]
  %v178 = vld [vmem:[%s1 + $0x10c] sm:$0xf]
  %v179 = vld [vmem:[%s1 + $0x110] sm:$0xf]
  %v180 = vld [vmem:[%s1 + $0x114] sm:$0xf]
  %v181 = vld [vmem:[%s1 + $0x118] sm:$0xf]
  %v182 = vld [vmem:[%s1 + $0x11c] sm:$0xf]
  %v183 = vld [vmem:[%s2] sm:$0x1]
  %v185 = vlaneseq
  %v186 = vshrl.u32 %v185, 7
  %v187 = vsub.s32 0, %v186
  %v188 = vrot.slane %v183, %v187
  %v286 = vunpack.c.l.b16 %v15
  %v287 = vunpack.c.h.b16 %v15
  %v288 = vunpack.c.l.b16 %v16
  %v289 = vunpack.c.h.b16 %v16
  %v290 = vunpack.c.l.b16 %v17
  %v291 = vunpack.c.l.b16 %v18
  %v292 = vunpack.c.h.b16 %v18
  %v293 = vunpack.c.l.b16 %v19
  %v294 = vunpack.c.h.b16 %v19
  %v295 = vunpack.c.l.b16 %v20
  %v296 = vunpack.c.l.b16 %v21
  %v297 = vunpack.c.h.b16 %v21
  %v298 = vunpack.c.l.b16 %v22
  %v299 = vunpack.c.h.b16 %v22
  %v300 = vunpack.c.l.b16 %v23
  %v301 = vunpack.c.l.b16 %v24
  %v302 = vunpack.c.h.b16 %v24
  %v303 = vunpack.c.l.b16 %v25
  %v304 = vunpack.c.h.b16 %v25
  %v305 = vunpack.c.l.b16 %v26
  %v306 = vunpack.c.l.b16 %v27
  %v307 = vunpack.c.h.b16 %v27
  %v308 = vunpack.c.l.b16 %v28
  %v309 = vunpack.c.h.b16 %v28
  %v310 = vunpack.c.l.b16 %v29
  %v311 = vunpack.c.l.b16 %v30
  %v312 = vunpack.c.h.b16 %v30
  %v313 = vunpack.c.l.b16 %v31
  %v314 = vunpack.c.h.b16 %v31
  %v315 = vunpack.c.l.b16 %v32
  %v316 = vunpack.c.l.b16 %v33
  %v317 = vunpack.c.h.b16 %v33
  %v318 = vunpack.c.l.b16 %v34
  %v319 = vunpack.c.h.b16 %v34
  %v320 = vunpack.c.l.b16 %v35
  %v321 = vunpack.c.l.b16 %v36
  %v322 = vunpack.c.h.b16 %v36
  %v323 = vunpack.c.l.b16 %v37
  %v324 = vunpack.c.h.b16 %v37
  %v325 = vunpack.c.l.b16 %v38
  %v326 = vunpack.c.l.b16 %v39
  %v327 = vunpack.c.h.b16 %v39
  %v328 = vunpack.c.l.b16 %v40
  %v329 = vunpack.c.h.b16 %v40
  %v330 = vunpack.c.l.b16 %v41
  %v331 = vunpack.c.l.b16 %v42
  %v332 = vunpack.c.h.b16 %v42
  %v333 = vunpack.c.l.b16 %v43
  %v334 = vunpack.c.h.b16 %v43
  %v335 = vunpack.c.l.b16 %v44
  %v336 = vunpack.c.l.b16 %v45
  %v337 = vunpack.c.h.b16 %v45
  %v338 = vunpack.c.l.b16 %v46
  %v339 = vunpack.c.h.b16 %v46
  %v340 = vunpack.c.l.b16 %v47
  %v341 = vunpack.c.l.b16 %v48
  %v342 = vunpack.c.h.b16 %v48
  %v343 = vunpack.c.l.b16 %v49
  %v344 = vunpack.c.h.b16 %v49
  %v345 = vunpack.c.l.b16 %v50
  %v346 = vunpack.c.l.b16 %v51
  %v347 = vunpack.c.h.b16 %v51
  %v348 = vunpack.c.l.b16 %v52
  %v349 = vunpack.c.h.b16 %v52
  %v350 = vunpack.c.l.b16 %v53
  %v351 = vunpack.c.l.b16 %v54
  %v352 = vunpack.c.h.b16 %v54
  %v353 = vunpack.c.l.b16 %v55
  %v354 = vunpack.c.h.b16 %v55
  %v355 = vunpack.c.l.b16 %v56
  %v356 = vunpack.c.l.b16 %v57
  %v357 = vunpack.c.h.b16 %v57
  %v358 = vunpack.c.l.b16 %v58
  %v359 = vunpack.c.h.b16 %v58
  %v360 = vunpack.c.l.b16 %v59
  %v361 = vunpack.c.l.b16 %v60
  %v362 = vunpack.c.h.b16 %v60
  %v363 = vunpack.c.l.b16 %v61
  %v364 = vunpack.c.h.b16 %v61
  %v365 = vunpack.c.l.b16 %v62
  %v366 = vunpack.c.l.b16 %v63
  %v367 = vunpack.c.h.b16 %v63
  %v368 = vunpack.c.l.b16 %v64
  %v369 = vunpack.c.h.b16 %v64
  %v370 = vunpack.c.l.b16 %v65
  %v371 = vunpack.c.l.b16 %v66
  %v372 = vunpack.c.h.b16 %v66
  %v373 = vunpack.c.l.b16 %v67
  %v374 = vunpack.c.h.b16 %v67
  %v375 = vunpack.c.l.b16 %v68
  %v376 = vunpack.c.l.b16 %v69
  %v377 = vunpack.c.h.b16 %v69
  %v378 = vunpack.c.l.b16 %v70
  %v379 = vunpack.c.h.b16 %v70
  %v380 = vunpack.c.l.b16 %v71
  %v381 = vunpack.c.l.b16 %v72
  %v382 = vunpack.c.h.b16 %v72
  %v383 = vunpack.c.l.b16 %v73
  %v384 = vunpack.c.h.b16 %v73
  %v385 = vunpack.c.l.b16 %v74
  %v386 = vunpack.c.l.b16 %v75
  %v387 = vunpack.c.h.b16 %v75
  %v388 = vunpack.c.l.b16 %v76
  %v389 = vunpack.c.h.b16 %v76
  %v390 = vunpack.c.l.b16 %v77
  %v391 = vunpack.c.l.b16 %v78
  %v392 = vunpack.c.h.b16 %v78
  %v393 = vunpack.c.l.b16 %v79
  %v394 = vunpack.c.h.b16 %v79
  %v395 = vunpack.c.l.b16 %v80
  %v396 = vunpack.c.l.b16 %v81
  %v397 = vunpack.c.h.b16 %v81
  %v398 = vunpack.c.l.b16 %v82
  %v399 = vunpack.c.h.b16 %v82
  %v400 = vunpack.c.l.b16 %v83
  %v401 = vunpack.c.l.b16 %v84
  %v402 = vunpack.c.h.b16 %v84
  %v403 = vunpack.c.l.b16 %v85
  %v404 = vunpack.c.h.b16 %v85
  %v405 = vunpack.c.l.b16 %v86
  %v406 = vunpack.c.l.b16 %v87
  %v407 = vunpack.c.h.b16 %v87
  %v408 = vunpack.c.l.b16 %v88
  %v409 = vunpack.c.h.b16 %v88
  %v410 = vunpack.c.l.b16 %v89
  %v411 = vunpack.c.l.b16 %v90
  %v412 = vunpack.c.h.b16 %v90
  %v413 = vunpack.c.l.b16 %v91
  %v414 = vunpack.c.h.b16 %v91
  %v415 = vunpack.c.l.b16 %v92
  %v416 = vunpack.c.l.b16 %v93
  %v417 = vunpack.c.h.b16 %v93
  %v418 = vunpack.c.l.b16 %v94
  %v419 = vunpack.c.h.b16 %v94
  %v420 = vunpack.c.l.b16 %v95
  %v421 = vunpack.c.l.b16 %v96
  %v422 = vunpack.c.h.b16 %v96
  %v423 = vunpack.c.l.b16 %v97
  %v424 = vunpack.c.h.b16 %v97
  %v425 = vunpack.c.l.b16 %v98
  %v426 = vunpack.c.l.b16 %v99
  %v427 = vunpack.c.h.b16 %v99
  %v428 = vunpack.c.l.b16 %v100
  %v429 = vunpack.c.h.b16 %v100
  %v430 = vunpack.c.l.b16 %v101
  %v431 = vunpack.c.l.b16 %v102
  %v432 = vunpack.c.h.b16 %v102
  %v433 = vunpack.c.l.b16 %v103
  %v434 = vunpack.c.h.b16 %v103
  %v435 = vunpack.c.l.b16 %v104
  %v436 = vunpack.c.l.b16 %v105
  %v437 = vunpack.c.h.b16 %v105
  %v438 = vunpack.c.l.b16 %v106
  %v439 = vunpack.c.h.b16 %v106
  %v440 = vunpack.c.l.b16 %v107
  %v441 = vunpack.c.l.b16 %v108
  %v442 = vunpack.c.h.b16 %v108
  %v443 = vunpack.c.l.b16 %v109
  %v444 = vunpack.c.h.b16 %v109
  %v445 = vunpack.c.l.b16 %v110
  %v446 = vpack.c.b16 %v291, %v286
  %v447 = vpack.c.b16 %v292, %v287
  %v448 = vpack.c.b16 %v293, %v288
  %v449 = vpack.c.b16 %v294, %v289
  %v450 = vpack.c.b16 %v295, %v290
  %v451 = vpack.c.b16 %v301, %v296
  %v452 = vpack.c.b16 %v302, %v297
  %v453 = vpack.c.b16 %v303, %v298
  %v454 = vpack.c.b16 %v304, %v299
  %v455 = vpack.c.b16 %v305, %v300
  %v456 = vpack.c.b16 %v311, %v306
  %v457 = vpack.c.b16 %v312, %v307
  %v458 = vpack.c.b16 %v313, %v308
  %v459 = vpack.c.b16 %v314, %v309
  %v460 = vpack.c.b16 %v315, %v310
  %v461 = vpack.c.b16 %v321, %v316
  %v462 = vpack.c.b16 %v322, %v317
  %v463 = vpack.c.b16 %v323, %v318
  %v464 = vpack.c.b16 %v324, %v319
  %v465 = vpack.c.b16 %v325, %v320
  %v466 = vpack.c.b16 %v331, %v326
  %v467 = vpack.c.b16 %v332, %v327
  %v468 = vpack.c.b16 %v333, %v328
  %v469 = vpack.c.b16 %v334, %v329
  %v470 = vpack.c.b16 %v335, %v330
  %v471 = vpack.c.b16 %v341, %v336
  %v472 = vpack.c.b16 %v342, %v337
  %v473 = vpack.c.b16 %v343, %v338
  %v474 = vpack.c.b16 %v344, %v339
  %v475 = vpack.c.b16 %v345, %v340
  %v476 = vpack.c.b16 %v351, %v346
  %v477 = vpack.c.b16 %v352, %v347
  %v478 = vpack.c.b16 %v353, %v348
  %v479 = vpack.c.b16 %v354, %v349
  %v480 = vpack.c.b16 %v355, %v350
  %v481 = vpack.c.b16 %v361, %v356
  %v482 = vpack.c.b16 %v362, %v357
  %v483 = vpack.c.b16 %v363, %v358
  %v484 = vpack.c.b16 %v364, %v359
  %v485 = vpack.c.b16 %v365, %v360
  %v486 = vpack.c.b16 %v371, %v366
  %v487 = vpack.c.b16 %v372, %v367
  %v488 = vpack.c.b16 %v373, %v368
  %v489 = vpack.c.b16 %v374, %v369
  %v490 = vpack.c.b16 %v375, %v370
  %v491 = vpack.c.b16 %v381, %v376
  %v492 = vpack.c.b16 %v382, %v377
  %v493 = vpack.c.b16 %v383, %v378
  %v494 = vpack.c.b16 %v384, %v379
  %v495 = vpack.c.b16 %v385, %v380
  %v496 = vpack.c.b16 %v391, %v386
  %v497 = vpack.c.b16 %v392, %v387
  %v498 = vpack.c.b16 %v393, %v388
  %v499 = vpack.c.b16 %v394, %v389
  %v500 = vpack.c.b16 %v395, %v390
  %v501 = vpack.c.b16 %v401, %v396
  %v502 = vpack.c.b16 %v402, %v397
  %v503 = vpack.c.b16 %v403, %v398
  %v504 = vpack.c.b16 %v404, %v399
  %v505 = vpack.c.b16 %v405, %v400
  %v506 = vpack.c.b16 %v411, %v406
  %v507 = vpack.c.b16 %v412, %v407
  %v508 = vpack.c.b16 %v413, %v408
  %v509 = vpack.c.b16 %v414, %v409
  %v510 = vpack.c.b16 %v415, %v410
  %v511 = vpack.c.b16 %v421, %v416
  %v512 = vpack.c.b16 %v422, %v417
  %v513 = vpack.c.b16 %v423, %v418
  %v514 = vpack.c.b16 %v424, %v419
  %v515 = vpack.c.b16 %v425, %v420
  %v516 = vpack.c.b16 %v431, %v426
  %v517 = vpack.c.b16 %v432, %v427
  %v518 = vpack.c.b16 %v433, %v428
  %v519 = vpack.c.b16 %v434, %v429
  %v520 = vpack.c.b16 %v435, %v430
  %v521 = vpack.c.b16 %v441, %v436
  %v522 = vpack.c.b16 %v442, %v437
  %v523 = vpack.c.b16 %v443, %v438
  %v524 = vpack.c.b16 %v444, %v439
  %v525 = vpack.c.b16 %v445, %v440
  %v662 = vunpack.c.l.b16 %v111
  %v663 = vunpack.c.l.b16 %v112
  %v664 = vunpack.c.l.b16 %v113
  %v665 = vunpack.c.l.b16 %v114
  %v666 = vunpack.c.l.b16 %v115
  %v667 = vunpack.c.l.b16 %v116
  %v668 = vunpack.c.l.b16 %v117
  %v669 = vunpack.c.l.b16 %v118
  %v670 = vunpack.c.l.b16 %v119
  %v671 = vunpack.c.l.b16 %v120
  %v672 = vunpack.c.l.b16 %v121
  %v673 = vunpack.c.l.b16 %v122
  %v674 = vunpack.c.l.b16 %v123
  %v675 = vunpack.c.l.b16 %v124
  %v676 = vunpack.c.l.b16 %v125
  %v677 = vunpack.c.l.b16 %v126
  %v678 = vunpack.c.l.b16 %v127
  %v679 = vunpack.c.l.b16 %v128
  %v680 = vunpack.c.l.b16 %v129
  %v681 = vunpack.c.l.b16 %v130
  %v682 = vunpack.c.l.b16 %v131
  %v683 = vunpack.c.l.b16 %v132
  %v684 = vunpack.c.l.b16 %v133
  %v685 = vunpack.c.l.b16 %v134
  %v686 = vunpack.c.l.b16 %v135
  %v687 = vunpack.c.l.b16 %v136
  %v688 = vunpack.c.l.b16 %v137
  %v689 = vunpack.c.l.b16 %v138
  %v690 = vunpack.c.l.b16 %v139
  %v691 = vunpack.c.l.b16 %v140
  %v692 = vunpack.c.l.b16 %v141
  %v693 = vunpack.c.l.b16 %v142
  %v694 = vunpack.c.l.b16 %v143
  %v695 = vunpack.c.l.b16 %v144
  %v696 = vunpack.c.l.b16 %v145
  %v697 = vunpack.c.l.b16 %v146
  %v698 = vunpack.c.l.b16 %v147
  %v699 = vunpack.c.l.b16 %v148
  %v700 = vunpack.c.l.b16 %v149
  %v701 = vunpack.c.l.b16 %v150
  %v702 = vunpack.c.l.b16 %v151
  %v703 = vunpack.c.l.b16 %v152
  %v704 = vunpack.c.l.b16 %v153
  %v705 = vunpack.c.l.b16 %v154
  %v706 = vunpack.c.l.b16 %v155
  %v707 = vunpack.c.l.b16 %v156
  %v708 = vunpack.c.l.b16 %v157
  %v709 = vunpack.c.l.b16 %v158
  %v710 = vunpack.c.l.b16 %v159
  %v711 = vunpack.c.l.b16 %v160
  %v712 = vunpack.c.l.b16 %v161
  %v713 = vunpack.c.l.b16 %v162
  %v714 = vunpack.c.l.b16 %v163
  %v715 = vunpack.c.l.b16 %v164
  %v716 = vunpack.c.l.b16 %v165
  %v717 = vunpack.c.l.b16 %v166
  %v718 = vunpack.c.l.b16 %v167
  %v719 = vunpack.c.l.b16 %v168
  %v720 = vunpack.c.l.b16 %v169
  %v721 = vunpack.c.l.b16 %v170
  %v722 = vunpack.c.l.b16 %v171
  %v723 = vunpack.c.l.b16 %v172
  %v724 = vunpack.c.l.b16 %v173
  %v725 = vunpack.c.l.b16 %v174
  %v726 = vunpack.c.l.b16 %v175
  %v727 = vunpack.c.l.b16 %v176
  %v728 = vunpack.c.l.b16 %v177
  %v729 = vunpack.c.l.b16 %v178
  %v730 = vunpack.c.l.b16 %v179
  %v731 = vunpack.c.l.b16 %v180
  %v732 = vunpack.c.l.b16 %v181
  %v733 = vunpack.c.l.b16 %v182
  %v734 = vpack.c.b16 %v663, %v662
  %v735 = vpack.c.b16 %v665, %v664
  %v736 = vpack.c.b16 %v667, %v666
  %v737 = vpack.c.b16 %v669, %v668
  %v738 = vpack.c.b16 %v671, %v670
  %v739 = vpack.c.b16 %v673, %v672
  %v740 = vpack.c.b16 %v675, %v674
  %v741 = vpack.c.b16 %v677, %v676
  %v742 = vpack.c.b16 %v679, %v678
  %v743 = vpack.c.b16 %v681, %v680
  %v744 = vpack.c.b16 %v683, %v682
  %v745 = vpack.c.b16 %v685, %v684
  %v746 = vpack.c.b16 %v687, %v686
  %v747 = vpack.c.b16 %v689, %v688
  %v748 = vpack.c.b16 %v691, %v690
  %v749 = vpack.c.b16 %v693, %v692
  %v750 = vpack.c.b16 %v695, %v694
  %v751 = vpack.c.b16 %v697, %v696
  %v752 = vpack.c.b16 %v699, %v698
  %v753 = vpack.c.b16 %v701, %v700
  %v754 = vpack.c.b16 %v703, %v702
  %v755 = vpack.c.b16 %v705, %v704
  %v756 = vpack.c.b16 %v707, %v706
  %v757 = vpack.c.b16 %v709, %v708
  %v758 = vpack.c.b16 %v711, %v710
  %v759 = vpack.c.b16 %v713, %v712
  %v760 = vpack.c.b16 %v715, %v714
  %v761 = vpack.c.b16 %v717, %v716
  %v762 = vpack.c.b16 %v719, %v718
  %v763 = vpack.c.b16 %v721, %v720
  %v764 = vpack.c.b16 %v723, %v722
  %v765 = vpack.c.b16 %v725, %v724
  %v766 = vpack.c.b16 %v727, %v726
  %v767 = vpack.c.b16 %v729, %v728
  %v768 = vpack.c.b16 %v731, %v730
  %v769 = vpack.c.b16 %v733, %v732
  %vm806 = vcmask 523264
  %v808 = vsel %vm806, %v450, 0
  %v811 = vsel %vm806, %v455, 0
  %v814 = vsel %vm806, %v460, 0
  %v817 = vsel %vm806, %v465, 0
  %v820 = vsel %vm806, %v470, 0
  %v823 = vsel %vm806, %v475, 0
  %v826 = vsel %vm806, %v480, 0
  %v829 = vsel %vm806, %v485, 0
  %v832 = vsel %vm806, %v490, 0
  %v835 = vsel %vm806, %v495, 0
  %v838 = vsel %vm806, %v500, 0
  %v841 = vsel %vm806, %v505, 0
  %v844 = vsel %vm806, %v510, 0
  %v847 = vsel %vm806, %v515, 0
  %v850 = vsel %vm806, %v520, 0
  %v853 = vsel %vm806, %v525, 0
  %855 = vmatprep.subr.bf16.mxu0 0
  %856 = vmatpush1.bf16.msra.mxu0 %v741
  %857 = vmatprep.subr.bf16.mxu0 0
  %858 = vmatpush1.bf16.msra.mxu0 %v740
  %859 = vmatprep.subr.bf16.mxu0 0
  %860 = vmatpush1.bf16.msra.mxu0 %v739
  %861 = vmatprep.subr.bf16.mxu0 0
  %862 = vmatpush1.bf16.msra.mxu0 %v738
  %863 = vmatprep.subr.bf16.mxu0 0
  %864 = vmatpush1.bf16.msra.mxu0 %v737
  %865 = vmatprep.subr.bf16.mxu0 0
  %866 = vmatpush1.bf16.msra.mxu0 %v736
  %867 = vmatprep.subr.bf16.mxu0 0
  %868 = vmatpush1.bf16.msra.mxu0 %v735
  %869 = vmatprep.subr.bf16.mxu0 0
  %870 = vmatpush1.bf16.msra.mxu0 %v734
  %871 = vmatprep.subr.bf16.mxu0 0
  %872 = vmatpush2.bf16.msra.mxu0 %v749
  %873 = vmatprep.subr.bf16.mxu0 0
  %874 = vmatpush2.bf16.msra.mxu0 %v748
  %875 = vmatprep.subr.bf16.mxu0 0
  %876 = vmatpush2.bf16.msra.mxu0 %v747
  %877 = vmatprep.subr.bf16.mxu0 0
  %878 = vmatpush2.bf16.msra.mxu0 %v746
  %879 = vmatprep.subr.bf16.mxu0 0
  %880 = vmatpush2.bf16.msra.mxu0 %v745
  %881 = vmatprep.subr.bf16.mxu0 0
  %882 = vmatpush2.bf16.msra.mxu0 %v744
  %883 = vmatprep.subr.bf16.mxu0 0
  %884 = vmatpush2.bf16.msra.mxu0 %v743
  %885 = vmatprep.subr.bf16.mxu0 0
  %886 = vmatpush2.bf16.msra.mxu0 %v742
  %887 = vmatprep.mubr.bf16.mxu0 %v447
  %888 = vmatmul.mubr.bf16.gmra.mxu0 %v446
  %v889 = vpop.f32.mrf.mxu0
  %v890 = vadd.f32 %v188, %v889
  %v891 = vpop.f32.mrf.mxu0
  %v892 = vpop.f32.mrf.mxu0
  %v893 = vadd.f32 %v188, %v892
  %v894 = vpop.f32.mrf.mxu0
  %895 = vmatprep.mubr.bf16.mxu0 %v452
  %896 = vmatmul.mubr.bf16.gmra.mxu0 %v451
  %v897 = vpop.f32.mrf.mxu0
  %v898 = vadd.f32 %v188, %v897
  %v899 = vpop.f32.mrf.mxu0
  %v900 = vpop.f32.mrf.mxu0
  %v901 = vadd.f32 %v188, %v900
  %v902 = vpop.f32.mrf.mxu0
  %903 = vmatprep.mubr.bf16.mxu0 %v457
  %904 = vmatmul.mubr.bf16.gmra.mxu0 %v456
  %v905 = vpop.f32.mrf.mxu0
  %v906 = vadd.f32 %v188, %v905
  %v907 = vpop.f32.mrf.mxu0
  %v908 = vpop.f32.mrf.mxu0
  %v909 = vadd.f32 %v188, %v908
  %v910 = vpop.f32.mrf.mxu0
  %911 = vmatprep.mubr.bf16.mxu0 %v462
  %912 = vmatmul.mubr.bf16.gmra.mxu0 %v461
  %v913 = vpop.f32.mrf.mxu0
  %v914 = vadd.f32 %v188, %v913
  %v915 = vpop.f32.mrf.mxu0
  %v916 = vpop.f32.mrf.mxu0
  %v917 = vadd.f32 %v188, %v916
  %v918 = vpop.f32.mrf.mxu0
  %919 = vmatprep.mubr.bf16.mxu0 %v467
  %920 = vmatmul.mubr.bf16.gmra.mxu0 %v466
  %v921 = vpop.f32.mrf.mxu0
  %v922 = vadd.f32 %v188, %v921
  %v923 = vpop.f32.mrf.mxu0
  %v924 = vpop.f32.mrf.mxu0
  %v925 = vadd.f32 %v188, %v924
  %v926 = vpop.f32.mrf.mxu0
  %927 = vmatprep.mubr.bf16.mxu0 %v472
  %928 = vmatmul.mubr.bf16.gmra.mxu0 %v471
  %v929 = vpop.f32.mrf.mxu0
  %v930 = vadd.f32 %v188, %v929
  %v931 = vpop.f32.mrf.mxu0
  %v932 = vpop.f32.mrf.mxu0
  %v933 = vadd.f32 %v188, %v932
  %v934 = vpop.f32.mrf.mxu0
  %935 = vmatprep.mubr.bf16.mxu0 %v477
  %936 = vmatmul.mubr.bf16.gmra.mxu0 %v476
  %v937 = vpop.f32.mrf.mxu0
  %v938 = vadd.f32 %v188, %v937
  %v939 = vpop.f32.mrf.mxu0
  %v940 = vpop.f32.mrf.mxu0
  %v941 = vadd.f32 %v188, %v940
  %v942 = vpop.f32.mrf.mxu0
  %943 = vmatprep.mubr.bf16.mxu0 %v482
  %944 = vmatmul.mubr.bf16.gmra.mxu0 %v481
  %v945 = vpop.f32.mrf.mxu0
  %v946 = vadd.f32 %v188, %v945
  %v947 = vpop.f32.mrf.mxu0
  %v948 = vpop.f32.mrf.mxu0
  %v949 = vadd.f32 %v188, %v948
  %v950 = vpop.f32.mrf.mxu0
  %951 = vmatprep.mubr.bf16.mxu0 %v487
  %952 = vmatmul.mubr.bf16.gmra.mxu0 %v486
  %v953 = vpop.f32.mrf.mxu0
  %v954 = vadd.f32 %v188, %v953
  %v955 = vpop.f32.mrf.mxu0
  %v956 = vpop.f32.mrf.mxu0
  %v957 = vadd.f32 %v188, %v956
  %v958 = vpop.f32.mrf.mxu0
  %959 = vmatprep.mubr.bf16.mxu0 %v492
  %960 = vmatmul.mubr.bf16.gmra.mxu0 %v491
  %v961 = vpop.f32.mrf.mxu0
  %v962 = vadd.f32 %v188, %v961
  %v963 = vpop.f32.mrf.mxu0
  %v964 = vpop.f32.mrf.mxu0
  %v965 = vadd.f32 %v188, %v964
  %v966 = vpop.f32.mrf.mxu0
  %967 = vmatprep.mubr.bf16.mxu0 %v497
  %968 = vmatmul.mubr.bf16.gmra.mxu0 %v496
  %v969 = vpop.f32.mrf.mxu0
  %v970 = vadd.f32 %v188, %v969
  %v971 = vpop.f32.mrf.mxu0
  %v972 = vpop.f32.mrf.mxu0
  %v973 = vadd.f32 %v188, %v972
  %v974 = vpop.f32.mrf.mxu0
  %975 = vmatprep.mubr.bf16.mxu0 %v502
  %976 = vmatmul.mubr.bf16.gmra.mxu0 %v501
  %v977 = vpop.f32.mrf.mxu0
  %v978 = vadd.f32 %v188, %v977
  %v979 = vpop.f32.mrf.mxu0
  %v980 = vpop.f32.mrf.mxu0
  %v981 = vadd.f32 %v188, %v980
  %v982 = vpop.f32.mrf.mxu0
  %983 = vmatprep.mubr.bf16.mxu0 %v507
  %984 = vmatmul.mubr.bf16.gmra.mxu0 %v506
  %v985 = vpop.f32.mrf.mxu0
  %v986 = vadd.f32 %v188, %v985
  %v987 = vpop.f32.mrf.mxu0
  %v988 = vpop.f32.mrf.mxu0
  %v989 = vadd.f32 %v188, %v988
  %v990 = vpop.f32.mrf.mxu0
  %991 = vmatprep.mubr.bf16.mxu0 %v512
  %992 = vmatmul.mubr.bf16.gmra.mxu0 %v511
  %v993 = vpop.f32.mrf.mxu0
  %v994 = vadd.f32 %v188, %v993
  %v995 = vpop.f32.mrf.mxu0
  %v996 = vpop.f32.mrf.mxu0
  %v997 = vadd.f32 %v188, %v996
  %v998 = vpop.f32.mrf.mxu0
  %999 = vmatprep.mubr.bf16.mxu0 %v517
  %1000 = vmatmul.mubr.bf16.gmra.mxu0 %v516
  %v1001 = vpop.f32.mrf.mxu0
  %v1002 = vadd.f32 %v188, %v1001
  %v1003 = vpop.f32.mrf.mxu0
  %v1004 = vpop.f32.mrf.mxu0
  %v1005 = vadd.f32 %v188, %v1004
  %v1006 = vpop.f32.mrf.mxu0
  %1007 = vmatprep.mubr.bf16.mxu0 %v522
  %1008 = vmatmul.mubr.bf16.gmra.mxu0 %v521
  %v1009 = vpop.f32.mrf.mxu0
  %v1010 = vadd.f32 %v188, %v1009
  %v1011 = vpop.f32.mrf.mxu0
  %v1012 = vpop.f32.mrf.mxu0
  %v1013 = vadd.f32 %v188, %v1012
  %v1014 = vpop.f32.mrf.mxu0
  %1015 = vdwg.mxu0
  %1016 = vmatprep.subr.bf16.mxu0 0
  %1017 = vmatpush1.bf16.msra.mxu0 %v757
  %1018 = vmatprep.subr.bf16.mxu0 0
  %1019 = vmatpush1.bf16.msra.mxu0 %v756
  %1020 = vmatprep.subr.bf16.mxu0 0
  %1021 = vmatpush1.bf16.msra.mxu0 %v755
  %1022 = vmatprep.subr.bf16.mxu0 0
  %1023 = vmatpush1.bf16.msra.mxu0 %v754
  %1024 = vmatprep.subr.bf16.mxu0 0
  %1025 = vmatpush1.bf16.msra.mxu0 %v753
  %1026 = vmatprep.subr.bf16.mxu0 0
  %1027 = vmatpush1.bf16.msra.mxu0 %v752
  %1028 = vmatprep.subr.bf16.mxu0 0
  %1029 = vmatpush1.bf16.msra.mxu0 %v751
  %1030 = vmatprep.subr.bf16.mxu0 0
  %1031 = vmatpush1.bf16.msra.mxu0 %v750
  %1032 = vmatprep.subr.bf16.mxu0 0
  %1033 = vmatpush2.bf16.msra.mxu0 %v765
  %1034 = vmatprep.subr.bf16.mxu0 0
  %1035 = vmatpush2.bf16.msra.mxu0 %v764
  %1036 = vmatprep.subr.bf16.mxu0 0
  %1037 = vmatpush2.bf16.msra.mxu0 %v763
  %1038 = vmatprep.subr.bf16.mxu0 0
  %1039 = vmatpush2.bf16.msra.mxu0 %v762
  %1040 = vmatprep.subr.bf16.mxu0 0
  %1041 = vmatpush2.bf16.msra.mxu0 %v761
  %1042 = vmatprep.subr.bf16.mxu0 0
  %1043 = vmatpush2.bf16.msra.mxu0 %v760
  %1044 = vmatprep.subr.bf16.mxu0 0
  %1045 = vmatpush2.bf16.msra.mxu0 %v759
  %1046 = vmatprep.subr.bf16.mxu0 0
  %1047 = vmatpush2.bf16.msra.mxu0 %v758
  %1048 = vmatprep.mubr.bf16.mxu0 %v449
  %1049 = vmatmul.mubr.bf16.gmra.mxu0 %v448
  %v1050 = vpop.f32.mrf.mxu0
  %v1051 = vadd.f32 %v890, %v1050
  %v1052 = vpop.f32.mrf.mxu0
  %v1053 = vpop.f32.mrf.mxu0
  %v1054 = vadd.f32 %v893, %v1053
  %v1055 = vpop.f32.mrf.mxu0
  %1056 = vmatprep.mubr.bf16.mxu0 %v454
  %1057 = vmatmul.mubr.bf16.gmra.mxu0 %v453
  %v1058 = vpop.f32.mrf.mxu0
  %v1059 = vadd.f32 %v898, %v1058
  %v1060 = vpop.f32.mrf.mxu0
  %v1061 = vpop.f32.mrf.mxu0
  %v1062 = vadd.f32 %v901, %v1061
  %v1063 = vpop.f32.mrf.mxu0
  %1064 = vmatprep.mubr.bf16.mxu0 %v459
  %1065 = vmatmul.mubr.bf16.gmra.mxu0 %v458
  %v1066 = vpop.f32.mrf.mxu0
  %v1067 = vadd.f32 %v906, %v1066
  %v1068 = vpop.f32.mrf.mxu0
  %v1069 = vpop.f32.mrf.mxu0
  %v1070 = vadd.f32 %v909, %v1069
  %v1071 = vpop.f32.mrf.mxu0
  %1072 = vmatprep.mubr.bf16.mxu0 %v464
  %1073 = vmatmul.mubr.bf16.gmra.mxu0 %v463
  %v1074 = vpop.f32.mrf.mxu0
  %v1075 = vadd.f32 %v914, %v1074
  %v1076 = vpop.f32.mrf.mxu0
  %v1077 = vpop.f32.mrf.mxu0
  %v1078 = vadd.f32 %v917, %v1077
  %v1079 = vpop.f32.mrf.mxu0
  %1080 = vmatprep.mubr.bf16.mxu0 %v469
  %1081 = vmatmul.mubr.bf16.gmra.mxu0 %v468
  %v1082 = vpop.f32.mrf.mxu0
  %v1083 = vadd.f32 %v922, %v1082
  %v1084 = vpop.f32.mrf.mxu0
  %v1085 = vpop.f32.mrf.mxu0
  %v1086 = vadd.f32 %v925, %v1085
  %v1087 = vpop.f32.mrf.mxu0
  %1088 = vmatprep.mubr.bf16.mxu0 %v474
  %1089 = vmatmul.mubr.bf16.gmra.mxu0 %v473
  %v1090 = vpop.f32.mrf.mxu0
  %v1091 = vadd.f32 %v930, %v1090
  %v1092 = vpop.f32.mrf.mxu0
  %v1093 = vpop.f32.mrf.mxu0
  %v1094 = vadd.f32 %v933, %v1093
  %v1095 = vpop.f32.mrf.mxu0
  %1096 = vmatprep.mubr.bf16.mxu0 %v479
  %1097 = vmatmul.mubr.bf16.gmra.mxu0 %v478
  %v1098 = vpop.f32.mrf.mxu0
  %v1099 = vadd.f32 %v938, %v1098
  %v1100 = vpop.f32.mrf.mxu0
  %v1101 = vpop.f32.mrf.mxu0
  %v1102 = vadd.f32 %v941, %v1101
  %v1103 = vpop.f32.mrf.mxu0
  %1104 = vmatprep.mubr.bf16.mxu0 %v484
  %1105 = vmatmul.mubr.bf16.gmra.mxu0 %v483
  %v1106 = vpop.f32.mrf.mxu0
  %v1107 = vadd.f32 %v946, %v1106
  %v1108 = vpop.f32.mrf.mxu0
  %v1109 = vpop.f32.mrf.mxu0
  %v1110 = vadd.f32 %v949, %v1109
  %v1111 = vpop.f32.mrf.mxu0
  %1112 = vmatprep.mubr.bf16.mxu0 %v489
  %1113 = vmatmul.mubr.bf16.gmra.mxu0 %v488
  %v1114 = vpop.f32.mrf.mxu0
  %v1115 = vadd.f32 %v954, %v1114
  %v1116 = vpop.f32.mrf.mxu0
  %v1117 = vpop.f32.mrf.mxu0
  %v1118 = vadd.f32 %v957, %v1117
  %v1119 = vpop.f32.mrf.mxu0
  %1120 = vmatprep.mubr.bf16.mxu0 %v494
  %1121 = vmatmul.mubr.bf16.gmra.mxu0 %v493
  %v1122 = vpop.f32.mrf.mxu0
  %v1123 = vadd.f32 %v962, %v1122
  %v1124 = vpop.f32.mrf.mxu0
  %v1125 = vpop.f32.mrf.mxu0
  %v1126 = vadd.f32 %v965, %v1125
  %v1127 = vpop.f32.mrf.mxu0
  %1128 = vmatprep.mubr.bf16.mxu0 %v499
  %1129 = vmatmul.mubr.bf16.gmra.mxu0 %v498
  %v1130 = vpop.f32.mrf.mxu0
  %v1131 = vadd.f32 %v970, %v1130
  %v1132 = vpop.f32.mrf.mxu0
  %v1133 = vpop.f32.mrf.mxu0
  %v1134 = vadd.f32 %v973, %v1133
  %v1135 = vpop.f32.mrf.mxu0
  %1136 = vmatprep.mubr.bf16.mxu0 %v504
  %1137 = vmatmul.mubr.bf16.gmra.mxu0 %v503
  %v1138 = vpop.f32.mrf.mxu0
  %v1139 = vadd.f32 %v978, %v1138
  %v1140 = vpop.f32.mrf.mxu0
  %v1141 = vpop.f32.mrf.mxu0
  %v1142 = vadd.f32 %v981, %v1141
  %v1143 = vpop.f32.mrf.mxu0
  %1144 = vmatprep.mubr.bf16.mxu0 %v509
  %1145 = vmatmul.mubr.bf16.gmra.mxu0 %v508
  %v1146 = vpop.f32.mrf.mxu0
  %v1147 = vadd.f32 %v986, %v1146
  %v1148 = vpop.f32.mrf.mxu0
  %v1149 = vpop.f32.mrf.mxu0
  %v1150 = vadd.f32 %v989, %v1149
  %v1151 = vpop.f32.mrf.mxu0
  %1152 = vmatprep.mubr.bf16.mxu0 %v514
  %1153 = vmatmul.mubr.bf16.gmra.mxu0 %v513
  %v1154 = vpop.f32.mrf.mxu0
  %v1155 = vadd.f32 %v994, %v1154
  %v1156 = vpop.f32.mrf.mxu0
  %v1157 = vpop.f32.mrf.mxu0
  %v1158 = vadd.f32 %v997, %v1157
  %v1159 = vpop.f32.mrf.mxu0
  %1160 = vmatprep.mubr.bf16.mxu0 %v519
  %1161 = vmatmul.mubr.bf16.gmra.mxu0 %v518
  %v1162 = vpop.f32.mrf.mxu0
  %v1163 = vadd.f32 %v1002, %v1162
  %v1164 = vpop.f32.mrf.mxu0
  %v1165 = vpop.f32.mrf.mxu0
  %v1166 = vadd.f32 %v1005, %v1165
  %v1167 = vpop.f32.mrf.mxu0
  %1168 = vmatprep.mubr.bf16.mxu0 %v524
  %1169 = vmatmul.mubr.bf16.gmra.mxu0 %v523
  %v1170 = vpop.f32.mrf.mxu0
  %v1171 = vadd.f32 %v1010, %v1170
  %v1172 = vpop.f32.mrf.mxu0
  %v1173 = vpop.f32.mrf.mxu0
  %v1174 = vadd.f32 %v1013, %v1173
  %v1175 = vpop.f32.mrf.mxu0
  %1176 = vdwg.mxu0
  %1177 = vmatprep.subr.bf16.mxu0 0
  %1178 = vmatpush1.bf16.msra.mxu0 0
  %1179 = vmatprep.subr.bf16.mxu0 0
  %1180 = vmatpush1.bf16.msra.mxu0 0
  %1181 = vmatprep.subr.bf16.mxu0 0
  %1182 = vmatpush1.bf16.msra.mxu0 0
  %1183 = vmatprep.subr.bf16.mxu0 0
  %1184 = vmatpush1.bf16.msra.mxu0 0
  %1185 = vmatprep.subr.bf16.mxu0 0
  %1186 = vmatpush1.bf16.msra.mxu0 %v769
  %1187 = vmatprep.subr.bf16.mxu0 0
  %1188 = vmatpush1.bf16.msra.mxu0 %v768
  %1189 = vmatprep.subr.bf16.mxu0 0
  %1190 = vmatpush1.bf16.msra.mxu0 %v767
  %1191 = vmatprep.subr.bf16.mxu0 0
  %1192 = vmatpush1.bf16.msra.mxu0 %v766
  %1193 = vmatprep.subr.bf16.mxu0 0
  %1194 = vmatpush2.bf16.msra.mxu0 0
  %1195 = vmatprep.subr.bf16.mxu0 0
  %1196 = vmatpush2.bf16.msra.mxu0 0
  %1197 = vmatprep.subr.bf16.mxu0 0
  %1198 = vmatpush2.bf16.msra.mxu0 0
  %1199 = vmatprep.subr.bf16.mxu0 0
  %1200 = vmatpush2.bf16.msra.mxu0 0
  %1201 = vmatprep.subr.bf16.mxu0 0
  %1202 = vmatpush2.bf16.msra.mxu0 0
  %1203 = vmatprep.subr.bf16.mxu0 0
  %1204 = vmatpush2.bf16.msra.mxu0 0
  %1205 = vmatprep.subr.bf16.mxu0 0
  %1206 = vmatpush2.bf16.msra.mxu0 0
  %1207 = vmatprep.subr.bf16.mxu0 0
  %1208 = vmatpush2.bf16.msra.mxu0 0
  %1209 = vmatprep.mubr.bf16.mxu0 0
  %1210 = vmatmul.mubr.bf16.gmra.mxu0 %v808
  %v1211 = vpop.f32.mrf.mxu0
  %v1212 = vadd.f32 %v1051, %v1211
  %v1213 = vpop.f32.mrf.mxu0
  %v1214 = vpop.f32.mrf.mxu0
  %v1215 = vadd.f32 %v1054, %v1214
  %v1216 = vpop.f32.mrf.mxu0
  %1217 = vmatprep.mubr.bf16.mxu0 0
  %1218 = vmatmul.mubr.bf16.gmra.mxu0 %v811
  %v1219 = vpop.f32.mrf.mxu0
  %v1220 = vadd.f32 %v1059, %v1219
  %v1221 = vpop.f32.mrf.mxu0
  %v1222 = vpop.f32.mrf.mxu0
  %v1223 = vadd.f32 %v1062, %v1222
  %v1224 = vpop.f32.mrf.mxu0
  %1225 = vmatprep.mubr.bf16.mxu0 0
  %1226 = vmatmul.mubr.bf16.gmra.mxu0 %v814
  %v1227 = vpop.f32.mrf.mxu0
  %v1228 = vadd.f32 %v1067, %v1227
  %v1229 = vpop.f32.mrf.mxu0
  %v1230 = vpop.f32.mrf.mxu0
  %v1231 = vadd.f32 %v1070, %v1230
  %v1232 = vpop.f32.mrf.mxu0
  %1233 = vmatprep.mubr.bf16.mxu0 0
  %1234 = vmatmul.mubr.bf16.gmra.mxu0 %v817
  %v1235 = vpop.f32.mrf.mxu0
  %v1236 = vadd.f32 %v1075, %v1235
  %v1237 = vpop.f32.mrf.mxu0
  %v1238 = vpop.f32.mrf.mxu0
  %v1239 = vadd.f32 %v1078, %v1238
  %v1240 = vpop.f32.mrf.mxu0
  %1241 = vmatprep.mubr.bf16.mxu0 0
  %1242 = vmatmul.mubr.bf16.gmra.mxu0 %v820
  %v1243 = vpop.f32.mrf.mxu0
  %v1244 = vadd.f32 %v1083, %v1243
  %v1245 = vpop.f32.mrf.mxu0
  %v1246 = vpop.f32.mrf.mxu0
  %v1247 = vadd.f32 %v1086, %v1246
  %v1248 = vpop.f32.mrf.mxu0
  %1249 = vmatprep.mubr.bf16.mxu0 0
  %1250 = vmatmul.mubr.bf16.gmra.mxu0 %v823
  %v1251 = vpop.f32.mrf.mxu0
  %v1252 = vadd.f32 %v1091, %v1251
  %v1253 = vpop.f32.mrf.mxu0
  %v1254 = vpop.f32.mrf.mxu0
  %v1255 = vadd.f32 %v1094, %v1254
  %v1256 = vpop.f32.mrf.mxu0
  %1257 = vmatprep.mubr.bf16.mxu0 0
  %1258 = vmatmul.mubr.bf16.gmra.mxu0 %v826
  %v1259 = vpop.f32.mrf.mxu0
  %v1260 = vadd.f32 %v1099, %v1259
  %v1261 = vpop.f32.mrf.mxu0
  %v1262 = vpop.f32.mrf.mxu0
  %v1263 = vadd.f32 %v1102, %v1262
  %v1264 = vpop.f32.mrf.mxu0
  %1265 = vmatprep.mubr.bf16.mxu0 0
  %1266 = vmatmul.mubr.bf16.gmra.mxu0 %v829
  %v1267 = vpop.f32.mrf.mxu0
  %v1268 = vadd.f32 %v1107, %v1267
  %v1269 = vpop.f32.mrf.mxu0
  %v1270 = vpop.f32.mrf.mxu0
  %v1271 = vadd.f32 %v1110, %v1270
  %v1272 = vpop.f32.mrf.mxu0
  %1273 = vmatprep.mubr.bf16.mxu0 0
  %1274 = vmatmul.mubr.bf16.gmra.mxu0 %v832
  %v1275 = vpop.f32.mrf.mxu0
  %v1276 = vadd.f32 %v1115, %v1275
  %v1277 = vpop.f32.mrf.mxu0
  %v1278 = vpop.f32.mrf.mxu0
  %v1279 = vadd.f32 %v1118, %v1278
  %v1280 = vpop.f32.mrf.mxu0
  %1281 = vmatprep.mubr.bf16.mxu0 0
  %1282 = vmatmul.mubr.bf16.gmra.mxu0 %v835
  %v1283 = vpop.f32.mrf.mxu0
  %v1284 = vadd.f32 %v1123, %v1283
  %v1285 = vpop.f32.mrf.mxu0
  %v1286 = vpop.f32.mrf.mxu0
  %v1287 = vadd.f32 %v1126, %v1286
  %v1288 = vpop.f32.mrf.mxu0
  %1289 = vmatprep.mubr.bf16.mxu0 0
  %1290 = vmatmul.mubr.bf16.gmra.mxu0 %v838
  %v1291 = vpop.f32.mrf.mxu0
  %v1292 = vadd.f32 %v1131, %v1291
  %v1293 = vpop.f32.mrf.mxu0
  %v1294 = vpop.f32.mrf.mxu0
  %v1295 = vadd.f32 %v1134, %v1294
  %v1296 = vpop.f32.mrf.mxu0
  %1297 = vmatprep.mubr.bf16.mxu0 0
  %1298 = vmatmul.mubr.bf16.gmra.mxu0 %v841
  %v1299 = vpop.f32.mrf.mxu0
  %v1300 = vadd.f32 %v1139, %v1299
  %v1301 = vpop.f32.mrf.mxu0
  %v1302 = vpop.f32.mrf.mxu0
  %v1303 = vadd.f32 %v1142, %v1302
  %v1304 = vpop.f32.mrf.mxu0
  %1305 = vmatprep.mubr.bf16.mxu0 0
  %1306 = vmatmul.mubr.bf16.gmra.mxu0 %v844
  %v1307 = vpop.f32.mrf.mxu0
  %v1308 = vadd.f32 %v1147, %v1307
  %v1309 = vpop.f32.mrf.mxu0
  %v1310 = vpop.f32.mrf.mxu0
  %v1311 = vadd.f32 %v1150, %v1310
  %v1312 = vpop.f32.mrf.mxu0
  %1313 = vmatprep.mubr.bf16.mxu0 0
  %1314 = vmatmul.mubr.bf16.gmra.mxu0 %v847
  %v1315 = vpop.f32.mrf.mxu0
  %v1316 = vadd.f32 %v1155, %v1315
  %v1317 = vpop.f32.mrf.mxu0
  %v1318 = vpop.f32.mrf.mxu0
  %v1319 = vadd.f32 %v1158, %v1318
  %v1320 = vpop.f32.mrf.mxu0
  %1321 = vmatprep.mubr.bf16.mxu0 0
  %1322 = vmatmul.mubr.bf16.gmra.mxu0 %v850
  %v1323 = vpop.f32.mrf.mxu0
  %v1324 = vadd.f32 %v1163, %v1323
  %v1325 = vpop.f32.mrf.mxu0
  %v1326 = vpop.f32.mrf.mxu0
  %v1327 = vadd.f32 %v1166, %v1326
  %v1328 = vpop.f32.mrf.mxu0
  %1329 = vmatprep.mubr.bf16.mxu0 0
  %1330 = vmatmul.mubr.bf16.gmra.mxu0 %v853
  %v1331 = vpop.f32.mrf.mxu0
  %v1332 = vadd.f32 %v1171, %v1331
  %v1333 = vpop.f32.mrf.mxu0
  %v1334 = vpop.f32.mrf.mxu0
  %v1335 = vadd.f32 %v1174, %v1334
  %v1336 = vpop.f32.mrf.mxu0
  %1337 = vdwg.mxu0
  %v1338 = vmax.f32 %v1212, 0.0
  %v1339 = vmax.f32 %v1215, 0.0
  %v1340 = vmax.f32 %v1220, 0.0
  %v1341 = vmax.f32 %v1223, 0.0
  %v1342 = vmax.f32 %v1228, 0.0
  %v1343 = vmax.f32 %v1231, 0.0
  %v1344 = vmax.f32 %v1236, 0.0
  %v1345 = vmax.f32 %v1239, 0.0
  %v1346 = vmax.f32 %v1244, 0.0
  %v1347 = vmax.f32 %v1247, 0.0
  %v1348 = vmax.f32 %v1252, 0.0
  %v1349 = vmax.f32 %v1255, 0.0
  %v1350 = vmax.f32 %v1260, 0.0
  %v1351 = vmax.f32 %v1263, 0.0
  %v1352 = vmax.f32 %v1268, 0.0
  %v1353 = vmax.f32 %v1271, 0.0
  %v1354 = vmax.f32 %v1276, 0.0
  %v1355 = vmax.f32 %v1279, 0.0
  %v1356 = vmax.f32 %v1284, 0.0
  %v1357 = vmax.f32 %v1287, 0.0
  %v1358 = vmax.f32 %v1292, 0.0
  %v1359 = vmax.f32 %v1295, 0.0
  %v1360 = vmax.f32 %v1300, 0.0
  %v1361 = vmax.f32 %v1303, 0.0
  %v1362 = vmax.f32 %v1308, 0.0
  %v1363 = vmax.f32 %v1311, 0.0
  %v1364 = vmax.f32 %v1316, 0.0
  %v1365 = vmax.f32 %v1319, 0.0
  %v1366 = vmax.f32 %v1324, 0.0
  %v1367 = vmax.f32 %v1327, 0.0
  %v1368 = vmax.f32 %v1332, 0.0
  %v1369 = vmax.f32 %v1335, 0.0
  %1370 = vst [vmem:[%s3] sm:$0xff] %v1338
  %1371 = vst [vmem:[%s3 + $0x8] sm:$0xff] %v1339
  %1372 = vst [vmem:[%s3 + $0x10] sm:$0xff] %v1340
  %1373 = vst [vmem:[%s3 + $0x18] sm:$0xff] %v1341
  %1374 = vst [vmem:[%s3 + $0x20] sm:$0xff] %v1342
  %1375 = vst [vmem:[%s3 + $0x28] sm:$0xff] %v1343
  %1376 = vst [vmem:[%s3 + $0x30] sm:$0xff] %v1344
  %1377 = vst [vmem:[%s3 + $0x38] sm:$0xff] %v1345
  %1378 = vst [vmem:[%s3 + $0x40] sm:$0xff] %v1346
  %1379 = vst [vmem:[%s3 + $0x48] sm:$0xff] %v1347
  %1380 = vst [vmem:[%s3 + $0x50] sm:$0xff] %v1348
  %1381 = vst [vmem:[%s3 + $0x58] sm:$0xff] %v1349
  %1382 = vst [vmem:[%s3 + $0x60] sm:$0xff] %v1350
  %1383 = vst [vmem:[%s3 + $0x68] sm:$0xff] %v1351
  %1384 = vst [vmem:[%s3 + $0x70] sm:$0xff] %v1352
  %1385 = vst [vmem:[%s3 + $0x78] sm:$0xff] %v1353
  %1386 = vst [vmem:[%s3 + $0x80] sm:$0xff] %v1354
  %1387 = vst [vmem:[%s3 + $0x88] sm:$0xff] %v1355
  %1388 = vst [vmem:[%s3 + $0x90] sm:$0xff] %v1356
  %1389 = vst [vmem:[%s3 + $0x98] sm:$0xff] %v1357
  %1390 = vst [vmem:[%s3 + $0xa0] sm:$0xff] %v1358
  %1391 = vst [vmem:[%s3 + $0xa8] sm:$0xff] %v1359
  %1392 = vst [vmem:[%s3 + $0xb0] sm:$0xff] %v1360
  %1393 = vst [vmem:[%s3 + $0xb8] sm:$0xff] %v1361
  %1394 = vst [vmem:[%s3 + $0xc0] sm:$0xff] %v1362
  %1395 = vst [vmem:[%s3 + $0xc8] sm:$0xff] %v1363
  %1396 = vst [vmem:[%s3 + $0xd0] sm:$0xff] %v1364
  %1397 = vst [vmem:[%s3 + $0xd8] sm:$0xff] %v1365
  %1398 = vst [vmem:[%s3 + $0xe0] sm:$0xff] %v1366
  %1399 = vst [vmem:[%s3 + $0xe8] sm:$0xff] %v1367
  %1400 = vst [vmem:[%s3 + $0xf0] sm:$0xff] %v1368
  %1401 = vst [vmem:[%s3 + $0xf8] sm:$0xff] %v1369
  // Predicated region
  $region14: #{point_correspondence_forward.10} parent=0 // pred_check
    _
  $region15: #{point_correspondence_forward.10} parent=0 // pred_check_branch
    %1403 = sbr.rel (0) target = $region17
  $region16: #{point_correspondence_forward.10} parent=0 // pred_region
    _
  $region17: #{point_correspondence_forward.10} parent=0 // pred_fallthru
    _
  // Predicated region
  $region18: #{point_correspondence_forward.10} parent=0 // pred_check
    _
  $region19: #{point_correspondence_forward.10} parent=0 // pred_check_branch
    %1405 = sbr.rel (0) target = $region21
  $region20: #{point_correspondence_forward.10} parent=0 // pred_region
    _
  $region21: #{point_correspondence_forward.10} parent=0 // pred_fallthru
    _

// kernel: point_correspondence_forward.11
$region0: #{point_correspondence_forward.11}
  #allocation0 [shape = 'u32[]', space=smem, size = 0x4, offset = 0x4, fixed_abs, tag = 'smem constant byte address 0x4 - core index']
  #allocation1 [shape = 'u32[144,128]{1,0:T(1,128)}', space=vmem, size = 0x12000, scoped, tag = 'internal scratch']
  %s0 = inlined_call_operand.vmem [shape: bf16[64,1152], index: 0, kind: input, shape index: {}]
  %s1 = inlined_call_operand.vmem [shape: bf16[1152,256], index: 1, kind: input, shape index: {}]
  %s2 = inlined_call_operand.vmem [shape: f32[1,256], index: 2, kind: input, shape index: {}]
  %s3 = inlined_call_operand.vmem [shape: f32[64,256], index: 3, kind: output, shape index: {}]
  %s4 = sld [smem:[#allocation0]]
  $region22: #{point_correspondence_forward.11} parent=0
    _
  %s6 = ssub.s32 1, %s4
  %s7 = scalar_select 0, %s6, %s4
  // Predicated region
  $region2: #{point_correspondence_forward.11} parent=0 // pred_check
    _
  $region3: #{point_correspondence_forward.11} parent=0 // pred_check_branch
    %9 = sbr.rel (0) target = $region5
  $region4: #{point_correspondence_forward.11} parent=0 // pred_region
    _
  $region5: #{point_correspondence_forward.11} parent=0 // pred_fallthru
    _
  // Predicated region
  $region6: #{point_correspondence_forward.11} parent=0 // pred_check
    _
  $region7: #{point_correspondence_forward.11} parent=0 // pred_check_branch
    %11 = sbr.rel (0) target = $region9
  $region8: #{point_correspondence_forward.11} parent=0 // pred_region
    _
  $region9: #{point_correspondence_forward.11} parent=0 // pred_fallthru
    _
  // Predicated region
  $region10: #{point_correspondence_forward.11} parent=0 // pred_check
    _
  $region11: #{point_correspondence_forward.11} parent=0 // pred_check_branch
    %13 = sbr.rel (0) target = $region13
  $region12: #{point_correspondence_forward.11} parent=0 // pred_region
    _
  $region13: #{point_correspondence_forward.11} parent=0 // pred_fallthru
    _
  %v15 = vld [vmem:[%s0] sm:$0xff]
  %v16 = vld [vmem:[%s0 + $0x8] sm:$0xff]
  %v17 = vld [vmem:[%s0 + $0x10] sm:$0xff]
  %v18 = vld [vmem:[%s0 + $0x18] sm:$0xff]
  %v19 = vld [vmem:[%s0 + $0x20] sm:$0xf]
  %v20 = vld [vmem:[%s0 + $0x24] sm:$0xff]
  %v21 = vld [vmem:[%s0 + $0x2c] sm:$0xff]
  %v22 = vld [vmem:[%s0 + $0x34] sm:$0xff]
  %v23 = vld [vmem:[%s0 + $0x3c] sm:$0xff]
  %v24 = vld [vmem:[%s0 + $0x44] sm:$0xf]
  %v25 = vld [vmem:[%s0 + $0x48] sm:$0xff]
  %v26 = vld [vmem:[%s0 + $0x50] sm:$0xff]
  %v27 = vld [vmem:[%s0 + $0x58] sm:$0xff]
  %v28 = vld [vmem:[%s0 + $0x60] sm:$0xff]
  %v29 = vld [vmem:[%s0 + $0x68] sm:$0xf]
  %v30 = vld [vmem:[%s0 + $0x6c] sm:$0xff]
  %v31 = vld [vmem:[%s0 + $0x74] sm:$0xff]
  %v32 = vld [vmem:[%s0 + $0x7c] sm:$0xff]
  %v33 = vld [vmem:[%s0 + $0x84] sm:$0xff]
  %v34 = vld [vmem:[%s0 + $0x8c] sm:$0xf]
  %v35 = vld [vmem:[%s0 + $0x90] sm:$0xff]
  %v36 = vld [vmem:[%s0 + $0x98] sm:$0xff]
  %v37 = vld [vmem:[%s0 + $0xa0] sm:$0xff]
  %v38 = vld [vmem:[%s0 + $0xa8] sm:$0xff]
  %v39 = vld [vmem:[%s0 + $0xb0] sm:$0xf]
  %v40 = vld [vmem:[%s0 + $0xb4] sm:$0xff]
  %v41 = vld [vmem:[%s0 + $0xbc] sm:$0xff]
  %v42 = vld [vmem:[%s0 + $0xc4] sm:$0xff]
  %v43 = vld [vmem:[%s0 + $0xcc] sm:$0xff]
  %v44 = vld [vmem:[%s0 + $0xd4] sm:$0xf]
  %v45 = vld [vmem:[%s0 + $0xd8] sm:$0xff]
  %v46 = vld [vmem:[%s0 + $0xe0] sm:$0xff]
  %v47 = vld [vmem:[%s0 + $0xe8] sm:$0xff]
  %v48 = vld [vmem:[%s0 + $0xf0] sm:$0xff]
  %v49 = vld [vmem:[%s0 + $0xf8] sm:$0xf]
  %v50 = vld [vmem:[%s0 + $0xfc] sm:$0xff]
  %v51 = vld [vmem:[%s0 + $0x104] sm:$0xff]
  %v52 = vld [vmem:[%s0 + $0x10c] sm:$0xff]
  %v53 = vld [vmem:[%s0 + $0x114] sm:$0xff]
  %v54 = vld [vmem:[%s0 + $0x11c] sm:$0xf]
  %v55 = vld [vmem:[%s1] sm:$0xff]
  %v56 = vld [vmem:[%s1 + $0x8] sm:$0xff]
  %v57 = vld [vmem:[%s1 + $0x10] sm:$0xff]
  %v58 = vld [vmem:[%s1 + $0x18] sm:$0xff]
  %v59 = vld [vmem:[%s1 + $0x20] sm:$0xff]
  %v60 = vld [vmem:[%s1 + $0x28] sm:$0xff]
  %v61 = vld [vmem:[%s1 + $0x30] sm:$0xff]
  %v62 = vld [vmem:[%s1 + $0x38] sm:$0xff]
  %v63 = vld [vmem:[%s1 + $0x40] sm:$0xff]
  %v64 = vld [vmem:[%s1 + $0x48] sm:$0xff]
  %v65 = vld [vmem:[%s1 + $0x50] sm:$0xff]
  %v66 = vld [vmem:[%s1 + $0x58] sm:$0xff]
  %v67 = vld [vmem:[%s1 + $0x60] sm:$0xff]
  %v68 = vld [vmem:[%s1 + $0x68] sm:$0xff]
  %v69 = vld [vmem:[%s1 + $0x70] sm:$0xff]
  %v70 = vld [vmem:[%s1 + $0x78] sm:$0xff]
  %v71 = vld [vmem:[%s1 + $0x80] sm:$0xff]
  %v72 = vld [vmem:[%s1 + $0x88] sm:$0xff]
  %v73 = vld [vmem:[%s1 + $0x90] sm:$0xff]
  %v74 = vld [vmem:[%s1 + $0x98] sm:$0xff]
  %v75 = vld [vmem:[%s1 + $0xa0] sm:$0xff]
  %v76 = vld [vmem:[%s1 + $0xa8] sm:$0xff]
  %v77 = vld [vmem:[%s1 + $0xb0] sm:$0xff]
  %v78 = vld [vmem:[%s1 + $0xb8] sm:$0xff]
  %v79 = vld [vmem:[%s1 + $0xc0] sm:$0xff]
  %v80 = vld [vmem:[%s1 + $0xc8] sm:$0xff]
  %v81 = vld [vmem:[%s1 + $0xd0] sm:$0xff]
  %v82 = vld [vmem:[%s1 + $0xd8] sm:$0xff]
  %v83 = vld [vmem:[%s1 + $0xe0] sm:$0xff]
  %v84 = vld [vmem:[%s1 + $0xe8] sm:$0xff]
  %v85 = vld [vmem:[%s1 + $0xf0] sm:$0xff]
  %v86 = vld [vmem:[%s1 + $0xf8] sm:$0xff]
  %v87 = vld [vmem:[%s1 + $0x100] sm:$0xff]
  %v88 = vld [vmem:[%s1 + $0x108] sm:$0xff]
  %v89 = vld [vmem:[%s1 + $0x110] sm:$0xff]
  %v90 = vld [vmem:[%s1 + $0x118] sm:$0xff]
  %v91 = vld [vmem:[%s1 + $0x120] sm:$0xff]
  %v92 = vld [vmem:[%s1 + $0x128] sm:$0xff]
  %v93 = vld [vmem:[%s1 + $0x130] sm:$0xff]
  %v94 = vld [vmem:[%s1 + $0x138] sm:$0xff]
  %v95 = vld [vmem:[%s1 + $0x140] sm:$0xff]
  %v96 = vld [vmem:[%s1 + $0x148] sm:$0xff]
  %v97 = vld [vmem:[%s1 + $0x150] sm:$0xff]
  %v98 = vld [vmem:[%s1 + $0x158] sm:$0xff]
  %v99 = vld [vmem:[%s1 + $0x160] sm:$0xff]
  %v100 = vld [vmem:[%s1 + $0x168] sm:$0xff]
  %v101 = vld [vmem:[%s1 + $0x170] sm:$0xff]
  %v102 = vld [vmem:[%s1 + $0x178] sm:$0xff]
  %v103 = vld [vmem:[%s1 + $0x180] sm:$0xff]
  %v104 = vld [vmem:[%s1 + $0x188] sm:$0xff]
  %v105 = vld [vmem:[%s1 + $0x190] sm:$0xff]
  %v106 = vld [vmem:[%s1 + $0x198] sm:$0xff]
  %v107 = vld [vmem:[%s1 + $0x1a0] sm:$0xff]
  %v108 = vld [vmem:[%s1 + $0x1a8] sm:$0xff]
  %v109 = vld [vmem:[%s1 + $0x1b0] sm:$0xff]
  %v110 = vld [vmem:[%s1 + $0x1b8] sm:$0xff]
  %v111 = vld [vmem:[%s1 + $0x1c0] sm:$0xff]
  %v112 = vld [vmem:[%s1 + $0x1c8] sm:$0xff]
  %v113 = vld [vmem:[%s1 + $0x1d0] sm:$0xff]
  %v114 = vld [vmem:[%s1 + $0x1d8] sm:$0xff]
  %v115 = vld [vmem:[%s1 + $0x1e0] sm:$0xff]
  %v116 = vld [vmem:[%s1 + $0x1e8] sm:$0xff]
  %v117 = vld [vmem:[%s1 + $0x1f0] sm:$0xff]
  %v118 = vld [vmem:[%s1 + $0x1f8] sm:$0xff]
  %v119 = vld [vmem:[%s1 + $0x200] sm:$0xff]
  %v120 = vld [vmem:[%s1 + $0x208] sm:$0xff]
  %v121 = vld [vmem:[%s1 + $0x210] sm:$0xff]
  %v122 = vld [vmem:[%s1 + $0x218] sm:$0xff]
  %v123 = vld [vmem:[%s1 + $0x220] sm:$0xff]
  %v124 = vld [vmem:[%s1 + $0x228] sm:$0xff]
  %v125 = vld [vmem:[%s1 + $0x230] sm:$0xff]
  %v126 = vld [vmem:[%s1 + $0x238] sm:$0xff]
  %v127 = vld [vmem:[%s1 + $0x240] sm:$0xff]
  %v128 = vld [vmem:[%s1 + $0x248] sm:$0xff]
  %v129 = vld [vmem:[%s1 + $0x250] sm:$0xff]
  %v130 = vld [vmem:[%s1 + $0x258] sm:$0xff]
  %v131 = vld [vmem:[%s1 + $0x260] sm:$0xff]
  %v132 = vld [vmem:[%s1 + $0x268] sm:$0xff]
  %v133 = vld [vmem:[%s1 + $0x270] sm:$0xff]
  %v134 = vld [vmem:[%s1 + $0x278] sm:$0xff]
  %v135 = vld [vmem:[%s1 + $0x280] sm:$0xff]
  %v136 = vld [vmem:[%s1 + $0x288] sm:$0xff]
  %v137 = vld [vmem:[%s1 + $0x290] sm:$0xff]
  %v138 = vld [vmem:[%s1 + $0x298] sm:$0xff]
  %v139 = vld [vmem:[%s1 + $0x2a0] sm:$0xff]
  %v140 = vld [vmem:[%s1 + $0x2a8] sm:$0xff]
  %v141 = vld [vmem:[%s1 + $0x2b0] sm:$0xff]
  %v142 = vld [vmem:[%s1 + $0x2b8] sm:$0xff]
  %v143 = vld [vmem:[%s1 + $0x2c0] sm:$0xff]
  %v144 = vld [vmem:[%s1 + $0x2c8] sm:$0xff]
  %v145 = vld [vmem:[%s1 + $0x2d0] sm:$0xff]
  %v146 = vld [vmem:[%s1 + $0x2d8] sm:$0xff]
  %v147 = vld [vmem:[%s1 + $0x2e0] sm:$0xff]
  %v148 = vld [vmem:[%s1 + $0x2e8] sm:$0xff]
  %v149 = vld [vmem:[%s1 + $0x2f0] sm:$0xff]
  %v150 = vld [vmem:[%s1 + $0x2f8] sm:$0xff]
  %v151 = vld [vmem:[%s1 + $0x300] sm:$0xff]
  %v152 = vld [vmem:[%s1 + $0x308] sm:$0xff]
  %v153 = vld [vmem:[%s1 + $0x310] sm:$0xff]
  %v154 = vld [vmem:[%s1 + $0x318] sm:$0xff]
  %v155 = vld [vmem:[%s1 + $0x320] sm:$0xff]
  %v156 = vld [vmem:[%s1 + $0x328] sm:$0xff]
  %v157 = vld [vmem:[%s1 + $0x330] sm:$0xff]
  %v158 = vld [vmem:[%s1 + $0x338] sm:$0xff]
  %v159 = vld [vmem:[%s1 + $0x340] sm:$0xff]
  %v160 = vld [vmem:[%s1 + $0x348] sm:$0xff]
  %v161 = vld [vmem:[%s1 + $0x350] sm:$0xff]
  %v162 = vld [vmem:[%s1 + $0x358] sm:$0xff]
  %v163 = vld [vmem:[%s1 + $0x360] sm:$0xff]
  %v164 = vld [vmem:[%s1 + $0x368] sm:$0xff]
  %v165 = vld [vmem:[%s1 + $0x370] sm:$0xff]
  %v166 = vld [vmem:[%s1 + $0x378] sm:$0xff]
  %v167 = vld [vmem:[%s1 + $0x380] sm:$0xff]
  %v168 = vld [vmem:[%s1 + $0x388] sm:$0xff]
  %v169 = vld [vmem:[%s1 + $0x390] sm:$0xff]
  %v170 = vld [vmem:[%s1 + $0x398] sm:$0xff]
  %v171 = vld [vmem:[%s1 + $0x3a0] sm:$0xff]
  %v172 = vld [vmem:[%s1 + $0x3a8] sm:$0xff]
  %v173 = vld [vmem:[%s1 + $0x3b0] sm:$0xff]
  %v174 = vld [vmem:[%s1 + $0x3b8] sm:$0xff]
  %v175 = vld [vmem:[%s1 + $0x3c0] sm:$0xff]
  %v176 = vld [vmem:[%s1 + $0x3c8] sm:$0xff]
  %v177 = vld [vmem:[%s1 + $0x3d0] sm:$0xff]
  %v178 = vld [vmem:[%s1 + $0x3d8] sm:$0xff]
  %v179 = vld [vmem:[%s1 + $0x3e0] sm:$0xff]
  %v180 = vld [vmem:[%s1 + $0x3e8] sm:$0xff]
  %v181 = vld [vmem:[%s1 + $0x3f0] sm:$0xff]
  %v182 = vld [vmem:[%s1 + $0x3f8] sm:$0xff]
  %v183 = vld [vmem:[%s1 + $0x400] sm:$0xff]
  %v184 = vld [vmem:[%s1 + $0x408] sm:$0xff]
  %v185 = vld [vmem:[%s1 + $0x410] sm:$0xff]
  %v186 = vld [vmem:[%s1 + $0x418] sm:$0xff]
  %v187 = vld [vmem:[%s1 + $0x420] sm:$0xff]
  %v188 = vld [vmem:[%s1 + $0x428] sm:$0xff]
  %v189 = vld [vmem:[%s1 + $0x430] sm:$0xff]
  %v190 = vld [vmem:[%s1 + $0x438] sm:$0xff]
  %v191 = vld [vmem:[%s1 + $0x440] sm:$0xff]
  %v192 = vld [vmem:[%s1 + $0x448] sm:$0xff]
  %v193 = vld [vmem:[%s1 + $0x450] sm:$0xff]
  %v194 = vld [vmem:[%s1 + $0x458] sm:$0xff]
  %v195 = vld [vmem:[%s1 + $0x460] sm:$0xff]
  %v196 = vld [vmem:[%s1 + $0x468] sm:$0xff]
  %v197 = vld [vmem:[%s1 + $0x470] sm:$0xff]
  %v198 = vld [vmem:[%s1 + $0x478] sm:$0xff]
  %v199 = vld [vmem:[%s2] sm:$0x3]
  %v201 = vlaneseq
  %v202 = vshrl.u32 %v201, 7
  %v203 = vsub.s32 0, %v202
  %v204 = vrot.slane %v199, %v203
  %v205 = vlaneseq
  %v206 = vshrl.u32 %v205, 7
  %v207 = vsub.s32 1, %v206
  %v208 = vrot.slane %v199, %v207
  %v251 = vunpack.c.l.b16 %v15
  %v252 = vunpack.c.h.b16 %v15
  %v253 = vunpack.c.l.b16 %v16
  %v254 = vunpack.c.h.b16 %v16
  %v255 = vunpack.c.l.b16 %v17
  %v256 = vunpack.c.h.b16 %v17
  %v257 = vunpack.c.l.b16 %v18
  %v258 = vunpack.c.h.b16 %v18
  %v259 = vunpack.c.l.b16 %v19
  %v260 = vunpack.c.l.b16 %v20
  %v261 = vunpack.c.h.b16 %v20
  %v262 = vunpack.c.l.b16 %v21
  %v263 = vunpack.c.h.b16 %v21
  %v264 = vunpack.c.l.b16 %v22
  %v265 = vunpack.c.h.b16 %v22
  %v266 = vunpack.c.l.b16 %v23
  %v267 = vunpack.c.h.b16 %v23
  %v268 = vunpack.c.l.b16 %v24
  %v269 = vunpack.c.l.b16 %v25
  %v270 = vunpack.c.h.b16 %v25
  %v271 = vunpack.c.l.b16 %v26
  %v272 = vunpack.c.h.b16 %v26
  %v273 = vunpack.c.l.b16 %v27
  %v274 = vunpack.c.h.b16 %v27
  %v275 = vunpack.c.l.b16 %v28
  %v276 = vunpack.c.h.b16 %v28
  %v277 = vunpack.c.l.b16 %v29
  %v278 = vunpack.c.l.b16 %v30
  %v279 = vunpack.c.h.b16 %v30
  %v280 = vunpack.c.l.b16 %v31
  %v281 = vunpack.c.h.b16 %v31
  %v282 = vunpack.c.l.b16 %v32
  %v283 = vunpack.c.h.b16 %v32
  %v284 = vunpack.c.l.b16 %v33
  %v285 = vunpack.c.h.b16 %v33
  %v286 = vunpack.c.l.b16 %v34
  %v287 = vunpack.c.l.b16 %v35
  %v288 = vunpack.c.h.b16 %v35
  %v289 = vunpack.c.l.b16 %v36
  %v290 = vunpack.c.h.b16 %v36
  %v291 = vunpack.c.l.b16 %v37
  %v292 = vunpack.c.h.b16 %v37
  %v293 = vunpack.c.l.b16 %v38
  %v294 = vunpack.c.h.b16 %v38
  %v295 = vunpack.c.l.b16 %v39
  %v296 = vunpack.c.l.b16 %v40
  %v297 = vunpack.c.h.b16 %v40
  %v298 = vunpack.c.l.b16 %v41
  %v299 = vunpack.c.h.b16 %v41
  %v300 = vunpack.c.l.b16 %v42
  %v301 = vunpack.c.h.b16 %v42
  %v302 = vunpack.c.l.b16 %v43
  %v303 = vunpack.c.h.b16 %v43
  %v304 = vunpack.c.l.b16 %v44
  %v305 = vunpack.c.l.b16 %v45
  %v306 = vunpack.c.h.b16 %v45
  %v307 = vunpack.c.l.b16 %v46
  %v308 = vunpack.c.h.b16 %v46
  %v309 = vunpack.c.l.b16 %v47
  %v310 = vunpack.c.h.b16 %v47
  %v311 = vunpack.c.l.b16 %v48
  %v312 = vunpack.c.h.b16 %v48
  %v313 = vunpack.c.l.b16 %v49
  %v314 = vunpack.c.l.b16 %v50
  %v315 = vunpack.c.h.b16 %v50
  %v316 = vunpack.c.l.b16 %v51
  %v317 = vunpack.c.h.b16 %v51
  %v318 = vunpack.c.l.b16 %v52
  %v319 = vunpack.c.h.b16 %v52
  %v320 = vunpack.c.l.b16 %v53
  %v321 = vunpack.c.h.b16 %v53
  %v322 = vunpack.c.l.b16 %v54
  %v323 = vpack.c.b16 %v260, %v251
  %v324 = vpack.c.b16 %v261, %v252
  %v325 = vpack.c.b16 %v262, %v253
  %v326 = vpack.c.b16 %v263, %v254
  %v327 = vpack.c.b16 %v264, %v255
  %v328 = vpack.c.b16 %v265, %v256
  %v329 = vpack.c.b16 %v266, %v257
  %v330 = vpack.c.b16 %v267, %v258
  %v331 = vpack.c.b16 %v268, %v259
  %v332 = vpack.c.b16 %v278, %v269
  %v333 = vpack.c.b16 %v279, %v270
  %v334 = vpack.c.b16 %v280, %v271
  %v335 = vpack.c.b16 %v281, %v272
  %v336 = vpack.c.b16 %v282, %v273
  %v337 = vpack.c.b16 %v283, %v274
  %v338 = vpack.c.b16 %v284, %v275
  %v339 = vpack.c.b16 %v285, %v276
  %v340 = vpack.c.b16 %v286, %v277
  %v341 = vpack.c.b16 %v296, %v287
  %v342 = vpack.c.b16 %v297, %v288
  %v343 = vpack.c.b16 %v298, %v289
  %v344 = vpack.c.b16 %v299, %v290
  %v345 = vpack.c.b16 %v300, %v291
  %v346 = vpack.c.b16 %v301, %v292
  %v347 = vpack.c.b16 %v302, %v293
  %v348 = vpack.c.b16 %v303, %v294
  %v349 = vpack.c.b16 %v304, %v295
  %v350 = vpack.c.b16 %v314, %v305
  %v351 = vpack.c.b16 %v315, %v306
  %v352 = vpack.c.b16 %v316, %v307
  %v353 = vpack.c.b16 %v317, %v308
  %v354 = vpack.c.b16 %v318, %v309
  %v355 = vpack.c.b16 %v319, %v310
  %v356 = vpack.c.b16 %v320, %v311
  %v357 = vpack.c.b16 %v321, %v312
  %v358 = vpack.c.b16 %v322, %v313
  %v539 = vunpack.c.l.b16 %v55
  %v540 = vunpack.c.h.b16 %v55
  %v541 = vunpack.c.l.b16 %v56
  %v542 = vunpack.c.h.b16 %v56
  %v543 = vunpack.c.l.b16 %v57
  %v544 = vunpack.c.h.b16 %v57
  %v545 = vunpack.c.l.b16 %v58
  %v546 = vunpack.c.h.b16 %v58
  %v547 = vunpack.c.l.b16 %v59
  %v548 = vunpack.c.h.b16 %v59
  %v549 = vunpack.c.l.b16 %v60
  %v550 = vunpack.c.h.b16 %v60
  %v551 = vunpack.c.l.b16 %v61
  %v552 = vunpack.c.h.b16 %v61
  %v553 = vunpack.c.l.b16 %v62
  %v554 = vunpack.c.h.b16 %v62
  %v555 = vunpack.c.l.b16 %v63
  %v556 = vunpack.c.h.b16 %v63
  %v557 = vunpack.c.l.b16 %v64
  %v558 = vunpack.c.h.b16 %v64
  %v559 = vunpack.c.l.b16 %v65
  %v560 = vunpack.c.h.b16 %v65
  %v561 = vunpack.c.l.b16 %v66
  %v562 = vunpack.c.h.b16 %v66
  %v563 = vunpack.c.l.b16 %v67
  %v564 = vunpack.c.h.b16 %v67
  %v565 = vunpack.c.l.b16 %v68
  %v566 = vunpack.c.h.b16 %v68
  %v567 = vunpack.c.l.b16 %v69
  %v568 = vunpack.c.h.b16 %v69
  %v569 = vunpack.c.l.b16 %v70
  %v570 = vunpack.c.h.b16 %v70
  %v571 = vunpack.c.l.b16 %v71
  %v572 = vunpack.c.h.b16 %v71
  %v573 = vunpack.c.l.b16 %v72
  %v574 = vunpack.c.h.b16 %v72
  %v575 = vunpack.c.l.b16 %v73
  %v576 = vunpack.c.h.b16 %v73
  %v577 = vunpack.c.l.b16 %v74
  %v578 = vunpack.c.h.b16 %v74
  %v579 = vunpack.c.l.b16 %v75
  %v580 = vunpack.c.h.b16 %v75
  %v581 = vunpack.c.l.b16 %v76
  %v582 = vunpack.c.h.b16 %v76
  %v583 = vunpack.c.l.b16 %v77
  %v584 = vunpack.c.h.b16 %v77
  %v585 = vunpack.c.l.b16 %v78
  %v586 = vunpack.c.h.b16 %v78
  %v587 = vunpack.c.l.b16 %v79
  %v588 = vunpack.c.h.b16 %v79
  %v589 = vunpack.c.l.b16 %v80
  %v590 = vunpack.c.h.b16 %v80
  %v591 = vunpack.c.l.b16 %v81
  %v592 = vunpack.c.h.b16 %v81
  %v593 = vunpack.c.l.b16 %v82
  %v594 = vunpack.c.h.b16 %v82
  %v595 = vunpack.c.l.b16 %v83
  %v596 = vunpack.c.h.b16 %v83
  %v597 = vunpack.c.l.b16 %v84
  %v598 = vunpack.c.h.b16 %v84
  %v599 = vunpack.c.l.b16 %v85
  %v600 = vunpack.c.h.b16 %v85
  %v601 = vunpack.c.l.b16 %v86
  %v602 = vunpack.c.h.b16 %v86
  %v603 = vunpack.c.l.b16 %v87
  %v604 = vunpack.c.h.b16 %v87
  %v605 = vunpack.c.l.b16 %v88
  %v606 = vunpack.c.h.b16 %v88
  %v607 = vunpack.c.l.b16 %v89
  %v608 = vunpack.c.h.b16 %v89
  %v609 = vunpack.c.l.b16 %v90
  %v610 = vunpack.c.h.b16 %v90
  %v611 = vunpack.c.l.b16 %v91
  %v612 = vunpack.c.h.b16 %v91
  %v613 = vunpack.c.l.b16 %v92
  %v614 = vunpack.c.h.b16 %v92
  %v615 = vunpack.c.l.b16 %v93
  %v616 = vunpack.c.h.b16 %v93
  %v617 = vunpack.c.l.b16 %v94
  %v618 = vunpack.c.h.b16 %v94
  %v619 = vunpack.c.l.b16 %v95
  %v620 = vunpack.c.h.b16 %v95
  %v621 = vunpack.c.l.b16 %v96
  %v622 = vunpack.c.h.b16 %v96
  %v623 = vunpack.c.l.b16 %v97
  %v624 = vunpack.c.h.b16 %v97
  %v625 = vunpack.c.l.b16 %v98
  %v626 = vunpack.c.h.b16 %v98
  %v627 = vunpack.c.l.b16 %v99
  %v628 = vunpack.c.h.b16 %v99
  %v629 = vunpack.c.l.b16 %v100
  %v630 = vunpack.c.h.b16 %v100
  %v631 = vunpack.c.l.b16 %v101
  %v632 = vunpack.c.h.b16 %v101
  %v633 = vunpack.c.l.b16 %v102
  %v634 = vunpack.c.h.b16 %v102
  %v635 = vunpack.c.l.b16 %v103
  %v636 = vunpack.c.h.b16 %v103
  %v637 = vunpack.c.l.b16 %v104
  %v638 = vunpack.c.h.b16 %v104
  %v639 = vunpack.c.l.b16 %v105
  %v640 = vunpack.c.h.b16 %v105
  %v641 = vunpack.c.l.b16 %v106
  %v642 = vunpack.c.h.b16 %v106
  %v643 = vunpack.c.l.b16 %v107
  %v644 = vunpack.c.h.b16 %v107
  %v645 = vunpack.c.l.b16 %v108
  %v646 = vunpack.c.h.b16 %v108
  %v647 = vunpack.c.l.b16 %v109
  %v648 = vunpack.c.h.b16 %v109
  %v649 = vunpack.c.l.b16 %v110
  %v650 = vunpack.c.h.b16 %v110
  %v651 = vunpack.c.l.b16 %v111
  %v652 = vunpack.c.h.b16 %v111
  %v653 = vunpack.c.l.b16 %v112
  %v654 = vunpack.c.h.b16 %v112
  %v655 = vunpack.c.l.b16 %v113
  %v656 = vunpack.c.h.b16 %v113
  %v657 = vunpack.c.l.b16 %v114
  %v658 = vunpack.c.h.b16 %v114
  %v659 = vunpack.c.l.b16 %v115
  %v660 = vunpack.c.h.b16 %v115
  %v661 = vunpack.c.l.b16 %v116
  %v662 = vunpack.c.h.b16 %v116
  %v663 = vunpack.c.l.b16 %v117
  %v664 = vunpack.c.h.b16 %v117
  %v665 = vunpack.c.l.b16 %v118
  %v666 = vunpack.c.h.b16 %v118
  %v667 = vunpack.c.l.b16 %v119
  %v668 = vunpack.c.h.b16 %v119
  %v669 = vunpack.c.l.b16 %v120
  %v670 = vunpack.c.h.b16 %v120
  %v671 = vunpack.c.l.b16 %v121
  %v672 = vunpack.c.h.b16 %v121
  %v673 = vunpack.c.l.b16 %v122
  %v674 = vunpack.c.h.b16 %v122
  %v675 = vunpack.c.l.b16 %v123
  %v676 = vunpack.c.h.b16 %v123
  %v677 = vunpack.c.l.b16 %v124
  %v678 = vunpack.c.h.b16 %v124
  %v679 = vunpack.c.l.b16 %v125
  %v680 = vunpack.c.h.b16 %v125
  %v681 = vunpack.c.l.b16 %v126
  %v682 = vunpack.c.h.b16 %v126
  %v683 = vunpack.c.l.b16 %v127
  %v684 = vunpack.c.h.b16 %v127
  %v685 = vunpack.c.l.b16 %v128
  %v686 = vunpack.c.h.b16 %v128
  %v687 = vunpack.c.l.b16 %v129
  %v688 = vunpack.c.h.b16 %v129
  %v689 = vunpack.c.l.b16 %v130
  %v690 = vunpack.c.h.b16 %v130
  %v691 = vunpack.c.l.b16 %v131
  %v692 = vunpack.c.h.b16 %v131
  %v693 = vunpack.c.l.b16 %v132
  %v694 = vunpack.c.h.b16 %v132
  %v695 = vunpack.c.l.b16 %v133
  %v696 = vunpack.c.h.b16 %v133
  %v697 = vunpack.c.l.b16 %v134
  %v698 = vunpack.c.h.b16 %v134
  %v699 = vunpack.c.l.b16 %v135
  %v700 = vunpack.c.h.b16 %v135
  %v701 = vunpack.c.l.b16 %v136
  %v702 = vunpack.c.h.b16 %v136
  %v703 = vunpack.c.l.b16 %v137
  %v704 = vunpack.c.h.b16 %v137
  %v705 = vunpack.c.l.b16 %v138
  %v706 = vunpack.c.h.b16 %v138
  %v707 = vunpack.c.l.b16 %v139
  %v708 = vunpack.c.h.b16 %v139
  %v709 = vunpack.c.l.b16 %v140
  %v710 = vunpack.c.h.b16 %v140
  %v711 = vunpack.c.l.b16 %v141
  %v712 = vunpack.c.h.b16 %v141
  %v713 = vunpack.c.l.b16 %v142
  %v714 = vunpack.c.h.b16 %v142
  %v715 = vunpack.c.l.b16 %v143
  %v716 = vunpack.c.h.b16 %v143
  %v717 = vunpack.c.l.b16 %v144
  %v718 = vunpack.c.h.b16 %v144
  %v719 = vunpack.c.l.b16 %v145
  %v720 = vunpack.c.h.b16 %v145
  %v721 = vunpack.c.l.b16 %v146
  %v722 = vunpack.c.h.b16 %v146
  %v723 = vunpack.c.l.b16 %v147
  %v724 = vunpack.c.h.b16 %v147
  %v725 = vunpack.c.l.b16 %v148
  %v726 = vunpack.c.h.b16 %v148
  %v727 = vunpack.c.l.b16 %v149
  %v728 = vunpack.c.h.b16 %v149
  %v729 = vunpack.c.l.b16 %v150
  %v730 = vunpack.c.h.b16 %v150
  %v731 = vunpack.c.l.b16 %v151
  %v732 = vunpack.c.h.b16 %v151
  %v733 = vunpack.c.l.b16 %v152
  %v734 = vunpack.c.h.b16 %v152
  %v735 = vunpack.c.l.b16 %v153
  %v736 = vunpack.c.h.b16 %v153
  %v737 = vunpack.c.l.b16 %v154
  %v738 = vunpack.c.h.b16 %v154
  %v739 = vunpack.c.l.b16 %v155
  %v740 = vunpack.c.h.b16 %v155
  %v741 = vunpack.c.l.b16 %v156
  %v742 = vunpack.c.h.b16 %v156
  %v743 = vunpack.c.l.b16 %v157
  %v744 = vunpack.c.h.b16 %v157
  %v745 = vunpack.c.l.b16 %v158
  %v746 = vunpack.c.h.b16 %v158
  %v747 = vunpack.c.l.b16 %v159
  %v748 = vunpack.c.h.b16 %v159
  %v749 = vunpack.c.l.b16 %v160
  %v750 = vunpack.c.h.b16 %v160
  %v751 = vunpack.c.l.b16 %v161
  %v752 = vunpack.c.h.b16 %v161
  %v753 = vunpack.c.l.b16 %v162
  %v754 = vunpack.c.h.b16 %v162
  %v755 = vunpack.c.l.b16 %v163
  %v756 = vunpack.c.h.b16 %v163
  %v757 = vunpack.c.l.b16 %v164
  %v758 = vunpack.c.h.b16 %v164
  %v759 = vunpack.c.l.b16 %v165
  %v760 = vunpack.c.h.b16 %v165
  %v761 = vunpack.c.l.b16 %v166
  %v762 = vunpack.c.h.b16 %v166
  %v763 = vunpack.c.l.b16 %v167
  %v764 = vunpack.c.h.b16 %v167
  %v765 = vunpack.c.l.b16 %v168
  %v766 = vunpack.c.h.b16 %v168
  %v767 = vunpack.c.l.b16 %v169
  %v768 = vunpack.c.h.b16 %v169
  %v769 = vunpack.c.l.b16 %v170
  %v770 = vunpack.c.h.b16 %v170
  %v771 = vunpack.c.l.b16 %v171
  %v772 = vunpack.c.h.b16 %v171
  %v773 = vunpack.c.l.b16 %v172
  %v774 = vunpack.c.h.b16 %v172
  %v775 = vunpack.c.l.b16 %v173
  %v776 = vunpack.c.h.b16 %v173
  %v777 = vunpack.c.l.b16 %v174
  %v778 = vunpack.c.h.b16 %v174
  %v779 = vunpack.c.l.b16 %v175
  %v780 = vunpack.c.h.b16 %v175
  %v781 = vunpack.c.l.b16 %v176
  %v782 = vunpack.c.h.b16 %v176
  %v783 = vunpack.c.l.b16 %v177
  %v784 = vunpack.c.h.b16 %v177
  %v785 = vunpack.c.l.b16 %v178
  %v786 = vunpack.c.h.b16 %v178
  %v787 = vunpack.c.l.b16 %v179
  %v788 = vunpack.c.h.b16 %v179
  %v789 = vunpack.c.l.b16 %v180
  %v790 = vunpack.c.h.b16 %v180
  %v791 = vunpack.c.l.b16 %v181
  %v792 = vunpack.c.h.b16 %v181
  %v793 = vunpack.c.l.b16 %v182
  %v794 = vunpack.c.h.b16 %v182
  %v795 = vunpack.c.l.b16 %v183
  %v796 = vunpack.c.h.b16 %v183
  %v797 = vunpack.c.l.b16 %v184
  %v798 = vunpack.c.h.b16 %v184
  %v799 = vunpack.c.l.b16 %v185
  %v800 = vunpack.c.h.b16 %v185
  %v801 = vunpack.c.l.b16 %v186
  %v802 = vunpack.c.h.b16 %v186
  %v803 = vunpack.c.l.b16 %v187
  %v804 = vunpack.c.h.b16 %v187
  %v805 = vunpack.c.l.b16 %v188
  %v806 = vunpack.c.h.b16 %v188
  %v807 = vunpack.c.l.b16 %v189
  %v808 = vunpack.c.h.b16 %v189
  %v809 = vunpack.c.l.b16 %v190
  %v810 = vunpack.c.h.b16 %v190
  %v811 = vunpack.c.l.b16 %v191
  %v812 = vunpack.c.h.b16 %v191
  %v813 = vunpack.c.l.b16 %v192
  %v814 = vunpack.c.h.b16 %v192
  %v815 = vunpack.c.l.b16 %v193
  %v816 = vunpack.c.h.b16 %v193
  %v817 = vunpack.c.l.b16 %v194
  %v818 = vunpack.c.h.b16 %v194
  %v819 = vunpack.c.l.b16 %v195
  %v820 = vunpack.c.h.b16 %v195
  %v821 = vunpack.c.l.b16 %v196
  %v822 = vunpack.c.h.b16 %v196
  %v823 = vunpack.c.l.b16 %v197
  %v824 = vunpack.c.h.b16 %v197
  %v825 = vunpack.c.l.b16 %v198
  %v826 = vunpack.c.h.b16 %v198
  %v827 = vpack.c.b16 %v541, %v539
  %v828 = vpack.c.b16 %v542, %v540
  %v829 = vpack.c.b16 %v545, %v543
  %v830 = vpack.c.b16 %v546, %v544
  %v831 = vpack.c.b16 %v549, %v547
  %v832 = vpack.c.b16 %v550, %v548
  %v833 = vpack.c.b16 %v553, %v551
  %v834 = vpack.c.b16 %v554, %v552
  %v835 = vpack.c.b16 %v557, %v555
  %v836 = vpack.c.b16 %v558, %v556
  %v837 = vpack.c.b16 %v561, %v559
  %v838 = vpack.c.b16 %v562, %v560
  %v839 = vpack.c.b16 %v565, %v563
  %v840 = vpack.c.b16 %v566, %v564
  %v841 = vpack.c.b16 %v569, %v567
  %v842 = vpack.c.b16 %v570, %v568
  %v843 = vpack.c.b16 %v573, %v571
  %v844 = vpack.c.b16 %v574, %v572
  %v845 = vpack.c.b16 %v577, %v575
  %v846 = vpack.c.b16 %v578, %v576
  %v847 = vpack.c.b16 %v581, %v579
  %v848 = vpack.c.b16 %v582, %v580
  %v849 = vpack.c.b16 %v585, %v583
  %v850 = vpack.c.b16 %v586, %v584
  %v851 = vpack.c.b16 %v589, %v587
  %v852 = vpack.c.b16 %v590, %v588
  %v853 = vpack.c.b16 %v593, %v591
  %v854 = vpack.c.b16 %v594, %v592
  %v855 = vpack.c.b16 %v597, %v595
  %v856 = vpack.c.b16 %v598, %v596
  %v857 = vpack.c.b16 %v601, %v599
  %v858 = vpack.c.b16 %v602, %v600
  %v859 = vpack.c.b16 %v605, %v603
  %v860 = vpack.c.b16 %v606, %v604
  %v861 = vpack.c.b16 %v609, %v607
  %v862 = vpack.c.b16 %v610, %v608
  %v863 = vpack.c.b16 %v613, %v611
  %v864 = vpack.c.b16 %v614, %v612
  %v865 = vpack.c.b16 %v617, %v615
  %v866 = vpack.c.b16 %v618, %v616
  %v867 = vpack.c.b16 %v621, %v619
  %v868 = vpack.c.b16 %v622, %v620
  %v869 = vpack.c.b16 %v625, %v623
  %v870 = vpack.c.b16 %v626, %v624
  %v871 = vpack.c.b16 %v629, %v627
  %v872 = vpack.c.b16 %v630, %v628
  %v873 = vpack.c.b16 %v633, %v631
  %v874 = vpack.c.b16 %v634, %v632
  %v875 = vpack.c.b16 %v637, %v635
  %v876 = vpack.c.b16 %v638, %v636
  %v877 = vpack.c.b16 %v641, %v639
  %v878 = vpack.c.b16 %v642, %v640
  %v879 = vpack.c.b16 %v645, %v643
  %v880 = vpack.c.b16 %v646, %v644
  %v881 = vpack.c.b16 %v649, %v647
  %v882 = vpack.c.b16 %v650, %v648
  %v883 = vpack.c.b16 %v653, %v651
  %v884 = vpack.c.b16 %v654, %v652
  %v885 = vpack.c.b16 %v657, %v655
  %v886 = vpack.c.b16 %v658, %v656
  %v887 = vpack.c.b16 %v661, %v659
  %v888 = vpack.c.b16 %v662, %v660
  %v889 = vpack.c.b16 %v665, %v663
  %v890 = vpack.c.b16 %v666, %v664
  %v891 = vpack.c.b16 %v669, %v667
  %v892 = vpack.c.b16 %v670, %v668
  %v893 = vpack.c.b16 %v673, %v671
  %v894 = vpack.c.b16 %v674, %v672
  %v895 = vpack.c.b16 %v677, %v675
  %v896 = vpack.c.b16 %v678, %v676
  %v897 = vpack.c.b16 %v681, %v679
  %v898 = vpack.c.b16 %v682, %v680
  %v899 = vpack.c.b16 %v685, %v683
  %v900 = vpack.c.b16 %v686, %v684
  %v901 = vpack.c.b16 %v689, %v687
  %v902 = vpack.c.b16 %v690, %v688
  %v903 = vpack.c.b16 %v693, %v691
  %v904 = vpack.c.b16 %v694, %v692
  %v905 = vpack.c.b16 %v697, %v695
  %v906 = vpack.c.b16 %v698, %v696
  %v907 = vpack.c.b16 %v701, %v699
  %v908 = vpack.c.b16 %v702, %v700
  %v909 = vpack.c.b16 %v705, %v703
  %v910 = vpack.c.b16 %v706, %v704
  %v911 = vpack.c.b16 %v709, %v707
  %v912 = vpack.c.b16 %v710, %v708
  %v913 = vpack.c.b16 %v713, %v711
  %v914 = vpack.c.b16 %v714, %v712
  %v915 = vpack.c.b16 %v717, %v715
  %v916 = vpack.c.b16 %v718, %v716
  %v917 = vpack.c.b16 %v721, %v719
  %v918 = vpack.c.b16 %v722, %v720
  %v919 = vpack.c.b16 %v725, %v723
  %v920 = vpack.c.b16 %v726, %v724
  %v921 = vpack.c.b16 %v729, %v727
  %v922 = vpack.c.b16 %v730, %v728
  %v923 = vpack.c.b16 %v733, %v731
  %v924 = vpack.c.b16 %v734, %v732
  %v925 = vpack.c.b16 %v737, %v735
  %v926 = vpack.c.b16 %v738, %v736
  %v927 = vpack.c.b16 %v741, %v739
  %v928 = vpack.c.b16 %v742, %v740
  %v929 = vpack.c.b16 %v745, %v743
  %v930 = vpack.c.b16 %v746, %v744
  %v931 = vpack.c.b16 %v749, %v747
  %v932 = vpack.c.b16 %v750, %v748
  %v933 = vpack.c.b16 %v753, %v751
  %v934 = vpack.c.b16 %v754, %v752
  %v935 = vpack.c.b16 %v757, %v755
  %v936 = vpack.c.b16 %v758, %v756
  %v937 = vpack.c.b16 %v761, %v759
  %v938 = vpack.c.b16 %v762, %v760
  %v939 = vpack.c.b16 %v765, %v763
  %v940 = vpack.c.b16 %v766, %v764
  %v941 = vpack.c.b16 %v769, %v767
  %v942 = vpack.c.b16 %v770, %v768
  %v943 = vpack.c.b16 %v773, %v771
  %v944 = vpack.c.b16 %v774, %v772
  %v945 = vpack.c.b16 %v777, %v775
  %v946 = vpack.c.b16 %v778, %v776
  %v947 = vpack.c.b16 %v781, %v779
  %v948 = vpack.c.b16 %v782, %v780
  %v949 = vpack.c.b16 %v785, %v783
  %v950 = vpack.c.b16 %v786, %v784
  %v951 = vpack.c.b16 %v789, %v787
  %v952 = vpack.c.b16 %v790, %v788
  %v953 = vpack.c.b16 %v793, %v791
  %v954 = vpack.c.b16 %v794, %v792
  %v955 = vpack.c.b16 %v797, %v795
  %v956 = vpack.c.b16 %v798, %v796
  %v957 = vpack.c.b16 %v801, %v799
  %v958 = vpack.c.b16 %v802, %v800
  %v959 = vpack.c.b16 %v805, %v803
  %v960 = vpack.c.b16 %v806, %v804
  %v961 = vpack.c.b16 %v809, %v807
  %v962 = vpack.c.b16 %v810, %v808
  %v963 = vpack.c.b16 %v813, %v811
  %v964 = vpack.c.b16 %v814, %v812
  %v965 = vpack.c.b16 %v817, %v815
  %v966 = vpack.c.b16 %v818, %v816
  %v967 = vpack.c.b16 %v821, %v819
  %v968 = vpack.c.b16 %v822, %v820
  %v969 = vpack.c.b16 %v825, %v823
  %v970 = vpack.c.b16 %v826, %v824
  %1115 = vmatprep.subr.bf16.mxu0 %v842
  %1116 = vmatpush1.bf16.msra.mxu0 %v841
  %1117 = vmatprep.subr.bf16.mxu0 %v840
  %1118 = vmatpush1.bf16.msra.mxu0 %v839
  %1119 = vmatprep.subr.bf16.mxu0 %v838
  %1120 = vmatpush1.bf16.msra.mxu0 %v837
  %1121 = vmatprep.subr.bf16.mxu0 %v836
  %1122 = vmatpush1.bf16.msra.mxu0 %v835
  %1123 = vmatprep.subr.bf16.mxu0 %v834
  %1124 = vmatpush1.bf16.msra.mxu0 %v833
  %1125 = vmatprep.subr.bf16.mxu0 %v832
  %1126 = vmatpush1.bf16.msra.mxu0 %v831
  %1127 = vmatprep.subr.bf16.mxu0 %v830
  %1128 = vmatpush1.bf16.msra.mxu0 %v829
  %1129 = vmatprep.subr.bf16.mxu0 %v828
  %1130 = vmatpush1.bf16.msra.mxu0 %v827
  %1131 = vmatprep.subr.bf16.mxu0 %v858
  %1132 = vmatpush2.bf16.msra.mxu0 %v857
  %1133 = vmatprep.subr.bf16.mxu0 %v856
  %1134 = vmatpush2.bf16.msra.mxu0 %v855
  %1135 = vmatprep.subr.bf16.mxu0 %v854
  %1136 = vmatpush2.bf16.msra.mxu0 %v853
  %1137 = vmatprep.subr.bf16.mxu0 %v852
  %1138 = vmatpush2.bf16.msra.mxu0 %v851
  %1139 = vmatprep.subr.bf16.mxu0 %v850
  %1140 = vmatpush2.bf16.msra.mxu0 %v849
  %1141 = vmatprep.subr.bf16.mxu0 %v848
  %1142 = vmatpush2.bf16.msra.mxu0 %v847
  %1143 = vmatprep.subr.bf16.mxu0 %v846
  %1144 = vmatpush2.bf16.msra.mxu0 %v845
  %1145 = vmatprep.subr.bf16.mxu0 %v844
  %1146 = vmatpush2.bf16.msra.mxu0 %v843
  %1147 = vmatprep.mubr.bf16.mxu0 %v324
  %1148 = vmatmul.mubr.bf16.gmra.mxu0 %v323
  %v1149 = vpop.f32.mrf.mxu0
  %v1150 = vadd.f32 %v204, %v1149
  %v1151 = vpop.f32.mrf.mxu0
  %v1152 = vadd.f32 %v208, %v1151
  %v1153 = vpop.f32.mrf.mxu0
  %v1154 = vadd.f32 %v204, %v1153
  %v1155 = vpop.f32.mrf.mxu0
  %v1156 = vadd.f32 %v208, %v1155
  %1157 = vmatprep.mubr.bf16.mxu0 %v333
  %1158 = vmatmul.mubr.bf16.gmra.mxu0 %v332
  %v1159 = vpop.f32.mrf.mxu0
  %v1160 = vadd.f32 %v204, %v1159
  %v1161 = vpop.f32.mrf.mxu0
  %v1162 = vadd.f32 %v208, %v1161
  %v1163 = vpop.f32.mrf.mxu0
  %v1164 = vadd.f32 %v204, %v1163
  %v1165 = vpop.f32.mrf.mxu0
  %v1166 = vadd.f32 %v208, %v1165
  %1167 = vmatprep.mubr.bf16.mxu0 %v342
  %1168 = vmatmul.mubr.bf16.gmra.mxu0 %v341
  %v1169 = vpop.f32.mrf.mxu0
  %v1170 = vadd.f32 %v204, %v1169
  %v1171 = vpop.f32.mrf.mxu0
  %v1172 = vadd.f32 %v208, %v1171
  %v1173 = vpop.f32.mrf.mxu0
  %v1174 = vadd.f32 %v204, %v1173
  %v1175 = vpop.f32.mrf.mxu0
  %v1176 = vadd.f32 %v208, %v1175
  %1177 = vmatprep.mubr.bf16.mxu0 %v351
  %1178 = vmatmul.mubr.bf16.gmra.mxu0 %v350
  %v1179 = vpop.f32.mrf.mxu0
  %v1180 = vadd.f32 %v204, %v1179
  %v1181 = vpop.f32.mrf.mxu0
  %v1182 = vadd.f32 %v208, %v1181
  %v1183 = vpop.f32.mrf.mxu0
  %v1184 = vadd.f32 %v204, %v1183
  %v1185 = vpop.f32.mrf.mxu0
  %v1186 = vadd.f32 %v208, %v1185
  %1187 = vdwg.mxu0
  %1188 = vmatprep.subr.bf16.mxu0 %v874
  %1189 = vmatpush1.bf16.msra.mxu0 %v873
  %1190 = vmatprep.subr.bf16.mxu0 %v872
  %1191 = vmatpush1.bf16.msra.mxu0 %v871
  %1192 = vmatprep.subr.bf16.mxu0 %v870
  %1193 = vmatpush1.bf16.msra.mxu0 %v869
  %1194 = vmatprep.subr.bf16.mxu0 %v868
  %1195 = vmatpush1.bf16.msra.mxu0 %v867
  %1196 = vmatprep.subr.bf16.mxu0 %v866
  %1197 = vmatpush1.bf16.msra.mxu0 %v865
  %1198 = vmatprep.subr.bf16.mxu0 %v864
  %1199 = vmatpush1.bf16.msra.mxu0 %v863
  %1200 = vmatprep.subr.bf16.mxu0 %v862
  %1201 = vmatpush1.bf16.msra.mxu0 %v861
  %1202 = vmatprep.subr.bf16.mxu0 %v860
  %1203 = vmatpush1.bf16.msra.mxu0 %v859
  %1204 = vmatprep.subr.bf16.mxu0 %v890
  %1205 = vmatpush2.bf16.msra.mxu0 %v889
  %1206 = vmatprep.subr.bf16.mxu0 %v888
  %1207 = vmatpush2.bf16.msra.mxu0 %v887
  %1208 = vmatprep.subr.bf16.mxu0 %v886
  %1209 = vmatpush2.bf16.msra.mxu0 %v885
  %1210 = vmatprep.subr.bf16.mxu0 %v884
  %1211 = vmatpush2.bf16.msra.mxu0 %v883
  %1212 = vmatprep.subr.bf16.mxu0 %v882
  %1213 = vmatpush2.bf16.msra.mxu0 %v881
  %1214 = vmatprep.subr.bf16.mxu0 %v880
  %1215 = vmatpush2.bf16.msra.mxu0 %v879
  %1216 = vmatprep.subr.bf16.mxu0 %v878
  %1217 = vmatpush2.bf16.msra.mxu0 %v877
  %1218 = vmatprep.subr.bf16.mxu0 %v876
  %1219 = vmatpush2.bf16.msra.mxu0 %v875
  %1220 = vmatprep.mubr.bf16.mxu0 %v326
  %1221 = vmatmul.mubr.bf16.gmra.mxu0 %v325
  %v1222 = vpop.f32.mrf.mxu0
  %v1223 = vadd.f32 %v1150, %v1222
  %v1224 = vpop.f32.mrf.mxu0
  %v1225 = vadd.f32 %v1152, %v1224
  %v1226 = vpop.f32.mrf.mxu0
  %v1227 = vadd.f32 %v1154, %v1226
  %v1228 = vpop.f32.mrf.mxu0
  %v1229 = vadd.f32 %v1156, %v1228
  %1230 = vmatprep.mubr.bf16.mxu0 %v335
  %1231 = vmatmul.mubr.bf16.gmra.mxu0 %v334
  %v1232 = vpop.f32.mrf.mxu0
  %v1233 = vadd.f32 %v1160, %v1232
  %v1234 = vpop.f32.mrf.mxu0
  %v1235 = vadd.f32 %v1162, %v1234
  %v1236 = vpop.f32.mrf.mxu0
  %v1237 = vadd.f32 %v1164, %v1236
  %v1238 = vpop.f32.mrf.mxu0
  %v1239 = vadd.f32 %v1166, %v1238
  %1240 = vmatprep.mubr.bf16.mxu0 %v344
  %1241 = vmatmul.mubr.bf16.gmra.mxu0 %v343
  %v1242 = vpop.f32.mrf.mxu0
  %v1243 = vadd.f32 %v1170, %v1242
  %v1244 = vpop.f32.mrf.mxu0
  %v1245 = vadd.f32 %v1172, %v1244
  %v1246 = vpop.f32.mrf.mxu0
  %v1247 = vadd.f32 %v1174, %v1246
  %v1248 = vpop.f32.mrf.mxu0
  %v1249 = vadd.f32 %v1176, %v1248
  %1250 = vmatprep.mubr.bf16.mxu0 %v353
  %1251 = vmatmul.mubr.bf16.gmra.mxu0 %v352
  %v1252 = vpop.f32.mrf.mxu0
  %v1253 = vadd.f32 %v1180, %v1252
  %v1254 = vpop.f32.mrf.mxu0
  %v1255 = vadd.f32 %v1182, %v1254
  %v1256 = vpop.f32.mrf.mxu0
  %v1257 = vadd.f32 %v1184, %v1256
  %v1258 = vpop.f32.mrf.mxu0
  %v1259 = vadd.f32 %v1186, %v1258
  %1260 = vdwg.mxu0
  %1261 = vmatprep.subr.bf16.mxu0 %v906
  %1262 = vmatpush1.bf16.msra.mxu0 %v905
  %1263 = vmatprep.subr.bf16.mxu0 %v904
  %1264 = vmatpush1.bf16.msra.mxu0 %v903
  %1265 = vmatprep.subr.bf16.mxu0 %v902
  %1266 = vmatpush1.bf16.msra.mxu0 %v901
  %1267 = vmatprep.subr.bf16.mxu0 %v900
  %1268 = vmatpush1.bf16.msra.mxu0 %v899
  %1269 = vmatprep.subr.bf16.mxu0 %v898
  %1270 = vmatpush1.bf16.msra.mxu0 %v897
  %1271 = vmatprep.subr.bf16.mxu0 %v896
  %1272 = vmatpush1.bf16.msra.mxu0 %v895
  %1273 = vmatprep.subr.bf16.mxu0 %v894
  %1274 = vmatpush1.bf16.msra.mxu0 %v893
  %1275 = vmatprep.subr.bf16.mxu0 %v892
  %1276 = vmatpush1.bf16.msra.mxu0 %v891
  %1277 = vmatprep.subr.bf16.mxu0 %v922
  %1278 = vmatpush2.bf16.msra.mxu0 %v921
  %1279 = vmatprep.subr.bf16.mxu0 %v920
  %1280 = vmatpush2.bf16.msra.mxu0 %v919
  %1281 = vmatprep.subr.bf16.mxu0 %v918
  %1282 = vmatpush2.bf16.msra.mxu0 %v917
  %1283 = vmatprep.subr.bf16.mxu0 %v916
  %1284 = vmatpush2.bf16.msra.mxu0 %v915
  %1285 = vmatprep.subr.bf16.mxu0 %v914
  %1286 = vmatpush2.bf16.msra.mxu0 %v913
  %1287 = vmatprep.subr.bf16.mxu0 %v912
  %1288 = vmatpush2.bf16.msra.mxu0 %v911
  %1289 = vmatprep.subr.bf16.mxu0 %v910
  %1290 = vmatpush2.bf16.msra.mxu0 %v909
  %1291 = vmatprep.subr.bf16.mxu0 %v908
  %1292 = vmatpush2.bf16.msra.mxu0 %v907
  %1293 = vmatprep.mubr.bf16.mxu0 %v328
  %1294 = vmatmul.mubr.bf16.gmra.mxu0 %v327
  %v1295 = vpop.f32.mrf.mxu0
  %v1296 = vadd.f32 %v1223, %v1295
  %v1297 = vpop.f32.mrf.mxu0
  %v1298 = vadd.f32 %v1225, %v1297
  %v1299 = vpop.f32.mrf.mxu0
  %v1300 = vadd.f32 %v1227, %v1299
  %v1301 = vpop.f32.mrf.mxu0
  %v1302 = vadd.f32 %v1229, %v1301
  %1303 = vmatprep.mubr.bf16.mxu0 %v337
  %1304 = vmatmul.mubr.bf16.gmra.mxu0 %v336
  %v1305 = vpop.f32.mrf.mxu0
  %v1306 = vadd.f32 %v1233, %v1305
  %v1307 = vpop.f32.mrf.mxu0
  %v1308 = vadd.f32 %v1235, %v1307
  %v1309 = vpop.f32.mrf.mxu0
  %v1310 = vadd.f32 %v1237, %v1309
  %v1311 = vpop.f32.mrf.mxu0
  %v1312 = vadd.f32 %v1239, %v1311
  %1313 = vmatprep.mubr.bf16.mxu0 %v346
  %1314 = vmatmul.mubr.bf16.gmra.mxu0 %v345
  %v1315 = vpop.f32.mrf.mxu0
  %v1316 = vadd.f32 %v1243, %v1315
  %v1317 = vpop.f32.mrf.mxu0
  %v1318 = vadd.f32 %v1245, %v1317
  %v1319 = vpop.f32.mrf.mxu0
  %v1320 = vadd.f32 %v1247, %v1319
  %v1321 = vpop.f32.mrf.mxu0
  %v1322 = vadd.f32 %v1249, %v1321
  %1323 = vmatprep.mubr.bf16.mxu0 %v355
  %1324 = vmatmul.mubr.bf16.gmra.mxu0 %v354
  %v1325 = vpop.f32.mrf.mxu0
  %v1326 = vadd.f32 %v1253, %v1325
  %v1327 = vpop.f32.mrf.mxu0
  %v1328 = vadd.f32 %v1255, %v1327
  %v1329 = vpop.f32.mrf.mxu0
  %v1330 = vadd.f32 %v1257, %v1329
  %v1331 = vpop.f32.mrf.mxu0
  %v1332 = vadd.f32 %v1259, %v1331
  %1333 = vdwg.mxu0
  %1334 = vmatprep.subr.bf16.mxu0 %v938
  %1335 = vmatpush1.bf16.msra.mxu0 %v937
  %1336 = vmatprep.subr.bf16.mxu0 %v936
  %1337 = vmatpush1.bf16.msra.mxu0 %v935
  %1338 = vmatprep.subr.bf16.mxu0 %v934
  %1339 = vmatpush1.bf16.msra.mxu0 %v933
  %1340 = vmatprep.subr.bf16.mxu0 %v932
  %1341 = vmatpush1.bf16.msra.mxu0 %v931
  %1342 = vmatprep.subr.bf16.mxu0 %v930
  %1343 = vmatpush1.bf16.msra.mxu0 %v929
  %1344 = vmatprep.subr.bf16.mxu0 %v928
  %1345 = vmatpush1.bf16.msra.mxu0 %v927
  %1346 = vmatprep.subr.bf16.mxu0 %v926
  %1347 = vmatpush1.bf16.msra.mxu0 %v925
  %1348 = vmatprep.subr.bf16.mxu0 %v924
  %1349 = vmatpush1.bf16.msra.mxu0 %v923
  %1350 = vmatprep.subr.bf16.mxu0 %v954
  %1351 = vmatpush2.bf16.msra.mxu0 %v953
  %1352 = vmatprep.subr.bf16.mxu0 %v952
  %1353 = vmatpush2.bf16.msra.mxu0 %v951
  %1354 = vmatprep.subr.bf16.mxu0 %v950
  %1355 = vmatpush2.bf16.msra.mxu0 %v949
  %1356 = vmatprep.subr.bf16.mxu0 %v948
  %1357 = vmatpush2.bf16.msra.mxu0 %v947
  %1358 = vmatprep.subr.bf16.mxu0 %v946
  %1359 = vmatpush2.bf16.msra.mxu0 %v945
  %1360 = vmatprep.subr.bf16.mxu0 %v944
  %1361 = vmatpush2.bf16.msra.mxu0 %v943
  %1362 = vmatprep.subr.bf16.mxu0 %v942
  %1363 = vmatpush2.bf16.msra.mxu0 %v941
  %1364 = vmatprep.subr.bf16.mxu0 %v940
  %1365 = vmatpush2.bf16.msra.mxu0 %v939
  %1366 = vmatprep.mubr.bf16.mxu0 %v330
  %1367 = vmatmul.mubr.bf16.gmra.mxu0 %v329
  %v1368 = vpop.f32.mrf.mxu0
  %v1369 = vadd.f32 %v1296, %v1368
  %v1370 = vpop.f32.mrf.mxu0
  %v1371 = vadd.f32 %v1298, %v1370
  %v1372 = vpop.f32.mrf.mxu0
  %v1373 = vadd.f32 %v1300, %v1372
  %v1374 = vpop.f32.mrf.mxu0
  %v1375 = vadd.f32 %v1302, %v1374
  %1376 = vmatprep.mubr.bf16.mxu0 %v339
  %1377 = vmatmul.mubr.bf16.gmra.mxu0 %v338
  %v1378 = vpop.f32.mrf.mxu0
  %v1379 = vadd.f32 %v1306, %v1378
  %v1380 = vpop.f32.mrf.mxu0
  %v1381 = vadd.f32 %v1308, %v1380
  %v1382 = vpop.f32.mrf.mxu0
  %v1383 = vadd.f32 %v1310, %v1382
  %v1384 = vpop.f32.mrf.mxu0
  %v1385 = vadd.f32 %v1312, %v1384
  %1386 = vmatprep.mubr.bf16.mxu0 %v348
  %1387 = vmatmul.mubr.bf16.gmra.mxu0 %v347
  %v1388 = vpop.f32.mrf.mxu0
  %v1389 = vadd.f32 %v1316, %v1388
  %v1390 = vpop.f32.mrf.mxu0
  %v1391 = vadd.f32 %v1318, %v1390
  %v1392 = vpop.f32.mrf.mxu0
  %v1393 = vadd.f32 %v1320, %v1392
  %v1394 = vpop.f32.mrf.mxu0
  %v1395 = vadd.f32 %v1322, %v1394
  %1396 = vmatprep.mubr.bf16.mxu0 %v357
  %1397 = vmatmul.mubr.bf16.gmra.mxu0 %v356
  %v1398 = vpop.f32.mrf.mxu0
  %v1399 = vadd.f32 %v1326, %v1398
  %v1400 = vpop.f32.mrf.mxu0
  %v1401 = vadd.f32 %v1328, %v1400
  %v1402 = vpop.f32.mrf.mxu0
  %v1403 = vadd.f32 %v1330, %v1402
  %v1404 = vpop.f32.mrf.mxu0
  %v1405 = vadd.f32 %v1332, %v1404
  %1406 = vdwg.mxu0
  %1407 = vmatprep.subr.bf16.mxu0 %v970
  %1408 = vmatpush1.bf16.msra.mxu0 %v969
  %1409 = vmatprep.subr.bf16.mxu0 %v968
  %1410 = vmatpush1.bf16.msra.mxu0 %v967
  %1411 = vmatprep.subr.bf16.mxu0 %v966
  %1412 = vmatpush1.bf16.msra.mxu0 %v965
  %1413 = vmatprep.subr.bf16.mxu0 %v964
  %1414 = vmatpush1.bf16.msra.mxu0 %v963
  %1415 = vmatprep.subr.bf16.mxu0 %v962
  %1416 = vmatpush1.bf16.msra.mxu0 %v961
  %1417 = vmatprep.subr.bf16.mxu0 %v960
  %1418 = vmatpush1.bf16.msra.mxu0 %v959
  %1419 = vmatprep.subr.bf16.mxu0 %v958
  %1420 = vmatpush1.bf16.msra.mxu0 %v957
  %1421 = vmatprep.subr.bf16.mxu0 %v956
  %1422 = vmatpush1.bf16.msra.mxu0 %v955
  %1423 = vmatprep.subr.bf16.mxu0 0
  %1424 = vmatpush2.bf16.msra.mxu0 0
  %1425 = vmatprep.subr.bf16.mxu0 0
  %1426 = vmatpush2.bf16.msra.mxu0 0
  %1427 = vmatprep.subr.bf16.mxu0 0
  %1428 = vmatpush2.bf16.msra.mxu0 0
  %1429 = vmatprep.subr.bf16.mxu0 0
  %1430 = vmatpush2.bf16.msra.mxu0 0
  %1431 = vmatprep.subr.bf16.mxu0 0
  %1432 = vmatpush2.bf16.msra.mxu0 0
  %1433 = vmatprep.subr.bf16.mxu0 0
  %1434 = vmatpush2.bf16.msra.mxu0 0
  %1435 = vmatprep.subr.bf16.mxu0 0
  %1436 = vmatpush2.bf16.msra.mxu0 0
  %1437 = vmatprep.subr.bf16.mxu0 0
  %1438 = vmatpush2.bf16.msra.mxu0 0
  %1439 = vmatprep.mubr.bf16.mxu0 0
  %1440 = vmatmul.mubr.bf16.gmra.mxu0 %v331
  %v1441 = vpop.f32.mrf.mxu0
  %v1442 = vadd.f32 %v1369, %v1441
  %v1443 = vpop.f32.mrf.mxu0
  %v1444 = vadd.f32 %v1371, %v1443
  %v1445 = vpop.f32.mrf.mxu0
  %v1446 = vadd.f32 %v1373, %v1445
  %v1447 = vpop.f32.mrf.mxu0
  %v1448 = vadd.f32 %v1375, %v1447
  %1449 = vmatprep.mubr.bf16.mxu0 0
  %1450 = vmatmul.mubr.bf16.gmra.mxu0 %v340
  %v1451 = vpop.f32.mrf.mxu0
  %v1452 = vadd.f32 %v1379, %v1451
  %v1453 = vpop.f32.mrf.mxu0
  %v1454 = vadd.f32 %v1381, %v1453
  %v1455 = vpop.f32.mrf.mxu0
  %v1456 = vadd.f32 %v1383, %v1455
  %v1457 = vpop.f32.mrf.mxu0
  %v1458 = vadd.f32 %v1385, %v1457
  %1459 = vmatprep.mubr.bf16.mxu0 0
  %1460 = vmatmul.mubr.bf16.gmra.mxu0 %v349
  %v1461 = vpop.f32.mrf.mxu0
  %v1462 = vadd.f32 %v1389, %v1461
  %v1463 = vpop.f32.mrf.mxu0
  %v1464 = vadd.f32 %v1391, %v1463
  %v1465 = vpop.f32.mrf.mxu0
  %v1466 = vadd.f32 %v1393, %v1465
  %v1467 = vpop.f32.mrf.mxu0
  %v1468 = vadd.f32 %v1395, %v1467
  %1469 = vmatprep.mubr.bf16.mxu0 0
  %1470 = vmatmul.mubr.bf16.gmra.mxu0 %v358
  %v1471 = vpop.f32.mrf.mxu0
  %v1472 = vadd.f32 %v1399, %v1471
  %v1473 = vpop.f32.mrf.mxu0
  %v1474 = vadd.f32 %v1401, %v1473
  %v1475 = vpop.f32.mrf.mxu0
  %v1476 = vadd.f32 %v1403, %v1475
  %v1477 = vpop.f32.mrf.mxu0
  %v1478 = vadd.f32 %v1405, %v1477
  %1479 = vdwg.mxu0
  %v1480 = vmax.f32 %v1442, 0.0
  %v1481 = vmax.f32 %v1444, 0.0
  %v1482 = vmax.f32 %v1446, 0.0
  %v1483 = vmax.f32 %v1448, 0.0
  %v1484 = vmax.f32 %v1452, 0.0
  %v1485 = vmax.f32 %v1454, 0.0
  %v1486 = vmax.f32 %v1456, 0.0
  %v1487 = vmax.f32 %v1458, 0.0
  %v1488 = vmax.f32 %v1462, 0.0
  %v1489 = vmax.f32 %v1464, 0.0
  %v1490 = vmax.f32 %v1466, 0.0
  %v1491 = vmax.f32 %v1468, 0.0
  %v1492 = vmax.f32 %v1472, 0.0
  %v1493 = vmax.f32 %v1474, 0.0
  %v1494 = vmax.f32 %v1476, 0.0
  %v1495 = vmax.f32 %v1478, 0.0
  %1496 = vst [vmem:[%s3] sm:$0xff] %v1480
  %1497 = vst [vmem:[%s3 + $0x8] sm:$0xff] %v1481
  %1498 = vst [vmem:[%s3 + $0x10] sm:$0xff] %v1482
  %1499 = vst [vmem:[%s3 + $0x18] sm:$0xff] %v1483
  %1500 = vst [vmem:[%s3 + $0x20] sm:$0xff] %v1484
  %1501 = vst [vmem:[%s3 + $0x28] sm:$0xff] %v1485
  %1502 = vst [vmem:[%s3 + $0x30] sm:$0xff] %v1486
  %1503 = vst [vmem:[%s3 + $0x38] sm:$0xff] %v1487
  %1504 = vst [vmem:[%s3 + $0x40] sm:$0xff] %v1488
  %1505 = vst [vmem:[%s3 + $0x48] sm:$0xff] %v1489
  %1506 = vst [vmem:[%s3 + $0x50] sm:$0xff] %v1490
  %1507 = vst [vmem:[%s3 + $0x58] sm:$0xff] %v1491
  %1508 = vst [vmem:[%s3 + $0x60] sm:$0xff] %v1492
  %1509 = vst [vmem:[%s3 + $0x68] sm:$0xff] %v1493
  %1510 = vst [vmem:[%s3 + $0x70] sm:$0xff] %v1494
  %1511 = vst [vmem:[%s3 + $0x78] sm:$0xff] %v1495
  // Predicated region
  $region14: #{point_correspondence_forward.11} parent=0 // pred_check
    _
  $region15: #{point_correspondence_forward.11} parent=0 // pred_check_branch
    %1513 = sbr.rel (0) target = $region17
  $region16: #{point_correspondence_forward.11} parent=0 // pred_region
    _
  $region17: #{point_correspondence_forward.11} parent=0 // pred_fallthru
    _
  // Predicated region
  $region18: #{point_correspondence_forward.11} parent=0 // pred_check
    _
  $region19: #{point_correspondence_forward.11} parent=0 // pred_check_branch
    %1515 = sbr.rel (0) target = $region21
  $region20: #{point_correspondence_forward.11} parent=0 // pred_region
    _
  $region21: #{point_correspondence_forward.11} parent=0 // pred_fallthru
    _

// kernel: point_correspondence_forward.16
$region0: #{point_correspondence_forward.16}
  #allocation0 [shape = 'u32[]', space=smem, size = 0x4, offset = 0x4, fixed_abs, tag = 'smem constant byte address 0x4 - core index']
  #allocation1 [shape = 'u32[144,128]{1,0:T(1,128)}', space=vmem, size = 0x12000, scoped, tag = 'internal scratch']
  %s0 = inlined_call_operand.vmem [shape: bf16[16,512], index: 0, kind: input, shape index: {}]
  %s1 = inlined_call_operand.vmem [shape: bf16[512,256], index: 1, kind: input, shape index: {}]
  %s2 = inlined_call_operand.vmem [shape: f32[1,256], index: 2, kind: input, shape index: {}]
  %s3 = inlined_call_operand.vmem [shape: f32[16,256], index: 3, kind: output, shape index: {}]
  %s4 = sld [smem:[#allocation0]]
  $region22: #{point_correspondence_forward.16} parent=0
    _
  %s6 = ssub.s32 1, %s4
  %s7 = scalar_select 0, %s6, %s4
  // Predicated region
  $region2: #{point_correspondence_forward.16} parent=0 // pred_check
    _
  $region3: #{point_correspondence_forward.16} parent=0 // pred_check_branch
    %9 = sbr.rel (0) target = $region5
  $region4: #{point_correspondence_forward.16} parent=0 // pred_region
    _
  $region5: #{point_correspondence_forward.16} parent=0 // pred_fallthru
    _
  // Predicated region
  $region6: #{point_correspondence_forward.16} parent=0 // pred_check
    _
  $region7: #{point_correspondence_forward.16} parent=0 // pred_check_branch
    %11 = sbr.rel (0) target = $region9
  $region8: #{point_correspondence_forward.16} parent=0 // pred_region
    _
  $region9: #{point_correspondence_forward.16} parent=0 // pred_fallthru
    _
  // Predicated region
  $region10: #{point_correspondence_forward.16} parent=0 // pred_check
    _
  $region11: #{point_correspondence_forward.16} parent=0 // pred_check_branch
    %13 = sbr.rel (0) target = $region13
  $region12: #{point_correspondence_forward.16} parent=0 // pred_region
    _
  $region13: #{point_correspondence_forward.16} parent=0 // pred_fallthru
    _
  %v14 = vld [vmem:[%s0] sm:$0xff]
  %v15 = vld [vmem:[%s0 + $0x8] sm:$0xff]
  %v16 = vld [vmem:[%s0 + $0x10] sm:$0xff]
  %v17 = vld [vmem:[%s0 + $0x18] sm:$0xff]
  %v18 = vld [vmem:[%s1] sm:$0xff]
  %v19 = vld [vmem:[%s1 + $0x8] sm:$0xff]
  %v20 = vld [vmem:[%s1 + $0x10] sm:$0xff]
  %v21 = vld [vmem:[%s1 + $0x18] sm:$0xff]
  %v22 = vld [vmem:[%s1 + $0x20] sm:$0xff]
  %v23 = vld [vmem:[%s1 + $0x28] sm:$0xff]
  %v24 = vld [vmem:[%s1 + $0x30] sm:$0xff]
  %v25 = vld [vmem:[%s1 + $0x38] sm:$0xff]
  %v26 = vld [vmem:[%s1 + $0x40] sm:$0xff]
  %v27 = vld [vmem:[%s1 + $0x48] sm:$0xff]
  %v28 = vld [vmem:[%s1 + $0x50] sm:$0xff]
  %v29 = vld [vmem:[%s1 + $0x58] sm:$0xff]
  %v30 = vld [vmem:[%s1 + $0x60] sm:$0xff]
  %v31 = vld [vmem:[%s1 + $0x68] sm:$0xff]
  %v32 = vld [vmem:[%s1 + $0x70] sm:$0xff]
  %v33 = vld [vmem:[%s1 + $0x78] sm:$0xff]
  %v34 = vld [vmem:[%s1 + $0x80] sm:$0xff]
  %v35 = vld [vmem:[%s1 + $0x88] sm:$0xff]
  %v36 = vld [vmem:[%s1 + $0x90] sm:$0xff]
  %v37 = vld [vmem:[%s1 + $0x98] sm:$0xff]
  %v38 = vld [vmem:[%s1 + $0xa0] sm:$0xff]
  %v39 = vld [vmem:[%s1 + $0xa8] sm:$0xff]
  %v40 = vld [vmem:[%s1 + $0xb0] sm:$0xff]
  %v41 = vld [vmem:[%s1 + $0xb8] sm:$0xff]
  %v42 = vld [vmem:[%s1 + $0xc0] sm:$0xff]
  %v43 = vld [vmem:[%s1 + $0xc8] sm:$0xff]
  %v44 = vld [vmem:[%s1 + $0xd0] sm:$0xff]
  %v45 = vld [vmem:[%s1 + $0xd8] sm:$0xff]
  %v46 = vld [vmem:[%s1 + $0xe0] sm:$0xff]
  %v47 = vld [vmem:[%s1 + $0xe8] sm:$0xff]
  %v48 = vld [vmem:[%s1 + $0xf0] sm:$0xff]
  %v49 = vld [vmem:[%s1 + $0xf8] sm:$0xff]
  %v50 = vld [vmem:[%s1 + $0x100] sm:$0xff]
  %v51 = vld [vmem:[%s1 + $0x108] sm:$0xff]
  %v52 = vld [vmem:[%s1 + $0x110] sm:$0xff]
  %v53 = vld [vmem:[%s1 + $0x118] sm:$0xff]
  %v54 = vld [vmem:[%s1 + $0x120] sm:$0xff]
  %v55 = vld [vmem:[%s1 + $0x128] sm:$0xff]
  %v56 = vld [vmem:[%s1 + $0x130] sm:$0xff]
  %v57 = vld [vmem:[%s1 + $0x138] sm:$0xff]
  %v58 = vld [vmem:[%s1 + $0x140] sm:$0xff]
  %v59 = vld [vmem:[%s1 + $0x148] sm:$0xff]
  %v60 = vld [vmem:[%s1 + $0x150] sm:$0xff]
  %v61 = vld [vmem:[%s1 + $0x158] sm:$0xff]
  %v62 = vld [vmem:[%s1 + $0x160] sm:$0xff]
  %v63 = vld [vmem:[%s1 + $0x168] sm:$0xff]
  %v64 = vld [vmem:[%s1 + $0x170] sm:$0xff]
  %v65 = vld [vmem:[%s1 + $0x178] sm:$0xff]
  %v66 = vld [vmem:[%s1 + $0x180] sm:$0xff]
  %v67 = vld [vmem:[%s1 + $0x188] sm:$0xff]
  %v68 = vld [vmem:[%s1 + $0x190] sm:$0xff]
  %v69 = vld [vmem:[%s1 + $0x198] sm:$0xff]
  %v70 = vld [vmem:[%s1 + $0x1a0] sm:$0xff]
  %v71 = vld [vmem:[%s1 + $0x1a8] sm:$0xff]
  %v72 = vld [vmem:[%s1 + $0x1b0] sm:$0xff]
  %v73 = vld [vmem:[%s1 + $0x1b8] sm:$0xff]
  %v74 = vld [vmem:[%s1 + $0x1c0] sm:$0xff]
  %v75 = vld [vmem:[%s1 + $0x1c8] sm:$0xff]
  %v76 = vld [vmem:[%s1 + $0x1d0] sm:$0xff]
  %v77 = vld [vmem:[%s1 + $0x1d8] sm:$0xff]
  %v78 = vld [vmem:[%s1 + $0x1e0] sm:$0xff]
  %v79 = vld [vmem:[%s1 + $0x1e8] sm:$0xff]
  %v80 = vld [vmem:[%s1 + $0x1f0] sm:$0xff]
  %v81 = vld [vmem:[%s1 + $0x1f8] sm:$0xff]
  %v82 = vld [vmem:[%s2] sm:$0x3]
  %v84 = vlaneseq
  %v85 = vshrl.u32 %v84, 7
  %v86 = vsub.s32 0, %v85
  %v87 = vrot.slane %v82, %v86
  %v88 = vlaneseq
  %v89 = vshrl.u32 %v88, 7
  %v90 = vsub.s32 1, %v89
  %v91 = vrot.slane %v82, %v90
  %v98 = vunpack.c.l.b16 %v14
  %v99 = vunpack.c.h.b16 %v14
  %v100 = vunpack.c.l.b16 %v15
  %v101 = vunpack.c.h.b16 %v15
  %v102 = vunpack.c.l.b16 %v16
  %v103 = vunpack.c.h.b16 %v16
  %v104 = vunpack.c.l.b16 %v17
  %v105 = vunpack.c.h.b16 %v17
  %v106 = vpack.c.b16 %v102, %v98
  %v107 = vpack.c.b16 %v103, %v99
  %v108 = vpack.c.b16 %v104, %v100
  %v109 = vpack.c.b16 %v105, %v101
  %v178 = vunpack.c.l.b16 %v18
  %v179 = vunpack.c.h.b16 %v18
  %v180 = vunpack.c.l.b16 %v19
  %v181 = vunpack.c.h.b16 %v19
  %v182 = vunpack.c.l.b16 %v20
  %v183 = vunpack.c.h.b16 %v20
  %v184 = vunpack.c.l.b16 %v21
  %v185 = vunpack.c.h.b16 %v21
  %v186 = vunpack.c.l.b16 %v22
  %v187 = vunpack.c.h.b16 %v22
  %v188 = vunpack.c.l.b16 %v23
  %v189 = vunpack.c.h.b16 %v23
  %v190 = vunpack.c.l.b16 %v24
  %v191 = vunpack.c.h.b16 %v24
  %v192 = vunpack.c.l.b16 %v25
  %v193 = vunpack.c.h.b16 %v25
  %v194 = vunpack.c.l.b16 %v26
  %v195 = vunpack.c.h.b16 %v26
  %v196 = vunpack.c.l.b16 %v27
  %v197 = vunpack.c.h.b16 %v27
  %v198 = vunpack.c.l.b16 %v28
  %v199 = vunpack.c.h.b16 %v28
  %v200 = vunpack.c.l.b16 %v29
  %v201 = vunpack.c.h.b16 %v29
  %v202 = vunpack.c.l.b16 %v30
  %v203 = vunpack.c.h.b16 %v30
  %v204 = vunpack.c.l.b16 %v31
  %v205 = vunpack.c.h.b16 %v31
  %v206 = vunpack.c.l.b16 %v32
  %v207 = vunpack.c.h.b16 %v32
  %v208 = vunpack.c.l.b16 %v33
  %v209 = vunpack.c.h.b16 %v33
  %v210 = vunpack.c.l.b16 %v34
  %v211 = vunpack.c.h.b16 %v34
  %v212 = vunpack.c.l.b16 %v35
  %v213 = vunpack.c.h.b16 %v35
  %v214 = vunpack.c.l.b16 %v36
  %v215 = vunpack.c.h.b16 %v36
  %v216 = vunpack.c.l.b16 %v37
  %v217 = vunpack.c.h.b16 %v37
  %v218 = vunpack.c.l.b16 %v38
  %v219 = vunpack.c.h.b16 %v38
  %v220 = vunpack.c.l.b16 %v39
  %v221 = vunpack.c.h.b16 %v39
  %v222 = vunpack.c.l.b16 %v40
  %v223 = vunpack.c.h.b16 %v40
  %v224 = vunpack.c.l.b16 %v41
  %v225 = vunpack.c.h.b16 %v41
  %v226 = vunpack.c.l.b16 %v42
  %v227 = vunpack.c.h.b16 %v42
  %v228 = vunpack.c.l.b16 %v43
  %v229 = vunpack.c.h.b16 %v43
  %v230 = vunpack.c.l.b16 %v44
  %v231 = vunpack.c.h.b16 %v44
  %v232 = vunpack.c.l.b16 %v45
  %v233 = vunpack.c.h.b16 %v45
  %v234 = vunpack.c.l.b16 %v46
  %v235 = vunpack.c.h.b16 %v46
  %v236 = vunpack.c.l.b16 %v47
  %v237 = vunpack.c.h.b16 %v47
  %v238 = vunpack.c.l.b16 %v48
  %v239 = vunpack.c.h.b16 %v48
  %v240 = vunpack.c.l.b16 %v49
  %v241 = vunpack.c.h.b16 %v49
  %v242 = vunpack.c.l.b16 %v50
  %v243 = vunpack.c.h.b16 %v50
  %v244 = vunpack.c.l.b16 %v51
  %v245 = vunpack.c.h.b16 %v51
  %v246 = vunpack.c.l.b16 %v52
  %v247 = vunpack.c.h.b16 %v52
  %v248 = vunpack.c.l.b16 %v53
  %v249 = vunpack.c.h.b16 %v53
  %v250 = vunpack.c.l.b16 %v54
  %v251 = vunpack.c.h.b16 %v54
  %v252 = vunpack.c.l.b16 %v55
  %v253 = vunpack.c.h.b16 %v55
  %v254 = vunpack.c.l.b16 %v56
  %v255 = vunpack.c.h.b16 %v56
  %v256 = vunpack.c.l.b16 %v57
  %v257 = vunpack.c.h.b16 %v57
  %v258 = vunpack.c.l.b16 %v58
  %v259 = vunpack.c.h.b16 %v58
  %v260 = vunpack.c.l.b16 %v59
  %v261 = vunpack.c.h.b16 %v59
  %v262 = vunpack.c.l.b16 %v60
  %v263 = vunpack.c.h.b16 %v60
  %v264 = vunpack.c.l.b16 %v61
  %v265 = vunpack.c.h.b16 %v61
  %v266 = vunpack.c.l.b16 %v62
  %v267 = vunpack.c.h.b16 %v62
  %v268 = vunpack.c.l.b16 %v63
  %v269 = vunpack.c.h.b16 %v63
  %v270 = vunpack.c.l.b16 %v64
  %v271 = vunpack.c.h.b16 %v64
  %v272 = vunpack.c.l.b16 %v65
  %v273 = vunpack.c.h.b16 %v65
  %v274 = vunpack.c.l.b16 %v66
  %v275 = vunpack.c.h.b16 %v66
  %v276 = vunpack.c.l.b16 %v67
  %v277 = vunpack.c.h.b16 %v67
  %v278 = vunpack.c.l.b16 %v68
  %v279 = vunpack.c.h.b16 %v68
  %v280 = vunpack.c.l.b16 %v69
  %v281 = vunpack.c.h.b16 %v69
  %v282 = vunpack.c.l.b16 %v70
  %v283 = vunpack.c.h.b16 %v70
  %v284 = vunpack.c.l.b16 %v71
  %v285 = vunpack.c.h.b16 %v71
  %v286 = vunpack.c.l.b16 %v72
  %v287 = vunpack.c.h.b16 %v72
  %v288 = vunpack.c.l.b16 %v73
  %v289 = vunpack.c.h.b16 %v73
  %v290 = vunpack.c.l.b16 %v74
  %v291 = vunpack.c.h.b16 %v74
  %v292 = vunpack.c.l.b16 %v75
  %v293 = vunpack.c.h.b16 %v75
  %v294 = vunpack.c.l.b16 %v76
  %v295 = vunpack.c.h.b16 %v76
  %v296 = vunpack.c.l.b16 %v77
  %v297 = vunpack.c.h.b16 %v77
  %v298 = vunpack.c.l.b16 %v78
  %v299 = vunpack.c.h.b16 %v78
  %v300 = vunpack.c.l.b16 %v79
  %v301 = vunpack.c.h.b16 %v79
  %v302 = vunpack.c.l.b16 %v80
  %v303 = vunpack.c.h.b16 %v80
  %v304 = vunpack.c.l.b16 %v81
  %v305 = vunpack.c.h.b16 %v81
  %v306 = vpack.c.b16 %v180, %v178
  %v307 = vpack.c.b16 %v181, %v179
  %v308 = vpack.c.b16 %v184, %v182
  %v309 = vpack.c.b16 %v185, %v183
  %v310 = vpack.c.b16 %v188, %v186
  %v311 = vpack.c.b16 %v189, %v187
  %v312 = vpack.c.b16 %v192, %v190
  %v313 = vpack.c.b16 %v193, %v191
  %v314 = vpack.c.b16 %v196, %v194
  %v315 = vpack.c.b16 %v197, %v195
  %v316 = vpack.c.b16 %v200, %v198
  %v317 = vpack.c.b16 %v201, %v199
  %v318 = vpack.c.b16 %v204, %v202
  %v319 = vpack.c.b16 %v205, %v203
  %v320 = vpack.c.b16 %v208, %v206
  %v321 = vpack.c.b16 %v209, %v207
  %v322 = vpack.c.b16 %v212, %v210
  %v323 = vpack.c.b16 %v213, %v211
  %v324 = vpack.c.b16 %v216, %v214
  %v325 = vpack.c.b16 %v217, %v215
  %v326 = vpack.c.b16 %v220, %v218
  %v327 = vpack.c.b16 %v221, %v219
  %v328 = vpack.c.b16 %v224, %v222
  %v329 = vpack.c.b16 %v225, %v223
  %v330 = vpack.c.b16 %v228, %v226
  %v331 = vpack.c.b16 %v229, %v227
  %v332 = vpack.c.b16 %v232, %v230
  %v333 = vpack.c.b16 %v233, %v231
  %v334 = vpack.c.b16 %v236, %v234
  %v335 = vpack.c.b16 %v237, %v235
  %v336 = vpack.c.b16 %v240, %v238
  %v337 = vpack.c.b16 %v241, %v239
  %v338 = vpack.c.b16 %v244, %v242
  %v339 = vpack.c.b16 %v245, %v243
  %v340 = vpack.c.b16 %v248, %v246
  %v341 = vpack.c.b16 %v249, %v247
  %v342 = vpack.c.b16 %v252, %v250
  %v343 = vpack.c.b16 %v253, %v251
  %v344 = vpack.c.b16 %v256, %v254
  %v345 = vpack.c.b16 %v257, %v255
  %v346 = vpack.c.b16 %v260, %v258
  %v347 = vpack.c.b16 %v261, %v259
  %v348 = vpack.c.b16 %v264, %v262
  %v349 = vpack.c.b16 %v265, %v263
  %v350 = vpack.c.b16 %v268, %v266
  %v351 = vpack.c.b16 %v269, %v267
  %v352 = vpack.c.b16 %v272, %v270
  %v353 = vpack.c.b16 %v273, %v271
  %v354 = vpack.c.b16 %v276, %v274
  %v355 = vpack.c.b16 %v277, %v275
  %v356 = vpack.c.b16 %v280, %v278
  %v357 = vpack.c.b16 %v281, %v279
  %v358 = vpack.c.b16 %v284, %v282
  %v359 = vpack.c.b16 %v285, %v283
  %v360 = vpack.c.b16 %v288, %v286
  %v361 = vpack.c.b16 %v289, %v287
  %v362 = vpack.c.b16 %v292, %v290
  %v363 = vpack.c.b16 %v293, %v291
  %v364 = vpack.c.b16 %v296, %v294
  %v365 = vpack.c.b16 %v297, %v295
  %v366 = vpack.c.b16 %v300, %v298
  %v367 = vpack.c.b16 %v301, %v299
  %v368 = vpack.c.b16 %v304, %v302
  %v369 = vpack.c.b16 %v305, %v303
  %434 = vmatprep.subr.bf16.mxu0 %v321
  %435 = vmatpush1.bf16.msra.mxu0 %v320
  %436 = vmatprep.subr.bf16.mxu0 %v319
  %437 = vmatpush1.bf16.msra.mxu0 %v318
  %438 = vmatprep.subr.bf16.mxu0 %v317
  %439 = vmatpush1.bf16.msra.mxu0 %v316
  %440 = vmatprep.subr.bf16.mxu0 %v315
  %441 = vmatpush1.bf16.msra.mxu0 %v314
  %442 = vmatprep.subr.bf16.mxu0 %v313
  %443 = vmatpush1.bf16.msra.mxu0 %v312
  %444 = vmatprep.subr.bf16.mxu0 %v311
  %445 = vmatpush1.bf16.msra.mxu0 %v310
  %446 = vmatprep.subr.bf16.mxu0 %v309
  %447 = vmatpush1.bf16.msra.mxu0 %v308
  %448 = vmatprep.subr.bf16.mxu0 %v307
  %449 = vmatpush1.bf16.msra.mxu0 %v306
  %450 = vmatprep.subr.bf16.mxu0 %v337
  %451 = vmatpush2.bf16.msra.mxu0 %v336
  %452 = vmatprep.subr.bf16.mxu0 %v335
  %453 = vmatpush2.bf16.msra.mxu0 %v334
  %454 = vmatprep.subr.bf16.mxu0 %v333
  %455 = vmatpush2.bf16.msra.mxu0 %v332
  %456 = vmatprep.subr.bf16.mxu0 %v331
  %457 = vmatpush2.bf16.msra.mxu0 %v330
  %458 = vmatprep.subr.bf16.mxu0 %v329
  %459 = vmatpush2.bf16.msra.mxu0 %v328
  %460 = vmatprep.subr.bf16.mxu0 %v327
  %461 = vmatpush2.bf16.msra.mxu0 %v326
  %462 = vmatprep.subr.bf16.mxu0 %v325
  %463 = vmatpush2.bf16.msra.mxu0 %v324
  %464 = vmatprep.subr.bf16.mxu0 %v323
  %465 = vmatpush2.bf16.msra.mxu0 %v322
  %466 = vmatprep.mubr.bf16.mxu0 %v107
  %467 = vmatmul.mubr.bf16.gmra.mxu0 %v106
  %v468 = vpop.f32.mrf.mxu0
  %v469 = vadd.f32 %v87, %v468
  %v470 = vpop.f32.mrf.mxu0
  %v471 = vadd.f32 %v91, %v470
  %v472 = vpop.f32.mrf.mxu0
  %v473 = vadd.f32 %v87, %v472
  %v474 = vpop.f32.mrf.mxu0
  %v475 = vadd.f32 %v91, %v474
  %476 = vdwg.mxu0
  %477 = vmatprep.subr.bf16.mxu0 %v353
  %478 = vmatpush1.bf16.msra.mxu0 %v352
  %479 = vmatprep.subr.bf16.mxu0 %v351
  %480 = vmatpush1.bf16.msra.mxu0 %v350
  %481 = vmatprep.subr.bf16.mxu0 %v349
  %482 = vmatpush1.bf16.msra.mxu0 %v348
  %483 = vmatprep.subr.bf16.mxu0 %v347
  %484 = vmatpush1.bf16.msra.mxu0 %v346
  %485 = vmatprep.subr.bf16.mxu0 %v345
  %486 = vmatpush1.bf16.msra.mxu0 %v344
  %487 = vmatprep.subr.bf16.mxu0 %v343
  %488 = vmatpush1.bf16.msra.mxu0 %v342
  %489 = vmatprep.subr.bf16.mxu0 %v341
  %490 = vmatpush1.bf16.msra.mxu0 %v340
  %491 = vmatprep.subr.bf16.mxu0 %v339
  %492 = vmatpush1.bf16.msra.mxu0 %v338
  %493 = vmatprep.subr.bf16.mxu0 %v369
  %494 = vmatpush2.bf16.msra.mxu0 %v368
  %495 = vmatprep.subr.bf16.mxu0 %v367
  %496 = vmatpush2.bf16.msra.mxu0 %v366
  %497 = vmatprep.subr.bf16.mxu0 %v365
  %498 = vmatpush2.bf16.msra.mxu0 %v364
  %499 = vmatprep.subr.bf16.mxu0 %v363
  %500 = vmatpush2.bf16.msra.mxu0 %v362
  %501 = vmatprep.subr.bf16.mxu0 %v361
  %502 = vmatpush2.bf16.msra.mxu0 %v360
  %503 = vmatprep.subr.bf16.mxu0 %v359
  %504 = vmatpush2.bf16.msra.mxu0 %v358
  %505 = vmatprep.subr.bf16.mxu0 %v357
  %506 = vmatpush2.bf16.msra.mxu0 %v356
  %507 = vmatprep.subr.bf16.mxu0 %v355
  %508 = vmatpush2.bf16.msra.mxu0 %v354
  %509 = vmatprep.mubr.bf16.mxu0 %v109
  %510 = vmatmul.mubr.bf16.gmra.mxu0 %v108
  %v511 = vpop.f32.mrf.mxu0
  %v512 = vadd.f32 %v469, %v511
  %v513 = vpop.f32.mrf.mxu0
  %v514 = vadd.f32 %v471, %v513
  %v515 = vpop.f32.mrf.mxu0
  %v516 = vadd.f32 %v473, %v515
  %v517 = vpop.f32.mrf.mxu0
  %v518 = vadd.f32 %v475, %v517
  %519 = vdwg.mxu0
  %520 = vst [vmem:[%s3] sm:$0xff] %v512
  %521 = vst [vmem:[%s3 + $0x8] sm:$0xff] %v514
  %522 = vst [vmem:[%s3 + $0x10] sm:$0xff] %v516
  %523 = vst [vmem:[%s3 + $0x18] sm:$0xff] %v518
  // Predicated region
  $region14: #{point_correspondence_forward.16} parent=0 // pred_check
    _
  $region15: #{point_correspondence_forward.16} parent=0 // pred_check_branch
    %525 = sbr.rel (0) target = $region17
  $region16: #{point_correspondence_forward.16} parent=0 // pred_region
    _
  $region17: #{point_correspondence_forward.16} parent=0 // pred_fallthru
    _
  // Predicated region
  $region18: #{point_correspondence_forward.16} parent=0 // pred_check
    _
  $region19: #{point_correspondence_forward.16} parent=0 // pred_check_branch
    %527 = sbr.rel (0) target = $region21
  $region20: #{point_correspondence_forward.16} parent=0 // pred_region
    _
  $region21: #{point_correspondence_forward.16} parent=0 // pred_fallthru
    _

// kernel: point_correspondence_forward.15
$region0: #{point_correspondence_forward.15}
  #allocation0 [shape = 'u32[]', space=smem, size = 0x4, offset = 0x4, fixed_abs, tag = 'smem constant byte address 0x4 - core index']
  #allocation1 [shape = 'u32[144,128]{1,0:T(1,128)}', space=vmem, size = 0x12000, scoped, tag = 'internal scratch']
  %s0 = inlined_call_operand.vmem [shape: bf16[64,256], index: 0, kind: input, shape index: {}]
  %s1 = inlined_call_operand.vmem [shape: bf16[256,256], index: 1, kind: input, shape index: {}]
  %s2 = inlined_call_operand.vmem [shape: f32[1,256], index: 2, kind: input, shape index: {}]
  %s3 = inlined_call_operand.vmem [shape: f32[64,256], index: 3, kind: output, shape index: {}]
  %s4 = sld [smem:[#allocation0]]
  $region22: #{point_correspondence_forward.15} parent=0
    _
  %s6 = ssub.s32 1, %s4
  %s7 = scalar_select 0, %s6, %s4
  // Predicated region
  $region2: #{point_correspondence_forward.15} parent=0 // pred_check
    _
  $region3: #{point_correspondence_forward.15} parent=0 // pred_check_branch
    %9 = sbr.rel (0) target = $region5
  $region4: #{point_correspondence_forward.15} parent=0 // pred_region
    _
  $region5: #{point_correspondence_forward.15} parent=0 // pred_fallthru
    _
  // Predicated region
  $region6: #{point_correspondence_forward.15} parent=0 // pred_check
    _
  $region7: #{point_correspondence_forward.15} parent=0 // pred_check_branch
    %11 = sbr.rel (0) target = $region9
  $region8: #{point_correspondence_forward.15} parent=0 // pred_region
    _
  $region9: #{point_correspondence_forward.15} parent=0 // pred_fallthru
    _
  // Predicated region
  $region10: #{point_correspondence_forward.15} parent=0 // pred_check
    _
  $region11: #{point_correspondence_forward.15} parent=0 // pred_check_branch
    %13 = sbr.rel (0) target = $region13
  $region12: #{point_correspondence_forward.15} parent=0 // pred_region
    _
  $region13: #{point_correspondence_forward.15} parent=0 // pred_fallthru
    _
  %v14 = vld [vmem:[%s0] sm:$0xff]
  %v15 = vld [vmem:[%s0 + $0x8] sm:$0xff]
  %v16 = vld [vmem:[%s0 + $0x10] sm:$0xff]
  %v17 = vld [vmem:[%s0 + $0x18] sm:$0xff]
  %v18 = vld [vmem:[%s0 + $0x20] sm:$0xff]
  %v19 = vld [vmem:[%s0 + $0x28] sm:$0xff]
  %v20 = vld [vmem:[%s0 + $0x30] sm:$0xff]
  %v21 = vld [vmem:[%s0 + $0x38] sm:$0xff]
  %v22 = vld [vmem:[%s1] sm:$0xff]
  %v23 = vld [vmem:[%s1 + $0x8] sm:$0xff]
  %v24 = vld [vmem:[%s1 + $0x10] sm:$0xff]
  %v25 = vld [vmem:[%s1 + $0x18] sm:$0xff]
  %v26 = vld [vmem:[%s1 + $0x20] sm:$0xff]
  %v27 = vld [vmem:[%s1 + $0x28] sm:$0xff]
  %v28 = vld [vmem:[%s1 + $0x30] sm:$0xff]
  %v29 = vld [vmem:[%s1 + $0x38] sm:$0xff]
  %v30 = vld [vmem:[%s1 + $0x40] sm:$0xff]
  %v31 = vld [vmem:[%s1 + $0x48] sm:$0xff]
  %v32 = vld [vmem:[%s1 + $0x50] sm:$0xff]
  %v33 = vld [vmem:[%s1 + $0x58] sm:$0xff]
  %v34 = vld [vmem:[%s1 + $0x60] sm:$0xff]
  %v35 = vld [vmem:[%s1 + $0x68] sm:$0xff]
  %v36 = vld [vmem:[%s1 + $0x70] sm:$0xff]
  %v37 = vld [vmem:[%s1 + $0x78] sm:$0xff]
  %v38 = vld [vmem:[%s1 + $0x80] sm:$0xff]
  %v39 = vld [vmem:[%s1 + $0x88] sm:$0xff]
  %v40 = vld [vmem:[%s1 + $0x90] sm:$0xff]
  %v41 = vld [vmem:[%s1 + $0x98] sm:$0xff]
  %v42 = vld [vmem:[%s1 + $0xa0] sm:$0xff]
  %v43 = vld [vmem:[%s1 + $0xa8] sm:$0xff]
  %v44 = vld [vmem:[%s1 + $0xb0] sm:$0xff]
  %v45 = vld [vmem:[%s1 + $0xb8] sm:$0xff]
  %v46 = vld [vmem:[%s1 + $0xc0] sm:$0xff]
  %v47 = vld [vmem:[%s1 + $0xc8] sm:$0xff]
  %v48 = vld [vmem:[%s1 + $0xd0] sm:$0xff]
  %v49 = vld [vmem:[%s1 + $0xd8] sm:$0xff]
  %v50 = vld [vmem:[%s1 + $0xe0] sm:$0xff]
  %v51 = vld [vmem:[%s1 + $0xe8] sm:$0xff]
  %v52 = vld [vmem:[%s1 + $0xf0] sm:$0xff]
  %v53 = vld [vmem:[%s1 + $0xf8] sm:$0xff]
  %v54 = vld [vmem:[%s2] sm:$0x3]
  %v56 = vlaneseq
  %v57 = vshrl.u32 %v56, 7
  %v58 = vsub.s32 0, %v57
  %v59 = vrot.slane %v54, %v58
  %v60 = vlaneseq
  %v61 = vshrl.u32 %v60, 7
  %v62 = vsub.s32 1, %v61
  %v63 = vrot.slane %v54, %v62
  %v74 = vunpack.c.l.b16 %v14
  %v75 = vunpack.c.h.b16 %v14
  %v76 = vunpack.c.l.b16 %v15
  %v77 = vunpack.c.h.b16 %v15
  %v78 = vunpack.c.l.b16 %v16
  %v79 = vunpack.c.h.b16 %v16
  %v80 = vunpack.c.l.b16 %v17
  %v81 = vunpack.c.h.b16 %v17
  %v82 = vunpack.c.l.b16 %v18
  %v83 = vunpack.c.h.b16 %v18
  %v84 = vunpack.c.l.b16 %v19
  %v85 = vunpack.c.h.b16 %v19
  %v86 = vunpack.c.l.b16 %v20
  %v87 = vunpack.c.h.b16 %v20
  %v88 = vunpack.c.l.b16 %v21
  %v89 = vunpack.c.h.b16 %v21
  %v90 = vpack.c.b16 %v76, %v74
  %v91 = vpack.c.b16 %v77, %v75
  %v92 = vpack.c.b16 %v80, %v78
  %v93 = vpack.c.b16 %v81, %v79
  %v94 = vpack.c.b16 %v84, %v82
  %v95 = vpack.c.b16 %v85, %v83
  %v96 = vpack.c.b16 %v88, %v86
  %v97 = vpack.c.b16 %v89, %v87
  %v138 = vunpack.c.l.b16 %v22
  %v139 = vunpack.c.h.b16 %v22
  %v140 = vunpack.c.l.b16 %v23
  %v141 = vunpack.c.h.b16 %v23
  %v142 = vunpack.c.l.b16 %v24
  %v143 = vunpack.c.h.b16 %v24
  %v144 = vunpack.c.l.b16 %v25
  %v145 = vunpack.c.h.b16 %v25
  %v146 = vunpack.c.l.b16 %v26
  %v147 = vunpack.c.h.b16 %v26
  %v148 = vunpack.c.l.b16 %v27
  %v149 = vunpack.c.h.b16 %v27
  %v150 = vunpack.c.l.b16 %v28
  %v151 = vunpack.c.h.b16 %v28
  %v152 = vunpack.c.l.b16 %v29
  %v153 = vunpack.c.h.b16 %v29
  %v154 = vunpack.c.l.b16 %v30
  %v155 = vunpack.c.h.b16 %v30
  %v156 = vunpack.c.l.b16 %v31
  %v157 = vunpack.c.h.b16 %v31
  %v158 = vunpack.c.l.b16 %v32
  %v159 = vunpack.c.h.b16 %v32
  %v160 = vunpack.c.l.b16 %v33
  %v161 = vunpack.c.h.b16 %v33
  %v162 = vunpack.c.l.b16 %v34
  %v163 = vunpack.c.h.b16 %v34
  %v164 = vunpack.c.l.b16 %v35
  %v165 = vunpack.c.h.b16 %v35
  %v166 = vunpack.c.l.b16 %v36
  %v167 = vunpack.c.h.b16 %v36
  %v168 = vunpack.c.l.b16 %v37
  %v169 = vunpack.c.h.b16 %v37
  %v170 = vunpack.c.l.b16 %v38
  %v171 = vunpack.c.h.b16 %v38
  %v172 = vunpack.c.l.b16 %v39
  %v173 = vunpack.c.h.b16 %v39
  %v174 = vunpack.c.l.b16 %v40
  %v175 = vunpack.c.h.b16 %v40
  %v176 = vunpack.c.l.b16 %v41
  %v177 = vunpack.c.h.b16 %v41
  %v178 = vunpack.c.l.b16 %v42
  %v179 = vunpack.c.h.b16 %v42
  %v180 = vunpack.c.l.b16 %v43
  %v181 = vunpack.c.h.b16 %v43
  %v182 = vunpack.c.l.b16 %v44
  %v183 = vunpack.c.h.b16 %v44
  %v184 = vunpack.c.l.b16 %v45
  %v185 = vunpack.c.h.b16 %v45
  %v186 = vunpack.c.l.b16 %v46
  %v187 = vunpack.c.h.b16 %v46
  %v188 = vunpack.c.l.b16 %v47
  %v189 = vunpack.c.h.b16 %v47
  %v190 = vunpack.c.l.b16 %v48
  %v191 = vunpack.c.h.b16 %v48
  %v192 = vunpack.c.l.b16 %v49
  %v193 = vunpack.c.h.b16 %v49
  %v194 = vunpack.c.l.b16 %v50
  %v195 = vunpack.c.h.b16 %v50
  %v196 = vunpack.c.l.b16 %v51
  %v197 = vunpack.c.h.b16 %v51
  %v198 = vunpack.c.l.b16 %v52
  %v199 = vunpack.c.h.b16 %v52
  %v200 = vunpack.c.l.b16 %v53
  %v201 = vunpack.c.h.b16 %v53
  %v202 = vpack.c.b16 %v140, %v138
  %v203 = vpack.c.b16 %v141, %v139
  %v204 = vpack.c.b16 %v144, %v142
  %v205 = vpack.c.b16 %v145, %v143
  %v206 = vpack.c.b16 %v148, %v146
  %v207 = vpack.c.b16 %v149, %v147
  %v208 = vpack.c.b16 %v152, %v150
  %v209 = vpack.c.b16 %v153, %v151
  %v210 = vpack.c.b16 %v156, %v154
  %v211 = vpack.c.b16 %v157, %v155
  %v212 = vpack.c.b16 %v160, %v158
  %v213 = vpack.c.b16 %v161, %v159
  %v214 = vpack.c.b16 %v164, %v162
  %v215 = vpack.c.b16 %v165, %v163
  %v216 = vpack.c.b16 %v168, %v166
  %v217 = vpack.c.b16 %v169, %v167
  %v218 = vpack.c.b16 %v172, %v170
  %v219 = vpack.c.b16 %v173, %v171
  %v220 = vpack.c.b16 %v176, %v174
  %v221 = vpack.c.b16 %v177, %v175
  %v222 = vpack.c.b16 %v180, %v178
  %v223 = vpack.c.b16 %v181, %v179
  %v224 = vpack.c.b16 %v184, %v182
  %v225 = vpack.c.b16 %v185, %v183
  %v226 = vpack.c.b16 %v188, %v186
  %v227 = vpack.c.b16 %v189, %v187
  %v228 = vpack.c.b16 %v192, %v190
  %v229 = vpack.c.b16 %v193, %v191
  %v230 = vpack.c.b16 %v196, %v194
  %v231 = vpack.c.b16 %v197, %v195
  %v232 = vpack.c.b16 %v200, %v198
  %v233 = vpack.c.b16 %v201, %v199
  %266 = vmatprep.subr.bf16.mxu0 %v217
  %267 = vmatpush1.bf16.msra.mxu0 %v216
  %268 = vmatprep.subr.bf16.mxu0 %v215
  %269 = vmatpush1.bf16.msra.mxu0 %v214
  %270 = vmatprep.subr.bf16.mxu0 %v213
  %271 = vmatpush1.bf16.msra.mxu0 %v212
  %272 = vmatprep.subr.bf16.mxu0 %v211
  %273 = vmatpush1.bf16.msra.mxu0 %v210
  %274 = vmatprep.subr.bf16.mxu0 %v209
  %275 = vmatpush1.bf16.msra.mxu0 %v208
  %276 = vmatprep.subr.bf16.mxu0 %v207
  %277 = vmatpush1.bf16.msra.mxu0 %v206
  %278 = vmatprep.subr.bf16.mxu0 %v205
  %279 = vmatpush1.bf16.msra.mxu0 %v204
  %280 = vmatprep.subr.bf16.mxu0 %v203
  %281 = vmatpush1.bf16.msra.mxu0 %v202
  %282 = vmatprep.subr.bf16.mxu0 %v233
  %283 = vmatpush2.bf16.msra.mxu0 %v232
  %284 = vmatprep.subr.bf16.mxu0 %v231
  %285 = vmatpush2.bf16.msra.mxu0 %v230
  %286 = vmatprep.subr.bf16.mxu0 %v229
  %287 = vmatpush2.bf16.msra.mxu0 %v228
  %288 = vmatprep.subr.bf16.mxu0 %v227
  %289 = vmatpush2.bf16.msra.mxu0 %v226
  %290 = vmatprep.subr.bf16.mxu0 %v225
  %291 = vmatpush2.bf16.msra.mxu0 %v224
  %292 = vmatprep.subr.bf16.mxu0 %v223
  %293 = vmatpush2.bf16.msra.mxu0 %v222
  %294 = vmatprep.subr.bf16.mxu0 %v221
  %295 = vmatpush2.bf16.msra.mxu0 %v220
  %296 = vmatprep.subr.bf16.mxu0 %v219
  %297 = vmatpush2.bf16.msra.mxu0 %v218
  %298 = vmatprep.mubr.bf16.mxu0 %v91
  %299 = vmatmul.mubr.bf16.gmra.mxu0 %v90
  %v300 = vpop.f32.mrf.mxu0
  %v301 = vadd.f32 %v59, %v300
  %v302 = vpop.f32.mrf.mxu0
  %v303 = vadd.f32 %v63, %v302
  %v304 = vpop.f32.mrf.mxu0
  %v305 = vadd.f32 %v59, %v304
  %v306 = vpop.f32.mrf.mxu0
  %v307 = vadd.f32 %v63, %v306
  %308 = vmatprep.mubr.bf16.mxu0 %v93
  %309 = vmatmul.mubr.bf16.gmra.mxu0 %v92
  %v310 = vpop.f32.mrf.mxu0
  %v311 = vadd.f32 %v59, %v310
  %v312 = vpop.f32.mrf.mxu0
  %v313 = vadd.f32 %v63, %v312
  %v314 = vpop.f32.mrf.mxu0
  %v315 = vadd.f32 %v59, %v314
  %v316 = vpop.f32.mrf.mxu0
  %v317 = vadd.f32 %v63, %v316
  %318 = vmatprep.mubr.bf16.mxu0 %v95
  %319 = vmatmul.mubr.bf16.gmra.mxu0 %v94
  %v320 = vpop.f32.mrf.mxu0
  %v321 = vadd.f32 %v59, %v320
  %v322 = vpop.f32.mrf.mxu0
  %v323 = vadd.f32 %v63, %v322
  %v324 = vpop.f32.mrf.mxu0
  %v325 = vadd.f32 %v59, %v324
  %v326 = vpop.f32.mrf.mxu0
  %v327 = vadd.f32 %v63, %v326
  %328 = vmatprep.mubr.bf16.mxu0 %v97
  %329 = vmatmul.mubr.bf16.gmra.mxu0 %v96
  %v330 = vpop.f32.mrf.mxu0
  %v331 = vadd.f32 %v59, %v330
  %v332 = vpop.f32.mrf.mxu0
  %v333 = vadd.f32 %v63, %v332
  %v334 = vpop.f32.mrf.mxu0
  %v335 = vadd.f32 %v59, %v334
  %v336 = vpop.f32.mrf.mxu0
  %v337 = vadd.f32 %v63, %v336
  %338 = vdwg.mxu0
  %339 = vst [vmem:[%s3] sm:$0xff] %v301
  %340 = vst [vmem:[%s3 + $0x8] sm:$0xff] %v303
  %341 = vst [vmem:[%s3 + $0x10] sm:$0xff] %v305
  %342 = vst [vmem:[%s3 + $0x18] sm:$0xff] %v307
  %343 = vst [vmem:[%s3 + $0x20] sm:$0xff] %v311
  %344 = vst [vmem:[%s3 + $0x28] sm:$0xff] %v313
  %345 = vst [vmem:[%s3 + $0x30] sm:$0xff] %v315
  %346 = vst [vmem:[%s3 + $0x38] sm:$0xff] %v317
  %347 = vst [vmem:[%s3 + $0x40] sm:$0xff] %v321
  %348 = vst [vmem:[%s3 + $0x48] sm:$0xff] %v323
  %349 = vst [vmem:[%s3 + $0x50] sm:$0xff] %v325
  %350 = vst [vmem:[%s3 + $0x58] sm:$0xff] %v327
  %351 = vst [vmem:[%s3 + $0x60] sm:$0xff] %v331
  %352 = vst [vmem:[%s3 + $0x68] sm:$0xff] %v333
  %353 = vst [vmem:[%s3 + $0x70] sm:$0xff] %v335
  %354 = vst [vmem:[%s3 + $0x78] sm:$0xff] %v337
  // Predicated region
  $region14: #{point_correspondence_forward.15} parent=0 // pred_check
    _
  $region15: #{point_correspondence_forward.15} parent=0 // pred_check_branch
    %356 = sbr.rel (0) target = $region17
  $region16: #{point_correspondence_forward.15} parent=0 // pred_region
    _
  $region17: #{point_correspondence_forward.15} parent=0 // pred_fallthru
    _
  // Predicated region
  $region18: #{point_correspondence_forward.15} parent=0 // pred_check
    _
  $region19: #{point_correspondence_forward.15} parent=0 // pred_check_branch
    %358 = sbr.rel (0) target = $region21
  $region20: #{point_correspondence_forward.15} parent=0 // pred_region
    _
  $region21: #{point_correspondence_forward.15} parent=0 // pred_fallthru
    _

// kernel: point_correspondence_forward.12
$region0: #{point_correspondence_forward.12}
  #allocation0 [shape = 'u32[]', space=smem, size = 0x4, offset = 0x4, fixed_abs, tag = 'smem constant byte address 0x4 - core index']
  #allocation1 [shape = 'u32[144,128]{1,0:T(1,128)}', space=vmem, size = 0x12000, scoped, tag = 'internal scratch']
  %s0 = inlined_call_operand.vmem [shape: bf16[16,2304], index: 0, kind: input, shape index: {}]
  %s1 = inlined_call_operand.vmem [shape: bf16[2304,512], index: 1, kind: input, shape index: {}]
  %s2 = inlined_call_operand.vmem [shape: f32[1,512], index: 2, kind: input, shape index: {}]
  %s3 = inlined_call_operand.vmem [shape: f32[16,512], index: 3, kind: output, shape index: {}]
  %s4 = sld [smem:[#allocation0]]
  $region22: #{point_correspondence_forward.12} parent=0
    _
  %s6 = ssub.s32 1, %s4
  %s7 = scalar_select 0, %s6, %s4
  // Predicated region
  $region2: #{point_correspondence_forward.12} parent=0 // pred_check
    _
  $region3: #{point_correspondence_forward.12} parent=0 // pred_check_branch
    %9 = sbr.rel (0) target = $region5
  $region4: #{point_correspondence_forward.12} parent=0 // pred_region
    _
  $region5: #{point_correspondence_forward.12} parent=0 // pred_fallthru
    _
  // Predicated region
  $region6: #{point_correspondence_forward.12} parent=0 // pred_check
    _
  $region7: #{point_correspondence_forward.12} parent=0 // pred_check_branch
    %11 = sbr.rel (0) target = $region9
  $region8: #{point_correspondence_forward.12} parent=0 // pred_region
    _
  $region9: #{point_correspondence_forward.12} parent=0 // pred_fallthru
    _
  // Predicated region
  $region10: #{point_correspondence_forward.12} parent=0 // pred_check
    _
  $region11: #{point_correspondence_forward.12} parent=0 // pred_check_branch
    %13 = sbr.rel (0) target = $region13
  $region12: #{point_correspondence_forward.12} parent=0 // pred_region
    _
  $region13: #{point_correspondence_forward.12} parent=0 // pred_fallthru
    _
  %v14 = vld [vmem:[%s0] sm:$0xff]
  %v15 = vld [vmem:[%s0 + $0x8] sm:$0xff]
  %v16 = vld [vmem:[%s0 + $0x10] sm:$0xff]
  %v17 = vld [vmem:[%s0 + $0x18] sm:$0xff]
  %v18 = vld [vmem:[%s0 + $0x20] sm:$0xff]
  %v19 = vld [vmem:[%s0 + $0x28] sm:$0xff]
  %v20 = vld [vmem:[%s0 + $0x30] sm:$0xff]
  %v21 = vld [vmem:[%s0 + $0x38] sm:$0xff]
  %v22 = vld [vmem:[%s0 + $0x40] sm:$0xff]
  %v23 = vld [vmem:[%s0 + $0x48] sm:$0xff]
  %v24 = vld [vmem:[%s0 + $0x50] sm:$0xff]
  %v25 = vld [vmem:[%s0 + $0x58] sm:$0xff]
  %v26 = vld [vmem:[%s0 + $0x60] sm:$0xff]
  %v27 = vld [vmem:[%s0 + $0x68] sm:$0xff]
  %v28 = vld [vmem:[%s0 + $0x70] sm:$0xff]
  %v29 = vld [vmem:[%s0 + $0x78] sm:$0xff]
  %v30 = vld [vmem:[%s0 + $0x80] sm:$0xff]
  %v31 = vld [vmem:[%s0 + $0x88] sm:$0xff]
  %v32 = vld [vmem:[%s1] sm:$0xff]
  %v33 = vld [vmem:[%s1 + $0x8] sm:$0xff]
  %v34 = vld [vmem:[%s1 + $0x10] sm:$0xff]
  %v35 = vld [vmem:[%s1 + $0x18] sm:$0xff]
  %v36 = vld [vmem:[%s1 + $0x20] sm:$0xff]
  %v37 = vld [vmem:[%s1 + $0x28] sm:$0xff]
  %v38 = vld [vmem:[%s1 + $0x30] sm:$0xff]
  %v39 = vld [vmem:[%s1 + $0x38] sm:$0xff]
  %v40 = vld [vmem:[%s1 + $0x40] sm:$0xff]
  %v41 = vld [vmem:[%s1 + $0x48] sm:$0xff]
  %v42 = vld [vmem:[%s1 + $0x50] sm:$0xff]
  %v43 = vld [vmem:[%s1 + $0x58] sm:$0xff]
  %v44 = vld [vmem:[%s1 + $0x60] sm:$0xff]
  %v45 = vld [vmem:[%s1 + $0x68] sm:$0xff]
  %v46 = vld [vmem:[%s1 + $0x70] sm:$0xff]
  %v47 = vld [vmem:[%s1 + $0x78] sm:$0xff]
  %v48 = vld [vmem:[%s1 + $0x80] sm:$0xff]
  %v49 = vld [vmem:[%s1 + $0x88] sm:$0xff]
  %v50 = vld [vmem:[%s1 + $0x90] sm:$0xff]
  %v51 = vld [vmem:[%s1 + $0x98] sm:$0xff]
  %v52 = vld [vmem:[%s1 + $0xa0] sm:$0xff]
  %v53 = vld [vmem:[%s1 + $0xa8] sm:$0xff]
  %v54 = vld [vmem:[%s1 + $0xb0] sm:$0xff]
  %v55 = vld [vmem:[%s1 + $0xb8] sm:$0xff]
  %v56 = vld [vmem:[%s1 + $0xc0] sm:$0xff]
  %v57 = vld [vmem:[%s1 + $0xc8] sm:$0xff]
  %v58 = vld [vmem:[%s1 + $0xd0] sm:$0xff]
  %v59 = vld [vmem:[%s1 + $0xd8] sm:$0xff]
  %v60 = vld [vmem:[%s1 + $0xe0] sm:$0xff]
  %v61 = vld [vmem:[%s1 + $0xe8] sm:$0xff]
  %v62 = vld [vmem:[%s1 + $0xf0] sm:$0xff]
  %v63 = vld [vmem:[%s1 + $0xf8] sm:$0xff]
  %v64 = vld [vmem:[%s1 + $0x100] sm:$0xff]
  %v65 = vld [vmem:[%s1 + $0x108] sm:$0xff]
  %v66 = vld [vmem:[%s1 + $0x110] sm:$0xff]
  %v67 = vld [vmem:[%s1 + $0x118] sm:$0xff]
  %v68 = vld [vmem:[%s1 + $0x120] sm:$0xff]
  %v69 = vld [vmem:[%s1 + $0x128] sm:$0xff]
  %v70 = vld [vmem:[%s1 + $0x130] sm:$0xff]
  %v71 = vld [vmem:[%s1 + $0x138] sm:$0xff]
  %v72 = vld [vmem:[%s1 + $0x140] sm:$0xff]
  %v73 = vld [vmem:[%s1 + $0x148] sm:$0xff]
  %v74 = vld [vmem:[%s1 + $0x150] sm:$0xff]
  %v75 = vld [vmem:[%s1 + $0x158] sm:$0xff]
  %v76 = vld [vmem:[%s1 + $0x160] sm:$0xff]
  %v77 = vld [vmem:[%s1 + $0x168] sm:$0xff]
  %v78 = vld [vmem:[%s1 + $0x170] sm:$0xff]
  %v79 = vld [vmem:[%s1 + $0x178] sm:$0xff]
  %v80 = vld [vmem:[%s1 + $0x180] sm:$0xff]
  %v81 = vld [vmem:[%s1 + $0x188] sm:$0xff]
  %v82 = vld [vmem:[%s1 + $0x190] sm:$0xff]
  %v83 = vld [vmem:[%s1 + $0x198] sm:$0xff]
  %v84 = vld [vmem:[%s1 + $0x1a0] sm:$0xff]
  %v85 = vld [vmem:[%s1 + $0x1a8] sm:$0xff]
  %v86 = vld [vmem:[%s1 + $0x1b0] sm:$0xff]
  %v87 = vld [vmem:[%s1 + $0x1b8] sm:$0xff]
  %v88 = vld [vmem:[%s1 + $0x1c0] sm:$0xff]
  %v89 = vld [vmem:[%s1 + $0x1c8] sm:$0xff]
  %v90 = vld [vmem:[%s1 + $0x1d0] sm:$0xff]
  %v91 = vld [vmem:[%s1 + $0x1d8] sm:$0xff]
  %v92 = vld [vmem:[%s1 + $0x1e0] sm:$0xff]
  %v93 = vld [vmem:[%s1 + $0x1e8] sm:$0xff]
  %v94 = vld [vmem:[%s1 + $0x1f0] sm:$0xff]
  %v95 = vld [vmem:[%s1 + $0x1f8] sm:$0xff]
  %v96 = vld [vmem:[%s1 + $0x200] sm:$0xff]
  %v97 = vld [vmem:[%s1 + $0x208] sm:$0xff]
  %v98 = vld [vmem:[%s1 + $0x210] sm:$0xff]
  %v99 = vld [vmem:[%s1 + $0x218] sm:$0xff]
  %v100 = vld [vmem:[%s1 + $0x220] sm:$0xff]
  %v101 = vld [vmem:[%s1 + $0x228] sm:$0xff]
  %v102 = vld [vmem:[%s1 + $0x230] sm:$0xff]
  %v103 = vld [vmem:[%s1 + $0x238] sm:$0xff]
  %v104 = vld [vmem:[%s1 + $0x240] sm:$0xff]
  %v105 = vld [vmem:[%s1 + $0x248] sm:$0xff]
  %v106 = vld [vmem:[%s1 + $0x250] sm:$0xff]
  %v107 = vld [vmem:[%s1 + $0x258] sm:$0xff]
  %v108 = vld [vmem:[%s1 + $0x260] sm:$0xff]
  %v109 = vld [vmem:[%s1 + $0x268] sm:$0xff]
  %v110 = vld [vmem:[%s1 + $0x270] sm:$0xff]
  %v111 = vld [vmem:[%s1 + $0x278] sm:$0xff]
  %v112 = vld [vmem:[%s1 + $0x280] sm:$0xff]
  %v113 = vld [vmem:[%s1 + $0x288] sm:$0xff]
  %v114 = vld [vmem:[%s1 + $0x290] sm:$0xff]
  %v115 = vld [vmem:[%s1 + $0x298] sm:$0xff]
  %v116 = vld [vmem:[%s1 + $0x2a0] sm:$0xff]
  %v117 = vld [vmem:[%s1 + $0x2a8] sm:$0xff]
  %v118 = vld [vmem:[%s1 + $0x2b0] sm:$0xff]
  %v119 = vld [vmem:[%s1 + $0x2b8] sm:$0xff]
  %v120 = vld [vmem:[%s1 + $0x2c0] sm:$0xff]
  %v121 = vld [vmem:[%s1 + $0x2c8] sm:$0xff]
  %v122 = vld [vmem:[%s1 + $0x2d0] sm:$0xff]
  %v123 = vld [vmem:[%s1 + $0x2d8] sm:$0xff]
  %v124 = vld [vmem:[%s1 + $0x2e0] sm:$0xff]
  %v125 = vld [vmem:[%s1 + $0x2e8] sm:$0xff]
  %v126 = vld [vmem:[%s1 + $0x2f0] sm:$0xff]
  %v127 = vld [vmem:[%s1 + $0x2f8] sm:$0xff]
  %v128 = vld [vmem:[%s1 + $0x300] sm:$0xff]
  %v129 = vld [vmem:[%s1 + $0x308] sm:$0xff]
  %v130 = vld [vmem:[%s1 + $0x310] sm:$0xff]
  %v131 = vld [vmem:[%s1 + $0x318] sm:$0xff]
  %v132 = vld [vmem:[%s1 + $0x320] sm:$0xff]
  %v133 = vld [vmem:[%s1 + $0x328] sm:$0xff]
  %v134 = vld [vmem:[%s1 + $0x330] sm:$0xff]
  %v135 = vld [vmem:[%s1 + $0x338] sm:$0xff]
  %v136 = vld [vmem:[%s1 + $0x340] sm:$0xff]
  %v137 = vld [vmem:[%s1 + $0x348] sm:$0xff]
  %v138 = vld [vmem:[%s1 + $0x350] sm:$0xff]
  %v139 = vld [vmem:[%s1 + $0x358] sm:$0xff]
  %v140 = vld [vmem:[%s1 + $0x360] sm:$0xff]
  %v141 = vld [vmem:[%s1 + $0x368] sm:$0xff]
  %v142 = vld [vmem:[%s1 + $0x370] sm:$0xff]
  %v143 = vld [vmem:[%s1 + $0x378] sm:$0xff]
  %v144 = vld [vmem:[%s1 + $0x380] sm:$0xff]
  %v145 = vld [vmem:[%s1 + $0x388] sm:$0xff]
  %v146 = vld [vmem:[%s1 + $0x390] sm:$0xff]
  %v147 = vld [vmem:[%s1 + $0x398] sm:$0xff]
  %v148 = vld [vmem:[%s1 + $0x3a0] sm:$0xff]
  %v149 = vld [vmem:[%s1 + $0x3a8] sm:$0xff]
  %v150 = vld [vmem:[%s1 + $0x3b0] sm:$0xff]
  %v151 = vld [vmem:[%s1 + $0x3b8] sm:$0xff]
  %v152 = vld [vmem:[%s1 + $0x3c0] sm:$0xff]
  %v153 = vld [vmem:[%s1 + $0x3c8] sm:$0xff]
  %v154 = vld [vmem:[%s1 + $0x3d0] sm:$0xff]
  %v155 = vld [vmem:[%s1 + $0x3d8] sm:$0xff]
  %v156 = vld [vmem:[%s1 + $0x3e0] sm:$0xff]
  %v157 = vld [vmem:[%s1 + $0x3e8] sm:$0xff]
  %v158 = vld [vmem:[%s1 + $0x3f0] sm:$0xff]
  %v159 = vld [vmem:[%s1 + $0x3f8] sm:$0xff]
  %v160 = vld [vmem:[%s1 + $0x400] sm:$0xff]
  %v161 = vld [vmem:[%s1 + $0x408] sm:$0xff]
  %v162 = vld [vmem:[%s1 + $0x410] sm:$0xff]
  %v163 = vld [vmem:[%s1 + $0x418] sm:$0xff]
  %v164 = vld [vmem:[%s1 + $0x420] sm:$0xff]
  %v165 = vld [vmem:[%s1 + $0x428] sm:$0xff]
  %v166 = vld [vmem:[%s1 + $0x430] sm:$0xff]
  %v167 = vld [vmem:[%s1 + $0x438] sm:$0xff]
  %v168 = vld [vmem:[%s1 + $0x440] sm:$0xff]
  %v169 = vld [vmem:[%s1 + $0x448] sm:$0xff]
  %v170 = vld [vmem:[%s1 + $0x450] sm:$0xff]
  %v171 = vld [vmem:[%s1 + $0x458] sm:$0xff]
  %v172 = vld [vmem:[%s1 + $0x460] sm:$0xff]
  %v173 = vld [vmem:[%s1 + $0x468] sm:$0xff]
  %v174 = vld [vmem:[%s1 + $0x470] sm:$0xff]
  %v175 = vld [vmem:[%s1 + $0x478] sm:$0xff]
  %v176 = vld [vmem:[%s1 + $0x480] sm:$0xff]
  %v177 = vld [vmem:[%s1 + $0x488] sm:$0xff]
  %v178 = vld [vmem:[%s1 + $0x490] sm:$0xff]
  %v179 = vld [vmem:[%s1 + $0x498] sm:$0xff]
  %v180 = vld [vmem:[%s1 + $0x4a0] sm:$0xff]
  %v181 = vld [vmem:[%s1 + $0x4a8] sm:$0xff]
  %v182 = vld [vmem:[%s1 + $0x4b0] sm:$0xff]
  %v183 = vld [vmem:[%s1 + $0x4b8] sm:$0xff]
  %v184 = vld [vmem:[%s1 + $0x4c0] sm:$0xff]
  %v185 = vld [vmem:[%s1 + $0x4c8] sm:$0xff]
  %v186 = vld [vmem:[%s1 + $0x4d0] sm:$0xff]
  %v187 = vld [vmem:[%s1 + $0x4d8] sm:$0xff]
  %v188 = vld [vmem:[%s1 + $0x4e0] sm:$0xff]
  %v189 = vld [vmem:[%s1 + $0x4e8] sm:$0xff]
  %v190 = vld [vmem:[%s1 + $0x4f0] sm:$0xff]
  %v191 = vld [vmem:[%s1 + $0x4f8] sm:$0xff]
  %v192 = vld [vmem:[%s1 + $0x500] sm:$0xff]
  %v193 = vld [vmem:[%s1 + $0x508] sm:$0xff]
  %v194 = vld [vmem:[%s1 + $0x510] sm:$0xff]
  %v195 = vld [vmem:[%s1 + $0x518] sm:$0xff]
  %v196 = vld [vmem:[%s1 + $0x520] sm:$0xff]
  %v197 = vld [vmem:[%s1 + $0x528] sm:$0xff]
  %v198 = vld [vmem:[%s1 + $0x530] sm:$0xff]
  %v199 = vld [vmem:[%s1 + $0x538] sm:$0xff]
  %v200 = vld [vmem:[%s1 + $0x540] sm:$0xff]
  %v201 = vld [vmem:[%s1 + $0x548] sm:$0xff]
  %v202 = vld [vmem:[%s1 + $0x550] sm:$0xff]
  %v203 = vld [vmem:[%s1 + $0x558] sm:$0xff]
  %v204 = vld [vmem:[%s1 + $0x560] sm:$0xff]
  %v205 = vld [vmem:[%s1 + $0x568] sm:$0xff]
  %v206 = vld [vmem:[%s1 + $0x570] sm:$0xff]
  %v207 = vld [vmem:[%s1 + $0x578] sm:$0xff]
  %v208 = vld [vmem:[%s1 + $0x580] sm:$0xff]
  %v209 = vld [vmem:[%s1 + $0x588] sm:$0xff]
  %v210 = vld [vmem:[%s1 + $0x590] sm:$0xff]
  %v211 = vld [vmem:[%s1 + $0x598] sm:$0xff]
  %v212 = vld [vmem:[%s1 + $0x5a0] sm:$0xff]
  %v213 = vld [vmem:[%s1 + $0x5a8] sm:$0xff]
  %v214 = vld [vmem:[%s1 + $0x5b0] sm:$0xff]
  %v215 = vld [vmem:[%s1 + $0x5b8] sm:$0xff]
  %v216 = vld [vmem:[%s1 + $0x5c0] sm:$0xff]
  %v217 = vld [vmem:[%s1 + $0x5c8] sm:$0xff]
  %v218 = vld [vmem:[%s1 + $0x5d0] sm:$0xff]
  %v219 = vld [vmem:[%s1 + $0x5d8] sm:$0xff]
  %v220 = vld [vmem:[%s1 + $0x5e0] sm:$0xff]
  %v221 = vld [vmem:[%s1 + $0x5e8] sm:$0xff]
  %v222 = vld [vmem:[%s1 + $0x5f0] sm:$0xff]
  %v223 = vld [vmem:[%s1 + $0x5f8] sm:$0xff]
  %v224 = vld [vmem:[%s1 + $0x600] sm:$0xff]
  %v225 = vld [vmem:[%s1 + $0x608] sm:$0xff]
  %v226 = vld [vmem:[%s1 + $0x610] sm:$0xff]
  %v227 = vld [vmem:[%s1 + $0x618] sm:$0xff]
  %v228 = vld [vmem:[%s1 + $0x620] sm:$0xff]
  %v229 = vld [vmem:[%s1 + $0x628] sm:$0xff]
  %v230 = vld [vmem:[%s1 + $0x630] sm:$0xff]
  %v231 = vld [vmem:[%s1 + $0x638] sm:$0xff]
  %v232 = vld [vmem:[%s1 + $0x640] sm:$0xff]
  %v233 = vld [vmem:[%s1 + $0x648] sm:$0xff]
  %v234 = vld [vmem:[%s1 + $0x650] sm:$0xff]
  %v235 = vld [vmem:[%s1 + $0x658] sm:$0xff]
  %v236 = vld [vmem:[%s1 + $0x660] sm:$0xff]
  %v237 = vld [vmem:[%s1 + $0x668] sm:$0xff]
  %v238 = vld [vmem:[%s1 + $0x670] sm:$0xff]
  %v239 = vld [vmem:[%s1 + $0x678] sm:$0xff]
  %v240 = vld [vmem:[%s1 + $0x680] sm:$0xff]
  %v241 = vld [vmem:[%s1 + $0x688] sm:$0xff]
  %v242 = vld [vmem:[%s1 + $0x690] sm:$0xff]
  %v243 = vld [vmem:[%s1 + $0x698] sm:$0xff]
  %v244 = vld [vmem:[%s1 + $0x6a0] sm:$0xff]
  %v245 = vld [vmem:[%s1 + $0x6a8] sm:$0xff]
  %v246 = vld [vmem:[%s1 + $0x6b0] sm:$0xff]
  %v247 = vld [vmem:[%s1 + $0x6b8] sm:$0xff]
  %v248 = vld [vmem:[%s1 + $0x6c0] sm:$0xff]
  %v249 = vld [vmem:[%s1 + $0x6c8] sm:$0xff]
  %v250 = vld [vmem:[%s1 + $0x6d0] sm:$0xff]
  %v251 = vld [vmem:[%s1 + $0x6d8] sm:$0xff]
  %v252 = vld [vmem:[%s1 + $0x6e0] sm:$0xff]
  %v253 = vld [vmem:[%s1 + $0x6e8] sm:$0xff]
  %v254 = vld [vmem:[%s1 + $0x6f0] sm:$0xff]
  %v255 = vld [vmem:[%s1 + $0x6f8] sm:$0xff]
  %v256 = vld [vmem:[%s1 + $0x700] sm:$0xff]
  %v257 = vld [vmem:[%s1 + $0x708] sm:$0xff]
  %v258 = vld [vmem:[%s1 + $0x710] sm:$0xff]
  %v259 = vld [vmem:[%s1 + $0x718] sm:$0xff]
  %v260 = vld [vmem:[%s1 + $0x720] sm:$0xff]
  %v261 = vld [vmem:[%s1 + $0x728] sm:$0xff]
  %v262 = vld [vmem:[%s1 + $0x730] sm:$0xff]
  %v263 = vld [vmem:[%s1 + $0x738] sm:$0xff]
  %v264 = vld [vmem:[%s1 + $0x740] sm:$0xff]
  %v265 = vld [vmem:[%s1 + $0x748] sm:$0xff]
  %v266 = vld [vmem:[%s1 + $0x750] sm:$0xff]
  %v267 = vld [vmem:[%s1 + $0x758] sm:$0xff]
  %v268 = vld [vmem:[%s1 + $0x760] sm:$0xff]
  %v269 = vld [vmem:[%s1 + $0x768] sm:$0xff]
  %v270 = vld [vmem:[%s1 + $0x770] sm:$0xff]
  %v271 = vld [vmem:[%s1 + $0x778] sm:$0xff]
  %v272 = vld [vmem:[%s1 + $0x780] sm:$0xff]
  %v273 = vld [vmem:[%s1 + $0x788] sm:$0xff]
  %v274 = vld [vmem:[%s1 + $0x790] sm:$0xff]
  %v275 = vld [vmem:[%s1 + $0x798] sm:$0xff]
  %v276 = vld [vmem:[%s1 + $0x7a0] sm:$0xff]
  %v277 = vld [vmem:[%s1 + $0x7a8] sm:$0xff]
  %v278 = vld [vmem:[%s1 + $0x7b0] sm:$0xff]
  %v279 = vld [vmem:[%s1 + $0x7b8] sm:$0xff]
  %v280 = vld [vmem:[%s1 + $0x7c0] sm:$0xff]
  %v281 = vld [vmem:[%s1 + $0x7c8] sm:$0xff]
  %v282 = vld [vmem:[%s1 + $0x7d0] sm:$0xff]
  %v283 = vld [vmem:[%s1 + $0x7d8] sm:$0xff]
  %v284 = vld [vmem:[%s1 + $0x7e0] sm:$0xff]
  %v285 = vld [vmem:[%s1 + $0x7e8] sm:$0xff]
  %v286 = vld [vmem:[%s1 + $0x7f0] sm:$0xff]
  %v287 = vld [vmem:[%s1 + $0x7f8] sm:$0xff]
  %v288 = vld [vmem:[%s1 + $0x800] sm:$0xff]
  %v289 = vld [vmem:[%s1 + $0x808] sm:$0xff]
  %v290 = vld [vmem:[%s1 + $0x810] sm:$0xff]
  %v291 = vld [vmem:[%s1 + $0x818] sm:$0xff]
  %v292 = vld [vmem:[%s1 + $0x820] sm:$0xff]
  %v293 = vld [vmem:[%s1 + $0x828] sm:$0xff]
  %v294 = vld [vmem:[%s1 + $0x830] sm:$0xff]
  %v295 = vld [vmem:[%s1 + $0x838] sm:$0xff]
  %v296 = vld [vmem:[%s1 + $0x840] sm:$0xff]
  %v297 = vld [vmem:[%s1 + $0x848] sm:$0xff]
  %v298 = vld [vmem:[%s1 + $0x850] sm:$0xff]
  %v299 = vld [vmem:[%s1 + $0x858] sm:$0xff]
  %v300 = vld [vmem:[%s1 + $0x860] sm:$0xff]
  %v301 = vld [vmem:[%s1 + $0x868] sm:$0xff]
  %v302 = vld [vmem:[%s1 + $0x870] sm:$0xff]
  %v303 = vld [vmem:[%s1 + $0x878] sm:$0xff]
  %v304 = vld [vmem:[%s1 + $0x880] sm:$0xff]
  %v305 = vld [vmem:[%s1 + $0x888] sm:$0xff]
  %v306 = vld [vmem:[%s1 + $0x890] sm:$0xff]
  %v307 = vld [vmem:[%s1 + $0x898] sm:$0xff]
  %v308 = vld [vmem:[%s1 + $0x8a0] sm:$0xff]
  %v309 = vld [vmem:[%s1 + $0x8a8] sm:$0xff]
  %v310 = vld [vmem:[%s1 + $0x8b0] sm:$0xff]
  %v311 = vld [vmem:[%s1 + $0x8b8] sm:$0xff]
  %v312 = vld [vmem:[%s1 + $0x8c0] sm:$0xff]
  %v313 = vld [vmem:[%s1 + $0x8c8] sm:$0xff]
  %v314 = vld [vmem:[%s1 + $0x8d0] sm:$0xff]
  %v315 = vld [vmem:[%s1 + $0x8d8] sm:$0xff]
  %v316 = vld [vmem:[%s1 + $0x8e0] sm:$0xff]
  %v317 = vld [vmem:[%s1 + $0x8e8] sm:$0xff]
  %v318 = vld [vmem:[%s1 + $0x8f0] sm:$0xff]
  %v319 = vld [vmem:[%s1 + $0x8f8] sm:$0xff]
  %v320 = vld [vmem:[%s1 + $0x900] sm:$0xff]
  %v321 = vld [vmem:[%s1 + $0x908] sm:$0xff]
  %v322 = vld [vmem:[%s1 + $0x910] sm:$0xff]
  %v323 = vld [vmem:[%s1 + $0x918] sm:$0xff]
  %v324 = vld [vmem:[%s1 + $0x920] sm:$0xff]
  %v325 = vld [vmem:[%s1 + $0x928] sm:$0xff]
  %v326 = vld [vmem:[%s1 + $0x930] sm:$0xff]
  %v327 = vld [vmem:[%s1 + $0x938] sm:$0xff]
  %v328 = vld [vmem:[%s1 + $0x940] sm:$0xff]
  %v329 = vld [vmem:[%s1 + $0x948] sm:$0xff]
  %v330 = vld [vmem:[%s1 + $0x950] sm:$0xff]
  %v331 = vld [vmem:[%s1 + $0x958] sm:$0xff]
  %v332 = vld [vmem:[%s1 + $0x960] sm:$0xff]
  %v333 = vld [vmem:[%s1 + $0x968] sm:$0xff]
  %v334 = vld [vmem:[%s1 + $0x970] sm:$0xff]
  %v335 = vld [vmem:[%s1 + $0x978] sm:$0xff]
  %v336 = vld [vmem:[%s1 + $0x980] sm:$0xff]
  %v337 = vld [vmem:[%s1 + $0x988] sm:$0xff]
  %v338 = vld [vmem:[%s1 + $0x990] sm:$0xff]
  %v339 = vld [vmem:[%s1 + $0x998] sm:$0xff]
  %v340 = vld [vmem:[%s1 + $0x9a0] sm:$0xff]
  %v341 = vld [vmem:[%s1 + $0x9a8] sm:$0xff]
  %v342 = vld [vmem:[%s1 + $0x9b0] sm:$0xff]
  %v343 = vld [vmem:[%s1 + $0x9b8] sm:$0xff]
  %v344 = vld [vmem:[%s1 + $0x9c0] sm:$0xff]
  %v345 = vld [vmem:[%s1 + $0x9c8] sm:$0xff]
  %v346 = vld [vmem:[%s1 + $0x9d0] sm:$0xff]
  %v347 = vld [vmem:[%s1 + $0x9d8] sm:$0xff]
  %v348 = vld [vmem:[%s1 + $0x9e0] sm:$0xff]
  %v349 = vld [vmem:[%s1 + $0x9e8] sm:$0xff]
  %v350 = vld [vmem:[%s1 + $0x9f0] sm:$0xff]
  %v351 = vld [vmem:[%s1 + $0x9f8] sm:$0xff]
  %v352 = vld [vmem:[%s1 + $0xa00] sm:$0xff]
  %v353 = vld [vmem:[%s1 + $0xa08] sm:$0xff]
  %v354 = vld [vmem:[%s1 + $0xa10] sm:$0xff]
  %v355 = vld [vmem:[%s1 + $0xa18] sm:$0xff]
  %v356 = vld [vmem:[%s1 + $0xa20] sm:$0xff]
  %v357 = vld [vmem:[%s1 + $0xa28] sm:$0xff]
  %v358 = vld [vmem:[%s1 + $0xa30] sm:$0xff]
  %v359 = vld [vmem:[%s1 + $0xa38] sm:$0xff]
  %v360 = vld [vmem:[%s1 + $0xa40] sm:$0xff]
  %v361 = vld [vmem:[%s1 + $0xa48] sm:$0xff]
  %v362 = vld [vmem:[%s1 + $0xa50] sm:$0xff]
  %v363 = vld [vmem:[%s1 + $0xa58] sm:$0xff]
  %v364 = vld [vmem:[%s1 + $0xa60] sm:$0xff]
  %v365 = vld [vmem:[%s1 + $0xa68] sm:$0xff]
  %v366 = vld [vmem:[%s1 + $0xa70] sm:$0xff]
  %v367 = vld [vmem:[%s1 + $0xa78] sm:$0xff]
  %v368 = vld [vmem:[%s1 + $0xa80] sm:$0xff]
  %v369 = vld [vmem:[%s1 + $0xa88] sm:$0xff]
  %v370 = vld [vmem:[%s1 + $0xa90] sm:$0xff]
  %v371 = vld [vmem:[%s1 + $0xa98] sm:$0xff]
  %v372 = vld [vmem:[%s1 + $0xaa0] sm:$0xff]
  %v373 = vld [vmem:[%s1 + $0xaa8] sm:$0xff]
  %v374 = vld [vmem:[%s1 + $0xab0] sm:$0xff]
  %v375 = vld [vmem:[%s1 + $0xab8] sm:$0xff]
  %v376 = vld [vmem:[%s1 + $0xac0] sm:$0xff]
  %v377 = vld [vmem:[%s1 + $0xac8] sm:$0xff]
  %v378 = vld [vmem:[%s1 + $0xad0] sm:$0xff]
  %v379 = vld [vmem:[%s1 + $0xad8] sm:$0xff]
  %v380 = vld [vmem:[%s1 + $0xae0] sm:$0xff]
  %v381 = vld [vmem:[%s1 + $0xae8] sm:$0xff]
  %v382 = vld [vmem:[%s1 + $0xaf0] sm:$0xff]
  %v383 = vld [vmem:[%s1 + $0xaf8] sm:$0xff]
  %v384 = vld [vmem:[%s1 + $0xb00] sm:$0xff]
  %v385 = vld [vmem:[%s1 + $0xb08] sm:$0xff]
  %v386 = vld [vmem:[%s1 + $0xb10] sm:$0xff]
  %v387 = vld [vmem:[%s1 + $0xb18] sm:$0xff]
  %v388 = vld [vmem:[%s1 + $0xb20] sm:$0xff]
  %v389 = vld [vmem:[%s1 + $0xb28] sm:$0xff]
  %v390 = vld [vmem:[%s1 + $0xb30] sm:$0xff]
  %v391 = vld [vmem:[%s1 + $0xb38] sm:$0xff]
  %v392 = vld [vmem:[%s1 + $0xb40] sm:$0xff]
  %v393 = vld [vmem:[%s1 + $0xb48] sm:$0xff]
  %v394 = vld [vmem:[%s1 + $0xb50] sm:$0xff]
  %v395 = vld [vmem:[%s1 + $0xb58] sm:$0xff]
  %v396 = vld [vmem:[%s1 + $0xb60] sm:$0xff]
  %v397 = vld [vmem:[%s1 + $0xb68] sm:$0xff]
  %v398 = vld [vmem:[%s1 + $0xb70] sm:$0xff]
  %v399 = vld [vmem:[%s1 + $0xb78] sm:$0xff]
  %v400 = vld [vmem:[%s1 + $0xb80] sm:$0xff]
  %v401 = vld [vmem:[%s1 + $0xb88] sm:$0xff]
  %v402 = vld [vmem:[%s1 + $0xb90] sm:$0xff]
  %v403 = vld [vmem:[%s1 + $0xb98] sm:$0xff]
  %v404 = vld [vmem:[%s1 + $0xba0] sm:$0xff]
  %v405 = vld [vmem:[%s1 + $0xba8] sm:$0xff]
  %v406 = vld [vmem:[%s1 + $0xbb0] sm:$0xff]
  %v407 = vld [vmem:[%s1 + $0xbb8] sm:$0xff]
  %v408 = vld [vmem:[%s1 + $0xbc0] sm:$0xff]
  %v409 = vld [vmem:[%s1 + $0xbc8] sm:$0xff]
  %v410 = vld [vmem:[%s1 + $0xbd0] sm:$0xff]
  %v411 = vld [vmem:[%s1 + $0xbd8] sm:$0xff]
  %v412 = vld [vmem:[%s1 + $0xbe0] sm:$0xff]
  %v413 = vld [vmem:[%s1 + $0xbe8] sm:$0xff]
  %v414 = vld [vmem:[%s1 + $0xbf0] sm:$0xff]
  %v415 = vld [vmem:[%s1 + $0xbf8] sm:$0xff]
  %v416 = vld [vmem:[%s1 + $0xc00] sm:$0xff]
  %v417 = vld [vmem:[%s1 + $0xc08] sm:$0xff]
  %v418 = vld [vmem:[%s1 + $0xc10] sm:$0xff]
  %v419 = vld [vmem:[%s1 + $0xc18] sm:$0xff]
  %v420 = vld [vmem:[%s1 + $0xc20] sm:$0xff]
  %v421 = vld [vmem:[%s1 + $0xc28] sm:$0xff]
  %v422 = vld [vmem:[%s1 + $0xc30] sm:$0xff]
  %v423 = vld [vmem:[%s1 + $0xc38] sm:$0xff]
  %v424 = vld [vmem:[%s1 + $0xc40] sm:$0xff]
  %v425 = vld [vmem:[%s1 + $0xc48] sm:$0xff]
  %v426 = vld [vmem:[%s1 + $0xc50] sm:$0xff]
  %v427 = vld [vmem:[%s1 + $0xc58] sm:$0xff]
  %v428 = vld [vmem:[%s1 + $0xc60] sm:$0xff]
  %v429 = vld [vmem:[%s1 + $0xc68] sm:$0xff]
  %v430 = vld [vmem:[%s1 + $0xc70] sm:$0xff]
  %v431 = vld [vmem:[%s1 + $0xc78] sm:$0xff]
  %v432 = vld [vmem:[%s1 + $0xc80] sm:$0xff]
  %v433 = vld [vmem:[%s1 + $0xc88] sm:$0xff]
  %v434 = vld [vmem:[%s1 + $0xc90] sm:$0xff]
  %v435 = vld [vmem:[%s1 + $0xc98] sm:$0xff]
  %v436 = vld [vmem:[%s1 + $0xca0] sm:$0xff]
  %v437 = vld [vmem:[%s1 + $0xca8] sm:$0xff]
  %v438 = vld [vmem:[%s1 + $0xcb0] sm:$0xff]
  %v439 = vld [vmem:[%s1 + $0xcb8] sm:$0xff]
  %v440 = vld [vmem:[%s1 + $0xcc0] sm:$0xff]
  %v441 = vld [vmem:[%s1 + $0xcc8] sm:$0xff]
  %v442 = vld [vmem:[%s1 + $0xcd0] sm:$0xff]
  %v443 = vld [vmem:[%s1 + $0xcd8] sm:$0xff]
  %v444 = vld [vmem:[%s1 + $0xce0] sm:$0xff]
  %v445 = vld [vmem:[%s1 + $0xce8] sm:$0xff]
  %v446 = vld [vmem:[%s1 + $0xcf0] sm:$0xff]
  %v447 = vld [vmem:[%s1 + $0xcf8] sm:$0xff]
  %v448 = vld [vmem:[%s1 + $0xd00] sm:$0xff]
  %v449 = vld [vmem:[%s1 + $0xd08] sm:$0xff]
  %v450 = vld [vmem:[%s1 + $0xd10] sm:$0xff]
  %v451 = vld [vmem:[%s1 + $0xd18] sm:$0xff]
  %v452 = vld [vmem:[%s1 + $0xd20] sm:$0xff]
  %v453 = vld [vmem:[%s1 + $0xd28] sm:$0xff]
  %v454 = vld [vmem:[%s1 + $0xd30] sm:$0xff]
  %v455 = vld [vmem:[%s1 + $0xd38] sm:$0xff]
  %v456 = vld [vmem:[%s1 + $0xd40] sm:$0xff]
  %v457 = vld [vmem:[%s1 + $0xd48] sm:$0xff]
  %v458 = vld [vmem:[%s1 + $0xd50] sm:$0xff]
  %v459 = vld [vmem:[%s1 + $0xd58] sm:$0xff]
  %v460 = vld [vmem:[%s1 + $0xd60] sm:$0xff]
  %v461 = vld [vmem:[%s1 + $0xd68] sm:$0xff]
  %v462 = vld [vmem:[%s1 + $0xd70] sm:$0xff]
  %v463 = vld [vmem:[%s1 + $0xd78] sm:$0xff]
  %v464 = vld [vmem:[%s1 + $0xd80] sm:$0xff]
  %v465 = vld [vmem:[%s1 + $0xd88] sm:$0xff]
  %v466 = vld [vmem:[%s1 + $0xd90] sm:$0xff]
  %v467 = vld [vmem:[%s1 + $0xd98] sm:$0xff]
  %v468 = vld [vmem:[%s1 + $0xda0] sm:$0xff]
  %v469 = vld [vmem:[%s1 + $0xda8] sm:$0xff]
  %v470 = vld [vmem:[%s1 + $0xdb0] sm:$0xff]
  %v471 = vld [vmem:[%s1 + $0xdb8] sm:$0xff]
  %v472 = vld [vmem:[%s1 + $0xdc0] sm:$0xff]
  %v473 = vld [vmem:[%s1 + $0xdc8] sm:$0xff]
  %v474 = vld [vmem:[%s1 + $0xdd0] sm:$0xff]
  %v475 = vld [vmem:[%s1 + $0xdd8] sm:$0xff]
  %v476 = vld [vmem:[%s1 + $0xde0] sm:$0xff]
  %v477 = vld [vmem:[%s1 + $0xde8] sm:$0xff]
  %v478 = vld [vmem:[%s1 + $0xdf0] sm:$0xff]
  %v479 = vld [vmem:[%s1 + $0xdf8] sm:$0xff]
  %v480 = vld [vmem:[%s1 + $0xe00] sm:$0xff]
  %v481 = vld [vmem:[%s1 + $0xe08] sm:$0xff]
  %v482 = vld [vmem:[%s1 + $0xe10] sm:$0xff]
  %v483 = vld [vmem:[%s1 + $0xe18] sm:$0xff]
  %v484 = vld [vmem:[%s1 + $0xe20] sm:$0xff]
  %v485 = vld [vmem:[%s1 + $0xe28] sm:$0xff]
  %v486 = vld [vmem:[%s1 + $0xe30] sm:$0xff]
  %v487 = vld [vmem:[%s1 + $0xe38] sm:$0xff]
  %v488 = vld [vmem:[%s1 + $0xe40] sm:$0xff]
  %v489 = vld [vmem:[%s1 + $0xe48] sm:$0xff]
  %v490 = vld [vmem:[%s1 + $0xe50] sm:$0xff]
  %v491 = vld [vmem:[%s1 + $0xe58] sm:$0xff]
  %v492 = vld [vmem:[%s1 + $0xe60] sm:$0xff]
  %v493 = vld [vmem:[%s1 + $0xe68] sm:$0xff]
  %v494 = vld [vmem:[%s1 + $0xe70] sm:$0xff]
  %v495 = vld [vmem:[%s1 + $0xe78] sm:$0xff]
  %v496 = vld [vmem:[%s1 + $0xe80] sm:$0xff]
  %v497 = vld [vmem:[%s1 + $0xe88] sm:$0xff]
  %v498 = vld [vmem:[%s1 + $0xe90] sm:$0xff]
  %v499 = vld [vmem:[%s1 + $0xe98] sm:$0xff]
  %v500 = vld [vmem:[%s1 + $0xea0] sm:$0xff]
  %v501 = vld [vmem:[%s1 + $0xea8] sm:$0xff]
  %v502 = vld [vmem:[%s1 + $0xeb0] sm:$0xff]
  %v503 = vld [vmem:[%s1 + $0xeb8] sm:$0xff]
  %v504 = vld [vmem:[%s1 + $0xec0] sm:$0xff]
  %v505 = vld [vmem:[%s1 + $0xec8] sm:$0xff]
  %v506 = vld [vmem:[%s1 + $0xed0] sm:$0xff]
  %v507 = vld [vmem:[%s1 + $0xed8] sm:$0xff]
  %v508 = vld [vmem:[%s1 + $0xee0] sm:$0xff]
  %v509 = vld [vmem:[%s1 + $0xee8] sm:$0xff]
  %v510 = vld [vmem:[%s1 + $0xef0] sm:$0xff]
  %v511 = vld [vmem:[%s1 + $0xef8] sm:$0xff]
  %v512 = vld [vmem:[%s1 + $0xf00] sm:$0xff]
  %v513 = vld [vmem:[%s1 + $0xf08] sm:$0xff]
  %v514 = vld [vmem:[%s1 + $0xf10] sm:$0xff]
  %v515 = vld [vmem:[%s1 + $0xf18] sm:$0xff]
  %v516 = vld [vmem:[%s1 + $0xf20] sm:$0xff]
  %v517 = vld [vmem:[%s1 + $0xf28] sm:$0xff]
  %v518 = vld [vmem:[%s1 + $0xf30] sm:$0xff]
  %v519 = vld [vmem:[%s1 + $0xf38] sm:$0xff]
  %v520 = vld [vmem:[%s1 + $0xf40] sm:$0xff]
  %v521 = vld [vmem:[%s1 + $0xf48] sm:$0xff]
  %v522 = vld [vmem:[%s1 + $0xf50] sm:$0xff]
  %v523 = vld [vmem:[%s1 + $0xf58] sm:$0xff]
  %v524 = vld [vmem:[%s1 + $0xf60] sm:$0xff]
  %v525 = vld [vmem:[%s1 + $0xf68] sm:$0xff]
  %v526 = vld [vmem:[%s1 + $0xf70] sm:$0xff]
  %v527 = vld [vmem:[%s1 + $0xf78] sm:$0xff]
  %v528 = vld [vmem:[%s1 + $0xf80] sm:$0xff]
  %v529 = vld [vmem:[%s1 + $0xf88] sm:$0xff]
  %v530 = vld [vmem:[%s1 + $0xf90] sm:$0xff]
  %v531 = vld [vmem:[%s1 + $0xf98] sm:$0xff]
  %v532 = vld [vmem:[%s1 + $0xfa0] sm:$0xff]
  %v533 = vld [vmem:[%s1 + $0xfa8] sm:$0xff]
  %v534 = vld [vmem:[%s1 + $0xfb0] sm:$0xff]
  %v535 = vld [vmem:[%s1 + $0xfb8] sm:$0xff]
  %v536 = vld [vmem:[%s1 + $0xfc0] sm:$0xff]
  %v537 = vld [vmem:[%s1 + $0xfc8] sm:$0xff]
  %v538 = vld [vmem:[%s1 + $0xfd0] sm:$0xff]
  %v539 = vld [vmem:[%s1 + $0xfd8] sm:$0xff]
  %v540 = vld [vmem:[%s1 + $0xfe0] sm:$0xff]
  %v541 = vld [vmem:[%s1 + $0xfe8] sm:$0xff]
  %v542 = vld [vmem:[%s1 + $0xff0] sm:$0xff]
  %v543 = vld [vmem:[%s1 + $0xff8] sm:$0xff]
  %v544 = vld [vmem:[%s1 + $0x1000] sm:$0xff]
  %v545 = vld [vmem:[%s1 + $0x1008] sm:$0xff]
  %v546 = vld [vmem:[%s1 + $0x1010] sm:$0xff]
  %v547 = vld [vmem:[%s1 + $0x1018] sm:$0xff]
  %v548 = vld [vmem:[%s1 + $0x1020] sm:$0xff]
  %v549 = vld [vmem:[%s1 + $0x1028] sm:$0xff]
  %v550 = vld [vmem:[%s1 + $0x1030] sm:$0xff]
  %v551 = vld [vmem:[%s1 + $0x1038] sm:$0xff]
  %v552 = vld [vmem:[%s1 + $0x1040] sm:$0xff]
  %v553 = vld [vmem:[%s1 + $0x1048] sm:$0xff]
  %v554 = vld [vmem:[%s1 + $0x1050] sm:$0xff]
  %v555 = vld [vmem:[%s1 + $0x1058] sm:$0xff]
  %v556 = vld [vmem:[%s1 + $0x1060] sm:$0xff]
  %v557 = vld [vmem:[%s1 + $0x1068] sm:$0xff]
  %v558 = vld [vmem:[%s1 + $0x1070] sm:$0xff]
  %v559 = vld [vmem:[%s1 + $0x1078] sm:$0xff]
  %v560 = vld [vmem:[%s1 + $0x1080] sm:$0xff]
  %v561 = vld [vmem:[%s1 + $0x1088] sm:$0xff]
  %v562 = vld [vmem:[%s1 + $0x1090] sm:$0xff]
  %v563 = vld [vmem:[%s1 + $0x1098] sm:$0xff]
  %v564 = vld [vmem:[%s1 + $0x10a0] sm:$0xff]
  %v565 = vld [vmem:[%s1 + $0x10a8] sm:$0xff]
  %v566 = vld [vmem:[%s1 + $0x10b0] sm:$0xff]
  %v567 = vld [vmem:[%s1 + $0x10b8] sm:$0xff]
  %v568 = vld [vmem:[%s1 + $0x10c0] sm:$0xff]
  %v569 = vld [vmem:[%s1 + $0x10c8] sm:$0xff]
  %v570 = vld [vmem:[%s1 + $0x10d0] sm:$0xff]
  %v571 = vld [vmem:[%s1 + $0x10d8] sm:$0xff]
  %v572 = vld [vmem:[%s1 + $0x10e0] sm:$0xff]
  %v573 = vld [vmem:[%s1 + $0x10e8] sm:$0xff]
  %v574 = vld [vmem:[%s1 + $0x10f0] sm:$0xff]
  %v575 = vld [vmem:[%s1 + $0x10f8] sm:$0xff]
  %v576 = vld [vmem:[%s1 + $0x1100] sm:$0xff]
  %v577 = vld [vmem:[%s1 + $0x1108] sm:$0xff]
  %v578 = vld [vmem:[%s1 + $0x1110] sm:$0xff]
  %v579 = vld [vmem:[%s1 + $0x1118] sm:$0xff]
  %v580 = vld [vmem:[%s1 + $0x1120] sm:$0xff]
  %v581 = vld [vmem:[%s1 + $0x1128] sm:$0xff]
  %v582 = vld [vmem:[%s1 + $0x1130] sm:$0xff]
  %v583 = vld [vmem:[%s1 + $0x1138] sm:$0xff]
  %v584 = vld [vmem:[%s1 + $0x1140] sm:$0xff]
  %v585 = vld [vmem:[%s1 + $0x1148] sm:$0xff]
  %v586 = vld [vmem:[%s1 + $0x1150] sm:$0xff]
  %v587 = vld [vmem:[%s1 + $0x1158] sm:$0xff]
  %v588 = vld [vmem:[%s1 + $0x1160] sm:$0xff]
  %v589 = vld [vmem:[%s1 + $0x1168] sm:$0xff]
  %v590 = vld [vmem:[%s1 + $0x1170] sm:$0xff]
  %v591 = vld [vmem:[%s1 + $0x1178] sm:$0xff]
  %v592 = vld [vmem:[%s1 + $0x1180] sm:$0xff]
  %v593 = vld [vmem:[%s1 + $0x1188] sm:$0xff]
  %v594 = vld [vmem:[%s1 + $0x1190] sm:$0xff]
  %v595 = vld [vmem:[%s1 + $0x1198] sm:$0xff]
  %v596 = vld [vmem:[%s1 + $0x11a0] sm:$0xff]
  %v597 = vld [vmem:[%s1 + $0x11a8] sm:$0xff]
  %v598 = vld [vmem:[%s1 + $0x11b0] sm:$0xff]
  %v599 = vld [vmem:[%s1 + $0x11b8] sm:$0xff]
  %v600 = vld [vmem:[%s1 + $0x11c0] sm:$0xff]
  %v601 = vld [vmem:[%s1 + $0x11c8] sm:$0xff]
  %v602 = vld [vmem:[%s1 + $0x11d0] sm:$0xff]
  %v603 = vld [vmem:[%s1 + $0x11d8] sm:$0xff]
  %v604 = vld [vmem:[%s1 + $0x11e0] sm:$0xff]
  %v605 = vld [vmem:[%s1 + $0x11e8] sm:$0xff]
  %v606 = vld [vmem:[%s1 + $0x11f0] sm:$0xff]
  %v607 = vld [vmem:[%s1 + $0x11f8] sm:$0xff]
  %v608 = vld [vmem:[%s2] sm:$0xf]
  %v610 = vlaneseq
  %v611 = vshrl.u32 %v610, 7
  %v612 = vsub.s32 0, %v611
  %v613 = vrot.slane %v608, %v612
  %v614 = vlaneseq
  %v615 = vshrl.u32 %v614, 7
  %v616 = vsub.s32 1, %v615
  %v617 = vrot.slane %v608, %v616
  %v618 = vlaneseq
  %v619 = vshrl.u32 %v618, 7
  %v620 = vsub.s32 2, %v619
  %v621 = vrot.slane %v608, %v620
  %v622 = vlaneseq
  %v623 = vshrl.u32 %v622, 7
  %v624 = vsub.s32 3, %v623
  %v625 = vrot.slane %v608, %v624
  %v648 = vunpack.c.l.b16 %v14
  %v649 = vunpack.c.h.b16 %v14
  %v650 = vunpack.c.l.b16 %v15
  %v651 = vunpack.c.h.b16 %v15
  %v652 = vunpack.c.l.b16 %v16
  %v653 = vunpack.c.h.b16 %v16
  %v654 = vunpack.c.l.b16 %v17
  %v655 = vunpack.c.h.b16 %v17
  %v656 = vunpack.c.l.b16 %v18
  %v657 = vunpack.c.h.b16 %v18
  %v658 = vunpack.c.l.b16 %v19
  %v659 = vunpack.c.h.b16 %v19
  %v660 = vunpack.c.l.b16 %v20
  %v661 = vunpack.c.h.b16 %v20
  %v662 = vunpack.c.l.b16 %v21
  %v663 = vunpack.c.h.b16 %v21
  %v664 = vunpack.c.l.b16 %v22
  %v665 = vunpack.c.h.b16 %v22
  %v666 = vunpack.c.l.b16 %v23
  %v667 = vunpack.c.h.b16 %v23
  %v668 = vunpack.c.l.b16 %v24
  %v669 = vunpack.c.h.b16 %v24
  %v670 = vunpack.c.l.b16 %v25
  %v671 = vunpack.c.h.b16 %v25
  %v672 = vunpack.c.l.b16 %v26
  %v673 = vunpack.c.h.b16 %v26
  %v674 = vunpack.c.l.b16 %v27
  %v675 = vunpack.c.h.b16 %v27
  %v676 = vunpack.c.l.b16 %v28
  %v677 = vunpack.c.h.b16 %v28
  %v678 = vunpack.c.l.b16 %v29
  %v679 = vunpack.c.h.b16 %v29
  %v680 = vunpack.c.l.b16 %v30
  %v681 = vunpack.c.h.b16 %v30
  %v682 = vunpack.c.l.b16 %v31
  %v683 = vunpack.c.h.b16 %v31
  %v684 = vpack.c.b16 %v666, %v648
  %v685 = vpack.c.b16 %v667, %v649
  %v686 = vpack.c.b16 %v668, %v650
  %v687 = vpack.c.b16 %v669, %v651
  %v688 = vpack.c.b16 %v670, %v652
  %v689 = vpack.c.b16 %v671, %v653
  %v690 = vpack.c.b16 %v672, %v654
  %v691 = vpack.c.b16 %v673, %v655
  %v692 = vpack.c.b16 %v674, %v656
  %v693 = vpack.c.b16 %v675, %v657
  %v694 = vpack.c.b16 %v676, %v658
  %v695 = vpack.c.b16 %v677, %v659
  %v696 = vpack.c.b16 %v678, %v660
  %v697 = vpack.c.b16 %v679, %v661
  %v698 = vpack.c.b16 %v680, %v662
  %v699 = vpack.c.b16 %v681, %v663
  %v700 = vpack.c.b16 %v682, %v664
  %v701 = vpack.c.b16 %v683, %v665
  %v1296 = vunpack.c.l.b16 %v32
  %v1297 = vunpack.c.h.b16 %v32
  %v1298 = vunpack.c.l.b16 %v33
  %v1299 = vunpack.c.h.b16 %v33
  %v1300 = vunpack.c.l.b16 %v34
  %v1301 = vunpack.c.h.b16 %v34
  %v1302 = vunpack.c.l.b16 %v35
  %v1303 = vunpack.c.h.b16 %v35
  %v1304 = vunpack.c.l.b16 %v36
  %v1305 = vunpack.c.h.b16 %v36
  %v1306 = vunpack.c.l.b16 %v37
  %v1307 = vunpack.c.h.b16 %v37
  %v1308 = vunpack.c.l.b16 %v38
  %v1309 = vunpack.c.h.b16 %v38
  %v1310 = vunpack.c.l.b16 %v39
  %v1311 = vunpack.c.h.b16 %v39
  %v1312 = vunpack.c.l.b16 %v40
  %v1313 = vunpack.c.h.b16 %v40
  %v1314 = vunpack.c.l.b16 %v41
  %v1315 = vunpack.c.h.b16 %v41
  %v1316 = vunpack.c.l.b16 %v42
  %v1317 = vunpack.c.h.b16 %v42
  %v1318 = vunpack.c.l.b16 %v43
  %v1319 = vunpack.c.h.b16 %v43
  %v1320 = vunpack.c.l.b16 %v44
  %v1321 = vunpack.c.h.b16 %v44
  %v1322 = vunpack.c.l.b16 %v45
  %v1323 = vunpack.c.h.b16 %v45
  %v1324 = vunpack.c.l.b16 %v46
  %v1325 = vunpack.c.h.b16 %v46
  %v1326 = vunpack.c.l.b16 %v47
  %v1327 = vunpack.c.h.b16 %v47
  %v1328 = vunpack.c.l.b16 %v48
  %v1329 = vunpack.c.h.b16 %v48
  %v1330 = vunpack.c.l.b16 %v49
  %v1331 = vunpack.c.h.b16 %v49
  %v1332 = vunpack.c.l.b16 %v50
  %v1333 = vunpack.c.h.b16 %v50
  %v1334 = vunpack.c.l.b16 %v51
  %v1335 = vunpack.c.h.b16 %v51
  %v1336 = vunpack.c.l.b16 %v52
  %v1337 = vunpack.c.h.b16 %v52
  %v1338 = vunpack.c.l.b16 %v53
  %v1339 = vunpack.c.h.b16 %v53
  %v1340 = vunpack.c.l.b16 %v54
  %v1341 = vunpack.c.h.b16 %v54
  %v1342 = vunpack.c.l.b16 %v55
  %v1343 = vunpack.c.h.b16 %v55
  %v1344 = vunpack.c.l.b16 %v56
  %v1345 = vunpack.c.h.b16 %v56
  %v1346 = vunpack.c.l.b16 %v57
  %v1347 = vunpack.c.h.b16 %v57
  %v1348 = vunpack.c.l.b16 %v58
  %v1349 = vunpack.c.h.b16 %v58
  %v1350 = vunpack.c.l.b16 %v59
  %v1351 = vunpack.c.h.b16 %v59
  %v1352 = vunpack.c.l.b16 %v60
  %v1353 = vunpack.c.h.b16 %v60
  %v1354 = vunpack.c.l.b16 %v61
  %v1355 = vunpack.c.h.b16 %v61
  %v1356 = vunpack.c.l.b16 %v62
  %v1357 = vunpack.c.h.b16 %v62
  %v1358 = vunpack.c.l.b16 %v63
  %v1359 = vunpack.c.h.b16 %v63
  %v1360 = vunpack.c.l.b16 %v64
  %v1361 = vunpack.c.h.b16 %v64
  %v1362 = vunpack.c.l.b16 %v65
  %v1363 = vunpack.c.h.b16 %v65
  %v1364 = vunpack.c.l.b16 %v66
  %v1365 = vunpack.c.h.b16 %v66
  %v1366 = vunpack.c.l.b16 %v67
  %v1367 = vunpack.c.h.b16 %v67
  %v1368 = vunpack.c.l.b16 %v68
  %v1369 = vunpack.c.h.b16 %v68
  %v1370 = vunpack.c.l.b16 %v69
  %v1371 = vunpack.c.h.b16 %v69
  %v1372 = vunpack.c.l.b16 %v70
  %v1373 = vunpack.c.h.b16 %v70
  %v1374 = vunpack.c.l.b16 %v71
  %v1375 = vunpack.c.h.b16 %v71
  %v1376 = vunpack.c.l.b16 %v72
  %v1377 = vunpack.c.h.b16 %v72
  %v1378 = vunpack.c.l.b16 %v73
  %v1379 = vunpack.c.h.b16 %v73
  %v1380 = vunpack.c.l.b16 %v74
  %v1381 = vunpack.c.h.b16 %v74
  %v1382 = vunpack.c.l.b16 %v75
  %v1383 = vunpack.c.h.b16 %v75
  %v1384 = vunpack.c.l.b16 %v76
  %v1385 = vunpack.c.h.b16 %v76
  %v1386 = vunpack.c.l.b16 %v77
  %v1387 = vunpack.c.h.b16 %v77
  %v1388 = vunpack.c.l.b16 %v78
  %v1389 = vunpack.c.h.b16 %v78
  %v1390 = vunpack.c.l.b16 %v79
  %v1391 = vunpack.c.h.b16 %v79
  %v1392 = vunpack.c.l.b16 %v80
  %v1393 = vunpack.c.h.b16 %v80
  %v1394 = vunpack.c.l.b16 %v81
  %v1395 = vunpack.c.h.b16 %v81
  %v1396 = vunpack.c.l.b16 %v82
  %v1397 = vunpack.c.h.b16 %v82
  %v1398 = vunpack.c.l.b16 %v83
  %v1399 = vunpack.c.h.b16 %v83
  %v1400 = vunpack.c.l.b16 %v84
  %v1401 = vunpack.c.h.b16 %v84
  %v1402 = vunpack.c.l.b16 %v85
  %v1403 = vunpack.c.h.b16 %v85
  %v1404 = vunpack.c.l.b16 %v86
  %v1405 = vunpack.c.h.b16 %v86
  %v1406 = vunpack.c.l.b16 %v87
  %v1407 = vunpack.c.h.b16 %v87
  %v1408 = vunpack.c.l.b16 %v88
  %v1409 = vunpack.c.h.b16 %v88
  %v1410 = vunpack.c.l.b16 %v89
  %v1411 = vunpack.c.h.b16 %v89
  %v1412 = vunpack.c.l.b16 %v90
  %v1413 = vunpack.c.h.b16 %v90
  %v1414 = vunpack.c.l.b16 %v91
  %v1415 = vunpack.c.h.b16 %v91
  %v1416 = vunpack.c.l.b16 %v92
  %v1417 = vunpack.c.h.b16 %v92
  %v1418 = vunpack.c.l.b16 %v93
  %v1419 = vunpack.c.h.b16 %v93
  %v1420 = vunpack.c.l.b16 %v94
  %v1421 = vunpack.c.h.b16 %v94
  %v1422 = vunpack.c.l.b16 %v95
  %v1423 = vunpack.c.h.b16 %v95
  %v1424 = vunpack.c.l.b16 %v96
  %v1425 = vunpack.c.h.b16 %v96
  %v1426 = vunpack.c.l.b16 %v97
  %v1427 = vunpack.c.h.b16 %v97
  %v1428 = vunpack.c.l.b16 %v98
  %v1429 = vunpack.c.h.b16 %v98
  %v1430 = vunpack.c.l.b16 %v99
  %v1431 = vunpack.c.h.b16 %v99
  %v1432 = vunpack.c.l.b16 %v100
  %v1433 = vunpack.c.h.b16 %v100
  %v1434 = vunpack.c.l.b16 %v101
  %v1435 = vunpack.c.h.b16 %v101
  %v1436 = vunpack.c.l.b16 %v102
  %v1437 = vunpack.c.h.b16 %v102
  %v1438 = vunpack.c.l.b16 %v103
  %v1439 = vunpack.c.h.b16 %v103
  %v1440 = vunpack.c.l.b16 %v104
  %v1441 = vunpack.c.h.b16 %v104
  %v1442 = vunpack.c.l.b16 %v105
  %v1443 = vunpack.c.h.b16 %v105
  %v1444 = vunpack.c.l.b16 %v106
  %v1445 = vunpack.c.h.b16 %v106
  %v1446 = vunpack.c.l.b16 %v107
  %v1447 = vunpack.c.h.b16 %v107
  %v1448 = vunpack.c.l.b16 %v108
  %v1449 = vunpack.c.h.b16 %v108
  %v1450 = vunpack.c.l.b16 %v109
  %v1451 = vunpack.c.h.b16 %v109
  %v1452 = vunpack.c.l.b16 %v110
  %v1453 = vunpack.c.h.b16 %v110
  %v1454 = vunpack.c.l.b16 %v111
  %v1455 = vunpack.c.h.b16 %v111
  %v1456 = vunpack.c.l.b16 %v112
  %v1457 = vunpack.c.h.b16 %v112
  %v1458 = vunpack.c.l.b16 %v113
  %v1459 = vunpack.c.h.b16 %v113
  %v1460 = vunpack.c.l.b16 %v114
  %v1461 = vunpack.c.h.b16 %v114
  %v1462 = vunpack.c.l.b16 %v115
  %v1463 = vunpack.c.h.b16 %v115
  %v1464 = vunpack.c.l.b16 %v116
  %v1465 = vunpack.c.h.b16 %v116
  %v1466 = vunpack.c.l.b16 %v117
  %v1467 = vunpack.c.h.b16 %v117
  %v1468 = vunpack.c.l.b16 %v118
  %v1469 = vunpack.c.h.b16 %v118
  %v1470 = vunpack.c.l.b16 %v119
  %v1471 = vunpack.c.h.b16 %v119
  %v1472 = vunpack.c.l.b16 %v120
  %v1473 = vunpack.c.h.b16 %v120
  %v1474 = vunpack.c.l.b16 %v121
  %v1475 = vunpack.c.h.b16 %v121
  %v1476 = vunpack.c.l.b16 %v122
  %v1477 = vunpack.c.h.b16 %v122
  %v1478 = vunpack.c.l.b16 %v123
  %v1479 = vunpack.c.h.b16 %v123
  %v1480 = vunpack.c.l.b16 %v124
  %v1481 = vunpack.c.h.b16 %v124
  %v1482 = vunpack.c.l.b16 %v125
  %v1483 = vunpack.c.h.b16 %v125
  %v1484 = vunpack.c.l.b16 %v126
  %v1485 = vunpack.c.h.b16 %v126
  %v1486 = vunpack.c.l.b16 %v127
  %v1487 = vunpack.c.h.b16 %v127
  %v1488 = vunpack.c.l.b16 %v128
  %v1489 = vunpack.c.h.b16 %v128
  %v1490 = vunpack.c.l.b16 %v129
  %v1491 = vunpack.c.h.b16 %v129
  %v1492 = vunpack.c.l.b16 %v130
  %v1493 = vunpack.c.h.b16 %v130
  %v1494 = vunpack.c.l.b16 %v131
  %v1495 = vunpack.c.h.b16 %v131
  %v1496 = vunpack.c.l.b16 %v132
  %v1497 = vunpack.c.h.b16 %v132
  %v1498 = vunpack.c.l.b16 %v133
  %v1499 = vunpack.c.h.b16 %v133
  %v1500 = vunpack.c.l.b16 %v134
  %v1501 = vunpack.c.h.b16 %v134
  %v1502 = vunpack.c.l.b16 %v135
  %v1503 = vunpack.c.h.b16 %v135
  %v1504 = vunpack.c.l.b16 %v136
  %v1505 = vunpack.c.h.b16 %v136
  %v1506 = vunpack.c.l.b16 %v137
  %v1507 = vunpack.c.h.b16 %v137
  %v1508 = vunpack.c.l.b16 %v138
  %v1509 = vunpack.c.h.b16 %v138
  %v1510 = vunpack.c.l.b16 %v139
  %v1511 = vunpack.c.h.b16 %v139
  %v1512 = vunpack.c.l.b16 %v140
  %v1513 = vunpack.c.h.b16 %v140
  %v1514 = vunpack.c.l.b16 %v141
  %v1515 = vunpack.c.h.b16 %v141
  %v1516 = vunpack.c.l.b16 %v142
  %v1517 = vunpack.c.h.b16 %v142
  %v1518 = vunpack.c.l.b16 %v143
  %v1519 = vunpack.c.h.b16 %v143
  %v1520 = vunpack.c.l.b16 %v144
  %v1521 = vunpack.c.h.b16 %v144
  %v1522 = vunpack.c.l.b16 %v145
  %v1523 = vunpack.c.h.b16 %v145
  %v1524 = vunpack.c.l.b16 %v146
  %v1525 = vunpack.c.h.b16 %v146
  %v1526 = vunpack.c.l.b16 %v147
  %v1527 = vunpack.c.h.b16 %v147
  %v1528 = vunpack.c.l.b16 %v148
  %v1529 = vunpack.c.h.b16 %v148
  %v1530 = vunpack.c.l.b16 %v149
  %v1531 = vunpack.c.h.b16 %v149
  %v1532 = vunpack.c.l.b16 %v150
  %v1533 = vunpack.c.h.b16 %v150
  %v1534 = vunpack.c.l.b16 %v151
  %v1535 = vunpack.c.h.b16 %v151
  %v1536 = vunpack.c.l.b16 %v152
  %v1537 = vunpack.c.h.b16 %v152
  %v1538 = vunpack.c.l.b16 %v153
  %v1539 = vunpack.c.h.b16 %v153
  %v1540 = vunpack.c.l.b16 %v154
  %v1541 = vunpack.c.h.b16 %v154
  %v1542 = vunpack.c.l.b16 %v155
  %v1543 = vunpack.c.h.b16 %v155
  %v1544 = vunpack.c.l.b16 %v156
  %v1545 = vunpack.c.h.b16 %v156
  %v1546 = vunpack.c.l.b16 %v157
  %v1547 = vunpack.c.h.b16 %v157
  %v1548 = vunpack.c.l.b16 %v158
  %v1549 = vunpack.c.h.b16 %v158
  %v1550 = vunpack.c.l.b16 %v159
  %v1551 = vunpack.c.h.b16 %v159
  %v1552 = vunpack.c.l.b16 %v160
  %v1553 = vunpack.c.h.b16 %v160
  %v1554 = vunpack.c.l.b16 %v161
  %v1555 = vunpack.c.h.b16 %v161
  %v1556 = vunpack.c.l.b16 %v162
  %v1557 = vunpack.c.h.b16 %v162
  %v1558 = vunpack.c.l.b16 %v163
  %v1559 = vunpack.c.h.b16 %v163
  %v1560 = vunpack.c.l.b16 %v164
  %v1561 = vunpack.c.h.b16 %v164
  %v1562 = vunpack.c.l.b16 %v165
  %v1563 = vunpack.c.h.b16 %v165
  %v1564 = vunpack.c.l.b16 %v166
  %v1565 = vunpack.c.h.b16 %v166
  %v1566 = vunpack.c.l.b16 %v167
  %v1567 = vunpack.c.h.b16 %v167
  %v1568 = vunpack.c.l.b16 %v168
  %v1569 = vunpack.c.h.b16 %v168
  %v1570 = vunpack.c.l.b16 %v169
  %v1571 = vunpack.c.h.b16 %v169
  %v1572 = vunpack.c.l.b16 %v170
  %v1573 = vunpack.c.h.b16 %v170
  %v1574 = vunpack.c.l.b16 %v171
  %v1575 = vunpack.c.h.b16 %v171
  %v1576 = vunpack.c.l.b16 %v172
  %v1577 = vunpack.c.h.b16 %v172
  %v1578 = vunpack.c.l.b16 %v173
  %v1579 = vunpack.c.h.b16 %v173
  %v1580 = vunpack.c.l.b16 %v174
  %v1581 = vunpack.c.h.b16 %v174
  %v1582 = vunpack.c.l.b16 %v175
  %v1583 = vunpack.c.h.b16 %v175
  %v1584 = vunpack.c.l.b16 %v176
  %v1585 = vunpack.c.h.b16 %v176
  %v1586 = vunpack.c.l.b16 %v177
  %v1587 = vunpack.c.h.b16 %v177
  %v1588 = vunpack.c.l.b16 %v178
  %v1589 = vunpack.c.h.b16 %v178
  %v1590 = vunpack.c.l.b16 %v179
  %v1591 = vunpack.c.h.b16 %v179
  %v1592 = vunpack.c.l.b16 %v180
  %v1593 = vunpack.c.h.b16 %v180
  %v1594 = vunpack.c.l.b16 %v181
  %v1595 = vunpack.c.h.b16 %v181
  %v1596 = vunpack.c.l.b16 %v182
  %v1597 = vunpack.c.h.b16 %v182
  %v1598 = vunpack.c.l.b16 %v183
  %v1599 = vunpack.c.h.b16 %v183
  %v1600 = vunpack.c.l.b16 %v184
  %v1601 = vunpack.c.h.b16 %v184
  %v1602 = vunpack.c.l.b16 %v185
  %v1603 = vunpack.c.h.b16 %v185
  %v1604 = vunpack.c.l.b16 %v186
  %v1605 = vunpack.c.h.b16 %v186
  %v1606 = vunpack.c.l.b16 %v187
  %v1607 = vunpack.c.h.b16 %v187
  %v1608 = vunpack.c.l.b16 %v188
  %v1609 = vunpack.c.h.b16 %v188
  %v1610 = vunpack.c.l.b16 %v189
  %v1611 = vunpack.c.h.b16 %v189
  %v1612 = vunpack.c.l.b16 %v190
  %v1613 = vunpack.c.h.b16 %v190
  %v1614 = vunpack.c.l.b16 %v191
  %v1615 = vunpack.c.h.b16 %v191
  %v1616 = vunpack.c.l.b16 %v192
  %v1617 = vunpack.c.h.b16 %v192
  %v1618 = vunpack.c.l.b16 %v193
  %v1619 = vunpack.c.h.b16 %v193
  %v1620 = vunpack.c.l.b16 %v194
  %v1621 = vunpack.c.h.b16 %v194
  %v1622 = vunpack.c.l.b16 %v195
  %v1623 = vunpack.c.h.b16 %v195
  %v1624 = vunpack.c.l.b16 %v196
  %v1625 = vunpack.c.h.b16 %v196
  %v1626 = vunpack.c.l.b16 %v197
  %v1627 = vunpack.c.h.b16 %v197
  %v1628 = vunpack.c.l.b16 %v198
  %v1629 = vunpack.c.h.b16 %v198
  %v1630 = vunpack.c.l.b16 %v199
  %v1631 = vunpack.c.h.b16 %v199
  %v1632 = vunpack.c.l.b16 %v200
  %v1633 = vunpack.c.h.b16 %v200
  %v1634 = vunpack.c.l.b16 %v201
  %v1635 = vunpack.c.h.b16 %v201
  %v1636 = vunpack.c.l.b16 %v202
  %v1637 = vunpack.c.h.b16 %v202
  %v1638 = vunpack.c.l.b16 %v203
  %v1639 = vunpack.c.h.b16 %v203
  %v1640 = vunpack.c.l.b16 %v204
  %v1641 = vunpack.c.h.b16 %v204
  %v1642 = vunpack.c.l.b16 %v205
  %v1643 = vunpack.c.h.b16 %v205
  %v1644 = vunpack.c.l.b16 %v206
  %v1645 = vunpack.c.h.b16 %v206
  %v1646 = vunpack.c.l.b16 %v207
  %v1647 = vunpack.c.h.b16 %v207
  %v1648 = vunpack.c.l.b16 %v208
  %v1649 = vunpack.c.h.b16 %v208
  %v1650 = vunpack.c.l.b16 %v209
  %v1651 = vunpack.c.h.b16 %v209
  %v1652 = vunpack.c.l.b16 %v210
  %v1653 = vunpack.c.h.b16 %v210
  %v1654 = vunpack.c.l.b16 %v211
  %v1655 = vunpack.c.h.b16 %v211
  %v1656 = vunpack.c.l.b16 %v212
  %v1657 = vunpack.c.h.b16 %v212
  %v1658 = vunpack.c.l.b16 %v213
  %v1659 = vunpack.c.h.b16 %v213
  %v1660 = vunpack.c.l.b16 %v214
  %v1661 = vunpack.c.h.b16 %v214
  %v1662 = vunpack.c.l.b16 %v215
  %v1663 = vunpack.c.h.b16 %v215
  %v1664 = vunpack.c.l.b16 %v216
  %v1665 = vunpack.c.h.b16 %v216
  %v1666 = vunpack.c.l.b16 %v217
  %v1667 = vunpack.c.h.b16 %v217
  %v1668 = vunpack.c.l.b16 %v218
  %v1669 = vunpack.c.h.b16 %v218
  %v1670 = vunpack.c.l.b16 %v219
  %v1671 = vunpack.c.h.b16 %v219
  %v1672 = vunpack.c.l.b16 %v220
  %v1673 = vunpack.c.h.b16 %v220
  %v1674 = vunpack.c.l.b16 %v221
  %v1675 = vunpack.c.h.b16 %v221
  %v1676 = vunpack.c.l.b16 %v222
  %v1677 = vunpack.c.h.b16 %v222
  %v1678 = vunpack.c.l.b16 %v223
  %v1679 = vunpack.c.h.b16 %v223
  %v1680 = vunpack.c.l.b16 %v224
  %v1681 = vunpack.c.h.b16 %v224
  %v1682 = vunpack.c.l.b16 %v225
  %v1683 = vunpack.c.h.b16 %v225
  %v1684 = vunpack.c.l.b16 %v226
  %v1685 = vunpack.c.h.b16 %v226
  %v1686 = vunpack.c.l.b16 %v227
  %v1687 = vunpack.c.h.b16 %v227
  %v1688 = vunpack.c.l.b16 %v228
  %v1689 = vunpack.c.h.b16 %v228
  %v1690 = vunpack.c.l.b16 %v229
  %v1691 = vunpack.c.h.b16 %v229
  %v1692 = vunpack.c.l.b16 %v230
  %v1693 = vunpack.c.h.b16 %v230
  %v1694 = vunpack.c.l.b16 %v231
  %v1695 = vunpack.c.h.b16 %v231
  %v1696 = vunpack.c.l.b16 %v232
  %v1697 = vunpack.c.h.b16 %v232
  %v1698 = vunpack.c.l.b16 %v233
  %v1699 = vunpack.c.h.b16 %v233
  %v1700 = vunpack.c.l.b16 %v234
  %v1701 = vunpack.c.h.b16 %v234
  %v1702 = vunpack.c.l.b16 %v235
  %v1703 = vunpack.c.h.b16 %v235
  %v1704 = vunpack.c.l.b16 %v236
  %v1705 = vunpack.c.h.b16 %v236
  %v1706 = vunpack.c.l.b16 %v237
  %v1707 = vunpack.c.h.b16 %v237
  %v1708 = vunpack.c.l.b16 %v238
  %v1709 = vunpack.c.h.b16 %v238
  %v1710 = vunpack.c.l.b16 %v239
  %v1711 = vunpack.c.h.b16 %v239
  %v1712 = vunpack.c.l.b16 %v240
  %v1713 = vunpack.c.h.b16 %v240
  %v1714 = vunpack.c.l.b16 %v241
  %v1715 = vunpack.c.h.b16 %v241
  %v1716 = vunpack.c.l.b16 %v242
  %v1717 = vunpack.c.h.b16 %v242
  %v1718 = vunpack.c.l.b16 %v243
  %v1719 = vunpack.c.h.b16 %v243
  %v1720 = vunpack.c.l.b16 %v244
  %v1721 = vunpack.c.h.b16 %v244
  %v1722 = vunpack.c.l.b16 %v245
  %v1723 = vunpack.c.h.b16 %v245
  %v1724 = vunpack.c.l.b16 %v246
  %v1725 = vunpack.c.h.b16 %v246
  %v1726 = vunpack.c.l.b16 %v247
  %v1727 = vunpack.c.h.b16 %v247
  %v1728 = vunpack.c.l.b16 %v248
  %v1729 = vunpack.c.h.b16 %v248
  %v1730 = vunpack.c.l.b16 %v249
  %v1731 = vunpack.c.h.b16 %v249
  %v1732 = vunpack.c.l.b16 %v250
  %v1733 = vunpack.c.h.b16 %v250
  %v1734 = vunpack.c.l.b16 %v251
  %v1735 = vunpack.c.h.b16 %v251
  %v1736 = vunpack.c.l.b16 %v252
  %v1737 = vunpack.c.h.b16 %v252
  %v1738 = vunpack.c.l.b16 %v253
  %v1739 = vunpack.c.h.b16 %v253
  %v1740 = vunpack.c.l.b16 %v254
  %v1741 = vunpack.c.h.b16 %v254
  %v1742 = vunpack.c.l.b16 %v255
  %v1743 = vunpack.c.h.b16 %v255
  %v1744 = vunpack.c.l.b16 %v256
  %v1745 = vunpack.c.h.b16 %v256
  %v1746 = vunpack.c.l.b16 %v257
  %v1747 = vunpack.c.h.b16 %v257
  %v1748 = vunpack.c.l.b16 %v258
  %v1749 = vunpack.c.h.b16 %v258
  %v1750 = vunpack.c.l.b16 %v259
  %v1751 = vunpack.c.h.b16 %v259
  %v1752 = vunpack.c.l.b16 %v260
  %v1753 = vunpack.c.h.b16 %v260
  %v1754 = vunpack.c.l.b16 %v261
  %v1755 = vunpack.c.h.b16 %v261
  %v1756 = vunpack.c.l.b16 %v262
  %v1757 = vunpack.c.h.b16 %v262
  %v1758 = vunpack.c.l.b16 %v263
  %v1759 = vunpack.c.h.b16 %v263
  %v1760 = vunpack.c.l.b16 %v264
  %v1761 = vunpack.c.h.b16 %v264
  %v1762 = vunpack.c.l.b16 %v265
  %v1763 = vunpack.c.h.b16 %v265
  %v1764 = vunpack.c.l.b16 %v266
  %v1765 = vunpack.c.h.b16 %v266
  %v1766 = vunpack.c.l.b16 %v267
  %v1767 = vunpack.c.h.b16 %v267
  %v1768 = vunpack.c.l.b16 %v268
  %v1769 = vunpack.c.h.b16 %v268
  %v1770 = vunpack.c.l.b16 %v269
  %v1771 = vunpack.c.h.b16 %v269
  %v1772 = vunpack.c.l.b16 %v270
  %v1773 = vunpack.c.h.b16 %v270
  %v1774 = vunpack.c.l.b16 %v271
  %v1775 = vunpack.c.h.b16 %v271
  %v1776 = vunpack.c.l.b16 %v272
  %v1777 = vunpack.c.h.b16 %v272
  %v1778 = vunpack.c.l.b16 %v273
  %v1779 = vunpack.c.h.b16 %v273
  %v1780 = vunpack.c.l.b16 %v274
  %v1781 = vunpack.c.h.b16 %v274
  %v1782 = vunpack.c.l.b16 %v275
  %v1783 = vunpack.c.h.b16 %v275
  %v1784 = vunpack.c.l.b16 %v276
  %v1785 = vunpack.c.h.b16 %v276
  %v1786 = vunpack.c.l.b16 %v277
  %v1787 = vunpack.c.h.b16 %v277
  %v1788 = vunpack.c.l.b16 %v278
  %v1789 = vunpack.c.h.b16 %v278
  %v1790 = vunpack.c.l.b16 %v279
  %v1791 = vunpack.c.h.b16 %v279
  %v1792 = vunpack.c.l.b16 %v280
  %v1793 = vunpack.c.h.b16 %v280
  %v1794 = vunpack.c.l.b16 %v281
  %v1795 = vunpack.c.h.b16 %v281
  %v1796 = vunpack.c.l.b16 %v282
  %v1797 = vunpack.c.h.b16 %v282
  %v1798 = vunpack.c.l.b16 %v283
  %v1799 = vunpack.c.h.b16 %v283
  %v1800 = vunpack.c.l.b16 %v284
  %v1801 = vunpack.c.h.b16 %v284
  %v1802 = vunpack.c.l.b16 %v285
  %v1803 = vunpack.c.h.b16 %v285
  %v1804 = vunpack.c.l.b16 %v286
  %v1805 = vunpack.c.h.b16 %v286
  %v1806 = vunpack.c.l.b16 %v287
  %v1807 = vunpack.c.h.b16 %v287
  %v1808 = vunpack.c.l.b16 %v288
  %v1809 = vunpack.c.h.b16 %v288
  %v1810 = vunpack.c.l.b16 %v289
  %v1811 = vunpack.c.h.b16 %v289
  %v1812 = vunpack.c.l.b16 %v290
  %v1813 = vunpack.c.h.b16 %v290
  %v1814 = vunpack.c.l.b16 %v291
  %v1815 = vunpack.c.h.b16 %v291
  %v1816 = vunpack.c.l.b16 %v292
  %v1817 = vunpack.c.h.b16 %v292
  %v1818 = vunpack.c.l.b16 %v293
  %v1819 = vunpack.c.h.b16 %v293
  %v1820 = vunpack.c.l.b16 %v294
  %v1821 = vunpack.c.h.b16 %v294
  %v1822 = vunpack.c.l.b16 %v295
  %v1823 = vunpack.c.h.b16 %v295
  %v1824 = vunpack.c.l.b16 %v296
  %v1825 = vunpack.c.h.b16 %v296
  %v1826 = vunpack.c.l.b16 %v297
  %v1827 = vunpack.c.h.b16 %v297
  %v1828 = vunpack.c.l.b16 %v298
  %v1829 = vunpack.c.h.b16 %v298
  %v1830 = vunpack.c.l.b16 %v299
  %v1831 = vunpack.c.h.b16 %v299
  %v1832 = vunpack.c.l.b16 %v300
  %v1833 = vunpack.c.h.b16 %v300
  %v1834 = vunpack.c.l.b16 %v301
  %v1835 = vunpack.c.h.b16 %v301
  %v1836 = vunpack.c.l.b16 %v302
  %v1837 = vunpack.c.h.b16 %v302
  %v1838 = vunpack.c.l.b16 %v303
  %v1839 = vunpack.c.h.b16 %v303
  %v1840 = vunpack.c.l.b16 %v304
  %v1841 = vunpack.c.h.b16 %v304
  %v1842 = vunpack.c.l.b16 %v305
  %v1843 = vunpack.c.h.b16 %v305
  %v1844 = vunpack.c.l.b16 %v306
  %v1845 = vunpack.c.h.b16 %v306
  %v1846 = vunpack.c.l.b16 %v307
  %v1847 = vunpack.c.h.b16 %v307
  %v1848 = vunpack.c.l.b16 %v308
  %v1849 = vunpack.c.h.b16 %v308
  %v1850 = vunpack.c.l.b16 %v309
  %v1851 = vunpack.c.h.b16 %v309
  %v1852 = vunpack.c.l.b16 %v310
  %v1853 = vunpack.c.h.b16 %v310
  %v1854 = vunpack.c.l.b16 %v311
  %v1855 = vunpack.c.h.b16 %v311
  %v1856 = vunpack.c.l.b16 %v312
  %v1857 = vunpack.c.h.b16 %v312
  %v1858 = vunpack.c.l.b16 %v313
  %v1859 = vunpack.c.h.b16 %v313
  %v1860 = vunpack.c.l.b16 %v314
  %v1861 = vunpack.c.h.b16 %v314
  %v1862 = vunpack.c.l.b16 %v315
  %v1863 = vunpack.c.h.b16 %v315
  %v1864 = vunpack.c.l.b16 %v316
  %v1865 = vunpack.c.h.b16 %v316
  %v1866 = vunpack.c.l.b16 %v317
  %v1867 = vunpack.c.h.b16 %v317
  %v1868 = vunpack.c.l.b16 %v318
  %v1869 = vunpack.c.h.b16 %v318
  %v1870 = vunpack.c.l.b16 %v319
  %v1871 = vunpack.c.h.b16 %v319
  %v1872 = vunpack.c.l.b16 %v320
  %v1873 = vunpack.c.h.b16 %v320
  %v1874 = vunpack.c.l.b16 %v321
  %v1875 = vunpack.c.h.b16 %v321
  %v1876 = vunpack.c.l.b16 %v322
  %v1877 = vunpack.c.h.b16 %v322
  %v1878 = vunpack.c.l.b16 %v323
  %v1879 = vunpack.c.h.b16 %v323
  %v1880 = vunpack.c.l.b16 %v324
  %v1881 = vunpack.c.h.b16 %v324
  %v1882 = vunpack.c.l.b16 %v325
  %v1883 = vunpack.c.h.b16 %v325
  %v1884 = vunpack.c.l.b16 %v326
  %v1885 = vunpack.c.h.b16 %v326
  %v1886 = vunpack.c.l.b16 %v327
  %v1887 = vunpack.c.h.b16 %v327
  %v1888 = vunpack.c.l.b16 %v328
  %v1889 = vunpack.c.h.b16 %v328
  %v1890 = vunpack.c.l.b16 %v329
  %v1891 = vunpack.c.h.b16 %v329
  %v1892 = vunpack.c.l.b16 %v330
  %v1893 = vunpack.c.h.b16 %v330
  %v1894 = vunpack.c.l.b16 %v331
  %v1895 = vunpack.c.h.b16 %v331
  %v1896 = vunpack.c.l.b16 %v332
  %v1897 = vunpack.c.h.b16 %v332
  %v1898 = vunpack.c.l.b16 %v333
  %v1899 = vunpack.c.h.b16 %v333
  %v1900 = vunpack.c.l.b16 %v334
  %v1901 = vunpack.c.h.b16 %v334
  %v1902 = vunpack.c.l.b16 %v335
  %v1903 = vunpack.c.h.b16 %v335
  %v1904 = vunpack.c.l.b16 %v336
  %v1905 = vunpack.c.h.b16 %v336
  %v1906 = vunpack.c.l.b16 %v337
  %v1907 = vunpack.c.h.b16 %v337
  %v1908 = vunpack.c.l.b16 %v338
  %v1909 = vunpack.c.h.b16 %v338
  %v1910 = vunpack.c.l.b16 %v339
  %v1911 = vunpack.c.h.b16 %v339
  %v1912 = vunpack.c.l.b16 %v340
  %v1913 = vunpack.c.h.b16 %v340
  %v1914 = vunpack.c.l.b16 %v341
  %v1915 = vunpack.c.h.b16 %v341
  %v1916 = vunpack.c.l.b16 %v342
  %v1917 = vunpack.c.h.b16 %v342
  %v1918 = vunpack.c.l.b16 %v343
  %v1919 = vunpack.c.h.b16 %v343
  %v1920 = vunpack.c.l.b16 %v344
  %v1921 = vunpack.c.h.b16 %v344
  %v1922 = vunpack.c.l.b16 %v345
  %v1923 = vunpack.c.h.b16 %v345
  %v1924 = vunpack.c.l.b16 %v346
  %v1925 = vunpack.c.h.b16 %v346
  %v1926 = vunpack.c.l.b16 %v347
  %v1927 = vunpack.c.h.b16 %v347
  %v1928 = vunpack.c.l.b16 %v348
  %v1929 = vunpack.c.h.b16 %v348
  %v1930 = vunpack.c.l.b16 %v349
  %v1931 = vunpack.c.h.b16 %v349
  %v1932 = vunpack.c.l.b16 %v350
  %v1933 = vunpack.c.h.b16 %v350
  %v1934 = vunpack.c.l.b16 %v351
  %v1935 = vunpack.c.h.b16 %v351
  %v1936 = vunpack.c.l.b16 %v352
  %v1937 = vunpack.c.h.b16 %v352
  %v1938 = vunpack.c.l.b16 %v353
  %v1939 = vunpack.c.h.b16 %v353
  %v1940 = vunpack.c.l.b16 %v354
  %v1941 = vunpack.c.h.b16 %v354
  %v1942 = vunpack.c.l.b16 %v355
  %v1943 = vunpack.c.h.b16 %v355
  %v1944 = vunpack.c.l.b16 %v356
  %v1945 = vunpack.c.h.b16 %v356
  %v1946 = vunpack.c.l.b16 %v357
  %v1947 = vunpack.c.h.b16 %v357
  %v1948 = vunpack.c.l.b16 %v358
  %v1949 = vunpack.c.h.b16 %v358
  %v1950 = vunpack.c.l.b16 %v359
  %v1951 = vunpack.c.h.b16 %v359
  %v1952 = vunpack.c.l.b16 %v360
  %v1953 = vunpack.c.h.b16 %v360
  %v1954 = vunpack.c.l.b16 %v361
  %v1955 = vunpack.c.h.b16 %v361
  %v1956 = vunpack.c.l.b16 %v362
  %v1957 = vunpack.c.h.b16 %v362
  %v1958 = vunpack.c.l.b16 %v363
  %v1959 = vunpack.c.h.b16 %v363
  %v1960 = vunpack.c.l.b16 %v364
  %v1961 = vunpack.c.h.b16 %v364
  %v1962 = vunpack.c.l.b16 %v365
  %v1963 = vunpack.c.h.b16 %v365
  %v1964 = vunpack.c.l.b16 %v366
  %v1965 = vunpack.c.h.b16 %v366
  %v1966 = vunpack.c.l.b16 %v367
  %v1967 = vunpack.c.h.b16 %v367
  %v1968 = vunpack.c.l.b16 %v368
  %v1969 = vunpack.c.h.b16 %v368
  %v1970 = vunpack.c.l.b16 %v369
  %v1971 = vunpack.c.h.b16 %v369
  %v1972 = vunpack.c.l.b16 %v370
  %v1973 = vunpack.c.h.b16 %v370
  %v1974 = vunpack.c.l.b16 %v371
  %v1975 = vunpack.c.h.b16 %v371
  %v1976 = vunpack.c.l.b16 %v372
  %v1977 = vunpack.c.h.b16 %v372
  %v1978 = vunpack.c.l.b16 %v373
  %v1979 = vunpack.c.h.b16 %v373
  %v1980 = vunpack.c.l.b16 %v374
  %v1981 = vunpack.c.h.b16 %v374
  %v1982 = vunpack.c.l.b16 %v375
  %v1983 = vunpack.c.h.b16 %v375
  %v1984 = vunpack.c.l.b16 %v376
  %v1985 = vunpack.c.h.b16 %v376
  %v1986 = vunpack.c.l.b16 %v377
  %v1987 = vunpack.c.h.b16 %v377
  %v1988 = vunpack.c.l.b16 %v378
  %v1989 = vunpack.c.h.b16 %v378
  %v1990 = vunpack.c.l.b16 %v379
  %v1991 = vunpack.c.h.b16 %v379
  %v1992 = vunpack.c.l.b16 %v380
  %v1993 = vunpack.c.h.b16 %v380
  %v1994 = vunpack.c.l.b16 %v381
  %v1995 = vunpack.c.h.b16 %v381
  %v1996 = vunpack.c.l.b16 %v382
  %v1997 = vunpack.c.h.b16 %v382
  %v1998 = vunpack.c.l.b16 %v383
  %v1999 = vunpack.c.h.b16 %v383
  %v2000 = vunpack.c.l.b16 %v384
  %v2001 = vunpack.c.h.b16 %v384
  %v2002 = vunpack.c.l.b16 %v385
  %v2003 = vunpack.c.h.b16 %v385
  %v2004 = vunpack.c.l.b16 %v386
  %v2005 = vunpack.c.h.b16 %v386
  %v2006 = vunpack.c.l.b16 %v387
  %v2007 = vunpack.c.h.b16 %v387
  %v2008 = vunpack.c.l.b16 %v388
  %v2009 = vunpack.c.h.b16 %v388
  %v2010 = vunpack.c.l.b16 %v389
  %v2011 = vunpack.c.h.b16 %v389
  %v2012 = vunpack.c.l.b16 %v390
  %v2013 = vunpack.c.h.b16 %v390
  %v2014 = vunpack.c.l.b16 %v391
  %v2015 = vunpack.c.h.b16 %v391
  %v2016 = vunpack.c.l.b16 %v392
  %v2017 = vunpack.c.h.b16 %v392
  %v2018 = vunpack.c.l.b16 %v393
  %v2019 = vunpack.c.h.b16 %v393
  %v2020 = vunpack.c.l.b16 %v394
  %v2021 = vunpack.c.h.b16 %v394
  %v2022 = vunpack.c.l.b16 %v395
  %v2023 = vunpack.c.h.b16 %v395
  %v2024 = vunpack.c.l.b16 %v396
  %v2025 = vunpack.c.h.b16 %v396
  %v2026 = vunpack.c.l.b16 %v397
  %v2027 = vunpack.c.h.b16 %v397
  %v2028 = vunpack.c.l.b16 %v398
  %v2029 = vunpack.c.h.b16 %v398
  %v2030 = vunpack.c.l.b16 %v399
  %v2031 = vunpack.c.h.b16 %v399
  %v2032 = vunpack.c.l.b16 %v400
  %v2033 = vunpack.c.h.b16 %v400
  %v2034 = vunpack.c.l.b16 %v401
  %v2035 = vunpack.c.h.b16 %v401
  %v2036 = vunpack.c.l.b16 %v402
  %v2037 = vunpack.c.h.b16 %v402
  %v2038 = vunpack.c.l.b16 %v403
  %v2039 = vunpack.c.h.b16 %v403
  %v2040 = vunpack.c.l.b16 %v404
  %v2041 = vunpack.c.h.b16 %v404
  %v2042 = vunpack.c.l.b16 %v405
  %v2043 = vunpack.c.h.b16 %v405
  %v2044 = vunpack.c.l.b16 %v406
  %v2045 = vunpack.c.h.b16 %v406
  %v2046 = vunpack.c.l.b16 %v407
  %v2047 = vunpack.c.h.b16 %v407
  %v2048 = vunpack.c.l.b16 %v408
  %v2049 = vunpack.c.h.b16 %v408
  %v2050 = vunpack.c.l.b16 %v409
  %v2051 = vunpack.c.h.b16 %v409
  %v2052 = vunpack.c.l.b16 %v410
  %v2053 = vunpack.c.h.b16 %v410
  %v2054 = vunpack.c.l.b16 %v411
  %v2055 = vunpack.c.h.b16 %v411
  %v2056 = vunpack.c.l.b16 %v412
  %v2057 = vunpack.c.h.b16 %v412
  %v2058 = vunpack.c.l.b16 %v413
  %v2059 = vunpack.c.h.b16 %v413
  %v2060 = vunpack.c.l.b16 %v414
  %v2061 = vunpack.c.h.b16 %v414
  %v2062 = vunpack.c.l.b16 %v415
  %v2063 = vunpack.c.h.b16 %v415
  %v2064 = vunpack.c.l.b16 %v416
  %v2065 = vunpack.c.h.b16 %v416
  %v2066 = vunpack.c.l.b16 %v417
  %v2067 = vunpack.c.h.b16 %v417
  %v2068 = vunpack.c.l.b16 %v418
  %v2069 = vunpack.c.h.b16 %v418
  %v2070 = vunpack.c.l.b16 %v419
  %v2071 = vunpack.c.h.b16 %v419
  %v2072 = vunpack.c.l.b16 %v420
  %v2073 = vunpack.c.h.b16 %v420
  %v2074 = vunpack.c.l.b16 %v421
  %v2075 = vunpack.c.h.b16 %v421
  %v2076 = vunpack.c.l.b16 %v422
  %v2077 = vunpack.c.h.b16 %v422
  %v2078 = vunpack.c.l.b16 %v423
  %v2079 = vunpack.c.h.b16 %v423
  %v2080 = vunpack.c.l.b16 %v424
  %v2081 = vunpack.c.h.b16 %v424
  %v2082 = vunpack.c.l.b16 %v425
  %v2083 = vunpack.c.h.b16 %v425
  %v2084 = vunpack.c.l.b16 %v426
  %v2085 = vunpack.c.h.b16 %v426
  %v2086 = vunpack.c.l.b16 %v427
  %v2087 = vunpack.c.h.b16 %v427
  %v2088 = vunpack.c.l.b16 %v428
  %v2089 = vunpack.c.h.b16 %v428
  %v2090 = vunpack.c.l.b16 %v429
  %v2091 = vunpack.c.h.b16 %v429
  %v2092 = vunpack.c.l.b16 %v430
  %v2093 = vunpack.c.h.b16 %v430
  %v2094 = vunpack.c.l.b16 %v431
  %v2095 = vunpack.c.h.b16 %v431
  %v2096 = vunpack.c.l.b16 %v432
  %v2097 = vunpack.c.h.b16 %v432
  %v2098 = vunpack.c.l.b16 %v433
  %v2099 = vunpack.c.h.b16 %v433
  %v2100 = vunpack.c.l.b16 %v434
  %v2101 = vunpack.c.h.b16 %v434
  %v2102 = vunpack.c.l.b16 %v435
  %v2103 = vunpack.c.h.b16 %v435
  %v2104 = vunpack.c.l.b16 %v436
  %v2105 = vunpack.c.h.b16 %v436
  %v2106 = vunpack.c.l.b16 %v437
  %v2107 = vunpack.c.h.b16 %v437
  %v2108 = vunpack.c.l.b16 %v438
  %v2109 = vunpack.c.h.b16 %v438
  %v2110 = vunpack.c.l.b16 %v439
  %v2111 = vunpack.c.h.b16 %v439
  %v2112 = vunpack.c.l.b16 %v440
  %v2113 = vunpack.c.h.b16 %v440
  %v2114 = vunpack.c.l.b16 %v441
  %v2115 = vunpack.c.h.b16 %v441
  %v2116 = vunpack.c.l.b16 %v442
  %v2117 = vunpack.c.h.b16 %v442
  %v2118 = vunpack.c.l.b16 %v443
  %v2119 = vunpack.c.h.b16 %v443
  %v2120 = vunpack.c.l.b16 %v444
  %v2121 = vunpack.c.h.b16 %v444
  %v2122 = vunpack.c.l.b16 %v445
  %v2123 = vunpack.c.h.b16 %v445
  %v2124 = vunpack.c.l.b16 %v446
  %v2125 = vunpack.c.h.b16 %v446
  %v2126 = vunpack.c.l.b16 %v447
  %v2127 = vunpack.c.h.b16 %v447
  %v2128 = vunpack.c.l.b16 %v448
  %v2129 = vunpack.c.h.b16 %v448
  %v2130 = vunpack.c.l.b16 %v449
  %v2131 = vunpack.c.h.b16 %v449
  %v2132 = vunpack.c.l.b16 %v450
  %v2133 = vunpack.c.h.b16 %v450
  %v2134 = vunpack.c.l.b16 %v451
  %v2135 = vunpack.c.h.b16 %v451
  %v2136 = vunpack.c.l.b16 %v452
  %v2137 = vunpack.c.h.b16 %v452
  %v2138 = vunpack.c.l.b16 %v453
  %v2139 = vunpack.c.h.b16 %v453
  %v2140 = vunpack.c.l.b16 %v454
  %v2141 = vunpack.c.h.b16 %v454
  %v2142 = vunpack.c.l.b16 %v455
  %v2143 = vunpack.c.h.b16 %v455
  %v2144 = vunpack.c.l.b16 %v456
  %v2145 = vunpack.c.h.b16 %v456
  %v2146 = vunpack.c.l.b16 %v457
  %v2147 = vunpack.c.h.b16 %v457
  %v2148 = vunpack.c.l.b16 %v458
  %v2149 = vunpack.c.h.b16 %v458
  %v2150 = vunpack.c.l.b16 %v459
  %v2151 = vunpack.c.h.b16 %v459
  %v2152 = vunpack.c.l.b16 %v460
  %v2153 = vunpack.c.h.b16 %v460
  %v2154 = vunpack.c.l.b16 %v461
  %v2155 = vunpack.c.h.b16 %v461
  %v2156 = vunpack.c.l.b16 %v462
  %v2157 = vunpack.c.h.b16 %v462
  %v2158 = vunpack.c.l.b16 %v463
  %v2159 = vunpack.c.h.b16 %v463
  %v2160 = vunpack.c.l.b16 %v464
  %v2161 = vunpack.c.h.b16 %v464
  %v2162 = vunpack.c.l.b16 %v465
  %v2163 = vunpack.c.h.b16 %v465
  %v2164 = vunpack.c.l.b16 %v466
  %v2165 = vunpack.c.h.b16 %v466
  %v2166 = vunpack.c.l.b16 %v467
  %v2167 = vunpack.c.h.b16 %v467
  %v2168 = vunpack.c.l.b16 %v468
  %v2169 = vunpack.c.h.b16 %v468
  %v2170 = vunpack.c.l.b16 %v469
  %v2171 = vunpack.c.h.b16 %v469
  %v2172 = vunpack.c.l.b16 %v470
  %v2173 = vunpack.c.h.b16 %v470
  %v2174 = vunpack.c.l.b16 %v471
  %v2175 = vunpack.c.h.b16 %v471
  %v2176 = vunpack.c.l.b16 %v472
  %v2177 = vunpack.c.h.b16 %v472
  %v2178 = vunpack.c.l.b16 %v473
  %v2179 = vunpack.c.h.b16 %v473
  %v2180 = vunpack.c.l.b16 %v474
  %v2181 = vunpack.c.h.b16 %v474
  %v2182 = vunpack.c.l.b16 %v475
  %v2183 = vunpack.c.h.b16 %v475
  %v2184 = vunpack.c.l.b16 %v476
  %v2185 = vunpack.c.h.b16 %v476
  %v2186 = vunpack.c.l.b16 %v477
  %v2187 = vunpack.c.h.b16 %v477
  %v2188 = vunpack.c.l.b16 %v478
  %v2189 = vunpack.c.h.b16 %v478
  %v2190 = vunpack.c.l.b16 %v479
  %v2191 = vunpack.c.h.b16 %v479
  %v2192 = vunpack.c.l.b16 %v480
  %v2193 = vunpack.c.h.b16 %v480
  %v2194 = vunpack.c.l.b16 %v481
  %v2195 = vunpack.c.h.b16 %v481
  %v2196 = vunpack.c.l.b16 %v482
  %v2197 = vunpack.c.h.b16 %v482
  %v2198 = vunpack.c.l.b16 %v483
  %v2199 = vunpack.c.h.b16 %v483
  %v2200 = vunpack.c.l.b16 %v484
  %v2201 = vunpack.c.h.b16 %v484
  %v2202 = vunpack.c.l.b16 %v485
  %v2203 = vunpack.c.h.b16 %v485
  %v2204 = vunpack.c.l.b16 %v486
  %v2205 = vunpack.c.h.b16 %v486
  %v2206 = vunpack.c.l.b16 %v487
  %v2207 = vunpack.c.h.b16 %v487
  %v2208 = vunpack.c.l.b16 %v488
  %v2209 = vunpack.c.h.b16 %v488
  %v2210 = vunpack.c.l.b16 %v489
  %v2211 = vunpack.c.h.b16 %v489
  %v2212 = vunpack.c.l.b16 %v490
  %v2213 = vunpack.c.h.b16 %v490
  %v2214 = vunpack.c.l.b16 %v491
  %v2215 = vunpack.c.h.b16 %v491
  %v2216 = vunpack.c.l.b16 %v492
  %v2217 = vunpack.c.h.b16 %v492
  %v2218 = vunpack.c.l.b16 %v493
  %v2219 = vunpack.c.h.b16 %v493
  %v2220 = vunpack.c.l.b16 %v494
  %v2221 = vunpack.c.h.b16 %v494
  %v2222 = vunpack.c.l.b16 %v495
  %v2223 = vunpack.c.h.b16 %v495
  %v2224 = vunpack.c.l.b16 %v496
  %v2225 = vunpack.c.h.b16 %v496
  %v2226 = vunpack.c.l.b16 %v497
  %v2227 = vunpack.c.h.b16 %v497
  %v2228 = vunpack.c.l.b16 %v498
  %v2229 = vunpack.c.h.b16 %v498
  %v2230 = vunpack.c.l.b16 %v499
  %v2231 = vunpack.c.h.b16 %v499
  %v2232 = vunpack.c.l.b16 %v500
  %v2233 = vunpack.c.h.b16 %v500
  %v2234 = vunpack.c.l.b16 %v501
  %v2235 = vunpack.c.h.b16 %v501
  %v2236 = vunpack.c.l.b16 %v502
  %v2237 = vunpack.c.h.b16 %v502
  %v2238 = vunpack.c.l.b16 %v503
  %v2239 = vunpack.c.h.b16 %v503
  %v2240 = vunpack.c.l.b16 %v504
  %v2241 = vunpack.c.h.b16 %v504
  %v2242 = vunpack.c.l.b16 %v505
  %v2243 = vunpack.c.h.b16 %v505
  %v2244 = vunpack.c.l.b16 %v506
  %v2245 = vunpack.c.h.b16 %v506
  %v2246 = vunpack.c.l.b16 %v507
  %v2247 = vunpack.c.h.b16 %v507
  %v2248 = vunpack.c.l.b16 %v508
  %v2249 = vunpack.c.h.b16 %v508
  %v2250 = vunpack.c.l.b16 %v509
  %v2251 = vunpack.c.h.b16 %v509
  %v2252 = vunpack.c.l.b16 %v510
  %v2253 = vunpack.c.h.b16 %v510
  %v2254 = vunpack.c.l.b16 %v511
  %v2255 = vunpack.c.h.b16 %v511
  %v2256 = vunpack.c.l.b16 %v512
  %v2257 = vunpack.c.h.b16 %v512
  %v2258 = vunpack.c.l.b16 %v513
  %v2259 = vunpack.c.h.b16 %v513
  %v2260 = vunpack.c.l.b16 %v514
  %v2261 = vunpack.c.h.b16 %v514
  %v2262 = vunpack.c.l.b16 %v515
  %v2263 = vunpack.c.h.b16 %v515
  %v2264 = vunpack.c.l.b16 %v516
  %v2265 = vunpack.c.h.b16 %v516
  %v2266 = vunpack.c.l.b16 %v517
  %v2267 = vunpack.c.h.b16 %v517
  %v2268 = vunpack.c.l.b16 %v518
  %v2269 = vunpack.c.h.b16 %v518
  %v2270 = vunpack.c.l.b16 %v519
  %v2271 = vunpack.c.h.b16 %v519
  %v2272 = vunpack.c.l.b16 %v520
  %v2273 = vunpack.c.h.b16 %v520
  %v2274 = vunpack.c.l.b16 %v521
  %v2275 = vunpack.c.h.b16 %v521
  %v2276 = vunpack.c.l.b16 %v522
  %v2277 = vunpack.c.h.b16 %v522
  %v2278 = vunpack.c.l.b16 %v523
  %v2279 = vunpack.c.h.b16 %v523
  %v2280 = vunpack.c.l.b16 %v524
  %v2281 = vunpack.c.h.b16 %v524
  %v2282 = vunpack.c.l.b16 %v525
  %v2283 = vunpack.c.h.b16 %v525
  %v2284 = vunpack.c.l.b16 %v526
  %v2285 = vunpack.c.h.b16 %v526
  %v2286 = vunpack.c.l.b16 %v527
  %v2287 = vunpack.c.h.b16 %v527
  %v2288 = vunpack.c.l.b16 %v528
  %v2289 = vunpack.c.h.b16 %v528
  %v2290 = vunpack.c.l.b16 %v529
  %v2291 = vunpack.c.h.b16 %v529
  %v2292 = vunpack.c.l.b16 %v530
  %v2293 = vunpack.c.h.b16 %v530
  %v2294 = vunpack.c.l.b16 %v531
  %v2295 = vunpack.c.h.b16 %v531
  %v2296 = vunpack.c.l.b16 %v532
  %v2297 = vunpack.c.h.b16 %v532
  %v2298 = vunpack.c.l.b16 %v533
  %v2299 = vunpack.c.h.b16 %v533
  %v2300 = vunpack.c.l.b16 %v534
  %v2301 = vunpack.c.h.b16 %v534
  %v2302 = vunpack.c.l.b16 %v535
  %v2303 = vunpack.c.h.b16 %v535
  %v2304 = vunpack.c.l.b16 %v536
  %v2305 = vunpack.c.h.b16 %v536
  %v2306 = vunpack.c.l.b16 %v537
  %v2307 = vunpack.c.h.b16 %v537
  %v2308 = vunpack.c.l.b16 %v538
  %v2309 = vunpack.c.h.b16 %v538
  %v2310 = vunpack.c.l.b16 %v539
  %v2311 = vunpack.c.h.b16 %v539
  %v2312 = vunpack.c.l.b16 %v540
  %v2313 = vunpack.c.h.b16 %v540
  %v2314 = vunpack.c.l.b16 %v541
  %v2315 = vunpack.c.h.b16 %v541
  %v2316 = vunpack.c.l.b16 %v542
  %v2317 = vunpack.c.h.b16 %v542
  %v2318 = vunpack.c.l.b16 %v543
  %v2319 = vunpack.c.h.b16 %v543
  %v2320 = vunpack.c.l.b16 %v544
  %v2321 = vunpack.c.h.b16 %v544
  %v2322 = vunpack.c.l.b16 %v545
  %v2323 = vunpack.c.h.b16 %v545
  %v2324 = vunpack.c.l.b16 %v546
  %v2325 = vunpack.c.h.b16 %v546
  %v2326 = vunpack.c.l.b16 %v547
  %v2327 = vunpack.c.h.b16 %v547
  %v2328 = vunpack.c.l.b16 %v548
  %v2329 = vunpack.c.h.b16 %v548
  %v2330 = vunpack.c.l.b16 %v549
  %v2331 = vunpack.c.h.b16 %v549
  %v2332 = vunpack.c.l.b16 %v550
  %v2333 = vunpack.c.h.b16 %v550
  %v2334 = vunpack.c.l.b16 %v551
  %v2335 = vunpack.c.h.b16 %v551
  %v2336 = vunpack.c.l.b16 %v552
  %v2337 = vunpack.c.h.b16 %v552
  %v2338 = vunpack.c.l.b16 %v553
  %v2339 = vunpack.c.h.b16 %v553
  %v2340 = vunpack.c.l.b16 %v554
  %v2341 = vunpack.c.h.b16 %v554
  %v2342 = vunpack.c.l.b16 %v555
  %v2343 = vunpack.c.h.b16 %v555
  %v2344 = vunpack.c.l.b16 %v556
  %v2345 = vunpack.c.h.b16 %v556
  %v2346 = vunpack.c.l.b16 %v557
  %v2347 = vunpack.c.h.b16 %v557
  %v2348 = vunpack.c.l.b16 %v558
  %v2349 = vunpack.c.h.b16 %v558
  %v2350 = vunpack.c.l.b16 %v559
  %v2351 = vunpack.c.h.b16 %v559
  %v2352 = vunpack.c.l.b16 %v560
  %v2353 = vunpack.c.h.b16 %v560
  %v2354 = vunpack.c.l.b16 %v561
  %v2355 = vunpack.c.h.b16 %v561
  %v2356 = vunpack.c.l.b16 %v562
  %v2357 = vunpack.c.h.b16 %v562
  %v2358 = vunpack.c.l.b16 %v563
  %v2359 = vunpack.c.h.b16 %v563
  %v2360 = vunpack.c.l.b16 %v564
  %v2361 = vunpack.c.h.b16 %v564
  %v2362 = vunpack.c.l.b16 %v565
  %v2363 = vunpack.c.h.b16 %v565
  %v2364 = vunpack.c.l.b16 %v566
  %v2365 = vunpack.c.h.b16 %v566
  %v2366 = vunpack.c.l.b16 %v567
  %v2367 = vunpack.c.h.b16 %v567
  %v2368 = vunpack.c.l.b16 %v568
  %v2369 = vunpack.c.h.b16 %v568
  %v2370 = vunpack.c.l.b16 %v569
  %v2371 = vunpack.c.h.b16 %v569
  %v2372 = vunpack.c.l.b16 %v570
  %v2373 = vunpack.c.h.b16 %v570
  %v2374 = vunpack.c.l.b16 %v571
  %v2375 = vunpack.c.h.b16 %v571
  %v2376 = vunpack.c.l.b16 %v572
  %v2377 = vunpack.c.h.b16 %v572
  %v2378 = vunpack.c.l.b16 %v573
  %v2379 = vunpack.c.h.b16 %v573
  %v2380 = vunpack.c.l.b16 %v574
  %v2381 = vunpack.c.h.b16 %v574
  %v2382 = vunpack.c.l.b16 %v575
  %v2383 = vunpack.c.h.b16 %v575
  %v2384 = vunpack.c.l.b16 %v576
  %v2385 = vunpack.c.h.b16 %v576
  %v2386 = vunpack.c.l.b16 %v577
  %v2387 = vunpack.c.h.b16 %v577
  %v2388 = vunpack.c.l.b16 %v578
  %v2389 = vunpack.c.h.b16 %v578
  %v2390 = vunpack.c.l.b16 %v579
  %v2391 = vunpack.c.h.b16 %v579
  %v2392 = vunpack.c.l.b16 %v580
  %v2393 = vunpack.c.h.b16 %v580
  %v2394 = vunpack.c.l.b16 %v581
  %v2395 = vunpack.c.h.b16 %v581
  %v2396 = vunpack.c.l.b16 %v582
  %v2397 = vunpack.c.h.b16 %v582
  %v2398 = vunpack.c.l.b16 %v583
  %v2399 = vunpack.c.h.b16 %v583
  %v2400 = vunpack.c.l.b16 %v584
  %v2401 = vunpack.c.h.b16 %v584
  %v2402 = vunpack.c.l.b16 %v585
  %v2403 = vunpack.c.h.b16 %v585
  %v2404 = vunpack.c.l.b16 %v586
  %v2405 = vunpack.c.h.b16 %v586
  %v2406 = vunpack.c.l.b16 %v587
  %v2407 = vunpack.c.h.b16 %v587
  %v2408 = vunpack.c.l.b16 %v588
  %v2409 = vunpack.c.h.b16 %v588
  %v2410 = vunpack.c.l.b16 %v589
  %v2411 = vunpack.c.h.b16 %v589
  %v2412 = vunpack.c.l.b16 %v590
  %v2413 = vunpack.c.h.b16 %v590
  %v2414 = vunpack.c.l.b16 %v591
  %v2415 = vunpack.c.h.b16 %v591
  %v2416 = vunpack.c.l.b16 %v592
  %v2417 = vunpack.c.h.b16 %v592
  %v2418 = vunpack.c.l.b16 %v593
  %v2419 = vunpack.c.h.b16 %v593
  %v2420 = vunpack.c.l.b16 %v594
  %v2421 = vunpack.c.h.b16 %v594
  %v2422 = vunpack.c.l.b16 %v595
  %v2423 = vunpack.c.h.b16 %v595
  %v2424 = vunpack.c.l.b16 %v596
  %v2425 = vunpack.c.h.b16 %v596
  %v2426 = vunpack.c.l.b16 %v597
  %v2427 = vunpack.c.h.b16 %v597
  %v2428 = vunpack.c.l.b16 %v598
  %v2429 = vunpack.c.h.b16 %v598
  %v2430 = vunpack.c.l.b16 %v599
  %v2431 = vunpack.c.h.b16 %v599
  %v2432 = vunpack.c.l.b16 %v600
  %v2433 = vunpack.c.h.b16 %v600
  %v2434 = vunpack.c.l.b16 %v601
  %v2435 = vunpack.c.h.b16 %v601
  %v2436 = vunpack.c.l.b16 %v602
  %v2437 = vunpack.c.h.b16 %v602
  %v2438 = vunpack.c.l.b16 %v603
  %v2439 = vunpack.c.h.b16 %v603
  %v2440 = vunpack.c.l.b16 %v604
  %v2441 = vunpack.c.h.b16 %v604
  %v2442 = vunpack.c.l.b16 %v605
  %v2443 = vunpack.c.h.b16 %v605
  %v2444 = vunpack.c.l.b16 %v606
  %v2445 = vunpack.c.h.b16 %v606
  %v2446 = vunpack.c.l.b16 %v607
  %v2447 = vunpack.c.h.b16 %v607
  %v2448 = vpack.c.b16 %v1300, %v1296
  %v2449 = vpack.c.b16 %v1301, %v1297
  %v2450 = vpack.c.b16 %v1302, %v1298
  %v2451 = vpack.c.b16 %v1303, %v1299
  %v2452 = vpack.c.b16 %v1308, %v1304
  %v2453 = vpack.c.b16 %v1309, %v1305
  %v2454 = vpack.c.b16 %v1310, %v1306
  %v2455 = vpack.c.b16 %v1311, %v1307
  %v2456 = vpack.c.b16 %v1316, %v1312
  %v2457 = vpack.c.b16 %v1317, %v1313
  %v2458 = vpack.c.b16 %v1318, %v1314
  %v2459 = vpack.c.b16 %v1319, %v1315
  %v2460 = vpack.c.b16 %v1324, %v1320
  %v2461 = vpack.c.b16 %v1325, %v1321
  %v2462 = vpack.c.b16 %v1326, %v1322
  %v2463 = vpack.c.b16 %v1327, %v1323
  %v2464 = vpack.c.b16 %v1332, %v1328
  %v2465 = vpack.c.b16 %v1333, %v1329
  %v2466 = vpack.c.b16 %v1334, %v1330
  %v2467 = vpack.c.b16 %v1335, %v1331
  %v2468 = vpack.c.b16 %v1340, %v1336
  %v2469 = vpack.c.b16 %v1341, %v1337
  %v2470 = vpack.c.b16 %v1342, %v1338
  %v2471 = vpack.c.b16 %v1343, %v1339
  %v2472 = vpack.c.b16 %v1348, %v1344
  %v2473 = vpack.c.b16 %v1349, %v1345
  %v2474 = vpack.c.b16 %v1350, %v1346
  %v2475 = vpack.c.b16 %v1351, %v1347
  %v2476 = vpack.c.b16 %v1356, %v1352
  %v2477 = vpack.c.b16 %v1357, %v1353
  %v2478 = vpack.c.b16 %v1358, %v1354
  %v2479 = vpack.c.b16 %v1359, %v1355
  %v2480 = vpack.c.b16 %v1364, %v1360
  %v2481 = vpack.c.b16 %v1365, %v1361
  %v2482 = vpack.c.b16 %v1366, %v1362
  %v2483 = vpack.c.b16 %v1367, %v1363
  %v2484 = vpack.c.b16 %v1372, %v1368
  %v2485 = vpack.c.b16 %v1373, %v1369
  %v2486 = vpack.c.b16 %v1374, %v1370
  %v2487 = vpack.c.b16 %v1375, %v1371
  %v2488 = vpack.c.b16 %v1380, %v1376
  %v2489 = vpack.c.b16 %v1381, %v1377
  %v2490 = vpack.c.b16 %v1382, %v1378
  %v2491 = vpack.c.b16 %v1383, %v1379
  %v2492 = vpack.c.b16 %v1388, %v1384
  %v2493 = vpack.c.b16 %v1389, %v1385
  %v2494 = vpack.c.b16 %v1390, %v1386
  %v2495 = vpack.c.b16 %v1391, %v1387
  %v2496 = vpack.c.b16 %v1396, %v1392
  %v2497 = vpack.c.b16 %v1397, %v1393
  %v2498 = vpack.c.b16 %v1398, %v1394
  %v2499 = vpack.c.b16 %v1399, %v1395
  %v2500 = vpack.c.b16 %v1404, %v1400
  %v2501 = vpack.c.b16 %v1405, %v1401
  %v2502 = vpack.c.b16 %v1406, %v1402
  %v2503 = vpack.c.b16 %v1407, %v1403
  %v2504 = vpack.c.b16 %v1412, %v1408
  %v2505 = vpack.c.b16 %v1413, %v1409
  %v2506 = vpack.c.b16 %v1414, %v1410
  %v2507 = vpack.c.b16 %v1415, %v1411
  %v2508 = vpack.c.b16 %v1420, %v1416
  %v2509 = vpack.c.b16 %v1421, %v1417
  %v2510 = vpack.c.b16 %v1422, %v1418
  %v2511 = vpack.c.b16 %v1423, %v1419
  %v2512 = vpack.c.b16 %v1428, %v1424
  %v2513 = vpack.c.b16 %v1429, %v1425
  %v2514 = vpack.c.b16 %v1430, %v1426
  %v2515 = vpack.c.b16 %v1431, %v1427
  %v2516 = vpack.c.b16 %v1436, %v1432
  %v2517 = vpack.c.b16 %v1437, %v1433
  %v2518 = vpack.c.b16 %v1438, %v1434
  %v2519 = vpack.c.b16 %v1439, %v1435
  %v2520 = vpack.c.b16 %v1444, %v1440
  %v2521 = vpack.c.b16 %v1445, %v1441
  %v2522 = vpack.c.b16 %v1446, %v1442
  %v2523 = vpack.c.b16 %v1447, %v1443
  %v2524 = vpack.c.b16 %v1452, %v1448
  %v2525 = vpack.c.b16 %v1453, %v1449
  %v2526 = vpack.c.b16 %v1454, %v1450
  %v2527 = vpack.c.b16 %v1455, %v1451
  %v2528 = vpack.c.b16 %v1460, %v1456
  %v2529 = vpack.c.b16 %v1461, %v1457
  %v2530 = vpack.c.b16 %v1462, %v1458
  %v2531 = vpack.c.b16 %v1463, %v1459
  %v2532 = vpack.c.b16 %v1468, %v1464
  %v2533 = vpack.c.b16 %v1469, %v1465
  %v2534 = vpack.c.b16 %v1470, %v1466
  %v2535 = vpack.c.b16 %v1471, %v1467
  %v2536 = vpack.c.b16 %v1476, %v1472
  %v2537 = vpack.c.b16 %v1477, %v1473
  %v2538 = vpack.c.b16 %v1478, %v1474
  %v2539 = vpack.c.b16 %v1479, %v1475
  %v2540 = vpack.c.b16 %v1484, %v1480
  %v2541 = vpack.c.b16 %v1485, %v1481
  %v2542 = vpack.c.b16 %v1486, %v1482
  %v2543 = vpack.c.b16 %v1487, %v1483
  %v2544 = vpack.c.b16 %v1492, %v1488
  %v2545 = vpack.c.b16 %v1493, %v1489
  %v2546 = vpack.c.b16 %v1494, %v1490
  %v2547 = vpack.c.b16 %v1495, %v1491
  %v2548 = vpack.c.b16 %v1500, %v1496
  %v2549 = vpack.c.b16 %v1501, %v1497
  %v2550 = vpack.c.b16 %v1502, %v1498
  %v2551 = vpack.c.b16 %v1503, %v1499
  %v2552 = vpack.c.b16 %v1508, %v1504
  %v2553 = vpack.c.b16 %v1509, %v1505
  %v2554 = vpack.c.b16 %v1510, %v1506
  %v2555 = vpack.c.b16 %v1511, %v1507
  %v2556 = vpack.c.b16 %v1516, %v1512
  %v2557 = vpack.c.b16 %v1517, %v1513
  %v2558 = vpack.c.b16 %v1518, %v1514
  %v2559 = vpack.c.b16 %v1519, %v1515
  %v2560 = vpack.c.b16 %v1524, %v1520
  %v2561 = vpack.c.b16 %v1525, %v1521
  %v2562 = vpack.c.b16 %v1526, %v1522
  %v2563 = vpack.c.b16 %v1527, %v1523
  %v2564 = vpack.c.b16 %v1532, %v1528
  %v2565 = vpack.c.b16 %v1533, %v1529
  %v2566 = vpack.c.b16 %v1534, %v1530
  %v2567 = vpack.c.b16 %v1535, %v1531
  %v2568 = vpack.c.b16 %v1540, %v1536
  %v2569 = vpack.c.b16 %v1541, %v1537
  %v2570 = vpack.c.b16 %v1542, %v1538
  %v2571 = vpack.c.b16 %v1543, %v1539
  %v2572 = vpack.c.b16 %v1548, %v1544
  %v2573 = vpack.c.b16 %v1549, %v1545
  %v2574 = vpack.c.b16 %v1550, %v1546
  %v2575 = vpack.c.b16 %v1551, %v1547
  %v2576 = vpack.c.b16 %v1556, %v1552
  %v2577 = vpack.c.b16 %v1557, %v1553
  %v2578 = vpack.c.b16 %v1558, %v1554
  %v2579 = vpack.c.b16 %v1559, %v1555
  %v2580 = vpack.c.b16 %v1564, %v1560
  %v2581 = vpack.c.b16 %v1565, %v1561
  %v2582 = vpack.c.b16 %v1566, %v1562
  %v2583 = vpack.c.b16 %v1567, %v1563
  %v2584 = vpack.c.b16 %v1572, %v1568
  %v2585 = vpack.c.b16 %v1573, %v1569
  %v2586 = vpack.c.b16 %v1574, %v1570
  %v2587 = vpack.c.b16 %v1575, %v1571
  %v2588 = vpack.c.b16 %v1580, %v1576
  %v2589 = vpack.c.b16 %v1581, %v1577
  %v2590 = vpack.c.b16 %v1582, %v1578
  %v2591 = vpack.c.b16 %v1583, %v1579
  %v2592 = vpack.c.b16 %v1588, %v1584
  %v2593 = vpack.c.b16 %v1589, %v1585
  %v2594 = vpack.c.b16 %v1590, %v1586
  %v2595 = vpack.c.b16 %v1591, %v1587
  %v2596 = vpack.c.b16 %v1596, %v1592
  %v2597 = vpack.c.b16 %v1597, %v1593
  %v2598 = vpack.c.b16 %v1598, %v1594
  %v2599 = vpack.c.b16 %v1599, %v1595
  %v2600 = vpack.c.b16 %v1604, %v1600
  %v2601 = vpack.c.b16 %v1605, %v1601
  %v2602 = vpack.c.b16 %v1606, %v1602
  %v2603 = vpack.c.b16 %v1607, %v1603
  %v2604 = vpack.c.b16 %v1612, %v1608
  %v2605 = vpack.c.b16 %v1613, %v1609
  %v2606 = vpack.c.b16 %v1614, %v1610
  %v2607 = vpack.c.b16 %v1615, %v1611
  %v2608 = vpack.c.b16 %v1620, %v1616
  %v2609 = vpack.c.b16 %v1621, %v1617
  %v2610 = vpack.c.b16 %v1622, %v1618
  %v2611 = vpack.c.b16 %v1623, %v1619
  %v2612 = vpack.c.b16 %v1628, %v1624
  %v2613 = vpack.c.b16 %v1629, %v1625
  %v2614 = vpack.c.b16 %v1630, %v1626
  %v2615 = vpack.c.b16 %v1631, %v1627
  %v2616 = vpack.c.b16 %v1636, %v1632
  %v2617 = vpack.c.b16 %v1637, %v1633
  %v2618 = vpack.c.b16 %v1638, %v1634
  %v2619 = vpack.c.b16 %v1639, %v1635
  %v2620 = vpack.c.b16 %v1644, %v1640
  %v2621 = vpack.c.b16 %v1645, %v1641
  %v2622 = vpack.c.b16 %v1646, %v1642
  %v2623 = vpack.c.b16 %v1647, %v1643
  %v2624 = vpack.c.b16 %v1652, %v1648
  %v2625 = vpack.c.b16 %v1653, %v1649
  %v2626 = vpack.c.b16 %v1654, %v1650
  %v2627 = vpack.c.b16 %v1655, %v1651
  %v2628 = vpack.c.b16 %v1660, %v1656
  %v2629 = vpack.c.b16 %v1661, %v1657
  %v2630 = vpack.c.b16 %v1662, %v1658
  %v2631 = vpack.c.b16 %v1663, %v1659
  %v2632 = vpack.c.b16 %v1668, %v1664
  %v2633 = vpack.c.b16 %v1669, %v1665
  %v2634 = vpack.c.b16 %v1670, %v1666
  %v2635 = vpack.c.b16 %v1671, %v1667
  %v2636 = vpack.c.b16 %v1676, %v1672
  %v2637 = vpack.c.b16 %v1677, %v1673
  %v2638 = vpack.c.b16 %v1678, %v1674
  %v2639 = vpack.c.b16 %v1679, %v1675
  %v2640 = vpack.c.b16 %v1684, %v1680
  %v2641 = vpack.c.b16 %v1685, %v1681
  %v2642 = vpack.c.b16 %v1686, %v1682
  %v2643 = vpack.c.b16 %v1687, %v1683
  %v2644 = vpack.c.b16 %v1692, %v1688
  %v2645 = vpack.c.b16 %v1693, %v1689
  %v2646 = vpack.c.b16 %v1694, %v1690
  %v2647 = vpack.c.b16 %v1695, %v1691
  %v2648 = vpack.c.b16 %v1700, %v1696
  %v2649 = vpack.c.b16 %v1701, %v1697
  %v2650 = vpack.c.b16 %v1702, %v1698
  %v2651 = vpack.c.b16 %v1703, %v1699
  %v2652 = vpack.c.b16 %v1708, %v1704
  %v2653 = vpack.c.b16 %v1709, %v1705
  %v2654 = vpack.c.b16 %v1710, %v1706
  %v2655 = vpack.c.b16 %v1711, %v1707
  %v2656 = vpack.c.b16 %v1716, %v1712
  %v2657 = vpack.c.b16 %v1717, %v1713
  %v2658 = vpack.c.b16 %v1718, %v1714
  %v2659 = vpack.c.b16 %v1719, %v1715
  %v2660 = vpack.c.b16 %v1724, %v1720
  %v2661 = vpack.c.b16 %v1725, %v1721
  %v2662 = vpack.c.b16 %v1726, %v1722
  %v2663 = vpack.c.b16 %v1727, %v1723
  %v2664 = vpack.c.b16 %v1732, %v1728
  %v2665 = vpack.c.b16 %v1733, %v1729
  %v2666 = vpack.c.b16 %v1734, %v1730
  %v2667 = vpack.c.b16 %v1735, %v1731
  %v2668 = vpack.c.b16 %v1740, %v1736
  %v2669 = vpack.c.b16 %v1741, %v1737
  %v2670 = vpack.c.b16 %v1742, %v1738
  %v2671 = vpack.c.b16 %v1743, %v1739
  %v2672 = vpack.c.b16 %v1748, %v1744
  %v2673 = vpack.c.b16 %v1749, %v1745
  %v2674 = vpack.c.b16 %v1750, %v1746
  %v2675 = vpack.c.b16 %v1751, %v1747
  %v2676 = vpack.c.b16 %v1756, %v1752
  %v2677 = vpack.c.b16 %v1757, %v1753
  %v2678 = vpack.c.b16 %v1758, %v1754
  %v2679 = vpack.c.b16 %v1759, %v1755
  %v2680 = vpack.c.b16 %v1764, %v1760
  %v2681 = vpack.c.b16 %v1765, %v1761
  %v2682 = vpack.c.b16 %v1766, %v1762
  %v2683 = vpack.c.b16 %v1767, %v1763
  %v2684 = vpack.c.b16 %v1772, %v1768
  %v2685 = vpack.c.b16 %v1773, %v1769
  %v2686 = vpack.c.b16 %v1774, %v1770
  %v2687 = vpack.c.b16 %v1775, %v1771
  %v2688 = vpack.c.b16 %v1780, %v1776
  %v2689 = vpack.c.b16 %v1781, %v1777
  %v2690 = vpack.c.b16 %v1782, %v1778
  %v2691 = vpack.c.b16 %v1783, %v1779
  %v2692 = vpack.c.b16 %v1788, %v1784
  %v2693 = vpack.c.b16 %v1789, %v1785
  %v2694 = vpack.c.b16 %v1790, %v1786
  %v2695 = vpack.c.b16 %v1791, %v1787
  %v2696 = vpack.c.b16 %v1796, %v1792
  %v2697 = vpack.c.b16 %v1797, %v1793
  %v2698 = vpack.c.b16 %v1798, %v1794
  %v2699 = vpack.c.b16 %v1799, %v1795
  %v2700 = vpack.c.b16 %v1804, %v1800
  %v2701 = vpack.c.b16 %v1805, %v1801
  %v2702 = vpack.c.b16 %v1806, %v1802
  %v2703 = vpack.c.b16 %v1807, %v1803
  %v2704 = vpack.c.b16 %v1812, %v1808
  %v2705 = vpack.c.b16 %v1813, %v1809
  %v2706 = vpack.c.b16 %v1814, %v1810
  %v2707 = vpack.c.b16 %v1815, %v1811
  %v2708 = vpack.c.b16 %v1820, %v1816
  %v2709 = vpack.c.b16 %v1821, %v1817
  %v2710 = vpack.c.b16 %v1822, %v1818
  %v2711 = vpack.c.b16 %v1823, %v1819
  %v2712 = vpack.c.b16 %v1828, %v1824
  %v2713 = vpack.c.b16 %v1829, %v1825
  %v2714 = vpack.c.b16 %v1830, %v1826
  %v2715 = vpack.c.b16 %v1831, %v1827
  %v2716 = vpack.c.b16 %v1836, %v1832
  %v2717 = vpack.c.b16 %v1837, %v1833
  %v2718 = vpack.c.b16 %v1838, %v1834
  %v2719 = vpack.c.b16 %v1839, %v1835
  %v2720 = vpack.c.b16 %v1844, %v1840
  %v2721 = vpack.c.b16 %v1845, %v1841
  %v2722 = vpack.c.b16 %v1846, %v1842
  %v2723 = vpack.c.b16 %v1847, %v1843
  %v2724 = vpack.c.b16 %v1852, %v1848
  %v2725 = vpack.c.b16 %v1853, %v1849
  %v2726 = vpack.c.b16 %v1854, %v1850
  %v2727 = vpack.c.b16 %v1855, %v1851
  %v2728 = vpack.c.b16 %v1860, %v1856
  %v2729 = vpack.c.b16 %v1861, %v1857
  %v2730 = vpack.c.b16 %v1862, %v1858
  %v2731 = vpack.c.b16 %v1863, %v1859
  %v2732 = vpack.c.b16 %v1868, %v1864
  %v2733 = vpack.c.b16 %v1869, %v1865
  %v2734 = vpack.c.b16 %v1870, %v1866
  %v2735 = vpack.c.b16 %v1871, %v1867
  %v2736 = vpack.c.b16 %v1876, %v1872
  %v2737 = vpack.c.b16 %v1877, %v1873
  %v2738 = vpack.c.b16 %v1878, %v1874
  %v2739 = vpack.c.b16 %v1879, %v1875
  %v2740 = vpack.c.b16 %v1884, %v1880
  %v2741 = vpack.c.b16 %v1885, %v1881
  %v2742 = vpack.c.b16 %v1886, %v1882
  %v2743 = vpack.c.b16 %v1887, %v1883
  %v2744 = vpack.c.b16 %v1892, %v1888
  %v2745 = vpack.c.b16 %v1893, %v1889
  %v2746 = vpack.c.b16 %v1894, %v1890
  %v2747 = vpack.c.b16 %v1895, %v1891
  %v2748 = vpack.c.b16 %v1900, %v1896
  %v2749 = vpack.c.b16 %v1901, %v1897
  %v2750 = vpack.c.b16 %v1902, %v1898
  %v2751 = vpack.c.b16 %v1903, %v1899
  %v2752 = vpack.c.b16 %v1908, %v1904
  %v2753 = vpack.c.b16 %v1909, %v1905
  %v2754 = vpack.c.b16 %v1910, %v1906
  %v2755 = vpack.c.b16 %v1911, %v1907
  %v2756 = vpack.c.b16 %v1916, %v1912
  %v2757 = vpack.c.b16 %v1917, %v1913
  %v2758 = vpack.c.b16 %v1918, %v1914
  %v2759 = vpack.c.b16 %v1919, %v1915
  %v2760 = vpack.c.b16 %v1924, %v1920
  %v2761 = vpack.c.b16 %v1925, %v1921
  %v2762 = vpack.c.b16 %v1926, %v1922
  %v2763 = vpack.c.b16 %v1927, %v1923
  %v2764 = vpack.c.b16 %v1932, %v1928
  %v2765 = vpack.c.b16 %v1933, %v1929
  %v2766 = vpack.c.b16 %v1934, %v1930
  %v2767 = vpack.c.b16 %v1935, %v1931
  %v2768 = vpack.c.b16 %v1940, %v1936
  %v2769 = vpack.c.b16 %v1941, %v1937
  %v2770 = vpack.c.b16 %v1942, %v1938
  %v2771 = vpack.c.b16 %v1943, %v1939
  %v2772 = vpack.c.b16 %v1948, %v1944
  %v2773 = vpack.c.b16 %v1949, %v1945
  %v2774 = vpack.c.b16 %v1950, %v1946
  %v2775 = vpack.c.b16 %v1951, %v1947
  %v2776 = vpack.c.b16 %v1956, %v1952
  %v2777 = vpack.c.b16 %v1957, %v1953
  %v2778 = vpack.c.b16 %v1958, %v1954
  %v2779 = vpack.c.b16 %v1959, %v1955
  %v2780 = vpack.c.b16 %v1964, %v1960
  %v2781 = vpack.c.b16 %v1965, %v1961
  %v2782 = vpack.c.b16 %v1966, %v1962
  %v2783 = vpack.c.b16 %v1967, %v1963
  %v2784 = vpack.c.b16 %v1972, %v1968
  %v2785 = vpack.c.b16 %v1973, %v1969
  %v2786 = vpack.c.b16 %v1974, %v1970
  %v2787 = vpack.c.b16 %v1975, %v1971
  %v2788 = vpack.c.b16 %v1980, %v1976
  %v2789 = vpack.c.b16 %v1981, %v1977
  %v2790 = vpack.c.b16 %v1982, %v1978
  %v2791 = vpack.c.b16 %v1983, %v1979
  %v2792 = vpack.c.b16 %v1988, %v1984
  %v2793 = vpack.c.b16 %v1989, %v1985
  %v2794 = vpack.c.b16 %v1990, %v1986
  %v2795 = vpack.c.b16 %v1991, %v1987
  %v2796 = vpack.c.b16 %v1996, %v1992
  %v2797 = vpack.c.b16 %v1997, %v1993
  %v2798 = vpack.c.b16 %v1998, %v1994
  %v2799 = vpack.c.b16 %v1999, %v1995
  %v2800 = vpack.c.b16 %v2004, %v2000
  %v2801 = vpack.c.b16 %v2005, %v2001
  %v2802 = vpack.c.b16 %v2006, %v2002
  %v2803 = vpack.c.b16 %v2007, %v2003
  %v2804 = vpack.c.b16 %v2012, %v2008
  %v2805 = vpack.c.b16 %v2013, %v2009
  %v2806 = vpack.c.b16 %v2014, %v2010
  %v2807 = vpack.c.b16 %v2015, %v2011
  %v2808 = vpack.c.b16 %v2020, %v2016
  %v2809 = vpack.c.b16 %v2021, %v2017
  %v2810 = vpack.c.b16 %v2022, %v2018
  %v2811 = vpack.c.b16 %v2023, %v2019
  %v2812 = vpack.c.b16 %v2028, %v2024
  %v2813 = vpack.c.b16 %v2029, %v2025
  %v2814 = vpack.c.b16 %v2030, %v2026
  %v2815 = vpack.c.b16 %v2031, %v2027
  %v2816 = vpack.c.b16 %v2036, %v2032
  %v2817 = vpack.c.b16 %v2037, %v2033
  %v2818 = vpack.c.b16 %v2038, %v2034
  %v2819 = vpack.c.b16 %v2039, %v2035
  %v2820 = vpack.c.b16 %v2044, %v2040
  %v2821 = vpack.c.b16 %v2045, %v2041
  %v2822 = vpack.c.b16 %v2046, %v2042
  %v2823 = vpack.c.b16 %v2047, %v2043
  %v2824 = vpack.c.b16 %v2052, %v2048
  %v2825 = vpack.c.b16 %v2053, %v2049
  %v2826 = vpack.c.b16 %v2054, %v2050
  %v2827 = vpack.c.b16 %v2055, %v2051
  %v2828 = vpack.c.b16 %v2060, %v2056
  %v2829 = vpack.c.b16 %v2061, %v2057
  %v2830 = vpack.c.b16 %v2062, %v2058
  %v2831 = vpack.c.b16 %v2063, %v2059
  %v2832 = vpack.c.b16 %v2068, %v2064
  %v2833 = vpack.c.b16 %v2069, %v2065
  %v2834 = vpack.c.b16 %v2070, %v2066
  %v2835 = vpack.c.b16 %v2071, %v2067
  %v2836 = vpack.c.b16 %v2076, %v2072
  %v2837 = vpack.c.b16 %v2077, %v2073
  %v2838 = vpack.c.b16 %v2078, %v2074
  %v2839 = vpack.c.b16 %v2079, %v2075
  %v2840 = vpack.c.b16 %v2084, %v2080
  %v2841 = vpack.c.b16 %v2085, %v2081
  %v2842 = vpack.c.b16 %v2086, %v2082
  %v2843 = vpack.c.b16 %v2087, %v2083
  %v2844 = vpack.c.b16 %v2092, %v2088
  %v2845 = vpack.c.b16 %v2093, %v2089
  %v2846 = vpack.c.b16 %v2094, %v2090
  %v2847 = vpack.c.b16 %v2095, %v2091
  %v2848 = vpack.c.b16 %v2100, %v2096
  %v2849 = vpack.c.b16 %v2101, %v2097
  %v2850 = vpack.c.b16 %v2102, %v2098
  %v2851 = vpack.c.b16 %v2103, %v2099
  %v2852 = vpack.c.b16 %v2108, %v2104
  %v2853 = vpack.c.b16 %v2109, %v2105
  %v2854 = vpack.c.b16 %v2110, %v2106
  %v2855 = vpack.c.b16 %v2111, %v2107
  %v2856 = vpack.c.b16 %v2116, %v2112
  %v2857 = vpack.c.b16 %v2117, %v2113
  %v2858 = vpack.c.b16 %v2118, %v2114
  %v2859 = vpack.c.b16 %v2119, %v2115
  %v2860 = vpack.c.b16 %v2124, %v2120
  %v2861 = vpack.c.b16 %v2125, %v2121
  %v2862 = vpack.c.b16 %v2126, %v2122
  %v2863 = vpack.c.b16 %v2127, %v2123
  %v2864 = vpack.c.b16 %v2132, %v2128
  %v2865 = vpack.c.b16 %v2133, %v2129
  %v2866 = vpack.c.b16 %v2134, %v2130
  %v2867 = vpack.c.b16 %v2135, %v2131
  %v2868 = vpack.c.b16 %v2140, %v2136
  %v2869 = vpack.c.b16 %v2141, %v2137
  %v2870 = vpack.c.b16 %v2142, %v2138
  %v2871 = vpack.c.b16 %v2143, %v2139
  %v2872 = vpack.c.b16 %v2148, %v2144
  %v2873 = vpack.c.b16 %v2149, %v2145
  %v2874 = vpack.c.b16 %v2150, %v2146
  %v2875 = vpack.c.b16 %v2151, %v2147
  %v2876 = vpack.c.b16 %v2156, %v2152
  %v2877 = vpack.c.b16 %v2157, %v2153
  %v2878 = vpack.c.b16 %v2158, %v2154
  %v2879 = vpack.c.b16 %v2159, %v2155
  %v2880 = vpack.c.b16 %v2164, %v2160
  %v2881 = vpack.c.b16 %v2165, %v2161
  %v2882 = vpack.c.b16 %v2166, %v2162
  %v2883 = vpack.c.b16 %v2167, %v2163
  %v2884 = vpack.c.b16 %v2172, %v2168
  %v2885 = vpack.c.b16 %v2173, %v2169
  %v2886 = vpack.c.b16 %v2174, %v2170
  %v2887 = vpack.c.b16 %v2175, %v2171
  %v2888 = vpack.c.b16 %v2180, %v2176
  %v2889 = vpack.c.b16 %v2181, %v2177
  %v2890 = vpack.c.b16 %v2182, %v2178
  %v2891 = vpack.c.b16 %v2183, %v2179
  %v2892 = vpack.c.b16 %v2188, %v2184
  %v2893 = vpack.c.b16 %v2189, %v2185
  %v2894 = vpack.c.b16 %v2190, %v2186
  %v2895 = vpack.c.b16 %v2191, %v2187
  %v2896 = vpack.c.b16 %v2196, %v2192
  %v2897 = vpack.c.b16 %v2197, %v2193
  %v2898 = vpack.c.b16 %v2198, %v2194
  %v2899 = vpack.c.b16 %v2199, %v2195
  %v2900 = vpack.c.b16 %v2204, %v2200
  %v2901 = vpack.c.b16 %v2205, %v2201
  %v2902 = vpack.c.b16 %v2206, %v2202
  %v2903 = vpack.c.b16 %v2207, %v2203
  %v2904 = vpack.c.b16 %v2212, %v2208
  %v2905 = vpack.c.b16 %v2213, %v2209
  %v2906 = vpack.c.b16 %v2214, %v2210
  %v2907 = vpack.c.b16 %v2215, %v2211
  %v2908 = vpack.c.b16 %v2220, %v2216
  %v2909 = vpack.c.b16 %v2221, %v2217
  %v2910 = vpack.c.b16 %v2222, %v2218
  %v2911 = vpack.c.b16 %v2223, %v2219
  %v2912 = vpack.c.b16 %v2228, %v2224
  %v2913 = vpack.c.b16 %v2229, %v2225
  %v2914 = vpack.c.b16 %v2230, %v2226
  %v2915 = vpack.c.b16 %v2231, %v2227
  %v2916 = vpack.c.b16 %v2236, %v2232
  %v2917 = vpack.c.b16 %v2237, %v2233
  %v2918 = vpack.c.b16 %v2238, %v2234
  %v2919 = vpack.c.b16 %v2239, %v2235
  %v2920 = vpack.c.b16 %v2244, %v2240
  %v2921 = vpack.c.b16 %v2245, %v2241
  %v2922 = vpack.c.b16 %v2246, %v2242
  %v2923 = vpack.c.b16 %v2247, %v2243
  %v2924 = vpack.c.b16 %v2252, %v2248
  %v2925 = vpack.c.b16 %v2253, %v2249
  %v2926 = vpack.c.b16 %v2254, %v2250
  %v2927 = vpack.c.b16 %v2255, %v2251
  %v2928 = vpack.c.b16 %v2260, %v2256
  %v2929 = vpack.c.b16 %v2261, %v2257
  %v2930 = vpack.c.b16 %v2262, %v2258
  %v2931 = vpack.c.b16 %v2263, %v2259
  %v2932 = vpack.c.b16 %v2268, %v2264
  %v2933 = vpack.c.b16 %v2269, %v2265
  %v2934 = vpack.c.b16 %v2270, %v2266
  %v2935 = vpack.c.b16 %v2271, %v2267
  %v2936 = vpack.c.b16 %v2276, %v2272
  %v2937 = vpack.c.b16 %v2277, %v2273
  %v2938 = vpack.c.b16 %v2278, %v2274
  %v2939 = vpack.c.b16 %v2279, %v2275
  %v2940 = vpack.c.b16 %v2284, %v2280
  %v2941 = vpack.c.b16 %v2285, %v2281
  %v2942 = vpack.c.b16 %v2286, %v2282
  %v2943 = vpack.c.b16 %v2287, %v2283
  %v2944 = vpack.c.b16 %v2292, %v2288
  %v2945 = vpack.c.b16 %v2293, %v2289
  %v2946 = vpack.c.b16 %v2294, %v2290
  %v2947 = vpack.c.b16 %v2295, %v2291
  %v2948 = vpack.c.b16 %v2300, %v2296
  %v2949 = vpack.c.b16 %v2301, %v2297
  %v2950 = vpack.c.b16 %v2302, %v2298
  %v2951 = vpack.c.b16 %v2303, %v2299
  %v2952 = vpack.c.b16 %v2308, %v2304
  %v2953 = vpack.c.b16 %v2309, %v2305
  %v2954 = vpack.c.b16 %v2310, %v2306
  %v2955 = vpack.c.b16 %v2311, %v2307
  %v2956 = vpack.c.b16 %v2316, %v2312
  %v2957 = vpack.c.b16 %v2317, %v2313
  %v2958 = vpack.c.b16 %v2318, %v2314
  %v2959 = vpack.c.b16 %v2319, %v2315
  %v2960 = vpack.c.b16 %v2324, %v2320
  %v2961 = vpack.c.b16 %v2325, %v2321
  %v2962 = vpack.c.b16 %v2326, %v2322
  %v2963 = vpack.c.b16 %v2327, %v2323
  %v2964 = vpack.c.b16 %v2332, %v2328
  %v2965 = vpack.c.b16 %v2333, %v2329
  %v2966 = vpack.c.b16 %v2334, %v2330
  %v2967 = vpack.c.b16 %v2335, %v2331
  %v2968 = vpack.c.b16 %v2340, %v2336
  %v2969 = vpack.c.b16 %v2341, %v2337
  %v2970 = vpack.c.b16 %v2342, %v2338
  %v2971 = vpack.c.b16 %v2343, %v2339
  %v2972 = vpack.c.b16 %v2348, %v2344
  %v2973 = vpack.c.b16 %v2349, %v2345
  %v2974 = vpack.c.b16 %v2350, %v2346
  %v2975 = vpack.c.b16 %v2351, %v2347
  %v2976 = vpack.c.b16 %v2356, %v2352
  %v2977 = vpack.c.b16 %v2357, %v2353
  %v2978 = vpack.c.b16 %v2358, %v2354
  %v2979 = vpack.c.b16 %v2359, %v2355
  %v2980 = vpack.c.b16 %v2364, %v2360
  %v2981 = vpack.c.b16 %v2365, %v2361
  %v2982 = vpack.c.b16 %v2366, %v2362
  %v2983 = vpack.c.b16 %v2367, %v2363
  %v2984 = vpack.c.b16 %v2372, %v2368
  %v2985 = vpack.c.b16 %v2373, %v2369
  %v2986 = vpack.c.b16 %v2374, %v2370
  %v2987 = vpack.c.b16 %v2375, %v2371
  %v2988 = vpack.c.b16 %v2380, %v2376
  %v2989 = vpack.c.b16 %v2381, %v2377
  %v2990 = vpack.c.b16 %v2382, %v2378
  %v2991 = vpack.c.b16 %v2383, %v2379
  %v2992 = vpack.c.b16 %v2388, %v2384
  %v2993 = vpack.c.b16 %v2389, %v2385
  %v2994 = vpack.c.b16 %v2390, %v2386
  %v2995 = vpack.c.b16 %v2391, %v2387
  %v2996 = vpack.c.b16 %v2396, %v2392
  %v2997 = vpack.c.b16 %v2397, %v2393
  %v2998 = vpack.c.b16 %v2398, %v2394
  %v2999 = vpack.c.b16 %v2399, %v2395
  %v3000 = vpack.c.b16 %v2404, %v2400
  %v3001 = vpack.c.b16 %v2405, %v2401
  %v3002 = vpack.c.b16 %v2406, %v2402
  %v3003 = vpack.c.b16 %v2407, %v2403
  %v3004 = vpack.c.b16 %v2412, %v2408
  %v3005 = vpack.c.b16 %v2413, %v2409
  %v3006 = vpack.c.b16 %v2414, %v2410
  %v3007 = vpack.c.b16 %v2415, %v2411
  %v3008 = vpack.c.b16 %v2420, %v2416
  %v3009 = vpack.c.b16 %v2421, %v2417
  %v3010 = vpack.c.b16 %v2422, %v2418
  %v3011 = vpack.c.b16 %v2423, %v2419
  %v3012 = vpack.c.b16 %v2428, %v2424
  %v3013 = vpack.c.b16 %v2429, %v2425
  %v3014 = vpack.c.b16 %v2430, %v2426
  %v3015 = vpack.c.b16 %v2431, %v2427
  %v3016 = vpack.c.b16 %v2436, %v2432
  %v3017 = vpack.c.b16 %v2437, %v2433
  %v3018 = vpack.c.b16 %v2438, %v2434
  %v3019 = vpack.c.b16 %v2439, %v2435
  %v3020 = vpack.c.b16 %v2444, %v2440
  %v3021 = vpack.c.b16 %v2445, %v2441
  %v3022 = vpack.c.b16 %v2446, %v2442
  %v3023 = vpack.c.b16 %v2447, %v2443
  %3600 = vmatprep.subr.bf16.mxu0 %v2477
  %3601 = vmatpush1.bf16.msra.mxu0 %v2476
  %3602 = vmatprep.subr.bf16.mxu0 %v2473
  %3603 = vmatpush1.bf16.msra.mxu0 %v2472
  %3604 = vmatprep.subr.bf16.mxu0 %v2469
  %3605 = vmatpush1.bf16.msra.mxu0 %v2468
  %3606 = vmatprep.subr.bf16.mxu0 %v2465
  %3607 = vmatpush1.bf16.msra.mxu0 %v2464
  %3608 = vmatprep.subr.bf16.mxu0 %v2461
  %3609 = vmatpush1.bf16.msra.mxu0 %v2460
  %3610 = vmatprep.subr.bf16.mxu0 %v2457
  %3611 = vmatpush1.bf16.msra.mxu0 %v2456
  %3612 = vmatprep.subr.bf16.mxu0 %v2453
  %3613 = vmatpush1.bf16.msra.mxu0 %v2452
  %3614 = vmatprep.subr.bf16.mxu0 %v2449
  %3615 = vmatpush1.bf16.msra.mxu0 %v2448
  %3616 = vmatprep.subr.bf16.mxu0 %v2509
  %3617 = vmatpush2.bf16.msra.mxu0 %v2508
  %3618 = vmatprep.subr.bf16.mxu0 %v2505
  %3619 = vmatpush2.bf16.msra.mxu0 %v2504
  %3620 = vmatprep.subr.bf16.mxu0 %v2501
  %3621 = vmatpush2.bf16.msra.mxu0 %v2500
  %3622 = vmatprep.subr.bf16.mxu0 %v2497
  %3623 = vmatpush2.bf16.msra.mxu0 %v2496
  %3624 = vmatprep.subr.bf16.mxu0 %v2493
  %3625 = vmatpush2.bf16.msra.mxu0 %v2492
  %3626 = vmatprep.subr.bf16.mxu0 %v2489
  %3627 = vmatpush2.bf16.msra.mxu0 %v2488
  %3628 = vmatprep.subr.bf16.mxu0 %v2485
  %3629 = vmatpush2.bf16.msra.mxu0 %v2484
  %3630 = vmatprep.subr.bf16.mxu0 %v2481
  %3631 = vmatpush2.bf16.msra.mxu0 %v2480
  %3632 = vmatprep.mubr.bf16.mxu0 %v685
  %3633 = vmatmul.mubr.bf16.gmra.mxu0 %v684
  %v3634 = vpop.f32.mrf.mxu0
  %v3635 = vadd.f32 %v613, %v3634
  %v3636 = vpop.f32.mrf.mxu0
  %v3637 = vadd.f32 %v617, %v3636
  %v3638 = vpop.f32.mrf.mxu0
  %v3639 = vadd.f32 %v613, %v3638
  %v3640 = vpop.f32.mrf.mxu0
  %v3641 = vadd.f32 %v617, %v3640
  %3642 = vdwg.mxu0
  %3643 = vmatprep.subr.bf16.mxu0 %v2541
  %3644 = vmatpush1.bf16.msra.mxu0 %v2540
  %3645 = vmatprep.subr.bf16.mxu0 %v2537
  %3646 = vmatpush1.bf16.msra.mxu0 %v2536
  %3647 = vmatprep.subr.bf16.mxu0 %v2533
  %3648 = vmatpush1.bf16.msra.mxu0 %v2532
  %3649 = vmatprep.subr.bf16.mxu0 %v2529
  %3650 = vmatpush1.bf16.msra.mxu0 %v2528
  %3651 = vmatprep.subr.bf16.mxu0 %v2525
  %3652 = vmatpush1.bf16.msra.mxu0 %v2524
  %3653 = vmatprep.subr.bf16.mxu0 %v2521
  %3654 = vmatpush1.bf16.msra.mxu0 %v2520
  %3655 = vmatprep.subr.bf16.mxu0 %v2517
  %3656 = vmatpush1.bf16.msra.mxu0 %v2516
  %3657 = vmatprep.subr.bf16.mxu0 %v2513
  %3658 = vmatpush1.bf16.msra.mxu0 %v2512
  %3659 = vmatprep.subr.bf16.mxu0 %v2573
  %3660 = vmatpush2.bf16.msra.mxu0 %v2572
  %3661 = vmatprep.subr.bf16.mxu0 %v2569
  %3662 = vmatpush2.bf16.msra.mxu0 %v2568
  %3663 = vmatprep.subr.bf16.mxu0 %v2565
  %3664 = vmatpush2.bf16.msra.mxu0 %v2564
  %3665 = vmatprep.subr.bf16.mxu0 %v2561
  %3666 = vmatpush2.bf16.msra.mxu0 %v2560
  %3667 = vmatprep.subr.bf16.mxu0 %v2557
  %3668 = vmatpush2.bf16.msra.mxu0 %v2556
  %3669 = vmatprep.subr.bf16.mxu0 %v2553
  %3670 = vmatpush2.bf16.msra.mxu0 %v2552
  %3671 = vmatprep.subr.bf16.mxu0 %v2549
  %3672 = vmatpush2.bf16.msra.mxu0 %v2548
  %3673 = vmatprep.subr.bf16.mxu0 %v2545
  %3674 = vmatpush2.bf16.msra.mxu0 %v2544
  %3675 = vmatprep.mubr.bf16.mxu0 %v687
  %3676 = vmatmul.mubr.bf16.gmra.mxu0 %v686
  %v3677 = vpop.f32.mrf.mxu0
  %v3678 = vadd.f32 %v3635, %v3677
  %v3679 = vpop.f32.mrf.mxu0
  %v3680 = vadd.f32 %v3637, %v3679
  %v3681 = vpop.f32.mrf.mxu0
  %v3682 = vadd.f32 %v3639, %v3681
  %v3683 = vpop.f32.mrf.mxu0
  %v3684 = vadd.f32 %v3641, %v3683
  %3685 = vdwg.mxu0
  %3686 = vmatprep.subr.bf16.mxu0 %v2605
  %3687 = vmatpush1.bf16.msra.mxu0 %v2604
  %3688 = vmatprep.subr.bf16.mxu0 %v2601
  %3689 = vmatpush1.bf16.msra.mxu0 %v2600
  %3690 = vmatprep.subr.bf16.mxu0 %v2597
  %3691 = vmatpush1.bf16.msra.mxu0 %v2596
  %3692 = vmatprep.subr.bf16.mxu0 %v2593
  %3693 = vmatpush1.bf16.msra.mxu0 %v2592
  %3694 = vmatprep.subr.bf16.mxu0 %v2589
  %3695 = vmatpush1.bf16.msra.mxu0 %v2588
  %3696 = vmatprep.subr.bf16.mxu0 %v2585
  %3697 = vmatpush1.bf16.msra.mxu0 %v2584
  %3698 = vmatprep.subr.bf16.mxu0 %v2581
  %3699 = vmatpush1.bf16.msra.mxu0 %v2580
  %3700 = vmatprep.subr.bf16.mxu0 %v2577
  %3701 = vmatpush1.bf16.msra.mxu0 %v2576
  %3702 = vmatprep.subr.bf16.mxu0 %v2637
  %3703 = vmatpush2.bf16.msra.mxu0 %v2636
  %3704 = vmatprep.subr.bf16.mxu0 %v2633
  %3705 = vmatpush2.bf16.msra.mxu0 %v2632
  %3706 = vmatprep.subr.bf16.mxu0 %v2629
  %3707 = vmatpush2.bf16.msra.mxu0 %v2628
  %3708 = vmatprep.subr.bf16.mxu0 %v2625
  %3709 = vmatpush2.bf16.msra.mxu0 %v2624
  %3710 = vmatprep.subr.bf16.mxu0 %v2621
  %3711 = vmatpush2.bf16.msra.mxu0 %v2620
  %3712 = vmatprep.subr.bf16.mxu0 %v2617
  %3713 = vmatpush2.bf16.msra.mxu0 %v2616
  %3714 = vmatprep.subr.bf16.mxu0 %v2613
  %3715 = vmatpush2.bf16.msra.mxu0 %v2612
  %3716 = vmatprep.subr.bf16.mxu0 %v2609
  %3717 = vmatpush2.bf16.msra.mxu0 %v2608
  %3718 = vmatprep.mubr.bf16.mxu0 %v689
  %3719 = vmatmul.mubr.bf16.gmra.mxu0 %v688
  %v3720 = vpop.f32.mrf.mxu0
  %v3721 = vadd.f32 %v3678, %v3720
  %v3722 = vpop.f32.mrf.mxu0
  %v3723 = vadd.f32 %v3680, %v3722
  %v3724 = vpop.f32.mrf.mxu0
  %v3725 = vadd.f32 %v3682, %v3724
  %v3726 = vpop.f32.mrf.mxu0
  %v3727 = vadd.f32 %v3684, %v3726
  %3728 = vdwg.mxu0
  %3729 = vmatprep.subr.bf16.mxu0 %v2669
  %3730 = vmatpush1.bf16.msra.mxu0 %v2668
  %3731 = vmatprep.subr.bf16.mxu0 %v2665
  %3732 = vmatpush1.bf16.msra.mxu0 %v2664
  %3733 = vmatprep.subr.bf16.mxu0 %v2661
  %3734 = vmatpush1.bf16.msra.mxu0 %v2660
  %3735 = vmatprep.subr.bf16.mxu0 %v2657
  %3736 = vmatpush1.bf16.msra.mxu0 %v2656
  %3737 = vmatprep.subr.bf16.mxu0 %v2653
  %3738 = vmatpush1.bf16.msra.mxu0 %v2652
  %3739 = vmatprep.subr.bf16.mxu0 %v2649
  %3740 = vmatpush1.bf16.msra.mxu0 %v2648
  %3741 = vmatprep.subr.bf16.mxu0 %v2645
  %3742 = vmatpush1.bf16.msra.mxu0 %v2644
  %3743 = vmatprep.subr.bf16.mxu0 %v2641
  %3744 = vmatpush1.bf16.msra.mxu0 %v2640
  %3745 = vmatprep.subr.bf16.mxu0 %v2701
  %3746 = vmatpush2.bf16.msra.mxu0 %v2700
  %3747 = vmatprep.subr.bf16.mxu0 %v2697
  %3748 = vmatpush2.bf16.msra.mxu0 %v2696
  %3749 = vmatprep.subr.bf16.mxu0 %v2693
  %3750 = vmatpush2.bf16.msra.mxu0 %v2692
  %3751 = vmatprep.subr.bf16.mxu0 %v2689
  %3752 = vmatpush2.bf16.msra.mxu0 %v2688
  %3753 = vmatprep.subr.bf16.mxu0 %v2685
  %3754 = vmatpush2.bf16.msra.mxu0 %v2684
  %3755 = vmatprep.subr.bf16.mxu0 %v2681
  %3756 = vmatpush2.bf16.msra.mxu0 %v2680
  %3757 = vmatprep.subr.bf16.mxu0 %v2677
  %3758 = vmatpush2.bf16.msra.mxu0 %v2676
  %3759 = vmatprep.subr.bf16.mxu0 %v2673
  %3760 = vmatpush2.bf16.msra.mxu0 %v2672
  %3761 = vmatprep.mubr.bf16.mxu0 %v691
  %3762 = vmatmul.mubr.bf16.gmra.mxu0 %v690
  %v3763 = vpop.f32.mrf.mxu0
  %v3764 = vadd.f32 %v3721, %v3763
  %v3765 = vpop.f32.mrf.mxu0
  %v3766 = vadd.f32 %v3723, %v3765
  %v3767 = vpop.f32.mrf.mxu0
  %v3768 = vadd.f32 %v3725, %v3767
  %v3769 = vpop.f32.mrf.mxu0
  %v3770 = vadd.f32 %v3727, %v3769
  %3771 = vdwg.mxu0
  %3772 = vmatprep.subr.bf16.mxu0 %v2733
  %3773 = vmatpush1.bf16.msra.mxu0 %v2732
  %3774 = vmatprep.subr.bf16.mxu0 %v2729
  %3775 = vmatpush1.bf16.msra.mxu0 %v2728
  %3776 = vmatprep.subr.bf16.mxu0 %v2725
  %3777 = vmatpush1.bf16.msra.mxu0 %v2724
  %3778 = vmatprep.subr.bf16.mxu0 %v2721
  %3779 = vmatpush1.bf16.msra.mxu0 %v2720
  %3780 = vmatprep.subr.bf16.mxu0 %v2717
  %3781 = vmatpush1.bf16.msra.mxu0 %v2716
  %3782 = vmatprep.subr.bf16.mxu0 %v2713
  %3783 = vmatpush1.bf16.msra.mxu0 %v2712
  %3784 = vmatprep.subr.bf16.mxu0 %v2709
  %3785 = vmatpush1.bf16.msra.mxu0 %v2708
  %3786 = vmatprep.subr.bf16.mxu0 %v2705
  %3787 = vmatpush1.bf16.msra.mxu0 %v2704
  %3788 = vmatprep.subr.bf16.mxu0 %v2765
  %3789 = vmatpush2.bf16.msra.mxu0 %v2764
  %3790 = vmatprep.subr.bf16.mxu0 %v2761
  %3791 = vmatpush2.bf16.msra.mxu0 %v2760
  %3792 = vmatprep.subr.bf16.mxu0 %v2757
  %3793 = vmatpush2.bf16.msra.mxu0 %v2756
  %3794 = vmatprep.subr.bf16.mxu0 %v2753
  %3795 = vmatpush2.bf16.msra.mxu0 %v2752
  %3796 = vmatprep.subr.bf16.mxu0 %v2749
  %3797 = vmatpush2.bf16.msra.mxu0 %v2748
  %3798 = vmatprep.subr.bf16.mxu0 %v2745
  %3799 = vmatpush2.bf16.msra.mxu0 %v2744
  %3800 = vmatprep.subr.bf16.mxu0 %v2741
  %3801 = vmatpush2.bf16.msra.mxu0 %v2740
  %3802 = vmatprep.subr.bf16.mxu0 %v2737
  %3803 = vmatpush2.bf16.msra.mxu0 %v2736
  %3804 = vmatprep.mubr.bf16.mxu0 %v693
  %3805 = vmatmul.mubr.bf16.gmra.mxu0 %v692
  %v3806 = vpop.f32.mrf.mxu0
  %v3807 = vadd.f32 %v3764, %v3806
  %v3808 = vpop.f32.mrf.mxu0
  %v3809 = vadd.f32 %v3766, %v3808
  %v3810 = vpop.f32.mrf.mxu0
  %v3811 = vadd.f32 %v3768, %v3810
  %v3812 = vpop.f32.mrf.mxu0
  %v3813 = vadd.f32 %v3770, %v3812
  %3814 = vdwg.mxu0
  %3815 = vmatprep.subr.bf16.mxu0 %v2797
  %3816 = vmatpush1.bf16.msra.mxu0 %v2796
  %3817 = vmatprep.subr.bf16.mxu0 %v2793
  %3818 = vmatpush1.bf16.msra.mxu0 %v2792
  %3819 = vmatprep.subr.bf16.mxu0 %v2789
  %3820 = vmatpush1.bf16.msra.mxu0 %v2788
  %3821 = vmatprep.subr.bf16.mxu0 %v2785
  %3822 = vmatpush1.bf16.msra.mxu0 %v2784
  %3823 = vmatprep.subr.bf16.mxu0 %v2781
  %3824 = vmatpush1.bf16.msra.mxu0 %v2780
  %3825 = vmatprep.subr.bf16.mxu0 %v2777
  %3826 = vmatpush1.bf16.msra.mxu0 %v2776
  %3827 = vmatprep.subr.bf16.mxu0 %v2773
  %3828 = vmatpush1.bf16.msra.mxu0 %v2772
  %3829 = vmatprep.subr.bf16.mxu0 %v2769
  %3830 = vmatpush1.bf16.msra.mxu0 %v2768
  %3831 = vmatprep.subr.bf16.mxu0 %v2829
  %3832 = vmatpush2.bf16.msra.mxu0 %v2828
  %3833 = vmatprep.subr.bf16.mxu0 %v2825
  %3834 = vmatpush2.bf16.msra.mxu0 %v2824
  %3835 = vmatprep.subr.bf16.mxu0 %v2821
  %3836 = vmatpush2.bf16.msra.mxu0 %v2820
  %3837 = vmatprep.subr.bf16.mxu0 %v2817
  %3838 = vmatpush2.bf16.msra.mxu0 %v2816
  %3839 = vmatprep.subr.bf16.mxu0 %v2813
  %3840 = vmatpush2.bf16.msra.mxu0 %v2812
  %3841 = vmatprep.subr.bf16.mxu0 %v2809
  %3842 = vmatpush2.bf16.msra.mxu0 %v2808
  %3843 = vmatprep.subr.bf16.mxu0 %v2805
  %3844 = vmatpush2.bf16.msra.mxu0 %v2804
  %3845 = vmatprep.subr.bf16.mxu0 %v2801
  %3846 = vmatpush2.bf16.msra.mxu0 %v2800
  %3847 = vmatprep.mubr.bf16.mxu0 %v695
  %3848 = vmatmul.mubr.bf16.gmra.mxu0 %v694
  %v3849 = vpop.f32.mrf.mxu0
  %v3850 = vadd.f32 %v3807, %v3849
  %v3851 = vpop.f32.mrf.mxu0
  %v3852 = vadd.f32 %v3809, %v3851
  %v3853 = vpop.f32.mrf.mxu0
  %v3854 = vadd.f32 %v3811, %v3853
  %v3855 = vpop.f32.mrf.mxu0
  %v3856 = vadd.f32 %v3813, %v3855
  %3857 = vdwg.mxu0
  %3858 = vmatprep.subr.bf16.mxu0 %v2861
  %3859 = vmatpush1.bf16.msra.mxu0 %v2860
  %3860 = vmatprep.subr.bf16.mxu0 %v2857
  %3861 = vmatpush1.bf16.msra.mxu0 %v2856
  %3862 = vmatprep.subr.bf16.mxu0 %v2853
  %3863 = vmatpush1.bf16.msra.mxu0 %v2852
  %3864 = vmatprep.subr.bf16.mxu0 %v2849
  %3865 = vmatpush1.bf16.msra.mxu0 %v2848
  %3866 = vmatprep.subr.bf16.mxu0 %v2845
  %3867 = vmatpush1.bf16.msra.mxu0 %v2844
  %3868 = vmatprep.subr.bf16.mxu0 %v2841
  %3869 = vmatpush1.bf16.msra.mxu0 %v2840
  %3870 = vmatprep.subr.bf16.mxu0 %v2837
  %3871 = vmatpush1.bf16.msra.mxu0 %v2836
  %3872 = vmatprep.subr.bf16.mxu0 %v2833
  %3873 = vmatpush1.bf16.msra.mxu0 %v2832
  %3874 = vmatprep.subr.bf16.mxu0 %v2893
  %3875 = vmatpush2.bf16.msra.mxu0 %v2892
  %3876 = vmatprep.subr.bf16.mxu0 %v2889
  %3877 = vmatpush2.bf16.msra.mxu0 %v2888
  %3878 = vmatprep.subr.bf16.mxu0 %v2885
  %3879 = vmatpush2.bf16.msra.mxu0 %v2884
  %3880 = vmatprep.subr.bf16.mxu0 %v2881
  %3881 = vmatpush2.bf16.msra.mxu0 %v2880
  %3882 = vmatprep.subr.bf16.mxu0 %v2877
  %3883 = vmatpush2.bf16.msra.mxu0 %v2876
  %3884 = vmatprep.subr.bf16.mxu0 %v2873
  %3885 = vmatpush2.bf16.msra.mxu0 %v2872
  %3886 = vmatprep.subr.bf16.mxu0 %v2869
  %3887 = vmatpush2.bf16.msra.mxu0 %v2868
  %3888 = vmatprep.subr.bf16.mxu0 %v2865
  %3889 = vmatpush2.bf16.msra.mxu0 %v2864
  %3890 = vmatprep.mubr.bf16.mxu0 %v697
  %3891 = vmatmul.mubr.bf16.gmra.mxu0 %v696
  %v3892 = vpop.f32.mrf.mxu0
  %v3893 = vadd.f32 %v3850, %v3892
  %v3894 = vpop.f32.mrf.mxu0
  %v3895 = vadd.f32 %v3852, %v3894
  %v3896 = vpop.f32.mrf.mxu0
  %v3897 = vadd.f32 %v3854, %v3896
  %v3898 = vpop.f32.mrf.mxu0
  %v3899 = vadd.f32 %v3856, %v3898
  %3900 = vdwg.mxu0
  %3901 = vmatprep.subr.bf16.mxu0 %v2925
  %3902 = vmatpush1.bf16.msra.mxu0 %v2924
  %3903 = vmatprep.subr.bf16.mxu0 %v2921
  %3904 = vmatpush1.bf16.msra.mxu0 %v2920
  %3905 = vmatprep.subr.bf16.mxu0 %v2917
  %3906 = vmatpush1.bf16.msra.mxu0 %v2916
  %3907 = vmatprep.subr.bf16.mxu0 %v2913
  %3908 = vmatpush1.bf16.msra.mxu0 %v2912
  %3909 = vmatprep.subr.bf16.mxu0 %v2909
  %3910 = vmatpush1.bf16.msra.mxu0 %v2908
  %3911 = vmatprep.subr.bf16.mxu0 %v2905
  %3912 = vmatpush1.bf16.msra.mxu0 %v2904
  %3913 = vmatprep.subr.bf16.mxu0 %v2901
  %3914 = vmatpush1.bf16.msra.mxu0 %v2900
  %3915 = vmatprep.subr.bf16.mxu0 %v2897
  %3916 = vmatpush1.bf16.msra.mxu0 %v2896
  %3917 = vmatprep.subr.bf16.mxu0 %v2957
  %3918 = vmatpush2.bf16.msra.mxu0 %v2956
  %3919 = vmatprep.subr.bf16.mxu0 %v2953
  %3920 = vmatpush2.bf16.msra.mxu0 %v2952
  %3921 = vmatprep.subr.bf16.mxu0 %v2949
  %3922 = vmatpush2.bf16.msra.mxu0 %v2948
  %3923 = vmatprep.subr.bf16.mxu0 %v2945
  %3924 = vmatpush2.bf16.msra.mxu0 %v2944
  %3925 = vmatprep.subr.bf16.mxu0 %v2941
  %3926 = vmatpush2.bf16.msra.mxu0 %v2940
  %3927 = vmatprep.subr.bf16.mxu0 %v2937
  %3928 = vmatpush2.bf16.msra.mxu0 %v2936
  %3929 = vmatprep.subr.bf16.mxu0 %v2933
  %3930 = vmatpush2.bf16.msra.mxu0 %v2932
  %3931 = vmatprep.subr.bf16.mxu0 %v2929
  %3932 = vmatpush2.bf16.msra.mxu0 %v2928
  %3933 = vmatprep.mubr.bf16.mxu0 %v699
  %3934 = vmatmul.mubr.bf16.gmra.mxu0 %v698
  %v3935 = vpop.f32.mrf.mxu0
  %v3936 = vadd.f32 %v3893, %v3935
  %v3937 = vpop.f32.mrf.mxu0
  %v3938 = vadd.f32 %v3895, %v3937
  %v3939 = vpop.f32.mrf.mxu0
  %v3940 = vadd.f32 %v3897, %v3939
  %v3941 = vpop.f32.mrf.mxu0
  %v3942 = vadd.f32 %v3899, %v3941
  %3943 = vdwg.mxu0
  %3944 = vmatprep.subr.bf16.mxu0 %v2989
  %3945 = vmatpush1.bf16.msra.mxu0 %v2988
  %3946 = vmatprep.subr.bf16.mxu0 %v2985
  %3947 = vmatpush1.bf16.msra.mxu0 %v2984
  %3948 = vmatprep.subr.bf16.mxu0 %v2981
  %3949 = vmatpush1.bf16.msra.mxu0 %v2980
  %3950 = vmatprep.subr.bf16.mxu0 %v2977
  %3951 = vmatpush1.bf16.msra.mxu0 %v2976
  %3952 = vmatprep.subr.bf16.mxu0 %v2973
  %3953 = vmatpush1.bf16.msra.mxu0 %v2972
  %3954 = vmatprep.subr.bf16.mxu0 %v2969
  %3955 = vmatpush1.bf16.msra.mxu0 %v2968
  %3956 = vmatprep.subr.bf16.mxu0 %v2965
  %3957 = vmatpush1.bf16.msra.mxu0 %v2964
  %3958 = vmatprep.subr.bf16.mxu0 %v2961
  %3959 = vmatpush1.bf16.msra.mxu0 %v2960
  %3960 = vmatprep.subr.bf16.mxu0 %v3021
  %3961 = vmatpush2.bf16.msra.mxu0 %v3020
  %3962 = vmatprep.subr.bf16.mxu0 %v3017
  %3963 = vmatpush2.bf16.msra.mxu0 %v3016
  %3964 = vmatprep.subr.bf16.mxu0 %v3013
  %3965 = vmatpush2.bf16.msra.mxu0 %v3012
  %3966 = vmatprep.subr.bf16.mxu0 %v3009
  %3967 = vmatpush2.bf16.msra.mxu0 %v3008
  %3968 = vmatprep.subr.bf16.mxu0 %v3005
  %3969 = vmatpush2.bf16.msra.mxu0 %v3004
  %3970 = vmatprep.subr.bf16.mxu0 %v3001
  %3971 = vmatpush2.bf16.msra.mxu0 %v3000
  %3972 = vmatprep.subr.bf16.mxu0 %v2997
  %3973 = vmatpush2.bf16.msra.mxu0 %v2996
  %3974 = vmatprep.subr.bf16.mxu0 %v2993
  %3975 = vmatpush2.bf16.msra.mxu0 %v2992
  %3976 = vmatprep.mubr.bf16.mxu0 %v701
  %3977 = vmatmul.mubr.bf16.gmra.mxu0 %v700
  %v3978 = vpop.f32.mrf.mxu0
  %v3979 = vadd.f32 %v3936, %v3978
  %v3980 = vpop.f32.mrf.mxu0
  %v3981 = vadd.f32 %v3938, %v3980
  %v3982 = vpop.f32.mrf.mxu0
  %v3983 = vadd.f32 %v3940, %v3982
  %v3984 = vpop.f32.mrf.mxu0
  %v3985 = vadd.f32 %v3942, %v3984
  %3986 = vdwg.mxu0
  %3987 = vmatprep.subr.bf16.mxu0 %v2479
  %3988 = vmatpush1.bf16.msra.mxu0 %v2478
  %3989 = vmatprep.subr.bf16.mxu0 %v2475
  %3990 = vmatpush1.bf16.msra.mxu0 %v2474
  %3991 = vmatprep.subr.bf16.mxu0 %v2471
  %3992 = vmatpush1.bf16.msra.mxu0 %v2470
  %3993 = vmatprep.subr.bf16.mxu0 %v2467
  %3994 = vmatpush1.bf16.msra.mxu0 %v2466
  %3995 = vmatprep.subr.bf16.mxu0 %v2463
  %3996 = vmatpush1.bf16.msra.mxu0 %v2462
  %3997 = vmatprep.subr.bf16.mxu0 %v2459
  %3998 = vmatpush1.bf16.msra.mxu0 %v2458
  %3999 = vmatprep.subr.bf16.mxu0 %v2455
  %4000 = vmatpush1.bf16.msra.mxu0 %v2454
  %4001 = vmatprep.subr.bf16.mxu0 %v2451
  %4002 = vmatpush1.bf16.msra.mxu0 %v2450
  %4003 = vmatprep.subr.bf16.mxu0 %v2511
  %4004 = vmatpush2.bf16.msra.mxu0 %v2510
  %4005 = vmatprep.subr.bf16.mxu0 %v2507
  %4006 = vmatpush2.bf16.msra.mxu0 %v2506
  %4007 = vmatprep.subr.bf16.mxu0 %v2503
  %4008 = vmatpush2.bf16.msra.mxu0 %v2502
  %4009 = vmatprep.subr.bf16.mxu0 %v2499
  %4010 = vmatpush2.bf16.msra.mxu0 %v2498
  %4011 = vmatprep.subr.bf16.mxu0 %v2495
  %4012 = vmatpush2.bf16.msra.mxu0 %v2494
  %4013 = vmatprep.subr.bf16.mxu0 %v2491
  %4014 = vmatpush2.bf16.msra.mxu0 %v2490
  %4015 = vmatprep.subr.bf16.mxu0 %v2487
  %4016 = vmatpush2.bf16.msra.mxu0 %v2486
  %4017 = vmatprep.subr.bf16.mxu0 %v2483
  %4018 = vmatpush2.bf16.msra.mxu0 %v2482
  %4019 = vmatprep.mubr.bf16.mxu0 %v685
  %4020 = vmatmul.mubr.bf16.gmra.mxu0 %v684
  %v4021 = vpop.f32.mrf.mxu0
  %v4022 = vadd.f32 %v621, %v4021
  %v4023 = vpop.f32.mrf.mxu0
  %v4024 = vadd.f32 %v625, %v4023
  %v4025 = vpop.f32.mrf.mxu0
  %v4026 = vadd.f32 %v621, %v4025
  %v4027 = vpop.f32.mrf.mxu0
  %v4028 = vadd.f32 %v625, %v4027
  %4029 = vdwg.mxu0
  %4030 = vmatprep.subr.bf16.mxu0 %v2543
  %4031 = vmatpush1.bf16.msra.mxu0 %v2542
  %4032 = vmatprep.subr.bf16.mxu0 %v2539
  %4033 = vmatpush1.bf16.msra.mxu0 %v2538
  %4034 = vmatprep.subr.bf16.mxu0 %v2535
  %4035 = vmatpush1.bf16.msra.mxu0 %v2534
  %4036 = vmatprep.subr.bf16.mxu0 %v2531
  %4037 = vmatpush1.bf16.msra.mxu0 %v2530
  %4038 = vmatprep.subr.bf16.mxu0 %v2527
  %4039 = vmatpush1.bf16.msra.mxu0 %v2526
  %4040 = vmatprep.subr.bf16.mxu0 %v2523
  %4041 = vmatpush1.bf16.msra.mxu0 %v2522
  %4042 = vmatprep.subr.bf16.mxu0 %v2519
  %4043 = vmatpush1.bf16.msra.mxu0 %v2518
  %4044 = vmatprep.subr.bf16.mxu0 %v2515
  %4045 = vmatpush1.bf16.msra.mxu0 %v2514
  %4046 = vmatprep.subr.bf16.mxu0 %v2575
  %4047 = vmatpush2.bf16.msra.mxu0 %v2574
  %4048 = vmatprep.subr.bf16.mxu0 %v2571
  %4049 = vmatpush2.bf16.msra.mxu0 %v2570
  %4050 = vmatprep.subr.bf16.mxu0 %v2567
  %4051 = vmatpush2.bf16.msra.mxu0 %v2566
  %4052 = vmatprep.subr.bf16.mxu0 %v2563
  %4053 = vmatpush2.bf16.msra.mxu0 %v2562
  %4054 = vmatprep.subr.bf16.mxu0 %v2559
  %4055 = vmatpush2.bf16.msra.mxu0 %v2558
  %4056 = vmatprep.subr.bf16.mxu0 %v2555
  %4057 = vmatpush2.bf16.msra.mxu0 %v2554
  %4058 = vmatprep.subr.bf16.mxu0 %v2551
  %4059 = vmatpush2.bf16.msra.mxu0 %v2550
  %4060 = vmatprep.subr.bf16.mxu0 %v2547
  %4061 = vmatpush2.bf16.msra.mxu0 %v2546
  %4062 = vmatprep.mubr.bf16.mxu0 %v687
  %4063 = vmatmul.mubr.bf16.gmra.mxu0 %v686
  %v4064 = vpop.f32.mrf.mxu0
  %v4065 = vadd.f32 %v4022, %v4064
  %v4066 = vpop.f32.mrf.mxu0
  %v4067 = vadd.f32 %v4024, %v4066
  %v4068 = vpop.f32.mrf.mxu0
  %v4069 = vadd.f32 %v4026, %v4068
  %v4070 = vpop.f32.mrf.mxu0
  %v4071 = vadd.f32 %v4028, %v4070
  %4072 = vdwg.mxu0
  %4073 = vmatprep.subr.bf16.mxu0 %v2607
  %4074 = vmatpush1.bf16.msra.mxu0 %v2606
  %4075 = vmatprep.subr.bf16.mxu0 %v2603
  %4076 = vmatpush1.bf16.msra.mxu0 %v2602
  %4077 = vmatprep.subr.bf16.mxu0 %v2599
  %4078 = vmatpush1.bf16.msra.mxu0 %v2598
  %4079 = vmatprep.subr.bf16.mxu0 %v2595
  %4080 = vmatpush1.bf16.msra.mxu0 %v2594
  %4081 = vmatprep.subr.bf16.mxu0 %v2591
  %4082 = vmatpush1.bf16.msra.mxu0 %v2590
  %4083 = vmatprep.subr.bf16.mxu0 %v2587
  %4084 = vmatpush1.bf16.msra.mxu0 %v2586
  %4085 = vmatprep.subr.bf16.mxu0 %v2583
  %4086 = vmatpush1.bf16.msra.mxu0 %v2582
  %4087 = vmatprep.subr.bf16.mxu0 %v2579
  %4088 = vmatpush1.bf16.msra.mxu0 %v2578
  %4089 = vmatprep.subr.bf16.mxu0 %v2639
  %4090 = vmatpush2.bf16.msra.mxu0 %v2638
  %4091 = vmatprep.subr.bf16.mxu0 %v2635
  %4092 = vmatpush2.bf16.msra.mxu0 %v2634
  %4093 = vmatprep.subr.bf16.mxu0 %v2631
  %4094 = vmatpush2.bf16.msra.mxu0 %v2630
  %4095 = vmatprep.subr.bf16.mxu0 %v2627
  %4096 = vmatpush2.bf16.msra.mxu0 %v2626
  %4097 = vmatprep.subr.bf16.mxu0 %v2623
  %4098 = vmatpush2.bf16.msra.mxu0 %v2622
  %4099 = vmatprep.subr.bf16.mxu0 %v2619
  %4100 = vmatpush2.bf16.msra.mxu0 %v2618
  %4101 = vmatprep.subr.bf16.mxu0 %v2615
  %4102 = vmatpush2.bf16.msra.mxu0 %v2614
  %4103 = vmatprep.subr.bf16.mxu0 %v2611
  %4104 = vmatpush2.bf16.msra.mxu0 %v2610
  %4105 = vmatprep.mubr.bf16.mxu0 %v689
  %4106 = vmatmul.mubr.bf16.gmra.mxu0 %v688
  %v4107 = vpop.f32.mrf.mxu0
  %v4108 = vadd.f32 %v4065, %v4107
  %v4109 = vpop.f32.mrf.mxu0
  %v4110 = vadd.f32 %v4067, %v4109
  %v4111 = vpop.f32.mrf.mxu0
  %v4112 = vadd.f32 %v4069, %v4111
  %v4113 = vpop.f32.mrf.mxu0
  %v4114 = vadd.f32 %v4071, %v4113
  %4115 = vdwg.mxu0
  %4116 = vmatprep.subr.bf16.mxu0 %v2671
  %4117 = vmatpush1.bf16.msra.mxu0 %v2670
  %4118 = vmatprep.subr.bf16.mxu0 %v2667
  %4119 = vmatpush1.bf16.msra.mxu0 %v2666
  %4120 = vmatprep.subr.bf16.mxu0 %v2663
  %4121 = vmatpush1.bf16.msra.mxu0 %v2662
  %4122 = vmatprep.subr.bf16.mxu0 %v2659
  %4123 = vmatpush1.bf16.msra.mxu0 %v2658
  %4124 = vmatprep.subr.bf16.mxu0 %v2655
  %4125 = vmatpush1.bf16.msra.mxu0 %v2654
  %4126 = vmatprep.subr.bf16.mxu0 %v2651
  %4127 = vmatpush1.bf16.msra.mxu0 %v2650
  %4128 = vmatprep.subr.bf16.mxu0 %v2647
  %4129 = vmatpush1.bf16.msra.mxu0 %v2646
  %4130 = vmatprep.subr.bf16.mxu0 %v2643
  %4131 = vmatpush1.bf16.msra.mxu0 %v2642
  %4132 = vmatprep.subr.bf16.mxu0 %v2703
  %4133 = vmatpush2.bf16.msra.mxu0 %v2702
  %4134 = vmatprep.subr.bf16.mxu0 %v2699
  %4135 = vmatpush2.bf16.msra.mxu0 %v2698
  %4136 = vmatprep.subr.bf16.mxu0 %v2695
  %4137 = vmatpush2.bf16.msra.mxu0 %v2694
  %4138 = vmatprep.subr.bf16.mxu0 %v2691
  %4139 = vmatpush2.bf16.msra.mxu0 %v2690
  %4140 = vmatprep.subr.bf16.mxu0 %v2687
  %4141 = vmatpush2.bf16.msra.mxu0 %v2686
  %4142 = vmatprep.subr.bf16.mxu0 %v2683
  %4143 = vmatpush2.bf16.msra.mxu0 %v2682
  %4144 = vmatprep.subr.bf16.mxu0 %v2679
  %4145 = vmatpush2.bf16.msra.mxu0 %v2678
  %4146 = vmatprep.subr.bf16.mxu0 %v2675
  %4147 = vmatpush2.bf16.msra.mxu0 %v2674
  %4148 = vmatprep.mubr.bf16.mxu0 %v691
  %4149 = vmatmul.mubr.bf16.gmra.mxu0 %v690
  %v4150 = vpop.f32.mrf.mxu0
  %v4151 = vadd.f32 %v4108, %v4150
  %v4152 = vpop.f32.mrf.mxu0
  %v4153 = vadd.f32 %v4110, %v4152
  %v4154 = vpop.f32.mrf.mxu0
  %v4155 = vadd.f32 %v4112, %v4154
  %v4156 = vpop.f32.mrf.mxu0
  %v4157 = vadd.f32 %v4114, %v4156
  %4158 = vdwg.mxu0
  %4159 = vmatprep.subr.bf16.mxu0 %v2735
  %4160 = vmatpush1.bf16.msra.mxu0 %v2734
  %4161 = vmatprep.subr.bf16.mxu0 %v2731
  %4162 = vmatpush1.bf16.msra.mxu0 %v2730
  %4163 = vmatprep.subr.bf16.mxu0 %v2727
  %4164 = vmatpush1.bf16.msra.mxu0 %v2726
  %4165 = vmatprep.subr.bf16.mxu0 %v2723
  %4166 = vmatpush1.bf16.msra.mxu0 %v2722
  %4167 = vmatprep.subr.bf16.mxu0 %v2719
  %4168 = vmatpush1.bf16.msra.mxu0 %v2718
  %4169 = vmatprep.subr.bf16.mxu0 %v2715
  %4170 = vmatpush1.bf16.msra.mxu0 %v2714
  %4171 = vmatprep.subr.bf16.mxu0 %v2711
  %4172 = vmatpush1.bf16.msra.mxu0 %v2710
  %4173 = vmatprep.subr.bf16.mxu0 %v2707
  %4174 = vmatpush1.bf16.msra.mxu0 %v2706
  %4175 = vmatprep.subr.bf16.mxu0 %v2767
  %4176 = vmatpush2.bf16.msra.mxu0 %v2766
  %4177 = vmatprep.subr.bf16.mxu0 %v2763
  %4178 = vmatpush2.bf16.msra.mxu0 %v2762
  %4179 = vmatprep.subr.bf16.mxu0 %v2759
  %4180 = vmatpush2.bf16.msra.mxu0 %v2758
  %4181 = vmatprep.subr.bf16.mxu0 %v2755
  %4182 = vmatpush2.bf16.msra.mxu0 %v2754
  %4183 = vmatprep.subr.bf16.mxu0 %v2751
  %4184 = vmatpush2.bf16.msra.mxu0 %v2750
  %4185 = vmatprep.subr.bf16.mxu0 %v2747
  %4186 = vmatpush2.bf16.msra.mxu0 %v2746
  %4187 = vmatprep.subr.bf16.mxu0 %v2743
  %4188 = vmatpush2.bf16.msra.mxu0 %v2742
  %4189 = vmatprep.subr.bf16.mxu0 %v2739
  %4190 = vmatpush2.bf16.msra.mxu0 %v2738
  %4191 = vmatprep.mubr.bf16.mxu0 %v693
  %4192 = vmatmul.mubr.bf16.gmra.mxu0 %v692
  %v4193 = vpop.f32.mrf.mxu0
  %v4194 = vadd.f32 %v4151, %v4193
  %v4195 = vpop.f32.mrf.mxu0
  %v4196 = vadd.f32 %v4153, %v4195
  %v4197 = vpop.f32.mrf.mxu0
  %v4198 = vadd.f32 %v4155, %v4197
  %v4199 = vpop.f32.mrf.mxu0
  %v4200 = vadd.f32 %v4157, %v4199
  %4201 = vdwg.mxu0
  %4202 = vmatprep.subr.bf16.mxu0 %v2799
  %4203 = vmatpush1.bf16.msra.mxu0 %v2798
  %4204 = vmatprep.subr.bf16.mxu0 %v2795
  %4205 = vmatpush1.bf16.msra.mxu0 %v2794
  %4206 = vmatprep.subr.bf16.mxu0 %v2791
  %4207 = vmatpush1.bf16.msra.mxu0 %v2790
  %4208 = vmatprep.subr.bf16.mxu0 %v2787
  %4209 = vmatpush1.bf16.msra.mxu0 %v2786
  %4210 = vmatprep.subr.bf16.mxu0 %v2783
  %4211 = vmatpush1.bf16.msra.mxu0 %v2782
  %4212 = vmatprep.subr.bf16.mxu0 %v2779
  %4213 = vmatpush1.bf16.msra.mxu0 %v2778
  %4214 = vmatprep.subr.bf16.mxu0 %v2775
  %4215 = vmatpush1.bf16.msra.mxu0 %v2774
  %4216 = vmatprep.subr.bf16.mxu0 %v2771
  %4217 = vmatpush1.bf16.msra.mxu0 %v2770
  %4218 = vmatprep.subr.bf16.mxu0 %v2831
  %4219 = vmatpush2.bf16.msra.mxu0 %v2830
  %4220 = vmatprep.subr.bf16.mxu0 %v2827
  %4221 = vmatpush2.bf16.msra.mxu0 %v2826
  %4222 = vmatprep.subr.bf16.mxu0 %v2823
  %4223 = vmatpush2.bf16.msra.mxu0 %v2822
  %4224 = vmatprep.subr.bf16.mxu0 %v2819
  %4225 = vmatpush2.bf16.msra.mxu0 %v2818
  %4226 = vmatprep.subr.bf16.mxu0 %v2815
  %4227 = vmatpush2.bf16.msra.mxu0 %v2814
  %4228 = vmatprep.subr.bf16.mxu0 %v2811
  %4229 = vmatpush2.bf16.msra.mxu0 %v2810
  %4230 = vmatprep.subr.bf16.mxu0 %v2807
  %4231 = vmatpush2.bf16.msra.mxu0 %v2806
  %4232 = vmatprep.subr.bf16.mxu0 %v2803
  %4233 = vmatpush2.bf16.msra.mxu0 %v2802
  %4234 = vmatprep.mubr.bf16.mxu0 %v695
  %4235 = vmatmul.mubr.bf16.gmra.mxu0 %v694
  %v4236 = vpop.f32.mrf.mxu0
  %v4237 = vadd.f32 %v4194, %v4236
  %v4238 = vpop.f32.mrf.mxu0
  %v4239 = vadd.f32 %v4196, %v4238
  %v4240 = vpop.f32.mrf.mxu0
  %v4241 = vadd.f32 %v4198, %v4240
  %v4242 = vpop.f32.mrf.mxu0
  %v4243 = vadd.f32 %v4200, %v4242
  %4244 = vdwg.mxu0
  %4245 = vmatprep.subr.bf16.mxu0 %v2863
  %4246 = vmatpush1.bf16.msra.mxu0 %v2862
  %4247 = vmatprep.subr.bf16.mxu0 %v2859
  %4248 = vmatpush1.bf16.msra.mxu0 %v2858
  %4249 = vmatprep.subr.bf16.mxu0 %v2855
  %4250 = vmatpush1.bf16.msra.mxu0 %v2854
  %4251 = vmatprep.subr.bf16.mxu0 %v2851
  %4252 = vmatpush1.bf16.msra.mxu0 %v2850
  %4253 = vmatprep.subr.bf16.mxu0 %v2847
  %4254 = vmatpush1.bf16.msra.mxu0 %v2846
  %4255 = vmatprep.subr.bf16.mxu0 %v2843
  %4256 = vmatpush1.bf16.msra.mxu0 %v2842
  %4257 = vmatprep.subr.bf16.mxu0 %v2839
  %4258 = vmatpush1.bf16.msra.mxu0 %v2838
  %4259 = vmatprep.subr.bf16.mxu0 %v2835
  %4260 = vmatpush1.bf16.msra.mxu0 %v2834
  %4261 = vmatprep.subr.bf16.mxu0 %v2895
  %4262 = vmatpush2.bf16.msra.mxu0 %v2894
  %4263 = vmatprep.subr.bf16.mxu0 %v2891
  %4264 = vmatpush2.bf16.msra.mxu0 %v2890
  %4265 = vmatprep.subr.bf16.mxu0 %v2887
  %4266 = vmatpush2.bf16.msra.mxu0 %v2886
  %4267 = vmatprep.subr.bf16.mxu0 %v2883
  %4268 = vmatpush2.bf16.msra.mxu0 %v2882
  %4269 = vmatprep.subr.bf16.mxu0 %v2879
  %4270 = vmatpush2.bf16.msra.mxu0 %v2878
  %4271 = vmatprep.subr.bf16.mxu0 %v2875
  %4272 = vmatpush2.bf16.msra.mxu0 %v2874
  %4273 = vmatprep.subr.bf16.mxu0 %v2871
  %4274 = vmatpush2.bf16.msra.mxu0 %v2870
  %4275 = vmatprep.subr.bf16.mxu0 %v2867
  %4276 = vmatpush2.bf16.msra.mxu0 %v2866
  %4277 = vmatprep.mubr.bf16.mxu0 %v697
  %4278 = vmatmul.mubr.bf16.gmra.mxu0 %v696
  %v4279 = vpop.f32.mrf.mxu0
  %v4280 = vadd.f32 %v4237, %v4279
  %v4281 = vpop.f32.mrf.mxu0
  %v4282 = vadd.f32 %v4239, %v4281
  %v4283 = vpop.f32.mrf.mxu0
  %v4284 = vadd.f32 %v4241, %v4283
  %v4285 = vpop.f32.mrf.mxu0
  %v4286 = vadd.f32 %v4243, %v4285
  %4287 = vdwg.mxu0
  %4288 = vmatprep.subr.bf16.mxu0 %v2927
  %4289 = vmatpush1.bf16.msra.mxu0 %v2926
  %4290 = vmatprep.subr.bf16.mxu0 %v2923
  %4291 = vmatpush1.bf16.msra.mxu0 %v2922
  %4292 = vmatprep.subr.bf16.mxu0 %v2919
  %4293 = vmatpush1.bf16.msra.mxu0 %v2918
  %4294 = vmatprep.subr.bf16.mxu0 %v2915
  %4295 = vmatpush1.bf16.msra.mxu0 %v2914
  %4296 = vmatprep.subr.bf16.mxu0 %v2911
  %4297 = vmatpush1.bf16.msra.mxu0 %v2910
  %4298 = vmatprep.subr.bf16.mxu0 %v2907
  %4299 = vmatpush1.bf16.msra.mxu0 %v2906
  %4300 = vmatprep.subr.bf16.mxu0 %v2903
  %4301 = vmatpush1.bf16.msra.mxu0 %v2902
  %4302 = vmatprep.subr.bf16.mxu0 %v2899
  %4303 = vmatpush1.bf16.msra.mxu0 %v2898
  %4304 = vmatprep.subr.bf16.mxu0 %v2959
  %4305 = vmatpush2.bf16.msra.mxu0 %v2958
  %4306 = vmatprep.subr.bf16.mxu0 %v2955
  %4307 = vmatpush2.bf16.msra.mxu0 %v2954
  %4308 = vmatprep.subr.bf16.mxu0 %v2951
  %4309 = vmatpush2.bf16.msra.mxu0 %v2950
  %4310 = vmatprep.subr.bf16.mxu0 %v2947
  %4311 = vmatpush2.bf16.msra.mxu0 %v2946
  %4312 = vmatprep.subr.bf16.mxu0 %v2943
  %4313 = vmatpush2.bf16.msra.mxu0 %v2942
  %4314 = vmatprep.subr.bf16.mxu0 %v2939
  %4315 = vmatpush2.bf16.msra.mxu0 %v2938
  %4316 = vmatprep.subr.bf16.mxu0 %v2935
  %4317 = vmatpush2.bf16.msra.mxu0 %v2934
  %4318 = vmatprep.subr.bf16.mxu0 %v2931
  %4319 = vmatpush2.bf16.msra.mxu0 %v2930
  %4320 = vmatprep.mubr.bf16.mxu0 %v699
  %4321 = vmatmul.mubr.bf16.gmra.mxu0 %v698
  %v4322 = vpop.f32.mrf.mxu0
  %v4323 = vadd.f32 %v4280, %v4322
  %v4324 = vpop.f32.mrf.mxu0
  %v4325 = vadd.f32 %v4282, %v4324
  %v4326 = vpop.f32.mrf.mxu0
  %v4327 = vadd.f32 %v4284, %v4326
  %v4328 = vpop.f32.mrf.mxu0
  %v4329 = vadd.f32 %v4286, %v4328
  %4330 = vdwg.mxu0
  %4331 = vmatprep.subr.bf16.mxu0 %v2991
  %4332 = vmatpush1.bf16.msra.mxu0 %v2990
  %4333 = vmatprep.subr.bf16.mxu0 %v2987
  %4334 = vmatpush1.bf16.msra.mxu0 %v2986
  %4335 = vmatprep.subr.bf16.mxu0 %v2983
  %4336 = vmatpush1.bf16.msra.mxu0 %v2982
  %4337 = vmatprep.subr.bf16.mxu0 %v2979
  %4338 = vmatpush1.bf16.msra.mxu0 %v2978
  %4339 = vmatprep.subr.bf16.mxu0 %v2975
  %4340 = vmatpush1.bf16.msra.mxu0 %v2974
  %4341 = vmatprep.subr.bf16.mxu0 %v2971
  %4342 = vmatpush1.bf16.msra.mxu0 %v2970
  %4343 = vmatprep.subr.bf16.mxu0 %v2967
  %4344 = vmatpush1.bf16.msra.mxu0 %v2966
  %4345 = vmatprep.subr.bf16.mxu0 %v2963
  %4346 = vmatpush1.bf16.msra.mxu0 %v2962
  %4347 = vmatprep.subr.bf16.mxu0 %v3023
  %4348 = vmatpush2.bf16.msra.mxu0 %v3022
  %4349 = vmatprep.subr.bf16.mxu0 %v3019
  %4350 = vmatpush2.bf16.msra.mxu0 %v3018
  %4351 = vmatprep.subr.bf16.mxu0 %v3015
  %4352 = vmatpush2.bf16.msra.mxu0 %v3014
  %4353 = vmatprep.subr.bf16.mxu0 %v3011
  %4354 = vmatpush2.bf16.msra.mxu0 %v3010
  %4355 = vmatprep.subr.bf16.mxu0 %v3007
  %4356 = vmatpush2.bf16.msra.mxu0 %v3006
  %4357 = vmatprep.subr.bf16.mxu0 %v3003
  %4358 = vmatpush2.bf16.msra.mxu0 %v3002
  %4359 = vmatprep.subr.bf16.mxu0 %v2999
  %4360 = vmatpush2.bf16.msra.mxu0 %v2998
  %4361 = vmatprep.subr.bf16.mxu0 %v2995
  %4362 = vmatpush2.bf16.msra.mxu0 %v2994
  %4363 = vmatprep.mubr.bf16.mxu0 %v701
  %4364 = vmatmul.mubr.bf16.gmra.mxu0 %v700
  %v4365 = vpop.f32.mrf.mxu0
  %v4366 = vadd.f32 %v4323, %v4365
  %v4367 = vpop.f32.mrf.mxu0
  %v4368 = vadd.f32 %v4325, %v4367
  %v4369 = vpop.f32.mrf.mxu0
  %v4370 = vadd.f32 %v4327, %v4369
  %v4371 = vpop.f32.mrf.mxu0
  %v4372 = vadd.f32 %v4329, %v4371
  %4373 = vdwg.mxu0
  %v4374 = vmax.f32 %v3979, 0.0
  %v4375 = vmax.f32 %v3981, 0.0
  %v4376 = vmax.f32 %v4366, 0.0
  %v4377 = vmax.f32 %v4368, 0.0
  %v4378 = vmax.f32 %v3983, 0.0
  %v4379 = vmax.f32 %v3985, 0.0
  %v4380 = vmax.f32 %v4370, 0.0
  %v4381 = vmax.f32 %v4372, 0.0
  %4382 = vst [vmem:[%s3] sm:$0xff] %v4374
  %4383 = vst [vmem:[%s3 + $0x8] sm:$0xff] %v4375
  %4384 = vst [vmem:[%s3 + $0x10] sm:$0xff] %v4376
  %4385 = vst [vmem:[%s3 + $0x18] sm:$0xff] %v4377
  %4386 = vst [vmem:[%s3 + $0x20] sm:$0xff] %v4378
  %4387 = vst [vmem:[%s3 + $0x28] sm:$0xff] %v4379
  %4388 = vst [vmem:[%s3 + $0x30] sm:$0xff] %v4380
  %4389 = vst [vmem:[%s3 + $0x38] sm:$0xff] %v4381
  // Predicated region
  $region14: #{point_correspondence_forward.12} parent=0 // pred_check
    _
  $region15: #{point_correspondence_forward.12} parent=0 // pred_check_branch
    %4391 = sbr.rel (0) target = $region17
  $region16: #{point_correspondence_forward.12} parent=0 // pred_region
    _
  $region17: #{point_correspondence_forward.12} parent=0 // pred_fallthru
    _
  // Predicated region
  $region18: #{point_correspondence_forward.12} parent=0 // pred_check
    _
  $region19: #{point_correspondence_forward.12} parent=0 // pred_check_branch
    %4393 = sbr.rel (0) target = $region21
  $region20: #{point_correspondence_forward.12} parent=0 // pred_region
    _
  $region21: #{point_correspondence_forward.12} parent=0 // pred_fallthru
    _

// kernel: point_correspondence_forward.14
$region0: #{point_correspondence_forward.14}
  #allocation0 [shape = 'u32[]', space=smem, size = 0x4, offset = 0x4, fixed_abs, tag = 'smem constant byte address 0x4 - core index']
  #allocation1 [shape = 'u32[144,128]{1,0:T(1,128)}', space=vmem, size = 0x12000, scoped, tag = 'internal scratch']
  %s0 = inlined_call_operand.vmem [shape: bf16[256,128], index: 0, kind: input, shape index: {}]
  %s1 = inlined_call_operand.vmem [shape: bf16[128,256], index: 1, kind: input, shape index: {}]
  %s2 = inlined_call_operand.vmem [shape: f32[1,256], index: 2, kind: input, shape index: {}]
  %s3 = inlined_call_operand.vmem [shape: f32[256,256], index: 3, kind: output, shape index: {}]
  %s4 = sld [smem:[#allocation0]]
  $region22: #{point_correspondence_forward.14} parent=0
    _
  %s6 = ssub.s32 1, %s4
  %s7 = scalar_select 0, %s6, %s4
  // Predicated region
  $region2: #{point_correspondence_forward.14} parent=0 // pred_check
    _
  $region3: #{point_correspondence_forward.14} parent=0 // pred_check_branch
    %9 = sbr.rel (0) target = $region5
  $region4: #{point_correspondence_forward.14} parent=0 // pred_region
    _
  $region5: #{point_correspondence_forward.14} parent=0 // pred_fallthru
    _
  // Predicated region
  $region6: #{point_correspondence_forward.14} parent=0 // pred_check
    _
  $region7: #{point_correspondence_forward.14} parent=0 // pred_check_branch
    %11 = sbr.rel (0) target = $region9
  $region8: #{point_correspondence_forward.14} parent=0 // pred_region
    _
  $region9: #{point_correspondence_forward.14} parent=0 // pred_fallthru
    _
  // Predicated region
  $region10: #{point_correspondence_forward.14} parent=0 // pred_check
    _
  $region11: #{point_correspondence_forward.14} parent=0 // pred_check_branch
    %13 = sbr.rel (0) target = $region13
  $region12: #{point_correspondence_forward.14} parent=0 // pred_region
    _
  $region13: #{point_correspondence_forward.14} parent=0 // pred_fallthru
    _
  %v15 = vld [vmem:[%s0] sm:$0xf]
  %v16 = vld [vmem:[%s0 + $0x4] sm:$0xf]
  %v17 = vld [vmem:[%s0 + $0x8] sm:$0xf]
  %v18 = vld [vmem:[%s0 + $0xc] sm:$0xf]
  %v19 = vld [vmem:[%s0 + $0x10] sm:$0xf]
  %v20 = vld [vmem:[%s0 + $0x14] sm:$0xf]
  %v21 = vld [vmem:[%s0 + $0x18] sm:$0xf]
  %v22 = vld [vmem:[%s0 + $0x1c] sm:$0xf]
  %v23 = vld [vmem:[%s0 + $0x20] sm:$0xf]
  %v24 = vld [vmem:[%s0 + $0x24] sm:$0xf]
  %v25 = vld [vmem:[%s0 + $0x28] sm:$0xf]
  %v26 = vld [vmem:[%s0 + $0x2c] sm:$0xf]
  %v27 = vld [vmem:[%s0 + $0x30] sm:$0xf]
  %v28 = vld [vmem:[%s0 + $0x34] sm:$0xf]
  %v29 = vld [vmem:[%s0 + $0x38] sm:$0xf]
  %v30 = vld [vmem:[%s0 + $0x3c] sm:$0xf]
  %v31 = vld [vmem:[%s0 + $0x40] sm:$0xf]
  %v32 = vld [vmem:[%s0 + $0x44] sm:$0xf]
  %v33 = vld [vmem:[%s0 + $0x48] sm:$0xf]
  %v34 = vld [vmem:[%s0 + $0x4c] sm:$0xf]
  %v35 = vld [vmem:[%s0 + $0x50] sm:$0xf]
  %v36 = vld [vmem:[%s0 + $0x54] sm:$0xf]
  %v37 = vld [vmem:[%s0 + $0x58] sm:$0xf]
  %v38 = vld [vmem:[%s0 + $0x5c] sm:$0xf]
  %v39 = vld [vmem:[%s0 + $0x60] sm:$0xf]
  %v40 = vld [vmem:[%s0 + $0x64] sm:$0xf]
  %v41 = vld [vmem:[%s0 + $0x68] sm:$0xf]
  %v42 = vld [vmem:[%s0 + $0x6c] sm:$0xf]
  %v43 = vld [vmem:[%s0 + $0x70] sm:$0xf]
  %v44 = vld [vmem:[%s0 + $0x74] sm:$0xf]
  %v45 = vld [vmem:[%s0 + $0x78] sm:$0xf]
  %v46 = vld [vmem:[%s0 + $0x7c] sm:$0xf]
  %v47 = vld [vmem:[%s1] sm:$0xff]
  %v48 = vld [vmem:[%s1 + $0x8] sm:$0xff]
  %v49 = vld [vmem:[%s1 + $0x10] sm:$0xff]
  %v50 = vld [vmem:[%s1 + $0x18] sm:$0xff]
  %v51 = vld [vmem:[%s1 + $0x20] sm:$0xff]
  %v52 = vld [vmem:[%s1 + $0x28] sm:$0xff]
  %v53 = vld [vmem:[%s1 + $0x30] sm:$0xff]
  %v54 = vld [vmem:[%s1 + $0x38] sm:$0xff]
  %v55 = vld [vmem:[%s1 + $0x40] sm:$0xff]
  %v56 = vld [vmem:[%s1 + $0x48] sm:$0xff]
  %v57 = vld [vmem:[%s1 + $0x50] sm:$0xff]
  %v58 = vld [vmem:[%s1 + $0x58] sm:$0xff]
  %v59 = vld [vmem:[%s1 + $0x60] sm:$0xff]
  %v60 = vld [vmem:[%s1 + $0x68] sm:$0xff]
  %v61 = vld [vmem:[%s1 + $0x70] sm:$0xff]
  %v62 = vld [vmem:[%s1 + $0x78] sm:$0xff]
  %v63 = vld [vmem:[%s2] sm:$0x3]
  %v65 = vlaneseq
  %v66 = vshrl.u32 %v65, 7
  %v67 = vsub.s32 0, %v66
  %v68 = vrot.slane %v63, %v67
  %v69 = vlaneseq
  %v70 = vshrl.u32 %v69, 7
  %v71 = vsub.s32 1, %v70
  %v72 = vrot.slane %v63, %v71
  %v107 = vunpack.c.l.b16 %v15
  %v108 = vunpack.c.l.b16 %v16
  %v109 = vunpack.c.l.b16 %v17
  %v110 = vunpack.c.l.b16 %v18
  %v111 = vunpack.c.l.b16 %v19
  %v112 = vunpack.c.l.b16 %v20
  %v113 = vunpack.c.l.b16 %v21
  %v114 = vunpack.c.l.b16 %v22
  %v115 = vunpack.c.l.b16 %v23
  %v116 = vunpack.c.l.b16 %v24
  %v117 = vunpack.c.l.b16 %v25
  %v118 = vunpack.c.l.b16 %v26
  %v119 = vunpack.c.l.b16 %v27
  %v120 = vunpack.c.l.b16 %v28
  %v121 = vunpack.c.l.b16 %v29
  %v122 = vunpack.c.l.b16 %v30
  %v123 = vunpack.c.l.b16 %v31
  %v124 = vunpack.c.l.b16 %v32
  %v125 = vunpack.c.l.b16 %v33
  %v126 = vunpack.c.l.b16 %v34
  %v127 = vunpack.c.l.b16 %v35
  %v128 = vunpack.c.l.b16 %v36
  %v129 = vunpack.c.l.b16 %v37
  %v130 = vunpack.c.l.b16 %v38
  %v131 = vunpack.c.l.b16 %v39
  %v132 = vunpack.c.l.b16 %v40
  %v133 = vunpack.c.l.b16 %v41
  %v134 = vunpack.c.l.b16 %v42
  %v135 = vunpack.c.l.b16 %v43
  %v136 = vunpack.c.l.b16 %v44
  %v137 = vunpack.c.l.b16 %v45
  %v138 = vunpack.c.l.b16 %v46
  %v139 = vpack.c.b16 %v108, %v107
  %v140 = vpack.c.b16 %v110, %v109
  %v141 = vpack.c.b16 %v112, %v111
  %v142 = vpack.c.b16 %v114, %v113
  %v143 = vpack.c.b16 %v116, %v115
  %v144 = vpack.c.b16 %v118, %v117
  %v145 = vpack.c.b16 %v120, %v119
  %v146 = vpack.c.b16 %v122, %v121
  %v147 = vpack.c.b16 %v124, %v123
  %v148 = vpack.c.b16 %v126, %v125
  %v149 = vpack.c.b16 %v128, %v127
  %v150 = vpack.c.b16 %v130, %v129
  %v151 = vpack.c.b16 %v132, %v131
  %v152 = vpack.c.b16 %v134, %v133
  %v153 = vpack.c.b16 %v136, %v135
  %v154 = vpack.c.b16 %v138, %v137
  %v187 = vunpack.c.l.b16 %v47
  %v188 = vunpack.c.h.b16 %v47
  %v189 = vunpack.c.l.b16 %v48
  %v190 = vunpack.c.h.b16 %v48
  %v191 = vunpack.c.l.b16 %v49
  %v192 = vunpack.c.h.b16 %v49
  %v193 = vunpack.c.l.b16 %v50
  %v194 = vunpack.c.h.b16 %v50
  %v195 = vunpack.c.l.b16 %v51
  %v196 = vunpack.c.h.b16 %v51
  %v197 = vunpack.c.l.b16 %v52
  %v198 = vunpack.c.h.b16 %v52
  %v199 = vunpack.c.l.b16 %v53
  %v200 = vunpack.c.h.b16 %v53
  %v201 = vunpack.c.l.b16 %v54
  %v202 = vunpack.c.h.b16 %v54
  %v203 = vunpack.c.l.b16 %v55
  %v204 = vunpack.c.h.b16 %v55
  %v205 = vunpack.c.l.b16 %v56
  %v206 = vunpack.c.h.b16 %v56
  %v207 = vunpack.c.l.b16 %v57
  %v208 = vunpack.c.h.b16 %v57
  %v209 = vunpack.c.l.b16 %v58
  %v210 = vunpack.c.h.b16 %v58
  %v211 = vunpack.c.l.b16 %v59
  %v212 = vunpack.c.h.b16 %v59
  %v213 = vunpack.c.l.b16 %v60
  %v214 = vunpack.c.h.b16 %v60
  %v215 = vunpack.c.l.b16 %v61
  %v216 = vunpack.c.h.b16 %v61
  %v217 = vunpack.c.l.b16 %v62
  %v218 = vunpack.c.h.b16 %v62
  %v219 = vpack.c.b16 %v189, %v187
  %v220 = vpack.c.b16 %v190, %v188
  %v221 = vpack.c.b16 %v193, %v191
  %v222 = vpack.c.b16 %v194, %v192
  %v223 = vpack.c.b16 %v197, %v195
  %v224 = vpack.c.b16 %v198, %v196
  %v225 = vpack.c.b16 %v201, %v199
  %v226 = vpack.c.b16 %v202, %v200
  %v227 = vpack.c.b16 %v205, %v203
  %v228 = vpack.c.b16 %v206, %v204
  %v229 = vpack.c.b16 %v209, %v207
  %v230 = vpack.c.b16 %v210, %v208
  %v231 = vpack.c.b16 %v213, %v211
  %v232 = vpack.c.b16 %v214, %v212
  %v233 = vpack.c.b16 %v217, %v215
  %v234 = vpack.c.b16 %v218, %v216
  %251 = vmatprep.subr.bf16.mxu0 %v234
  %252 = vmatpush1.bf16.msra.mxu0 %v233
  %253 = vmatprep.subr.bf16.mxu0 %v232
  %254 = vmatpush1.bf16.msra.mxu0 %v231
  %255 = vmatprep.subr.bf16.mxu0 %v230
  %256 = vmatpush1.bf16.msra.mxu0 %v229
  %257 = vmatprep.subr.bf16.mxu0 %v228
  %258 = vmatpush1.bf16.msra.mxu0 %v227
  %259 = vmatprep.subr.bf16.mxu0 %v226
  %260 = vmatpush1.bf16.msra.mxu0 %v225
  %261 = vmatprep.subr.bf16.mxu0 %v224
  %262 = vmatpush1.bf16.msra.mxu0 %v223
  %263 = vmatprep.subr.bf16.mxu0 %v222
  %264 = vmatpush1.bf16.msra.mxu0 %v221
  %265 = vmatprep.subr.bf16.mxu0 %v220
  %266 = vmatpush1.bf16.msra.mxu0 %v219
  %267 = vmatprep.subr.bf16.mxu0 0
  %268 = vmatpush2.bf16.msra.mxu0 0
  %269 = vmatprep.subr.bf16.mxu0 0
  %270 = vmatpush2.bf16.msra.mxu0 0
  %271 = vmatprep.subr.bf16.mxu0 0
  %272 = vmatpush2.bf16.msra.mxu0 0
  %273 = vmatprep.subr.bf16.mxu0 0
  %274 = vmatpush2.bf16.msra.mxu0 0
  %275 = vmatprep.subr.bf16.mxu0 0
  %276 = vmatpush2.bf16.msra.mxu0 0
  %277 = vmatprep.subr.bf16.mxu0 0
  %278 = vmatpush2.bf16.msra.mxu0 0
  %279 = vmatprep.subr.bf16.mxu0 0
  %280 = vmatpush2.bf16.msra.mxu0 0
  %281 = vmatprep.subr.bf16.mxu0 0
  %282 = vmatpush2.bf16.msra.mxu0 0
  %283 = vmatprep.mubr.bf16.mxu0 0
  %284 = vmatmul.mubr.bf16.gmra.mxu0 %v139
  %v285 = vpop.f32.mrf.mxu0
  %v286 = vadd.f32 %v68, %v285
  %v287 = vpop.f32.mrf.mxu0
  %v288 = vadd.f32 %v72, %v287
  %v289 = vpop.f32.mrf.mxu0
  %v290 = vadd.f32 %v68, %v289
  %v291 = vpop.f32.mrf.mxu0
  %v292 = vadd.f32 %v72, %v291
  %293 = vmatprep.mubr.bf16.mxu0 0
  %294 = vmatmul.mubr.bf16.gmra.mxu0 %v140
  %v295 = vpop.f32.mrf.mxu0
  %v296 = vadd.f32 %v68, %v295
  %v297 = vpop.f32.mrf.mxu0
  %v298 = vadd.f32 %v72, %v297
  %v299 = vpop.f32.mrf.mxu0
  %v300 = vadd.f32 %v68, %v299
  %v301 = vpop.f32.mrf.mxu0
  %v302 = vadd.f32 %v72, %v301
  %303 = vmatprep.mubr.bf16.mxu0 0
  %304 = vmatmul.mubr.bf16.gmra.mxu0 %v141
  %v305 = vpop.f32.mrf.mxu0
  %v306 = vadd.f32 %v68, %v305
  %v307 = vpop.f32.mrf.mxu0
  %v308 = vadd.f32 %v72, %v307
  %v309 = vpop.f32.mrf.mxu0
  %v310 = vadd.f32 %v68, %v309
  %v311 = vpop.f32.mrf.mxu0
  %v312 = vadd.f32 %v72, %v311
  %313 = vmatprep.mubr.bf16.mxu0 0
  %314 = vmatmul.mubr.bf16.gmra.mxu0 %v142
  %v315 = vpop.f32.mrf.mxu0
  %v316 = vadd.f32 %v68, %v315
  %v317 = vpop.f32.mrf.mxu0
  %v318 = vadd.f32 %v72, %v317
  %v319 = vpop.f32.mrf.mxu0
  %v320 = vadd.f32 %v68, %v319
  %v321 = vpop.f32.mrf.mxu0
  %v322 = vadd.f32 %v72, %v321
  %323 = vmatprep.mubr.bf16.mxu0 0
  %324 = vmatmul.mubr.bf16.gmra.mxu0 %v143
  %v325 = vpop.f32.mrf.mxu0
  %v326 = vadd.f32 %v68, %v325
  %v327 = vpop.f32.mrf.mxu0
  %v328 = vadd.f32 %v72, %v327
  %v329 = vpop.f32.mrf.mxu0
  %v330 = vadd.f32 %v68, %v329
  %v331 = vpop.f32.mrf.mxu0
  %v332 = vadd.f32 %v72, %v331
  %333 = vmatprep.mubr.bf16.mxu0 0
  %334 = vmatmul.mubr.bf16.gmra.mxu0 %v144
  %v335 = vpop.f32.mrf.mxu0
  %v336 = vadd.f32 %v68, %v335
  %v337 = vpop.f32.mrf.mxu0
  %v338 = vadd.f32 %v72, %v337
  %v339 = vpop.f32.mrf.mxu0
  %v340 = vadd.f32 %v68, %v339
  %v341 = vpop.f32.mrf.mxu0
  %v342 = vadd.f32 %v72, %v341
  %343 = vmatprep.mubr.bf16.mxu0 0
  %344 = vmatmul.mubr.bf16.gmra.mxu0 %v145
  %v345 = vpop.f32.mrf.mxu0
  %v346 = vadd.f32 %v68, %v345
  %v347 = vpop.f32.mrf.mxu0
  %v348 = vadd.f32 %v72, %v347
  %v349 = vpop.f32.mrf.mxu0
  %v350 = vadd.f32 %v68, %v349
  %v351 = vpop.f32.mrf.mxu0
  %v352 = vadd.f32 %v72, %v351
  %353 = vmatprep.mubr.bf16.mxu0 0
  %354 = vmatmul.mubr.bf16.gmra.mxu0 %v146
  %v355 = vpop.f32.mrf.mxu0
  %v356 = vadd.f32 %v68, %v355
  %v357 = vpop.f32.mrf.mxu0
  %v358 = vadd.f32 %v72, %v357
  %v359 = vpop.f32.mrf.mxu0
  %v360 = vadd.f32 %v68, %v359
  %v361 = vpop.f32.mrf.mxu0
  %v362 = vadd.f32 %v72, %v361
  %363 = vmatprep.mubr.bf16.mxu0 0
  %364 = vmatmul.mubr.bf16.gmra.mxu0 %v147
  %v365 = vpop.f32.mrf.mxu0
  %v366 = vadd.f32 %v68, %v365
  %v367 = vpop.f32.mrf.mxu0
  %v368 = vadd.f32 %v72, %v367
  %v369 = vpop.f32.mrf.mxu0
  %v370 = vadd.f32 %v68, %v369
  %v371 = vpop.f32.mrf.mxu0
  %v372 = vadd.f32 %v72, %v371
  %373 = vmatprep.mubr.bf16.mxu0 0
  %374 = vmatmul.mubr.bf16.gmra.mxu0 %v148
  %v375 = vpop.f32.mrf.mxu0
  %v376 = vadd.f32 %v68, %v375
  %v377 = vpop.f32.mrf.mxu0
  %v378 = vadd.f32 %v72, %v377
  %v379 = vpop.f32.mrf.mxu0
  %v380 = vadd.f32 %v68, %v379
  %v381 = vpop.f32.mrf.mxu0
  %v382 = vadd.f32 %v72, %v381
  %383 = vmatprep.mubr.bf16.mxu0 0
  %384 = vmatmul.mubr.bf16.gmra.mxu0 %v149
  %v385 = vpop.f32.mrf.mxu0
  %v386 = vadd.f32 %v68, %v385
  %v387 = vpop.f32.mrf.mxu0
  %v388 = vadd.f32 %v72, %v387
  %v389 = vpop.f32.mrf.mxu0
  %v390 = vadd.f32 %v68, %v389
  %v391 = vpop.f32.mrf.mxu0
  %v392 = vadd.f32 %v72, %v391
  %393 = vmatprep.mubr.bf16.mxu0 0
  %394 = vmatmul.mubr.bf16.gmra.mxu0 %v150
  %v395 = vpop.f32.mrf.mxu0
  %v396 = vadd.f32 %v68, %v395
  %v397 = vpop.f32.mrf.mxu0
  %v398 = vadd.f32 %v72, %v397
  %v399 = vpop.f32.mrf.mxu0
  %v400 = vadd.f32 %v68, %v399
  %v401 = vpop.f32.mrf.mxu0
  %v402 = vadd.f32 %v72, %v401
  %403 = vmatprep.mubr.bf16.mxu0 0
  %404 = vmatmul.mubr.bf16.gmra.mxu0 %v151
  %v405 = vpop.f32.mrf.mxu0
  %v406 = vadd.f32 %v68, %v405
  %v407 = vpop.f32.mrf.mxu0
  %v408 = vadd.f32 %v72, %v407
  %v409 = vpop.f32.mrf.mxu0
  %v410 = vadd.f32 %v68, %v409
  %v411 = vpop.f32.mrf.mxu0
  %v412 = vadd.f32 %v72, %v411
  %413 = vmatprep.mubr.bf16.mxu0 0
  %414 = vmatmul.mubr.bf16.gmra.mxu0 %v152
  %v415 = vpop.f32.mrf.mxu0
  %v416 = vadd.f32 %v68, %v415
  %v417 = vpop.f32.mrf.mxu0
  %v418 = vadd.f32 %v72, %v417
  %v419 = vpop.f32.mrf.mxu0
  %v420 = vadd.f32 %v68, %v419
  %v421 = vpop.f32.mrf.mxu0
  %v422 = vadd.f32 %v72, %v421
  %423 = vmatprep.mubr.bf16.mxu0 0
  %424 = vmatmul.mubr.bf16.gmra.mxu0 %v153
  %v425 = vpop.f32.mrf.mxu0
  %v426 = vadd.f32 %v68, %v425
  %v427 = vpop.f32.mrf.mxu0
  %v428 = vadd.f32 %v72, %v427
  %v429 = vpop.f32.mrf.mxu0
  %v430 = vadd.f32 %v68, %v429
  %v431 = vpop.f32.mrf.mxu0
  %v432 = vadd.f32 %v72, %v431
  %433 = vmatprep.mubr.bf16.mxu0 0
  %434 = vmatmul.mubr.bf16.gmra.mxu0 %v154
  %v435 = vpop.f32.mrf.mxu0
  %v436 = vadd.f32 %v68, %v435
  %v437 = vpop.f32.mrf.mxu0
  %v438 = vadd.f32 %v72, %v437
  %v439 = vpop.f32.mrf.mxu0
  %v440 = vadd.f32 %v68, %v439
  %v441 = vpop.f32.mrf.mxu0
  %v442 = vadd.f32 %v72, %v441
  %443 = vdwg.mxu0
  %444 = vst [vmem:[%s3] sm:$0xff] %v286
  %445 = vst [vmem:[%s3 + $0x8] sm:$0xff] %v288
  %446 = vst [vmem:[%s3 + $0x10] sm:$0xff] %v290
  %447 = vst [vmem:[%s3 + $0x18] sm:$0xff] %v292
  %448 = vst [vmem:[%s3 + $0x20] sm:$0xff] %v296
  %449 = vst [vmem:[%s3 + $0x28] sm:$0xff] %v298
  %450 = vst [vmem:[%s3 + $0x30] sm:$0xff] %v300
  %451 = vst [vmem:[%s3 + $0x38] sm:$0xff] %v302
  %452 = vst [vmem:[%s3 + $0x40] sm:$0xff] %v306
  %453 = vst [vmem:[%s3 + $0x48] sm:$0xff] %v308
  %454 = vst [vmem:[%s3 + $0x50] sm:$0xff] %v310
  %455 = vst [vmem:[%s3 + $0x58] sm:$0xff] %v312
  %456 = vst [vmem:[%s3 + $0x60] sm:$0xff] %v316
  %457 = vst [vmem:[%s3 + $0x68] sm:$0xff] %v318
  %458 = vst [vmem:[%s3 + $0x70] sm:$0xff] %v320
  %459 = vst [vmem:[%s3 + $0x78] sm:$0xff] %v322
  %460 = vst [vmem:[%s3 + $0x80] sm:$0xff] %v326
  %461 = vst [vmem:[%s3 + $0x88] sm:$0xff] %v328
  %462 = vst [vmem:[%s3 + $0x90] sm:$0xff] %v330
  %463 = vst [vmem:[%s3 + $0x98] sm:$0xff] %v332
  %464 = vst [vmem:[%s3 + $0xa0] sm:$0xff] %v336
  %465 = vst [vmem:[%s3 + $0xa8] sm:$0xff] %v338
  %466 = vst [vmem:[%s3 + $0xb0] sm:$0xff] %v340
  %467 = vst [vmem:[%s3 + $0xb8] sm:$0xff] %v342
  %468 = vst [vmem:[%s3 + $0xc0] sm:$0xff] %v346
  %469 = vst [vmem:[%s3 + $0xc8] sm:$0xff] %v348
  %470 = vst [vmem:[%s3 + $0xd0] sm:$0xff] %v350
  %471 = vst [vmem:[%s3 + $0xd8] sm:$0xff] %v352
  %472 = vst [vmem:[%s3 + $0xe0] sm:$0xff] %v356
  %473 = vst [vmem:[%s3 + $0xe8] sm:$0xff] %v358
  %474 = vst [vmem:[%s3 + $0xf0] sm:$0xff] %v360
  %475 = vst [vmem:[%s3 + $0xf8] sm:$0xff] %v362
  %476 = vst [vmem:[%s3 + $0x100] sm:$0xff] %v366
  %477 = vst [vmem:[%s3 + $0x108] sm:$0xff] %v368
  %478 = vst [vmem:[%s3 + $0x110] sm:$0xff] %v370
  %479 = vst [vmem:[%s3 + $0x118] sm:$0xff] %v372
  %480 = vst [vmem:[%s3 + $0x120] sm:$0xff] %v376
  %481 = vst [vmem:[%s3 + $0x128] sm:$0xff] %v378
  %482 = vst [vmem:[%s3 + $0x130] sm:$0xff] %v380
  %483 = vst [vmem:[%s3 + $0x138] sm:$0xff] %v382
  %484 = vst [vmem:[%s3 + $0x140] sm:$0xff] %v386
  %485 = vst [vmem:[%s3 + $0x148] sm:$0xff] %v388
  %486 = vst [vmem:[%s3 + $0x150] sm:$0xff] %v390
  %487 = vst [vmem:[%s3 + $0x158] sm:$0xff] %v392
  %488 = vst [vmem:[%s3 + $0x160] sm:$0xff] %v396
  %489 = vst [vmem:[%s3 + $0x168] sm:$0xff] %v398
  %490 = vst [vmem:[%s3 + $0x170] sm:$0xff] %v400
  %491 = vst [vmem:[%s3 + $0x178] sm:$0xff] %v402
  %492 = vst [vmem:[%s3 + $0x180] sm:$0xff] %v406
  %493 = vst [vmem:[%s3 + $0x188] sm:$0xff] %v408
  %494 = vst [vmem:[%s3 + $0x190] sm:$0xff] %v410
  %495 = vst [vmem:[%s3 + $0x198] sm:$0xff] %v412
  %496 = vst [vmem:[%s3 + $0x1a0] sm:$0xff] %v416
  %497 = vst [vmem:[%s3 + $0x1a8] sm:$0xff] %v418
  %498 = vst [vmem:[%s3 + $0x1b0] sm:$0xff] %v420
  %499 = vst [vmem:[%s3 + $0x1b8] sm:$0xff] %v422
  %500 = vst [vmem:[%s3 + $0x1c0] sm:$0xff] %v426
  %501 = vst [vmem:[%s3 + $0x1c8] sm:$0xff] %v428
  %502 = vst [vmem:[%s3 + $0x1d0] sm:$0xff] %v430
  %503 = vst [vmem:[%s3 + $0x1d8] sm:$0xff] %v432
  %504 = vst [vmem:[%s3 + $0x1e0] sm:$0xff] %v436
  %505 = vst [vmem:[%s3 + $0x1e8] sm:$0xff] %v438
  %506 = vst [vmem:[%s3 + $0x1f0] sm:$0xff] %v440
  %507 = vst [vmem:[%s3 + $0x1f8] sm:$0xff] %v442
  // Predicated region
  $region14: #{point_correspondence_forward.14} parent=0 // pred_check
    _
  $region15: #{point_correspondence_forward.14} parent=0 // pred_check_branch
    %509 = sbr.rel (0) target = $region17
  $region16: #{point_correspondence_forward.14} parent=0 // pred_region
    _
  $region17: #{point_correspondence_forward.14} parent=0 // pred_fallthru
    _
  // Predicated region
  $region18: #{point_correspondence_forward.14} parent=0 // pred_check
    _
  $region19: #{point_correspondence_forward.14} parent=0 // pred_check_branch
    %511 = sbr.rel (0) target = $region21
  $region20: #{point_correspondence_forward.14} parent=0 // pred_region
    _
  $region21: #{point_correspondence_forward.14} parent=0 // pred_fallthru
    _

// kernel: point_correspondence_forward.13
$region0: #{point_correspondence_forward.13}
  #allocation0 [shape = 'u32[]', space=smem, size = 0x4, offset = 0x4, fixed_abs, tag = 'smem constant byte address 0x4 - core index']
  #allocation1 [shape = 'u32[144,128]{1,0:T(1,128)}', space=vmem, size = 0x12000, scoped, tag = 'internal scratch']
  %s0 = inlined_call_operand.vmem [shape: bf16[1024,64], index: 0, kind: input, shape index: {}]
  %s1 = inlined_call_operand.vmem [shape: bf16[64,256], index: 1, kind: input, shape index: {}]
  %s2 = inlined_call_operand.vmem [shape: f32[1,256], index: 2, kind: input, shape index: {}]
  %s3 = inlined_call_operand.vmem [shape: f32[1024,256], index: 3, kind: output, shape index: {}]
  %s4 = sld [smem:[#allocation0]]
  $region45: #{point_correspondence_forward.13} parent=0
    _
  %s6 = ssub.s32 1, %s4
  %s7 = scalar_select 0, %s6, %s4
  loop: start=0, step=1, limit=6
  $region2: #{point_correspondence_forward.13} parent=0 // loop_pre_header
    _
  $region3: #{point_correspondence_forward.13} parent=0 // loop_header
    %s9 = sphi 0, %s13
    %p10 = scmp.ge.s32.totalorder %s9, 6
    %s19 = sphi 0, %s21
    %s22 = sphi 0, %s19
    %s23 = sphi 0, %s22
    %s39 = sphi 0, %s23
    %s43 = sphi 0, %s43
    %s45 = sphi 0, %s43
    %s46 = sphi 0, %s45
    %s60 = sphi 0, %s46
    %s64 = sphi 0, %s64
    %s66 = sphi 0, %s64
    %s67 = sphi 0, %s66
    %s81 = sphi 0, %s67
    %s87 = sphi 0, %s89
    %s90 = sphi 0, %s87
    %s91 = sphi 0, %s90
    %s107 = sphi 0, %s91
  $region4: #{point_correspondence_forward.13} parent=0 // loop_header_branch
    %12 = sbr.rel (%p10) target = $region8
  $region5: #{point_correspondence_forward.13} parent=0 // loop_body
    %s14 = ssub.s32 %s9, 1
    %s15 = ssub.s32 %s9, 2
    %s16 = sadd.s32 %s9, 1
    %s17 = ssub.s32 %s9, %s16
    %p18 = scmp.eq.s32.totalorder %s17, 0
    %s20 = sadd.s32 %s19, 1
    %s21 = scalar_select %p18, %s19, %s20
    %p24 = pneg %p18
    %p25 = scmp.eq.s32.totalorder %s9, 3
    %p26 = por %p24, %p25
    %p27 = scmp.ne.s32.totalorder %s19, %s22
    %p28 = scmp.eq.s32.totalorder %s9, 0
    %p29 = por %p27, %p28
    %p30 = scmp.ne.s32.totalorder %s19, %s22
    %p31 = scmp.eq.s32.totalorder %s14, 3
    %p32 = por %p30, %p31
    %p33 = scmp.ne.s32.totalorder %s22, %s23
    %p34 = scmp.eq.s32.totalorder %s14, 0
    %p35 = por %p33, %p34
    %p36 = scmp.ne.s32.totalorder %s22, %s23
    %p37 = scmp.eq.s32.totalorder %s15, 3
    %p38 = por %p36, %p37
    %p40 = scmp.ne.s32.totalorder %s23, %s39
    %p41 = scmp.eq.s32.totalorder %s15, 0
    %p42 = por %p40, %p41
    %s44 = sadd.s32 %s43, 1
    %p47 = scmp.eq.s32.totalorder %s9, 3
    %p48 = scmp.ne.s32.totalorder %s43, %s45
    %p49 = scmp.eq.s32.totalorder %s9, 0
    %p50 = por %p48, %p49
    %p51 = scmp.ne.s32.totalorder %s43, %s45
    %p52 = scmp.eq.s32.totalorder %s14, 3
    %p53 = por %p51, %p52
    %p54 = scmp.ne.s32.totalorder %s45, %s46
    %p55 = scmp.eq.s32.totalorder %s14, 0
    %p56 = por %p54, %p55
    %p57 = scmp.ne.s32.totalorder %s45, %s46
    %p58 = scmp.eq.s32.totalorder %s15, 3
    %p59 = por %p57, %p58
    %p61 = scmp.ne.s32.totalorder %s46, %s60
    %p62 = scmp.eq.s32.totalorder %s15, 0
    %p63 = por %p61, %p62
    %s65 = sadd.s32 %s64, 1
    %p68 = scmp.eq.s32.totalorder %s9, 3
    %p69 = scmp.ne.s32.totalorder %s64, %s66
    %p70 = scmp.eq.s32.totalorder %s9, 0
    %p71 = por %p69, %p70
    %p72 = scmp.ne.s32.totalorder %s64, %s66
    %p73 = scmp.eq.s32.totalorder %s14, 3
    %p74 = por %p72, %p73
    %p75 = scmp.ne.s32.totalorder %s66, %s67
    %p76 = scmp.eq.s32.totalorder %s14, 0
    %p77 = por %p75, %p76
    %p78 = scmp.ne.s32.totalorder %s66, %s67
    %p79 = scmp.eq.s32.totalorder %s15, 3
    %p80 = por %p78, %p79
    %p82 = scmp.ne.s32.totalorder %s67, %s81
    %p83 = scmp.eq.s32.totalorder %s15, 0
    %p84 = por %p82, %p83
    %s85 = ssub.s32 %s9, %s16
    %p86 = scmp.eq.s32.totalorder %s85, 0
    %s88 = sadd.s32 %s87, 1
    %s89 = scalar_select %p86, %s87, %s88
    %p92 = pneg %p86
    %p93 = scmp.eq.s32.totalorder %s9, 3
    %p94 = por %p92, %p93
    %p95 = scmp.ne.s32.totalorder %s87, %s90
    %p96 = scmp.eq.s32.totalorder %s9, 0
    %p97 = por %p95, %p96
    %p98 = scmp.ne.s32.totalorder %s87, %s90
    %p99 = scmp.eq.s32.totalorder %s14, 3
    %p100 = por %p98, %p99
    %p101 = scmp.ne.s32.totalorder %s90, %s91
    %p102 = scmp.eq.s32.totalorder %s14, 0
    %p103 = por %p101, %p102
    %p104 = scmp.ne.s32.totalorder %s90, %s91
    %p105 = scmp.eq.s32.totalorder %s15, 3
    %p106 = por %p104, %p105
    %p108 = scmp.ne.s32.totalorder %s91, %s107
    %p109 = scmp.eq.s32.totalorder %s15, 0
    %p110 = por %p108, %p109
    %p111 = scmp.le.s32.totalorder 1, %s9
    %p112 = scmp.lt.s32.totalorder %s9, 5
    %p113 = pnand %p111, %p112
    %p114 = pneg %p113
    // Predicated region
    $region9: #{point_correspondence_forward.13} parent=5 // pred_check
      _
    $region10: #{point_correspondence_forward.13} parent=5 // pred_check_branch
      %116 = sbr.rel (%p113) target = $region12
    $region11: #{point_correspondence_forward.13} parent=5 // pred_region
      %s117 = ssub.s32 %s9, 1
      // Predicated region
      $region13: #{point_correspondence_forward.13} parent=11 // pred_check
        %p118 = pneg %p56
      $region14: #{point_correspondence_forward.13} parent=11 // pred_check_branch
        %120 = sbr.rel (%p118) target = $region16
      $region15: #{point_correspondence_forward.13} parent=11 // pred_region
        _
      $region16: #{point_correspondence_forward.13} parent=11 // pred_fallthru
        _
      // Predicated region
      $region17: #{point_correspondence_forward.13} parent=11 // pred_check
        %p121 = pneg %p77
      $region18: #{point_correspondence_forward.13} parent=11 // pred_check_branch
        %123 = sbr.rel (%p121) target = $region20
      $region19: #{point_correspondence_forward.13} parent=11 // pred_region
        _
      $region20: #{point_correspondence_forward.13} parent=11 // pred_fallthru
        _
    $region12: #{point_correspondence_forward.13} parent=5 // pred_fallthru
      _
    %p124 = scmp.lt.s32.totalorder %s9, 4
    // Predicated region
    $region21: #{point_correspondence_forward.13} parent=5 // pred_check
      %p125 = pneg %p124
    $region22: #{point_correspondence_forward.13} parent=5 // pred_check_branch
      %127 = sbr.rel (%p125) target = $region24
    $region23: #{point_correspondence_forward.13} parent=5 // pred_region
      // Predicated region
      $region25: #{point_correspondence_forward.13} parent=23 // pred_check
        %p128 = pneg %p29
      $region26: #{point_correspondence_forward.13} parent=23 // pred_check_branch
        %130 = sbr.rel (%p128) target = $region28
      $region27: #{point_correspondence_forward.13} parent=23 // pred_region
        %s131 = smul.u32 32, %s9
        %p132 = scmp.lt.s32.totalorder %s131, 127
        %s133 = scalar_select %p132, %s131, 127
        %s134 = smul.addr %s133, 4
        %s135 = scalar_lea.vmem %s0, %s134
        %s136 = smul.u32 32, %s9
      $region28: #{point_correspondence_forward.13} parent=23 // pred_fallthru
        _
    $region24: #{point_correspondence_forward.13} parent=5 // pred_fallthru
      _
    %p137 = scmp.le.s32.totalorder 1, %s9
    %p138 = scmp.lt.s32.totalorder %s9, 5
    %p139 = pnand %p137, %p138
    %p140 = pneg %p139
    // Predicated region
    $region29: #{point_correspondence_forward.13} parent=5 // pred_check
      _
    $region30: #{point_correspondence_forward.13} parent=5 // pred_check_branch
      %142 = sbr.rel (%p139) target = $region32
    $region31: #{point_correspondence_forward.13} parent=5 // pred_region
      %s143 = ssub.s32 %s9, 1
      %s144 = smul.u32 32, %s14
      %p145 = scmp.lt.s32.totalorder %s144, 127
      %s146 = scalar_select %p145, %s144, 127
      %s147 = smul.addr %s146, 4
      %s148 = scalar_lea.vmem %s0, %s147
      %p149 = pneg %p35
      %p150 = pneg %p32
      %p151 = pneg %p56
      %p152 = pneg %p53
      %p153 = pneg %p77
      %p154 = pneg %p74
      %p155 = pneg %p103
      %p156 = pneg %p100
      %s157 = smul.u32 32, %s14
      %p158 = scmp.lt.s32.totalorder %s157, 127
      %s159 = scalar_select %p158, %s157, 127
      %s160 = smul.addr %s159, 2
      %s161 = smul.addr %s160, 8
      %s162 = scalar_lea.vmem %s3, %s161
      %s163 = smul.u32 32, %s14
      %p164 = scmp.lt.s32.totalorder %s163, 127
      %s165 = scalar_select %p164, %s163, 127
      %s166 = smul.addr %s165, 4
      %s167 = scalar_lea.vmem %s0, %s166
      %s168 = smul.u32 32, %s14
      %s169 = smul.u32 32, %s14
      %p170 = scmp.lt.s32.totalorder %s169, 127
      %s171 = scalar_select %p170, %s169, 127
      %s172 = smul.addr %s171, 2
      %s173 = smul.addr %s172, 8
      %s174 = scalar_lea.vmem %s3, %s173
      %s175 = smul.u32 32, %s14
      %v177 = vld [vmem:[%s167] sm:$0xf]
      %v178 = vld [vmem:[%s167 + $0x4] sm:$0xf]
      %v179 = vld [vmem:[%s167 + $0x8] sm:$0xf]
      %v180 = vld [vmem:[%s167 + $0xc] sm:$0xf]
      %v181 = vld [vmem:[%s167 + $0x10] sm:$0xf]
      %v182 = vld [vmem:[%s167 + $0x14] sm:$0xf]
      %v183 = vld [vmem:[%s167 + $0x18] sm:$0xf]
      %v184 = vld [vmem:[%s167 + $0x1c] sm:$0xf]
      %v185 = vld [vmem:[%s167 + $0x20] sm:$0xf]
      %v186 = vld [vmem:[%s167 + $0x24] sm:$0xf]
      %v187 = vld [vmem:[%s167 + $0x28] sm:$0xf]
      %v188 = vld [vmem:[%s167 + $0x2c] sm:$0xf]
      %v189 = vld [vmem:[%s167 + $0x30] sm:$0xf]
      %v190 = vld [vmem:[%s167 + $0x34] sm:$0xf]
      %v191 = vld [vmem:[%s167 + $0x38] sm:$0xf]
      %v192 = vld [vmem:[%s167 + $0x3c] sm:$0xf]
      %v193 = vld [vmem:[%s167 + $0x40] sm:$0xf]
      %v194 = vld [vmem:[%s167 + $0x44] sm:$0xf]
      %v195 = vld [vmem:[%s167 + $0x48] sm:$0xf]
      %v196 = vld [vmem:[%s167 + $0x4c] sm:$0xf]
      %v197 = vld [vmem:[%s167 + $0x50] sm:$0xf]
      %v198 = vld [vmem:[%s167 + $0x54] sm:$0xf]
      %v199 = vld [vmem:[%s167 + $0x58] sm:$0xf]
      %v200 = vld [vmem:[%s167 + $0x5c] sm:$0xf]
      %v201 = vld [vmem:[%s167 + $0x60] sm:$0xf]
      %v202 = vld [vmem:[%s167 + $0x64] sm:$0xf]
      %v203 = vld [vmem:[%s167 + $0x68] sm:$0xf]
      %v204 = vld [vmem:[%s167 + $0x6c] sm:$0xf]
      %v205 = vld [vmem:[%s167 + $0x70] sm:$0xf]
      %v206 = vld [vmem:[%s167 + $0x74] sm:$0xf]
      %v207 = vld [vmem:[%s167 + $0x78] sm:$0xf]
      %v208 = vld [vmem:[%s167 + $0x7c] sm:$0xf]
      %v209 = vld [vmem:[%s1] sm:$0xff]
      %v210 = vld [vmem:[%s1 + $0x8] sm:$0xff]
      %v211 = vld [vmem:[%s1 + $0x10] sm:$0xff]
      %v212 = vld [vmem:[%s1 + $0x18] sm:$0xff]
      %v213 = vld [vmem:[%s1 + $0x20] sm:$0xff]
      %v214 = vld [vmem:[%s1 + $0x28] sm:$0xff]
      %v215 = vld [vmem:[%s1 + $0x30] sm:$0xff]
      %v216 = vld [vmem:[%s1 + $0x38] sm:$0xff]
      %v217 = vld [vmem:[%s2] sm:$0x3]
      %v219 = vlaneseq
      %v220 = vshrl.u32 %v219, 7
      %v221 = vsub.s32 0, %v220
      %v222 = vrot.slane %v217, %v221
      %v223 = vlaneseq
      %v224 = vshrl.u32 %v223, 7
      %v225 = vsub.s32 1, %v224
      %v226 = vrot.slane %v217, %v225
      %v261 = vunpack.c.l.b16 %v177
      %v262 = vunpack.c.l.b16 %v178
      %v263 = vunpack.c.l.b16 %v179
      %v264 = vunpack.c.l.b16 %v180
      %v265 = vunpack.c.l.b16 %v181
      %v266 = vunpack.c.l.b16 %v182
      %v267 = vunpack.c.l.b16 %v183
      %v268 = vunpack.c.l.b16 %v184
      %v269 = vunpack.c.l.b16 %v185
      %v270 = vunpack.c.l.b16 %v186
      %v271 = vunpack.c.l.b16 %v187
      %v272 = vunpack.c.l.b16 %v188
      %v273 = vunpack.c.l.b16 %v189
      %v274 = vunpack.c.l.b16 %v190
      %v275 = vunpack.c.l.b16 %v191
      %v276 = vunpack.c.l.b16 %v192
      %v277 = vunpack.c.l.b16 %v193
      %v278 = vunpack.c.l.b16 %v194
      %v279 = vunpack.c.l.b16 %v195
      %v280 = vunpack.c.l.b16 %v196
      %v281 = vunpack.c.l.b16 %v197
      %v282 = vunpack.c.l.b16 %v198
      %v283 = vunpack.c.l.b16 %v199
      %v284 = vunpack.c.l.b16 %v200
      %v285 = vunpack.c.l.b16 %v201
      %v286 = vunpack.c.l.b16 %v202
      %v287 = vunpack.c.l.b16 %v203
      %v288 = vunpack.c.l.b16 %v204
      %v289 = vunpack.c.l.b16 %v205
      %v290 = vunpack.c.l.b16 %v206
      %v291 = vunpack.c.l.b16 %v207
      %v292 = vunpack.c.l.b16 %v208
      %v293 = vpack.c.b16 %v262, %v261
      %v294 = vpack.c.b16 %v264, %v263
      %v295 = vpack.c.b16 %v266, %v265
      %v296 = vpack.c.b16 %v268, %v267
      %v297 = vpack.c.b16 %v270, %v269
      %v298 = vpack.c.b16 %v272, %v271
      %v299 = vpack.c.b16 %v274, %v273
      %v300 = vpack.c.b16 %v276, %v275
      %v301 = vpack.c.b16 %v278, %v277
      %v302 = vpack.c.b16 %v280, %v279
      %v303 = vpack.c.b16 %v282, %v281
      %v304 = vpack.c.b16 %v284, %v283
      %v305 = vpack.c.b16 %v286, %v285
      %v306 = vpack.c.b16 %v288, %v287
      %v307 = vpack.c.b16 %v290, %v289
      %v308 = vpack.c.b16 %v292, %v291
      %v317 = vunpack.c.l.b16 %v209
      %v318 = vunpack.c.h.b16 %v209
      %v319 = vunpack.c.l.b16 %v210
      %v320 = vunpack.c.h.b16 %v210
      %v321 = vunpack.c.l.b16 %v211
      %v322 = vunpack.c.h.b16 %v211
      %v323 = vunpack.c.l.b16 %v212
      %v324 = vunpack.c.h.b16 %v212
      %v325 = vunpack.c.l.b16 %v213
      %v326 = vunpack.c.h.b16 %v213
      %v327 = vunpack.c.l.b16 %v214
      %v328 = vunpack.c.h.b16 %v214
      %v329 = vunpack.c.l.b16 %v215
      %v330 = vunpack.c.h.b16 %v215
      %v331 = vunpack.c.l.b16 %v216
      %v332 = vunpack.c.h.b16 %v216
      %v333 = vpack.c.b16 %v319, %v317
      %v334 = vpack.c.b16 %v320, %v318
      %v335 = vpack.c.b16 %v323, %v321
      %v336 = vpack.c.b16 %v324, %v322
      %v337 = vpack.c.b16 %v327, %v325
      %v338 = vpack.c.b16 %v328, %v326
      %v339 = vpack.c.b16 %v331, %v329
      %v340 = vpack.c.b16 %v332, %v330
      %vm349 = vcmask 523264
      %v351 = vsel %vm349, %v293, 0
      %v354 = vsel %vm349, %v294, 0
      %v357 = vsel %vm349, %v295, 0
      %v360 = vsel %vm349, %v296, 0
      %v363 = vsel %vm349, %v297, 0
      %v366 = vsel %vm349, %v298, 0
      %v369 = vsel %vm349, %v299, 0
      %v372 = vsel %vm349, %v300, 0
      %v375 = vsel %vm349, %v301, 0
      %v378 = vsel %vm349, %v302, 0
      %v381 = vsel %vm349, %v303, 0
      %v384 = vsel %vm349, %v304, 0
      %v387 = vsel %vm349, %v305, 0
      %v390 = vsel %vm349, %v306, 0
      %v393 = vsel %vm349, %v307, 0
      %v396 = vsel %vm349, %v308, 0
      %398 = vmatprep.subr.bf16.mxu0 0
      %399 = vmatpush1.bf16.msra.mxu0 0
      %400 = vmatprep.subr.bf16.mxu0 0
      %401 = vmatpush1.bf16.msra.mxu0 0
      %402 = vmatprep.subr.bf16.mxu0 0
      %403 = vmatpush1.bf16.msra.mxu0 0
      %404 = vmatprep.subr.bf16.mxu0 0
      %405 = vmatpush1.bf16.msra.mxu0 0
      %406 = vmatprep.subr.bf16.mxu0 %v340
      %407 = vmatpush1.bf16.msra.mxu0 %v339
      %408 = vmatprep.subr.bf16.mxu0 %v338
      %409 = vmatpush1.bf16.msra.mxu0 %v337
      %410 = vmatprep.subr.bf16.mxu0 %v336
      %411 = vmatpush1.bf16.msra.mxu0 %v335
      %412 = vmatprep.subr.bf16.mxu0 %v334
      %413 = vmatpush1.bf16.msra.mxu0 %v333
      %414 = vmatprep.subr.bf16.mxu0 0
      %415 = vmatpush2.bf16.msra.mxu0 0
      %416 = vmatprep.subr.bf16.mxu0 0
      %417 = vmatpush2.bf16.msra.mxu0 0
      %418 = vmatprep.subr.bf16.mxu0 0
      %419 = vmatpush2.bf16.msra.mxu0 0
      %420 = vmatprep.subr.bf16.mxu0 0
      %421 = vmatpush2.bf16.msra.mxu0 0
      %422 = vmatprep.subr.bf16.mxu0 0
      %423 = vmatpush2.bf16.msra.mxu0 0
      %424 = vmatprep.subr.bf16.mxu0 0
      %425 = vmatpush2.bf16.msra.mxu0 0
      %426 = vmatprep.subr.bf16.mxu0 0
      %427 = vmatpush2.bf16.msra.mxu0 0
      %428 = vmatprep.subr.bf16.mxu0 0
      %429 = vmatpush2.bf16.msra.mxu0 0
      %430 = vmatprep.mubr.bf16.mxu0 0
      %431 = vmatmul.mubr.bf16.gmra.mxu0 %v351
      %v432 = vpop.f32.mrf.mxu0
      %v433 = vadd.f32 %v222, %v432
      %v434 = vpop.f32.mrf.mxu0
      %v435 = vadd.f32 %v226, %v434
      %v436 = vpop.f32.mrf.mxu0
      %v437 = vadd.f32 %v222, %v436
      %v438 = vpop.f32.mrf.mxu0
      %v439 = vadd.f32 %v226, %v438
      %440 = vmatprep.mubr.bf16.mxu0 0
      %441 = vmatmul.mubr.bf16.gmra.mxu0 %v354
      %v442 = vpop.f32.mrf.mxu0
      %v443 = vadd.f32 %v222, %v442
      %v444 = vpop.f32.mrf.mxu0
      %v445 = vadd.f32 %v226, %v444
      %v446 = vpop.f32.mrf.mxu0
      %v447 = vadd.f32 %v222, %v446
      %v448 = vpop.f32.mrf.mxu0
      %v449 = vadd.f32 %v226, %v448
      %450 = vmatprep.mubr.bf16.mxu0 0
      %451 = vmatmul.mubr.bf16.gmra.mxu0 %v357
      %v452 = vpop.f32.mrf.mxu0
      %v453 = vadd.f32 %v222, %v452
      %v454 = vpop.f32.mrf.mxu0
      %v455 = vadd.f32 %v226, %v454
      %v456 = vpop.f32.mrf.mxu0
      %v457 = vadd.f32 %v222, %v456
      %v458 = vpop.f32.mrf.mxu0
      %v459 = vadd.f32 %v226, %v458
      %460 = vmatprep.mubr.bf16.mxu0 0
      %461 = vmatmul.mubr.bf16.gmra.mxu0 %v360
      %v462 = vpop.f32.mrf.mxu0
      %v463 = vadd.f32 %v222, %v462
      %v464 = vpop.f32.mrf.mxu0
      %v465 = vadd.f32 %v226, %v464
      %v466 = vpop.f32.mrf.mxu0
      %v467 = vadd.f32 %v222, %v466
      %v468 = vpop.f32.mrf.mxu0
      %v469 = vadd.f32 %v226, %v468
      %470 = vmatprep.mubr.bf16.mxu0 0
      %471 = vmatmul.mubr.bf16.gmra.mxu0 %v363
      %v472 = vpop.f32.mrf.mxu0
      %v473 = vadd.f32 %v222, %v472
      %v474 = vpop.f32.mrf.mxu0
      %v475 = vadd.f32 %v226, %v474
      %v476 = vpop.f32.mrf.mxu0
      %v477 = vadd.f32 %v222, %v476
      %v478 = vpop.f32.mrf.mxu0
      %v479 = vadd.f32 %v226, %v478
      %480 = vmatprep.mubr.bf16.mxu0 0
      %481 = vmatmul.mubr.bf16.gmra.mxu0 %v366
      %v482 = vpop.f32.mrf.mxu0
      %v483 = vadd.f32 %v222, %v482
      %v484 = vpop.f32.mrf.mxu0
      %v485 = vadd.f32 %v226, %v484
      %v486 = vpop.f32.mrf.mxu0
      %v487 = vadd.f32 %v222, %v486
      %v488 = vpop.f32.mrf.mxu0
      %v489 = vadd.f32 %v226, %v488
      %490 = vmatprep.mubr.bf16.mxu0 0
      %491 = vmatmul.mubr.bf16.gmra.mxu0 %v369
      %v492 = vpop.f32.mrf.mxu0
      %v493 = vadd.f32 %v222, %v492
      %v494 = vpop.f32.mrf.mxu0
      %v495 = vadd.f32 %v226, %v494
      %v496 = vpop.f32.mrf.mxu0
      %v497 = vadd.f32 %v222, %v496
      %v498 = vpop.f32.mrf.mxu0
      %v499 = vadd.f32 %v226, %v498
      %500 = vmatprep.mubr.bf16.mxu0 0
      %501 = vmatmul.mubr.bf16.gmra.mxu0 %v372
      %v502 = vpop.f32.mrf.mxu0
      %v503 = vadd.f32 %v222, %v502
      %v504 = vpop.f32.mrf.mxu0
      %v505 = vadd.f32 %v226, %v504
      %v506 = vpop.f32.mrf.mxu0
      %v507 = vadd.f32 %v222, %v506
      %v508 = vpop.f32.mrf.mxu0
      %v509 = vadd.f32 %v226, %v508
      %510 = vmatprep.mubr.bf16.mxu0 0
      %511 = vmatmul.mubr.bf16.gmra.mxu0 %v375
      %v512 = vpop.f32.mrf.mxu0
      %v513 = vadd.f32 %v222, %v512
      %v514 = vpop.f32.mrf.mxu0
      %v515 = vadd.f32 %v226, %v514
      %v516 = vpop.f32.mrf.mxu0
      %v517 = vadd.f32 %v222, %v516
      %v518 = vpop.f32.mrf.mxu0
      %v519 = vadd.f32 %v226, %v518
      %520 = vmatprep.mubr.bf16.mxu0 0
      %521 = vmatmul.mubr.bf16.gmra.mxu0 %v378
      %v522 = vpop.f32.mrf.mxu0
      %v523 = vadd.f32 %v222, %v522
      %v524 = vpop.f32.mrf.mxu0
      %v525 = vadd.f32 %v226, %v524
      %v526 = vpop.f32.mrf.mxu0
      %v527 = vadd.f32 %v222, %v526
      %v528 = vpop.f32.mrf.mxu0
      %v529 = vadd.f32 %v226, %v528
      %530 = vmatprep.mubr.bf16.mxu0 0
      %531 = vmatmul.mubr.bf16.gmra.mxu0 %v381
      %v532 = vpop.f32.mrf.mxu0
      %v533 = vadd.f32 %v222, %v532
      %v534 = vpop.f32.mrf.mxu0
      %v535 = vadd.f32 %v226, %v534
      %v536 = vpop.f32.mrf.mxu0
      %v537 = vadd.f32 %v222, %v536
      %v538 = vpop.f32.mrf.mxu0
      %v539 = vadd.f32 %v226, %v538
      %540 = vmatprep.mubr.bf16.mxu0 0
      %541 = vmatmul.mubr.bf16.gmra.mxu0 %v384
      %v542 = vpop.f32.mrf.mxu0
      %v543 = vadd.f32 %v222, %v542
      %v544 = vpop.f32.mrf.mxu0
      %v545 = vadd.f32 %v226, %v544
      %v546 = vpop.f32.mrf.mxu0
      %v547 = vadd.f32 %v222, %v546
      %v548 = vpop.f32.mrf.mxu0
      %v549 = vadd.f32 %v226, %v548
      %550 = vmatprep.mubr.bf16.mxu0 0
      %551 = vmatmul.mubr.bf16.gmra.mxu0 %v387
      %v552 = vpop.f32.mrf.mxu0
      %v553 = vadd.f32 %v222, %v552
      %v554 = vpop.f32.mrf.mxu0
      %v555 = vadd.f32 %v226, %v554
      %v556 = vpop.f32.mrf.mxu0
      %v557 = vadd.f32 %v222, %v556
      %v558 = vpop.f32.mrf.mxu0
      %v559 = vadd.f32 %v226, %v558
      %560 = vmatprep.mubr.bf16.mxu0 0
      %561 = vmatmul.mubr.bf16.gmra.mxu0 %v390
      %v562 = vpop.f32.mrf.mxu0
      %v563 = vadd.f32 %v222, %v562
      %v564 = vpop.f32.mrf.mxu0
      %v565 = vadd.f32 %v226, %v564
      %v566 = vpop.f32.mrf.mxu0
      %v567 = vadd.f32 %v222, %v566
      %v568 = vpop.f32.mrf.mxu0
      %v569 = vadd.f32 %v226, %v568
      %570 = vmatprep.mubr.bf16.mxu0 0
      %571 = vmatmul.mubr.bf16.gmra.mxu0 %v393
      %v572 = vpop.f32.mrf.mxu0
      %v573 = vadd.f32 %v222, %v572
      %v574 = vpop.f32.mrf.mxu0
      %v575 = vadd.f32 %v226, %v574
      %v576 = vpop.f32.mrf.mxu0
      %v577 = vadd.f32 %v222, %v576
      %v578 = vpop.f32.mrf.mxu0
      %v579 = vadd.f32 %v226, %v578
      %580 = vmatprep.mubr.bf16.mxu0 0
      %581 = vmatmul.mubr.bf16.gmra.mxu0 %v396
      %v582 = vpop.f32.mrf.mxu0
      %v583 = vadd.f32 %v222, %v582
      %v584 = vpop.f32.mrf.mxu0
      %v585 = vadd.f32 %v226, %v584
      %v586 = vpop.f32.mrf.mxu0
      %v587 = vadd.f32 %v222, %v586
      %v588 = vpop.f32.mrf.mxu0
      %v589 = vadd.f32 %v226, %v588
      %590 = vdwg.mxu0
      %591 = vst [vmem:[%s174] sm:$0xff] %v433
      %592 = vst [vmem:[%s174 + $0x8] sm:$0xff] %v435
      %593 = vst [vmem:[%s174 + $0x10] sm:$0xff] %v437
      %594 = vst [vmem:[%s174 + $0x18] sm:$0xff] %v439
      %595 = vst [vmem:[%s174 + $0x20] sm:$0xff] %v443
      %596 = vst [vmem:[%s174 + $0x28] sm:$0xff] %v445
      %597 = vst [vmem:[%s174 + $0x30] sm:$0xff] %v447
      %598 = vst [vmem:[%s174 + $0x38] sm:$0xff] %v449
      %599 = vst [vmem:[%s174 + $0x40] sm:$0xff] %v453
      %600 = vst [vmem:[%s174 + $0x48] sm:$0xff] %v455
      %601 = vst [vmem:[%s174 + $0x50] sm:$0xff] %v457
      %602 = vst [vmem:[%s174 + $0x58] sm:$0xff] %v459
      %603 = vst [vmem:[%s174 + $0x60] sm:$0xff] %v463
      %604 = vst [vmem:[%s174 + $0x68] sm:$0xff] %v465
      %605 = vst [vmem:[%s174 + $0x70] sm:$0xff] %v467
      %606 = vst [vmem:[%s174 + $0x78] sm:$0xff] %v469
      %607 = vst [vmem:[%s174 + $0x80] sm:$0xff] %v473
      %608 = vst [vmem:[%s174 + $0x88] sm:$0xff] %v475
      %609 = vst [vmem:[%s174 + $0x90] sm:$0xff] %v477
      %610 = vst [vmem:[%s174 + $0x98] sm:$0xff] %v479
      %611 = vst [vmem:[%s174 + $0xa0] sm:$0xff] %v483
      %612 = vst [vmem:[%s174 + $0xa8] sm:$0xff] %v485
      %613 = vst [vmem:[%s174 + $0xb0] sm:$0xff] %v487
      %614 = vst [vmem:[%s174 + $0xb8] sm:$0xff] %v489
      %615 = vst [vmem:[%s174 + $0xc0] sm:$0xff] %v493
      %616 = vst [vmem:[%s174 + $0xc8] sm:$0xff] %v495
      %617 = vst [vmem:[%s174 + $0xd0] sm:$0xff] %v497
      %618 = vst [vmem:[%s174 + $0xd8] sm:$0xff] %v499
      %619 = vst [vmem:[%s174 + $0xe0] sm:$0xff] %v503
      %620 = vst [vmem:[%s174 + $0xe8] sm:$0xff] %v505
      %621 = vst [vmem:[%s174 + $0xf0] sm:$0xff] %v507
      %622 = vst [vmem:[%s174 + $0xf8] sm:$0xff] %v509
      %623 = vst [vmem:[%s174 + $0x100] sm:$0xff] %v513
      %624 = vst [vmem:[%s174 + $0x108] sm:$0xff] %v515
      %625 = vst [vmem:[%s174 + $0x110] sm:$0xff] %v517
      %626 = vst [vmem:[%s174 + $0x118] sm:$0xff] %v519
      %627 = vst [vmem:[%s174 + $0x120] sm:$0xff] %v523
      %628 = vst [vmem:[%s174 + $0x128] sm:$0xff] %v525
      %629 = vst [vmem:[%s174 + $0x130] sm:$0xff] %v527
      %630 = vst [vmem:[%s174 + $0x138] sm:$0xff] %v529
      %631 = vst [vmem:[%s174 + $0x140] sm:$0xff] %v533
      %632 = vst [vmem:[%s174 + $0x148] sm:$0xff] %v535
      %633 = vst [vmem:[%s174 + $0x150] sm:$0xff] %v537
      %634 = vst [vmem:[%s174 + $0x158] sm:$0xff] %v539
      %635 = vst [vmem:[%s174 + $0x160] sm:$0xff] %v543
      %636 = vst [vmem:[%s174 + $0x168] sm:$0xff] %v545
      %637 = vst [vmem:[%s174 + $0x170] sm:$0xff] %v547
      %638 = vst [vmem:[%s174 + $0x178] sm:$0xff] %v549
      %639 = vst [vmem:[%s174 + $0x180] sm:$0xff] %v553
      %640 = vst [vmem:[%s174 + $0x188] sm:$0xff] %v555
      %641 = vst [vmem:[%s174 + $0x190] sm:$0xff] %v557
      %642 = vst [vmem:[%s174 + $0x198] sm:$0xff] %v559
      %643 = vst [vmem:[%s174 + $0x1a0] sm:$0xff] %v563
      %644 = vst [vmem:[%s174 + $0x1a8] sm:$0xff] %v565
      %645 = vst [vmem:[%s174 + $0x1b0] sm:$0xff] %v567
      %646 = vst [vmem:[%s174 + $0x1b8] sm:$0xff] %v569
      %647 = vst [vmem:[%s174 + $0x1c0] sm:$0xff] %v573
      %648 = vst [vmem:[%s174 + $0x1c8] sm:$0xff] %v575
      %649 = vst [vmem:[%s174 + $0x1d0] sm:$0xff] %v577
      %650 = vst [vmem:[%s174 + $0x1d8] sm:$0xff] %v579
      %651 = vst [vmem:[%s174 + $0x1e0] sm:$0xff] %v583
      %652 = vst [vmem:[%s174 + $0x1e8] sm:$0xff] %v585
      %653 = vst [vmem:[%s174 + $0x1f0] sm:$0xff] %v587
      %654 = vst [vmem:[%s174 + $0x1f8] sm:$0xff] %v589
      %s655 = smul.u32 32, %s14
      %p656 = scmp.lt.s32.totalorder %s655, 127
      %s657 = scalar_select %p656, %s655, 127
      %s658 = smul.addr %s657, 2
      %s659 = smul.addr %s658, 8
      %s660 = scalar_lea.vmem %s3, %s659
      // Predicated region
      $region33: #{point_correspondence_forward.13} parent=31 // pred_check
        %p661 = pneg %p100
      $region34: #{point_correspondence_forward.13} parent=31 // pred_check_branch
        %663 = sbr.rel (%p661) target = $region36
      $region35: #{point_correspondence_forward.13} parent=31 // pred_region
        %s664 = smul.u32 32, %s14
      $region36: #{point_correspondence_forward.13} parent=31 // pred_fallthru
        _
    $region32: #{point_correspondence_forward.13} parent=5 // pred_fallthru
      _
    %p665 = scmp.le.s32.totalorder 2, %s9
    // Predicated region
    $region37: #{point_correspondence_forward.13} parent=5 // pred_check
      %p666 = pneg %p665
    $region38: #{point_correspondence_forward.13} parent=5 // pred_check_branch
      %668 = sbr.rel (%p666) target = $region40
    $region39: #{point_correspondence_forward.13} parent=5 // pred_region
      %s669 = ssub.s32 %s9, 2
      // Predicated region
      $region41: #{point_correspondence_forward.13} parent=39 // pred_check
        %p670 = pneg %p106
      $region42: #{point_correspondence_forward.13} parent=39 // pred_check_branch
        %672 = sbr.rel (%p670) target = $region44
      $region43: #{point_correspondence_forward.13} parent=39 // pred_region
        %s673 = smul.u32 32, %s15
        %p674 = scmp.lt.s32.totalorder %s673, 127
        %s675 = scalar_select %p674, %s673, 127
        %s676 = smul.addr %s675, 2
        %s677 = smul.addr %s676, 8
        %s678 = scalar_lea.vmem %s3, %s677
      $region44: #{point_correspondence_forward.13} parent=39 // pred_fallthru
        _
    $region40: #{point_correspondence_forward.13} parent=5 // pred_fallthru
      _
  $region6: #{point_correspondence_forward.13} parent=0 // loop_footer
    %s13 = sadd.s32 1, %s9
  $region7: #{point_correspondence_forward.13} parent=0 // loop_footer_branch
    %8 = sbr.rel target = $region3
  $region8: #{point_correspondence_forward.13} parent=0 // loop_exit
    _

// kernel: point_correspondence_forward.17
$region0: #{point_correspondence_forward.17}
  #allocation0 [shape = 'u32[]', space=smem, size = 0x4, offset = 0x4, fixed_abs, tag = 'smem constant byte address 0x4 - core index']
  #allocation1 [shape = 'u32[144,128]{1,0:T(1,128)}', space=vmem, size = 0x12000, scoped, tag = 'internal scratch']
  #allocation2 [shape = 's32[1]{0}', space=sflag, size = 0x4, scoped, tag = 'scoped memory for point_correspondence_forward.17']
  #allocation3 [shape = 'u8[512]{0}', space=smem, size = 0x200, scoped, tag = 'prefetched SMEM operand 0']
  %s0 = inlined_call_operand.vmem [shape: s32[12], index: 0, kind: input, shape index: {}]
  %s1 = inlined_call_operand.vmem [shape: bf16[1536,2304], index: 1, kind: input, shape index: {}]
  %s2 = inlined_call_operand.vmem [shape: bf16[4,2304,256], index: 2, kind: input, shape index: {}]
  %s3 = inlined_call_operand.vmem [shape: f32[4,1,256], index: 3, kind: input, shape index: {}]
  %s4 = inlined_call_operand.vmem [shape: bf16[256,128], index: 4, kind: input, shape index: {}]
  %s5 = inlined_call_operand.vmem [shape: f32[1,128], index: 5, kind: input, shape index: {}]
  %s6 = inlined_call_operand.vmem [shape: f32[1536,128], index: 6, kind: output, shape index: {}]
  %s7 = sld [smem:[#allocation0]]
  $region53: #{point_correspondence_forward.17} parent=0
    _
  %s9 = ssub.s32 1, %s7
  %s10 = scalar_select 0, %s9, %s7
  %s11 = sshll.u32 %s0, 4
  %s12 = int_to_ptr.vmem [resolvable:$true] %s11
  %14 = dma.vmem_to_smem %s12, 16, [#allocation3], [#allocation2]
  %15 = dma.done [#allocation2], 16
  %16 = sfence
  loop: start=0, step=1, limit=14
  $region2: #{point_correspondence_forward.17} parent=0 // loop_pre_header
    _
  $region3: #{point_correspondence_forward.17} parent=0 // loop_header
    %s18 = sphi 0, %s22
    %p19 = scmp.ge.s32.totalorder %s18, 14
    %s28 = sphi 0, %s30
    %s31 = sphi 0, %s28
    %s32 = sphi 0, %s31
    %s48 = sphi 0, %s32
    %s56 = sphi 0, %s58
    %s59 = sphi 0, %s56
    %s60 = sphi 0, %s59
    %s76 = sphi 0, %s60
    %s84 = sphi 0, %s86
    %s87 = sphi 0, %s84
    %s88 = sphi 0, %s87
    %s104 = sphi 0, %s88
    %s108 = sphi 0, %s108
    %s110 = sphi 0, %s108
    %s111 = sphi 0, %s110
    %s125 = sphi 0, %s111
    %s129 = sphi 0, %s129
    %s131 = sphi 0, %s129
    %s132 = sphi 0, %s131
    %s146 = sphi 0, %s132
    %s152 = sphi 0, %s154
    %s155 = sphi 0, %s152
    %s156 = sphi 0, %s155
    %s172 = sphi 0, %s156
  $region4: #{point_correspondence_forward.17} parent=0 // loop_header_branch
    %21 = sbr.rel (%p19) target = $region8
  $region5: #{point_correspondence_forward.17} parent=0 // loop_body
    %s23 = ssub.s32 %s18, 1
    %s24 = ssub.s32 %s18, 2
    %s25 = sadd.s32 %s18, 1
    %s26 = ssub.s32 %s18, %s25
    %p27 = scmp.eq.s32.totalorder %s26, 0
    %s29 = sadd.s32 %s28, 1
    %s30 = scalar_select %p27, %s28, %s29
    %p33 = pneg %p27
    %p34 = scmp.eq.s32.totalorder %s18, 11
    %p35 = por %p33, %p34
    %p36 = scmp.ne.s32.totalorder %s28, %s31
    %p37 = scmp.eq.s32.totalorder %s18, 0
    %p38 = por %p36, %p37
    %p39 = scmp.ne.s32.totalorder %s28, %s31
    %p40 = scmp.eq.s32.totalorder %s23, 11
    %p41 = por %p39, %p40
    %p42 = scmp.ne.s32.totalorder %s31, %s32
    %p43 = scmp.eq.s32.totalorder %s23, 0
    %p44 = por %p42, %p43
    %p45 = scmp.ne.s32.totalorder %s31, %s32
    %p46 = scmp.eq.s32.totalorder %s24, 11
    %p47 = por %p45, %p46
    %p49 = scmp.ne.s32.totalorder %s32, %s48
    %p50 = scmp.eq.s32.totalorder %s24, 0
    %p51 = por %p49, %p50
    %s52 = sld [smem:[#allocation3 + %s18]]
    %s53 = sld [smem:[#allocation3 + %s25]]
    %s54 = ssub.s32 %s52, %s53
    %p55 = scmp.eq.s32.totalorder %s54, 0
    %s57 = sadd.s32 %s56, 1
    %s58 = scalar_select %p55, %s56, %s57
    %p61 = pneg %p55
    %p62 = scmp.eq.s32.totalorder %s18, 11
    %p63 = por %p61, %p62
    %p64 = scmp.ne.s32.totalorder %s56, %s59
    %p65 = scmp.eq.s32.totalorder %s18, 0
    %p66 = por %p64, %p65
    %p67 = scmp.ne.s32.totalorder %s56, %s59
    %p68 = scmp.eq.s32.totalorder %s23, 11
    %p69 = por %p67, %p68
    %p70 = scmp.ne.s32.totalorder %s59, %s60
    %p71 = scmp.eq.s32.totalorder %s23, 0
    %p72 = por %p70, %p71
    %p73 = scmp.ne.s32.totalorder %s59, %s60
    %p74 = scmp.eq.s32.totalorder %s24, 11
    %p75 = por %p73, %p74
    %p77 = scmp.ne.s32.totalorder %s60, %s76
    %p78 = scmp.eq.s32.totalorder %s24, 0
    %p79 = por %p77, %p78
    %s80 = sld [smem:[#allocation3 + %s18]]
    %s81 = sld [smem:[#allocation3 + %s25]]
    %s82 = ssub.s32 %s80, %s81
    %p83 = scmp.eq.s32.totalorder %s82, 0
    %s85 = sadd.s32 %s84, 1
    %s86 = scalar_select %p83, %s84, %s85
    %p89 = pneg %p83
    %p90 = scmp.eq.s32.totalorder %s18, 11
    %p91 = por %p89, %p90
    %p92 = scmp.ne.s32.totalorder %s84, %s87
    %p93 = scmp.eq.s32.totalorder %s18, 0
    %p94 = por %p92, %p93
    %p95 = scmp.ne.s32.totalorder %s84, %s87
    %p96 = scmp.eq.s32.totalorder %s23, 11
    %p97 = por %p95, %p96
    %p98 = scmp.ne.s32.totalorder %s87, %s88
    %p99 = scmp.eq.s32.totalorder %s23, 0
    %p100 = por %p98, %p99
    %p101 = scmp.ne.s32.totalorder %s87, %s88
    %p102 = scmp.eq.s32.totalorder %s24, 11
    %p103 = por %p101, %p102
    %p105 = scmp.ne.s32.totalorder %s88, %s104
    %p106 = scmp.eq.s32.totalorder %s24, 0
    %p107 = por %p105, %p106
    %s109 = sadd.s32 %s108, 1
    %p112 = scmp.eq.s32.totalorder %s18, 11
    %p113 = scmp.ne.s32.totalorder %s108, %s110
    %p114 = scmp.eq.s32.totalorder %s18, 0
    %p115 = por %p113, %p114
    %p116 = scmp.ne.s32.totalorder %s108, %s110
    %p117 = scmp.eq.s32.totalorder %s23, 11
    %p118 = por %p116, %p117
    %p119 = scmp.ne.s32.totalorder %s110, %s111
    %p120 = scmp.eq.s32.totalorder %s23, 0
    %p121 = por %p119, %p120
    %p122 = scmp.ne.s32.totalorder %s110, %s111
    %p123 = scmp.eq.s32.totalorder %s24, 11
    %p124 = por %p122, %p123
    %p126 = scmp.ne.s32.totalorder %s111, %s125
    %p127 = scmp.eq.s32.totalorder %s24, 0
    %p128 = por %p126, %p127
    %s130 = sadd.s32 %s129, 1
    %p133 = scmp.eq.s32.totalorder %s18, 11
    %p134 = scmp.ne.s32.totalorder %s129, %s131
    %p135 = scmp.eq.s32.totalorder %s18, 0
    %p136 = por %p134, %p135
    %p137 = scmp.ne.s32.totalorder %s129, %s131
    %p138 = scmp.eq.s32.totalorder %s23, 11
    %p139 = por %p137, %p138
    %p140 = scmp.ne.s32.totalorder %s131, %s132
    %p141 = scmp.eq.s32.totalorder %s23, 0
    %p142 = por %p140, %p141
    %p143 = scmp.ne.s32.totalorder %s131, %s132
    %p144 = scmp.eq.s32.totalorder %s24, 11
    %p145 = por %p143, %p144
    %p147 = scmp.ne.s32.totalorder %s132, %s146
    %p148 = scmp.eq.s32.totalorder %s24, 0
    %p149 = por %p147, %p148
    %s150 = ssub.s32 %s18, %s25
    %p151 = scmp.eq.s32.totalorder %s150, 0
    %s153 = sadd.s32 %s152, 1
    %s154 = scalar_select %p151, %s152, %s153
    %p157 = pneg %p151
    %p158 = scmp.eq.s32.totalorder %s18, 11
    %p159 = por %p157, %p158
    %p160 = scmp.ne.s32.totalorder %s152, %s155
    %p161 = scmp.eq.s32.totalorder %s18, 0
    %p162 = por %p160, %p161
    %p163 = scmp.ne.s32.totalorder %s152, %s155
    %p164 = scmp.eq.s32.totalorder %s23, 11
    %p165 = por %p163, %p164
    %p166 = scmp.ne.s32.totalorder %s155, %s156
    %p167 = scmp.eq.s32.totalorder %s23, 0
    %p168 = por %p166, %p167
    %p169 = scmp.ne.s32.totalorder %s155, %s156
    %p170 = scmp.eq.s32.totalorder %s24, 11
    %p171 = por %p169, %p170
    %p173 = scmp.ne.s32.totalorder %s156, %s172
    %p174 = scmp.eq.s32.totalorder %s24, 0
    %p175 = por %p173, %p174
    %p176 = scmp.le.s32.totalorder 1, %s18
    %p177 = scmp.lt.s32.totalorder %s18, 13
    %p178 = pnand %p176, %p177
    %p179 = pneg %p178
    // Predicated region
    $region9: #{point_correspondence_forward.17} parent=5 // pred_check
      _
    $region10: #{point_correspondence_forward.17} parent=5 // pred_check_branch
      %181 = sbr.rel (%p178) target = $region12
    $region11: #{point_correspondence_forward.17} parent=5 // pred_region
      %s182 = ssub.s32 %s18, 1
      // Predicated region
      $region13: #{point_correspondence_forward.17} parent=11 // pred_check
        %p183 = pneg %p121
      $region14: #{point_correspondence_forward.17} parent=11 // pred_check_branch
        %185 = sbr.rel (%p183) target = $region16
      $region15: #{point_correspondence_forward.17} parent=11 // pred_region
        _
      $region16: #{point_correspondence_forward.17} parent=11 // pred_fallthru
        _
      // Predicated region
      $region17: #{point_correspondence_forward.17} parent=11 // pred_check
        %p186 = pneg %p142
      $region18: #{point_correspondence_forward.17} parent=11 // pred_check_branch
        %188 = sbr.rel (%p186) target = $region20
      $region19: #{point_correspondence_forward.17} parent=11 // pred_region
        _
      $region20: #{point_correspondence_forward.17} parent=11 // pred_fallthru
        _
    $region12: #{point_correspondence_forward.17} parent=5 // pred_fallthru
      _
    %p189 = scmp.lt.s32.totalorder %s18, 12
    // Predicated region
    $region21: #{point_correspondence_forward.17} parent=5 // pred_check
      %p190 = pneg %p189
    $region22: #{point_correspondence_forward.17} parent=5 // pred_check_branch
      %192 = sbr.rel (%p190) target = $region24
    $region23: #{point_correspondence_forward.17} parent=5 // pred_region
      // Predicated region
      $region25: #{point_correspondence_forward.17} parent=23 // pred_check
        %p193 = pneg %p38
      $region26: #{point_correspondence_forward.17} parent=23 // pred_check_branch
        %195 = sbr.rel (%p193) target = $region28
      $region27: #{point_correspondence_forward.17} parent=23 // pred_region
        %s196 = smul.u32 16, %s18
        %p197 = scmp.lt.s32.totalorder %s196, 191
        %s198 = scalar_select %p197, %s196, 191
        %s199 = smul.addr %s198, 18
        %s200 = smul.addr %s199, 4
        %s201 = scalar_lea.vmem %s1, %s200
        %s202 = smul.u32 16, %s18
      $region28: #{point_correspondence_forward.17} parent=23 // pred_fallthru
        _
      // Predicated region
      $region29: #{point_correspondence_forward.17} parent=23 // pred_check
        %p203 = pneg %p66
      $region30: #{point_correspondence_forward.17} parent=23 // pred_check_branch
        %205 = sbr.rel (%p203) target = $region32
      $region31: #{point_correspondence_forward.17} parent=23 // pred_region
        %s206 = sld [smem:[#allocation3 + %s18]]
        %p207 = scmp.lt.s32.totalorder %s206, 3
        %s208 = scalar_select %p207, %s206, 3
        %s209 = smul.addr %s208, 576
        %s210 = smul.addr %s209, 4
        %s211 = scalar_lea.vmem %s2, %s210
        %s212 = sld [smem:[#allocation3 + %s18]]
      $region32: #{point_correspondence_forward.17} parent=23 // pred_fallthru
        _
      // Predicated region
      $region33: #{point_correspondence_forward.17} parent=23 // pred_check
        %p213 = pneg %p94
      $region34: #{point_correspondence_forward.17} parent=23 // pred_check_branch
        %215 = sbr.rel (%p213) target = $region36
      $region35: #{point_correspondence_forward.17} parent=23 // pred_region
        %s216 = sld [smem:[#allocation3 + %s18]]
        %p217 = scmp.lt.s32.totalorder %s216, 3
        %s218 = scalar_select %p217, %s216, 3
        %s219 = smul.addr %s218, 2
        %s220 = scalar_lea.vmem %s3, %s219
        %s221 = sld [smem:[#allocation3 + %s18]]
      $region36: #{point_correspondence_forward.17} parent=23 // pred_fallthru
        _
    $region24: #{point_correspondence_forward.17} parent=5 // pred_fallthru
      _
    %p222 = scmp.le.s32.totalorder 1, %s18
    %p223 = scmp.lt.s32.totalorder %s18, 13
    %p224 = pnand %p222, %p223
    %p225 = pneg %p224
    // Predicated region
    $region37: #{point_correspondence_forward.17} parent=5 // pred_check
      _
    $region38: #{point_correspondence_forward.17} parent=5 // pred_check_branch
      %227 = sbr.rel (%p224) target = $region40
    $region39: #{point_correspondence_forward.17} parent=5 // pred_region
      %s228 = ssub.s32 %s18, 1
      %s229 = smul.u32 16, %s23
      %p230 = scmp.lt.s32.totalorder %s229, 191
      %s231 = scalar_select %p230, %s229, 191
      %s232 = smul.addr %s231, 18
      %s233 = smul.addr %s232, 4
      %s234 = scalar_lea.vmem %s1, %s233
      %p235 = pneg %p44
      %p236 = pneg %p41
      %s237 = sld [smem:[#allocation3 + %s23]]
      %p238 = scmp.lt.s32.totalorder %s237, 3
      %s239 = scalar_select %p238, %s237, 3
      %s240 = smul.addr %s239, 576
      %s241 = smul.addr %s240, 4
      %s242 = scalar_lea.vmem %s2, %s241
      %p243 = pneg %p72
      %p244 = pneg %p69
      %s245 = sld [smem:[#allocation3 + %s23]]
      %p246 = scmp.lt.s32.totalorder %s245, 3
      %s247 = scalar_select %p246, %s245, 3
      %s248 = smul.addr %s247, 2
      %s249 = scalar_lea.vmem %s3, %s248
      %p250 = pneg %p100
      %p251 = pneg %p97
      %p252 = pneg %p121
      %p253 = pneg %p118
      %p254 = pneg %p142
      %p255 = pneg %p139
      %p256 = pneg %p168
      %p257 = pneg %p165
      %s258 = smul.u32 16, %s23
      %p259 = scmp.lt.s32.totalorder %s258, 191
      %s260 = scalar_select %p259, %s258, 191
      %s261 = smul.addr %s260, 8
      %s262 = scalar_lea.vmem %s6, %s261
      %s263 = smul.u32 16, %s23
      %p264 = scmp.lt.s32.totalorder %s263, 191
      %s265 = scalar_select %p264, %s263, 191
      %s266 = smul.addr %s265, 18
      %s267 = smul.addr %s266, 4
      %s268 = scalar_lea.vmem %s1, %s267
      %s269 = smul.u32 16, %s23
      %s270 = sld [smem:[#allocation3 + %s23]]
      %p271 = scmp.lt.s32.totalorder %s270, 3
      %s272 = scalar_select %p271, %s270, 3
      %s273 = smul.addr %s272, 576
      %s274 = smul.addr %s273, 4
      %s275 = scalar_lea.vmem %s2, %s274
      %s276 = sld [smem:[#allocation3 + %s23]]
      %s277 = sld [smem:[#allocation3 + %s23]]
      %p278 = scmp.lt.s32.totalorder %s277, 3
      %s279 = scalar_select %p278, %s277, 3
      %s280 = smul.addr %s279, 2
      %s281 = scalar_lea.vmem %s3, %s280
      %s282 = sld [smem:[#allocation3 + %s23]]
      %s283 = smul.u32 16, %s23
      %p284 = scmp.lt.s32.totalorder %s283, 191
      %s285 = scalar_select %p284, %s283, 191
      %s286 = smul.addr %s285, 8
      %s287 = scalar_lea.vmem %s6, %s286
      %s288 = smul.u32 16, %s23
      %v290 = vld [vmem:[%s268] sm:$0xff]
      %v291 = vld [vmem:[%s268 + $0x8] sm:$0xff]
      %v292 = vld [vmem:[%s268 + $0x10] sm:$0xff]
      %v293 = vld [vmem:[%s268 + $0x18] sm:$0xff]
      %v294 = vld [vmem:[%s268 + $0x20] sm:$0xff]
      %v295 = vld [vmem:[%s268 + $0x28] sm:$0xff]
      %v296 = vld [vmem:[%s268 + $0x30] sm:$0xff]
      %v297 = vld [vmem:[%s268 + $0x38] sm:$0xff]
      %v298 = vld [vmem:[%s268 + $0x40] sm:$0xff]
      %v299 = vld [vmem:[%s268 + $0x48] sm:$0xff]
      %v300 = vld [vmem:[%s268 + $0x50] sm:$0xff]
      %v301 = vld [vmem:[%s268 + $0x58] sm:$0xff]
      %v302 = vld [vmem:[%s268 + $0x60] sm:$0xff]
      %v303 = vld [vmem:[%s268 + $0x68] sm:$0xff]
      %v304 = vld [vmem:[%s268 + $0x70] sm:$0xff]
      %v305 = vld [vmem:[%s268 + $0x78] sm:$0xff]
      %v306 = vld [vmem:[%s268 + $0x80] sm:$0xff]
      %v307 = vld [vmem:[%s268 + $0x88] sm:$0xff]
      %v308 = vld [vmem:[%s268 + $0x90] sm:$0xff]
      %v309 = vld [vmem:[%s268 + $0x98] sm:$0xff]
      %v310 = vld [vmem:[%s268 + $0xa0] sm:$0xff]
      %v311 = vld [vmem:[%s268 + $0xa8] sm:$0xff]
      %v312 = vld [vmem:[%s268 + $0xb0] sm:$0xff]
      %v313 = vld [vmem:[%s268 + $0xb8] sm:$0xff]
      %v314 = vld [vmem:[%s268 + $0xc0] sm:$0xff]
      %v315 = vld [vmem:[%s268 + $0xc8] sm:$0xff]
      %v316 = vld [vmem:[%s268 + $0xd0] sm:$0xff]
      %v317 = vld [vmem:[%s268 + $0xd8] sm:$0xff]
      %v318 = vld [vmem:[%s268 + $0xe0] sm:$0xff]
      %v319 = vld [vmem:[%s268 + $0xe8] sm:$0xff]
      %v320 = vld [vmem:[%s268 + $0xf0] sm:$0xff]
      %v321 = vld [vmem:[%s268 + $0xf8] sm:$0xff]
      %v322 = vld [vmem:[%s268 + $0x100] sm:$0xff]
      %v323 = vld [vmem:[%s268 + $0x108] sm:$0xff]
      %v324 = vld [vmem:[%s268 + $0x110] sm:$0xff]
      %v325 = vld [vmem:[%s268 + $0x118] sm:$0xff]
      %v326 = vld [vmem:[%s268 + $0x120] sm:$0xff]
      %v327 = vld [vmem:[%s268 + $0x128] sm:$0xff]
      %v328 = vld [vmem:[%s268 + $0x130] sm:$0xff]
      %v329 = vld [vmem:[%s268 + $0x138] sm:$0xff]
      %v330 = vld [vmem:[%s268 + $0x140] sm:$0xff]
      %v331 = vld [vmem:[%s268 + $0x148] sm:$0xff]
      %v332 = vld [vmem:[%s268 + $0x150] sm:$0xff]
      %v333 = vld [vmem:[%s268 + $0x158] sm:$0xff]
      %v334 = vld [vmem:[%s268 + $0x160] sm:$0xff]
      %v335 = vld [vmem:[%s268 + $0x168] sm:$0xff]
      %v336 = vld [vmem:[%s268 + $0x170] sm:$0xff]
      %v337 = vld [vmem:[%s268 + $0x178] sm:$0xff]
      %v338 = vld [vmem:[%s268 + $0x180] sm:$0xff]
      %v339 = vld [vmem:[%s268 + $0x188] sm:$0xff]
      %v340 = vld [vmem:[%s268 + $0x190] sm:$0xff]
      %v341 = vld [vmem:[%s268 + $0x198] sm:$0xff]
      %v342 = vld [vmem:[%s268 + $0x1a0] sm:$0xff]
      %v343 = vld [vmem:[%s268 + $0x1a8] sm:$0xff]
      %v344 = vld [vmem:[%s268 + $0x1b0] sm:$0xff]
      %v345 = vld [vmem:[%s268 + $0x1b8] sm:$0xff]
      %v346 = vld [vmem:[%s268 + $0x1c0] sm:$0xff]
      %v347 = vld [vmem:[%s268 + $0x1c8] sm:$0xff]
      %v348 = vld [vmem:[%s268 + $0x1d0] sm:$0xff]
      %v349 = vld [vmem:[%s268 + $0x1d8] sm:$0xff]
      %v350 = vld [vmem:[%s268 + $0x1e0] sm:$0xff]
      %v351 = vld [vmem:[%s268 + $0x1e8] sm:$0xff]
      %v352 = vld [vmem:[%s268 + $0x1f0] sm:$0xff]
      %v353 = vld [vmem:[%s268 + $0x1f8] sm:$0xff]
      %v354 = vld [vmem:[%s268 + $0x200] sm:$0xff]
      %v355 = vld [vmem:[%s268 + $0x208] sm:$0xff]
      %v356 = vld [vmem:[%s268 + $0x210] sm:$0xff]
      %v357 = vld [vmem:[%s268 + $0x218] sm:$0xff]
      %v358 = vld [vmem:[%s268 + $0x220] sm:$0xff]
      %v359 = vld [vmem:[%s268 + $0x228] sm:$0xff]
      %v360 = vld [vmem:[%s268 + $0x230] sm:$0xff]
      %v361 = vld [vmem:[%s268 + $0x238] sm:$0xff]
      %v362 = vld [vmem:[%s268 + $0x240] sm:$0xff]
      %v363 = vld [vmem:[%s268 + $0x248] sm:$0xff]
      %v364 = vld [vmem:[%s268 + $0x250] sm:$0xff]
      %v365 = vld [vmem:[%s268 + $0x258] sm:$0xff]
      %v366 = vld [vmem:[%s268 + $0x260] sm:$0xff]
      %v367 = vld [vmem:[%s268 + $0x268] sm:$0xff]
      %v368 = vld [vmem:[%s268 + $0x270] sm:$0xff]
      %v369 = vld [vmem:[%s268 + $0x278] sm:$0xff]
      %v370 = vld [vmem:[%s268 + $0x280] sm:$0xff]
      %v371 = vld [vmem:[%s268 + $0x288] sm:$0xff]
      %v372 = vld [vmem:[%s268 + $0x290] sm:$0xff]
      %v373 = vld [vmem:[%s268 + $0x298] sm:$0xff]
      %v374 = vld [vmem:[%s268 + $0x2a0] sm:$0xff]
      %v375 = vld [vmem:[%s268 + $0x2a8] sm:$0xff]
      %v376 = vld [vmem:[%s268 + $0x2b0] sm:$0xff]
      %v377 = vld [vmem:[%s268 + $0x2b8] sm:$0xff]
      %v378 = vld [vmem:[%s268 + $0x2c0] sm:$0xff]
      %v379 = vld [vmem:[%s268 + $0x2c8] sm:$0xff]
      %v380 = vld [vmem:[%s268 + $0x2d0] sm:$0xff]
      %v381 = vld [vmem:[%s268 + $0x2d8] sm:$0xff]
      %v382 = vld [vmem:[%s268 + $0x2e0] sm:$0xff]
      %v383 = vld [vmem:[%s268 + $0x2e8] sm:$0xff]
      %v384 = vld [vmem:[%s268 + $0x2f0] sm:$0xff]
      %v385 = vld [vmem:[%s268 + $0x2f8] sm:$0xff]
      %v386 = vld [vmem:[%s268 + $0x300] sm:$0xff]
      %v387 = vld [vmem:[%s268 + $0x308] sm:$0xff]
      %v388 = vld [vmem:[%s268 + $0x310] sm:$0xff]
      %v389 = vld [vmem:[%s268 + $0x318] sm:$0xff]
      %v390 = vld [vmem:[%s268 + $0x320] sm:$0xff]
      %v391 = vld [vmem:[%s268 + $0x328] sm:$0xff]
      %v392 = vld [vmem:[%s268 + $0x330] sm:$0xff]
      %v393 = vld [vmem:[%s268 + $0x338] sm:$0xff]
      %v394 = vld [vmem:[%s268 + $0x340] sm:$0xff]
      %v395 = vld [vmem:[%s268 + $0x348] sm:$0xff]
      %v396 = vld [vmem:[%s268 + $0x350] sm:$0xff]
      %v397 = vld [vmem:[%s268 + $0x358] sm:$0xff]
      %v398 = vld [vmem:[%s268 + $0x360] sm:$0xff]
      %v399 = vld [vmem:[%s268 + $0x368] sm:$0xff]
      %v400 = vld [vmem:[%s268 + $0x370] sm:$0xff]
      %v401 = vld [vmem:[%s268 + $0x378] sm:$0xff]
      %v402 = vld [vmem:[%s268 + $0x380] sm:$0xff]
      %v403 = vld [vmem:[%s268 + $0x388] sm:$0xff]
      %v404 = vld [vmem:[%s268 + $0x390] sm:$0xff]
      %v405 = vld [vmem:[%s268 + $0x398] sm:$0xff]
      %v406 = vld [vmem:[%s268 + $0x3a0] sm:$0xff]
      %v407 = vld [vmem:[%s268 + $0x3a8] sm:$0xff]
      %v408 = vld [vmem:[%s268 + $0x3b0] sm:$0xff]
      %v409 = vld [vmem:[%s268 + $0x3b8] sm:$0xff]
      %v410 = vld [vmem:[%s268 + $0x3c0] sm:$0xff]
      %v411 = vld [vmem:[%s268 + $0x3c8] sm:$0xff]
      %v412 = vld [vmem:[%s268 + $0x3d0] sm:$0xff]
      %v413 = vld [vmem:[%s268 + $0x3d8] sm:$0xff]
      %v414 = vld [vmem:[%s268 + $0x3e0] sm:$0xff]
      %v415 = vld [vmem:[%s268 + $0x3e8] sm:$0xff]
      %v416 = vld [vmem:[%s268 + $0x3f0] sm:$0xff]
      %v417 = vld [vmem:[%s268 + $0x3f8] sm:$0xff]
      %v418 = vld [vmem:[%s268 + $0x400] sm:$0xff]
      %v419 = vld [vmem:[%s268 + $0x408] sm:$0xff]
      %v420 = vld [vmem:[%s268 + $0x410] sm:$0xff]
      %v421 = vld [vmem:[%s268 + $0x418] sm:$0xff]
      %v422 = vld [vmem:[%s268 + $0x420] sm:$0xff]
      %v423 = vld [vmem:[%s268 + $0x428] sm:$0xff]
      %v424 = vld [vmem:[%s268 + $0x430] sm:$0xff]
      %v425 = vld [vmem:[%s268 + $0x438] sm:$0xff]
      %v426 = vld [vmem:[%s268 + $0x440] sm:$0xff]
      %v427 = vld [vmem:[%s268 + $0x448] sm:$0xff]
      %v428 = vld [vmem:[%s268 + $0x450] sm:$0xff]
      %v429 = vld [vmem:[%s268 + $0x458] sm:$0xff]
      %v430 = vld [vmem:[%s268 + $0x460] sm:$0xff]
      %v431 = vld [vmem:[%s268 + $0x468] sm:$0xff]
      %v432 = vld [vmem:[%s268 + $0x470] sm:$0xff]
      %v433 = vld [vmem:[%s268 + $0x478] sm:$0xff]
      %v434 = vld [vmem:[%s275] sm:$0xff]
      %v435 = vld [vmem:[%s275 + $0x8] sm:$0xff]
      %v436 = vld [vmem:[%s275 + $0x10] sm:$0xff]
      %v437 = vld [vmem:[%s275 + $0x18] sm:$0xff]
      %v438 = vld [vmem:[%s275 + $0x20] sm:$0xff]
      %v439 = vld [vmem:[%s275 + $0x28] sm:$0xff]
      %v440 = vld [vmem:[%s275 + $0x30] sm:$0xff]
      %v441 = vld [vmem:[%s275 + $0x38] sm:$0xff]
      %v442 = vld [vmem:[%s275 + $0x40] sm:$0xff]
      %v443 = vld [vmem:[%s275 + $0x48] sm:$0xff]
      %v444 = vld [vmem:[%s275 + $0x50] sm:$0xff]
      %v445 = vld [vmem:[%s275 + $0x58] sm:$0xff]
      %v446 = vld [vmem:[%s275 + $0x60] sm:$0xff]
      %v447 = vld [vmem:[%s275 + $0x68] sm:$0xff]
      %v448 = vld [vmem:[%s275 + $0x70] sm:$0xff]
      %v449 = vld [vmem:[%s275 + $0x78] sm:$0xff]
      %v450 = vld [vmem:[%s275 + $0x80] sm:$0xff]
      %v451 = vld [vmem:[%s275 + $0x88] sm:$0xff]
      %v452 = vld [vmem:[%s275 + $0x90] sm:$0xff]
      %v453 = vld [vmem:[%s275 + $0x98] sm:$0xff]
      %v454 = vld [vmem:[%s275 + $0xa0] sm:$0xff]
      %v455 = vld [vmem:[%s275 + $0xa8] sm:$0xff]
      %v456 = vld [vmem:[%s275 + $0xb0] sm:$0xff]
      %v457 = vld [vmem:[%s275 + $0xb8] sm:$0xff]
      %v458 = vld [vmem:[%s275 + $0xc0] sm:$0xff]
      %v459 = vld [vmem:[%s275 + $0xc8] sm:$0xff]
      %v460 = vld [vmem:[%s275 + $0xd0] sm:$0xff]
      %v461 = vld [vmem:[%s275 + $0xd8] sm:$0xff]
      %v462 = vld [vmem:[%s275 + $0xe0] sm:$0xff]
      %v463 = vld [vmem:[%s275 + $0xe8] sm:$0xff]
      %v464 = vld [vmem:[%s275 + $0xf0] sm:$0xff]
      %v465 = vld [vmem:[%s275 + $0xf8] sm:$0xff]
      %v466 = vld [vmem:[%s275 + $0x100] sm:$0xff]
      %v467 = vld [vmem:[%s275 + $0x108] sm:$0xff]
      %v468 = vld [vmem:[%s275 + $0x110] sm:$0xff]
      %v469 = vld [vmem:[%s275 + $0x118] sm:$0xff]
      %v470 = vld [vmem:[%s275 + $0x120] sm:$0xff]
      %v471 = vld [vmem:[%s275 + $0x128] sm:$0xff]
      %v472 = vld [vmem:[%s275 + $0x130] sm:$0xff]
      %v473 = vld [vmem:[%s275 + $0x138] sm:$0xff]
      %v474 = vld [vmem:[%s275 + $0x140] sm:$0xff]
      %v475 = vld [vmem:[%s275 + $0x148] sm:$0xff]
      %v476 = vld [vmem:[%s275 + $0x150] sm:$0xff]
      %v477 = vld [vmem:[%s275 + $0x158] sm:$0xff]
      %v478 = vld [vmem:[%s275 + $0x160] sm:$0xff]
      %v479 = vld [vmem:[%s275 + $0x168] sm:$0xff]
      %v480 = vld [vmem:[%s275 + $0x170] sm:$0xff]
      %v481 = vld [vmem:[%s275 + $0x178] sm:$0xff]
      %v482 = vld [vmem:[%s275 + $0x180] sm:$0xff]
      %v483 = vld [vmem:[%s275 + $0x188] sm:$0xff]
      %v484 = vld [vmem:[%s275 + $0x190] sm:$0xff]
      %v485 = vld [vmem:[%s275 + $0x198] sm:$0xff]
      %v486 = vld [vmem:[%s275 + $0x1a0] sm:$0xff]
      %v487 = vld [vmem:[%s275 + $0x1a8] sm:$0xff]
      %v488 = vld [vmem:[%s275 + $0x1b0] sm:$0xff]
      %v489 = vld [vmem:[%s275 + $0x1b8] sm:$0xff]
      %v490 = vld [vmem:[%s275 + $0x1c0] sm:$0xff]
      %v491 = vld [vmem:[%s275 + $0x1c8] sm:$0xff]
      %v492 = vld [vmem:[%s275 + $0x1d0] sm:$0xff]
      %v493 = vld [vmem:[%s275 + $0x1d8] sm:$0xff]
      %v494 = vld [vmem:[%s275 + $0x1e0] sm:$0xff]
      %v495 = vld [vmem:[%s275 + $0x1e8] sm:$0xff]
      %v496 = vld [vmem:[%s275 + $0x1f0] sm:$0xff]
      %v497 = vld [vmem:[%s275 + $0x1f8] sm:$0xff]
      %v498 = vld [vmem:[%s275 + $0x200] sm:$0xff]
      %v499 = vld [vmem:[%s275 + $0x208] sm:$0xff]
      %v500 = vld [vmem:[%s275 + $0x210] sm:$0xff]
      %v501 = vld [vmem:[%s275 + $0x218] sm:$0xff]
      %v502 = vld [vmem:[%s275 + $0x220] sm:$0xff]
      %v503 = vld [vmem:[%s275 + $0x228] sm:$0xff]
      %v504 = vld [vmem:[%s275 + $0x230] sm:$0xff]
      %v505 = vld [vmem:[%s275 + $0x238] sm:$0xff]
      %v506 = vld [vmem:[%s275 + $0x240] sm:$0xff]
      %v507 = vld [vmem:[%s275 + $0x248] sm:$0xff]
      %v508 = vld [vmem:[%s275 + $0x250] sm:$0xff]
      %v509 = vld [vmem:[%s275 + $0x258] sm:$0xff]
      %v510 = vld [vmem:[%s275 + $0x260] sm:$0xff]
      %v511 = vld [vmem:[%s275 + $0x268] sm:$0xff]
      %v512 = vld [vmem:[%s275 + $0x270] sm:$0xff]
      %v513 = vld [vmem:[%s275 + $0x278] sm:$0xff]
      %v514 = vld [vmem:[%s275 + $0x280] sm:$0xff]
      %v515 = vld [vmem:[%s275 + $0x288] sm:$0xff]
      %v516 = vld [vmem:[%s275 + $0x290] sm:$0xff]
      %v517 = vld [vmem:[%s275 + $0x298] sm:$0xff]
      %v518 = vld [vmem:[%s275 + $0x2a0] sm:$0xff]
      %v519 = vld [vmem:[%s275 + $0x2a8] sm:$0xff]
      %v520 = vld [vmem:[%s275 + $0x2b0] sm:$0xff]
      %v521 = vld [vmem:[%s275 + $0x2b8] sm:$0xff]
      %v522 = vld [vmem:[%s275 + $0x2c0] sm:$0xff]
      %v523 = vld [vmem:[%s275 + $0x2c8] sm:$0xff]
      %v524 = vld [vmem:[%s275 + $0x2d0] sm:$0xff]
      %v525 = vld [vmem:[%s275 + $0x2d8] sm:$0xff]
      %v526 = vld [vmem:[%s275 + $0x2e0] sm:$0xff]
      %v527 = vld [vmem:[%s275 + $0x2e8] sm:$0xff]
      %v528 = vld [vmem:[%s275 + $0x2f0] sm:$0xff]
      %v529 = vld [vmem:[%s275 + $0x2f8] sm:$0xff]
      %v530 = vld [vmem:[%s275 + $0x300] sm:$0xff]
      %v531 = vld [vmem:[%s275 + $0x308] sm:$0xff]
      %v532 = vld [vmem:[%s275 + $0x310] sm:$0xff]
      %v533 = vld [vmem:[%s275 + $0x318] sm:$0xff]
      %v534 = vld [vmem:[%s275 + $0x320] sm:$0xff]
      %v535 = vld [vmem:[%s275 + $0x328] sm:$0xff]
      %v536 = vld [vmem:[%s275 + $0x330] sm:$0xff]
      %v537 = vld [vmem:[%s275 + $0x338] sm:$0xff]
      %v538 = vld [vmem:[%s275 + $0x340] sm:$0xff]
      %v539 = vld [vmem:[%s275 + $0x348] sm:$0xff]
      %v540 = vld [vmem:[%s275 + $0x350] sm:$0xff]
      %v541 = vld [vmem:[%s275 + $0x358] sm:$0xff]
      %v542 = vld [vmem:[%s275 + $0x360] sm:$0xff]
      %v543 = vld [vmem:[%s275 + $0x368] sm:$0xff]
      %v544 = vld [vmem:[%s275 + $0x370] sm:$0xff]
      %v545 = vld [vmem:[%s275 + $0x378] sm:$0xff]
      %v546 = vld [vmem:[%s275 + $0x380] sm:$0xff]
      %v547 = vld [vmem:[%s275 + $0x388] sm:$0xff]
      %v548 = vld [vmem:[%s275 + $0x390] sm:$0xff]
      %v549 = vld [vmem:[%s275 + $0x398] sm:$0xff]
      %v550 = vld [vmem:[%s275 + $0x3a0] sm:$0xff]
      %v551 = vld [vmem:[%s275 + $0x3a8] sm:$0xff]
      %v552 = vld [vmem:[%s275 + $0x3b0] sm:$0xff]
      %v553 = vld [vmem:[%s275 + $0x3b8] sm:$0xff]
      %v554 = vld [vmem:[%s275 + $0x3c0] sm:$0xff]
      %v555 = vld [vmem:[%s275 + $0x3c8] sm:$0xff]
      %v556 = vld [vmem:[%s275 + $0x3d0] sm:$0xff]
      %v557 = vld [vmem:[%s275 + $0x3d8] sm:$0xff]
      %v558 = vld [vmem:[%s275 + $0x3e0] sm:$0xff]
      %v559 = vld [vmem:[%s275 + $0x3e8] sm:$0xff]
      %v560 = vld [vmem:[%s275 + $0x3f0] sm:$0xff]
      %v561 = vld [vmem:[%s275 + $0x3f8] sm:$0xff]
      %v562 = vld [vmem:[%s275 + $0x400] sm:$0xff]
      %v563 = vld [vmem:[%s275 + $0x408] sm:$0xff]
      %v564 = vld [vmem:[%s275 + $0x410] sm:$0xff]
      %v565 = vld [vmem:[%s275 + $0x418] sm:$0xff]
      %v566 = vld [vmem:[%s275 + $0x420] sm:$0xff]
      %v567 = vld [vmem:[%s275 + $0x428] sm:$0xff]
      %v568 = vld [vmem:[%s275 + $0x430] sm:$0xff]
      %v569 = vld [vmem:[%s275 + $0x438] sm:$0xff]
      %v570 = vld [vmem:[%s275 + $0x440] sm:$0xff]
      %v571 = vld [vmem:[%s275 + $0x448] sm:$0xff]
      %v572 = vld [vmem:[%s275 + $0x450] sm:$0xff]
      %v573 = vld [vmem:[%s275 + $0x458] sm:$0xff]
      %v574 = vld [vmem:[%s275 + $0x460] sm:$0xff]
      %v575 = vld [vmem:[%s275 + $0x468] sm:$0xff]
      %v576 = vld [vmem:[%s275 + $0x470] sm:$0xff]
      %v577 = vld [vmem:[%s275 + $0x478] sm:$0xff]
      %v578 = vld [vmem:[%s275 + $0x480] sm:$0xff]
      %v579 = vld [vmem:[%s275 + $0x488] sm:$0xff]
      %v580 = vld [vmem:[%s275 + $0x490] sm:$0xff]
      %v581 = vld [vmem:[%s275 + $0x498] sm:$0xff]
      %v582 = vld [vmem:[%s275 + $0x4a0] sm:$0xff]
      %v583 = vld [vmem:[%s275 + $0x4a8] sm:$0xff]
      %v584 = vld [vmem:[%s275 + $0x4b0] sm:$0xff]
      %v585 = vld [vmem:[%s275 + $0x4b8] sm:$0xff]
      %v586 = vld [vmem:[%s275 + $0x4c0] sm:$0xff]
      %v587 = vld [vmem:[%s275 + $0x4c8] sm:$0xff]
      %v588 = vld [vmem:[%s275 + $0x4d0] sm:$0xff]
      %v589 = vld [vmem:[%s275 + $0x4d8] sm:$0xff]
      %v590 = vld [vmem:[%s275 + $0x4e0] sm:$0xff]
      %v591 = vld [vmem:[%s275 + $0x4e8] sm:$0xff]
      %v592 = vld [vmem:[%s275 + $0x4f0] sm:$0xff]
      %v593 = vld [vmem:[%s275 + $0x4f8] sm:$0xff]
      %v594 = vld [vmem:[%s275 + $0x500] sm:$0xff]
      %v595 = vld [vmem:[%s275 + $0x508] sm:$0xff]
      %v596 = vld [vmem:[%s275 + $0x510] sm:$0xff]
      %v597 = vld [vmem:[%s275 + $0x518] sm:$0xff]
      %v598 = vld [vmem:[%s275 + $0x520] sm:$0xff]
      %v599 = vld [vmem:[%s275 + $0x528] sm:$0xff]
      %v600 = vld [vmem:[%s275 + $0x530] sm:$0xff]
      %v601 = vld [vmem:[%s275 + $0x538] sm:$0xff]
      %v602 = vld [vmem:[%s275 + $0x540] sm:$0xff]
      %v603 = vld [vmem:[%s275 + $0x548] sm:$0xff]
      %v604 = vld [vmem:[%s275 + $0x550] sm:$0xff]
      %v605 = vld [vmem:[%s275 + $0x558] sm:$0xff]
      %v606 = vld [vmem:[%s275 + $0x560] sm:$0xff]
      %v607 = vld [vmem:[%s275 + $0x568] sm:$0xff]
      %v608 = vld [vmem:[%s275 + $0x570] sm:$0xff]
      %v609 = vld [vmem:[%s275 + $0x578] sm:$0xff]
      %v610 = vld [vmem:[%s275 + $0x580] sm:$0xff]
      %v611 = vld [vmem:[%s275 + $0x588] sm:$0xff]
      %v612 = vld [vmem:[%s275 + $0x590] sm:$0xff]
      %v613 = vld [vmem:[%s275 + $0x598] sm:$0xff]
      %v614 = vld [vmem:[%s275 + $0x5a0] sm:$0xff]
      %v615 = vld [vmem:[%s275 + $0x5a8] sm:$0xff]
      %v616 = vld [vmem:[%s275 + $0x5b0] sm:$0xff]
      %v617 = vld [vmem:[%s275 + $0x5b8] sm:$0xff]
      %v618 = vld [vmem:[%s275 + $0x5c0] sm:$0xff]
      %v619 = vld [vmem:[%s275 + $0x5c8] sm:$0xff]
      %v620 = vld [vmem:[%s275 + $0x5d0] sm:$0xff]
      %v621 = vld [vmem:[%s275 + $0x5d8] sm:$0xff]
      %v622 = vld [vmem:[%s275 + $0x5e0] sm:$0xff]
      %v623 = vld [vmem:[%s275 + $0x5e8] sm:$0xff]
      %v624 = vld [vmem:[%s275 + $0x5f0] sm:$0xff]
      %v625 = vld [vmem:[%s275 + $0x5f8] sm:$0xff]
      %v626 = vld [vmem:[%s275 + $0x600] sm:$0xff]
      %v627 = vld [vmem:[%s275 + $0x608] sm:$0xff]
      %v628 = vld [vmem:[%s275 + $0x610] sm:$0xff]
      %v629 = vld [vmem:[%s275 + $0x618] sm:$0xff]
      %v630 = vld [vmem:[%s275 + $0x620] sm:$0xff]
      %v631 = vld [vmem:[%s275 + $0x628] sm:$0xff]
      %v632 = vld [vmem:[%s275 + $0x630] sm:$0xff]
      %v633 = vld [vmem:[%s275 + $0x638] sm:$0xff]
      %v634 = vld [vmem:[%s275 + $0x640] sm:$0xff]
      %v635 = vld [vmem:[%s275 + $0x648] sm:$0xff]
      %v636 = vld [vmem:[%s275 + $0x650] sm:$0xff]
      %v637 = vld [vmem:[%s275 + $0x658] sm:$0xff]
      %v638 = vld [vmem:[%s275 + $0x660] sm:$0xff]
      %v639 = vld [vmem:[%s275 + $0x668] sm:$0xff]
      %v640 = vld [vmem:[%s275 + $0x670] sm:$0xff]
      %v641 = vld [vmem:[%s275 + $0x678] sm:$0xff]
      %v642 = vld [vmem:[%s275 + $0x680] sm:$0xff]
      %v643 = vld [vmem:[%s275 + $0x688] sm:$0xff]
      %v644 = vld [vmem:[%s275 + $0x690] sm:$0xff]
      %v645 = vld [vmem:[%s275 + $0x698] sm:$0xff]
      %v646 = vld [vmem:[%s275 + $0x6a0] sm:$0xff]
      %v647 = vld [vmem:[%s275 + $0x6a8] sm:$0xff]
      %v648 = vld [vmem:[%s275 + $0x6b0] sm:$0xff]
      %v649 = vld [vmem:[%s275 + $0x6b8] sm:$0xff]
      %v650 = vld [vmem:[%s275 + $0x6c0] sm:$0xff]
      %v651 = vld [vmem:[%s275 + $0x6c8] sm:$0xff]
      %v652 = vld [vmem:[%s275 + $0x6d0] sm:$0xff]
      %v653 = vld [vmem:[%s275 + $0x6d8] sm:$0xff]
      %v654 = vld [vmem:[%s275 + $0x6e0] sm:$0xff]
      %v655 = vld [vmem:[%s275 + $0x6e8] sm:$0xff]
      %v656 = vld [vmem:[%s275 + $0x6f0] sm:$0xff]
      %v657 = vld [vmem:[%s275 + $0x6f8] sm:$0xff]
      %v658 = vld [vmem:[%s275 + $0x700] sm:$0xff]
      %v659 = vld [vmem:[%s275 + $0x708] sm:$0xff]
      %v660 = vld [vmem:[%s275 + $0x710] sm:$0xff]
      %v661 = vld [vmem:[%s275 + $0x718] sm:$0xff]
      %v662 = vld [vmem:[%s275 + $0x720] sm:$0xff]
      %v663 = vld [vmem:[%s275 + $0x728] sm:$0xff]
      %v664 = vld [vmem:[%s275 + $0x730] sm:$0xff]
      %v665 = vld [vmem:[%s275 + $0x738] sm:$0xff]
      %v666 = vld [vmem:[%s275 + $0x740] sm:$0xff]
      %v667 = vld [vmem:[%s275 + $0x748] sm:$0xff]
      %v668 = vld [vmem:[%s275 + $0x750] sm:$0xff]
      %v669 = vld [vmem:[%s275 + $0x758] sm:$0xff]
      %v670 = vld [vmem:[%s275 + $0x760] sm:$0xff]
      %v671 = vld [vmem:[%s275 + $0x768] sm:$0xff]
      %v672 = vld [vmem:[%s275 + $0x770] sm:$0xff]
      %v673 = vld [vmem:[%s275 + $0x778] sm:$0xff]
      %v674 = vld [vmem:[%s275 + $0x780] sm:$0xff]
      %v675 = vld [vmem:[%s275 + $0x788] sm:$0xff]
      %v676 = vld [vmem:[%s275 + $0x790] sm:$0xff]
      %v677 = vld [vmem:[%s275 + $0x798] sm:$0xff]
      %v678 = vld [vmem:[%s275 + $0x7a0] sm:$0xff]
      %v679 = vld [vmem:[%s275 + $0x7a8] sm:$0xff]
      %v680 = vld [vmem:[%s275 + $0x7b0] sm:$0xff]
      %v681 = vld [vmem:[%s275 + $0x7b8] sm:$0xff]
      %v682 = vld [vmem:[%s275 + $0x7c0] sm:$0xff]
      %v683 = vld [vmem:[%s275 + $0x7c8] sm:$0xff]
      %v684 = vld [vmem:[%s275 + $0x7d0] sm:$0xff]
      %v685 = vld [vmem:[%s275 + $0x7d8] sm:$0xff]
      %v686 = vld [vmem:[%s275 + $0x7e0] sm:$0xff]
      %v687 = vld [vmem:[%s275 + $0x7e8] sm:$0xff]
      %v688 = vld [vmem:[%s275 + $0x7f0] sm:$0xff]
      %v689 = vld [vmem:[%s275 + $0x7f8] sm:$0xff]
      %v690 = vld [vmem:[%s275 + $0x800] sm:$0xff]
      %v691 = vld [vmem:[%s275 + $0x808] sm:$0xff]
      %v692 = vld [vmem:[%s275 + $0x810] sm:$0xff]
      %v693 = vld [vmem:[%s275 + $0x818] sm:$0xff]
      %v694 = vld [vmem:[%s275 + $0x820] sm:$0xff]
      %v695 = vld [vmem:[%s275 + $0x828] sm:$0xff]
      %v696 = vld [vmem:[%s275 + $0x830] sm:$0xff]
      %v697 = vld [vmem:[%s275 + $0x838] sm:$0xff]
      %v698 = vld [vmem:[%s275 + $0x840] sm:$0xff]
      %v699 = vld [vmem:[%s275 + $0x848] sm:$0xff]
      %v700 = vld [vmem:[%s275 + $0x850] sm:$0xff]
      %v701 = vld [vmem:[%s275 + $0x858] sm:$0xff]
      %v702 = vld [vmem:[%s275 + $0x860] sm:$0xff]
      %v703 = vld [vmem:[%s275 + $0x868] sm:$0xff]
      %v704 = vld [vmem:[%s275 + $0x870] sm:$0xff]
      %v705 = vld [vmem:[%s275 + $0x878] sm:$0xff]
      %v706 = vld [vmem:[%s275 + $0x880] sm:$0xff]
      %v707 = vld [vmem:[%s275 + $0x888] sm:$0xff]
      %v708 = vld [vmem:[%s275 + $0x890] sm:$0xff]
      %v709 = vld [vmem:[%s275 + $0x898] sm:$0xff]
      %v710 = vld [vmem:[%s275 + $0x8a0] sm:$0xff]
      %v711 = vld [vmem:[%s275 + $0x8a8] sm:$0xff]
      %v712 = vld [vmem:[%s275 + $0x8b0] sm:$0xff]
      %v713 = vld [vmem:[%s275 + $0x8b8] sm:$0xff]
      %v714 = vld [vmem:[%s275 + $0x8c0] sm:$0xff]
      %v715 = vld [vmem:[%s275 + $0x8c8] sm:$0xff]
      %v716 = vld [vmem:[%s275 + $0x8d0] sm:$0xff]
      %v717 = vld [vmem:[%s275 + $0x8d8] sm:$0xff]
      %v718 = vld [vmem:[%s275 + $0x8e0] sm:$0xff]
      %v719 = vld [vmem:[%s275 + $0x8e8] sm:$0xff]
      %v720 = vld [vmem:[%s275 + $0x8f0] sm:$0xff]
      %v721 = vld [vmem:[%s275 + $0x8f8] sm:$0xff]
      %v722 = vld [vmem:[%s281] sm:$0x3]
      %v724 = vlaneseq
      %v725 = vshrl.u32 %v724, 7
      %v726 = vsub.s32 0, %v725
      %v727 = vrot.slane %v722, %v726
      %v728 = vlaneseq
      %v729 = vshrl.u32 %v728, 7
      %v730 = vsub.s32 1, %v729
      %v731 = vrot.slane %v722, %v730
      %v878 = vunpack.c.l.b16 %v290
      %v879 = vunpack.c.h.b16 %v290
      %v880 = vunpack.c.l.b16 %v291
      %v881 = vunpack.c.h.b16 %v291
      %v882 = vunpack.c.l.b16 %v292
      %v883 = vunpack.c.h.b16 %v292
      %v884 = vunpack.c.l.b16 %v293
      %v885 = vunpack.c.h.b16 %v293
      %v886 = vunpack.c.l.b16 %v294
      %v887 = vunpack.c.h.b16 %v294
      %v888 = vunpack.c.l.b16 %v295
      %v889 = vunpack.c.h.b16 %v295
      %v890 = vunpack.c.l.b16 %v296
      %v891 = vunpack.c.h.b16 %v296
      %v892 = vunpack.c.l.b16 %v297
      %v893 = vunpack.c.h.b16 %v297
      %v894 = vunpack.c.l.b16 %v298
      %v895 = vunpack.c.h.b16 %v298
      %v896 = vunpack.c.l.b16 %v299
      %v897 = vunpack.c.h.b16 %v299
      %v898 = vunpack.c.l.b16 %v300
      %v899 = vunpack.c.h.b16 %v300
      %v900 = vunpack.c.l.b16 %v301
      %v901 = vunpack.c.h.b16 %v301
      %v902 = vunpack.c.l.b16 %v302
      %v903 = vunpack.c.h.b16 %v302
      %v904 = vunpack.c.l.b16 %v303
      %v905 = vunpack.c.h.b16 %v303
      %v906 = vunpack.c.l.b16 %v304
      %v907 = vunpack.c.h.b16 %v304
      %v908 = vunpack.c.l.b16 %v305
      %v909 = vunpack.c.h.b16 %v305
      %v910 = vunpack.c.l.b16 %v306
      %v911 = vunpack.c.h.b16 %v306
      %v912 = vunpack.c.l.b16 %v307
      %v913 = vunpack.c.h.b16 %v307
      %v914 = vunpack.c.l.b16 %v308
      %v915 = vunpack.c.h.b16 %v308
      %v916 = vunpack.c.l.b16 %v309
      %v917 = vunpack.c.h.b16 %v309
      %v918 = vunpack.c.l.b16 %v310
      %v919 = vunpack.c.h.b16 %v310
      %v920 = vunpack.c.l.b16 %v311
      %v921 = vunpack.c.h.b16 %v311
      %v922 = vunpack.c.l.b16 %v312
      %v923 = vunpack.c.h.b16 %v312
      %v924 = vunpack.c.l.b16 %v313
      %v925 = vunpack.c.h.b16 %v313
      %v926 = vunpack.c.l.b16 %v314
      %v927 = vunpack.c.h.b16 %v314
      %v928 = vunpack.c.l.b16 %v315
      %v929 = vunpack.c.h.b16 %v315
      %v930 = vunpack.c.l.b16 %v316
      %v931 = vunpack.c.h.b16 %v316
      %v932 = vunpack.c.l.b16 %v317
      %v933 = vunpack.c.h.b16 %v317
      %v934 = vunpack.c.l.b16 %v318
      %v935 = vunpack.c.h.b16 %v318
      %v936 = vunpack.c.l.b16 %v319
      %v937 = vunpack.c.h.b16 %v319
      %v938 = vunpack.c.l.b16 %v320
      %v939 = vunpack.c.h.b16 %v320
      %v940 = vunpack.c.l.b16 %v321
      %v941 = vunpack.c.h.b16 %v321
      %v942 = vunpack.c.l.b16 %v322
      %v943 = vunpack.c.h.b16 %v322
      %v944 = vunpack.c.l.b16 %v323
      %v945 = vunpack.c.h.b16 %v323
      %v946 = vunpack.c.l.b16 %v324
      %v947 = vunpack.c.h.b16 %v324
      %v948 = vunpack.c.l.b16 %v325
      %v949 = vunpack.c.h.b16 %v325
      %v950 = vunpack.c.l.b16 %v326
      %v951 = vunpack.c.h.b16 %v326
      %v952 = vunpack.c.l.b16 %v327
      %v953 = vunpack.c.h.b16 %v327
      %v954 = vunpack.c.l.b16 %v328
      %v955 = vunpack.c.h.b16 %v328
      %v956 = vunpack.c.l.b16 %v329
      %v957 = vunpack.c.h.b16 %v329
      %v958 = vunpack.c.l.b16 %v330
      %v959 = vunpack.c.h.b16 %v330
      %v960 = vunpack.c.l.b16 %v331
      %v961 = vunpack.c.h.b16 %v331
      %v962 = vunpack.c.l.b16 %v332
      %v963 = vunpack.c.h.b16 %v332
      %v964 = vunpack.c.l.b16 %v333
      %v965 = vunpack.c.h.b16 %v333
      %v966 = vunpack.c.l.b16 %v334
      %v967 = vunpack.c.h.b16 %v334
      %v968 = vunpack.c.l.b16 %v335
      %v969 = vunpack.c.h.b16 %v335
      %v970 = vunpack.c.l.b16 %v336
      %v971 = vunpack.c.h.b16 %v336
      %v972 = vunpack.c.l.b16 %v337
      %v973 = vunpack.c.h.b16 %v337
      %v974 = vunpack.c.l.b16 %v338
      %v975 = vunpack.c.h.b16 %v338
      %v976 = vunpack.c.l.b16 %v339
      %v977 = vunpack.c.h.b16 %v339
      %v978 = vunpack.c.l.b16 %v340
      %v979 = vunpack.c.h.b16 %v340
      %v980 = vunpack.c.l.b16 %v341
      %v981 = vunpack.c.h.b16 %v341
      %v982 = vunpack.c.l.b16 %v342
      %v983 = vunpack.c.h.b16 %v342
      %v984 = vunpack.c.l.b16 %v343
      %v985 = vunpack.c.h.b16 %v343
      %v986 = vunpack.c.l.b16 %v344
      %v987 = vunpack.c.h.b16 %v344
      %v988 = vunpack.c.l.b16 %v345
      %v989 = vunpack.c.h.b16 %v345
      %v990 = vunpack.c.l.b16 %v346
      %v991 = vunpack.c.h.b16 %v346
      %v992 = vunpack.c.l.b16 %v347
      %v993 = vunpack.c.h.b16 %v347
      %v994 = vunpack.c.l.b16 %v348
      %v995 = vunpack.c.h.b16 %v348
      %v996 = vunpack.c.l.b16 %v349
      %v997 = vunpack.c.h.b16 %v349
      %v998 = vunpack.c.l.b16 %v350
      %v999 = vunpack.c.h.b16 %v350
      %v1000 = vunpack.c.l.b16 %v351
      %v1001 = vunpack.c.h.b16 %v351
      %v1002 = vunpack.c.l.b16 %v352
      %v1003 = vunpack.c.h.b16 %v352
      %v1004 = vunpack.c.l.b16 %v353
      %v1005 = vunpack.c.h.b16 %v353
      %v1006 = vunpack.c.l.b16 %v354
      %v1007 = vunpack.c.h.b16 %v354
      %v1008 = vunpack.c.l.b16 %v355
      %v1009 = vunpack.c.h.b16 %v355
      %v1010 = vunpack.c.l.b16 %v356
      %v1011 = vunpack.c.h.b16 %v356
      %v1012 = vunpack.c.l.b16 %v357
      %v1013 = vunpack.c.h.b16 %v357
      %v1014 = vunpack.c.l.b16 %v358
      %v1015 = vunpack.c.h.b16 %v358
      %v1016 = vunpack.c.l.b16 %v359
      %v1017 = vunpack.c.h.b16 %v359
      %v1018 = vunpack.c.l.b16 %v360
      %v1019 = vunpack.c.h.b16 %v360
      %v1020 = vunpack.c.l.b16 %v361
      %v1021 = vunpack.c.h.b16 %v361
      %v1022 = vunpack.c.l.b16 %v362
      %v1023 = vunpack.c.h.b16 %v362
      %v1024 = vunpack.c.l.b16 %v363
      %v1025 = vunpack.c.h.b16 %v363
      %v1026 = vunpack.c.l.b16 %v364
      %v1027 = vunpack.c.h.b16 %v364
      %v1028 = vunpack.c.l.b16 %v365
      %v1029 = vunpack.c.h.b16 %v365
      %v1030 = vunpack.c.l.b16 %v366
      %v1031 = vunpack.c.h.b16 %v366
      %v1032 = vunpack.c.l.b16 %v367
      %v1033 = vunpack.c.h.b16 %v367
      %v1034 = vunpack.c.l.b16 %v368
      %v1035 = vunpack.c.h.b16 %v368
      %v1036 = vunpack.c.l.b16 %v369
      %v1037 = vunpack.c.h.b16 %v369
      %v1038 = vunpack.c.l.b16 %v370
      %v1039 = vunpack.c.h.b16 %v370
      %v1040 = vunpack.c.l.b16 %v371
      %v1041 = vunpack.c.h.b16 %v371
      %v1042 = vunpack.c.l.b16 %v372
      %v1043 = vunpack.c.h.b16 %v372
      %v1044 = vunpack.c.l.b16 %v373
      %v1045 = vunpack.c.h.b16 %v373
      %v1046 = vunpack.c.l.b16 %v374
      %v1047 = vunpack.c.h.b16 %v374
      %v1048 = vunpack.c.l.b16 %v375
      %v1049 = vunpack.c.h.b16 %v375
      %v1050 = vunpack.c.l.b16 %v376
      %v1051 = vunpack.c.h.b16 %v376
      %v1052 = vunpack.c.l.b16 %v377
      %v1053 = vunpack.c.h.b16 %v377
      %v1054 = vunpack.c.l.b16 %v378
      %v1055 = vunpack.c.h.b16 %v378
      %v1056 = vunpack.c.l.b16 %v379
      %v1057 = vunpack.c.h.b16 %v379
      %v1058 = vunpack.c.l.b16 %v380
      %v1059 = vunpack.c.h.b16 %v380
      %v1060 = vunpack.c.l.b16 %v381
      %v1061 = vunpack.c.h.b16 %v381
      %v1062 = vunpack.c.l.b16 %v382
      %v1063 = vunpack.c.h.b16 %v382
      %v1064 = vunpack.c.l.b16 %v383
      %v1065 = vunpack.c.h.b16 %v383
      %v1066 = vunpack.c.l.b16 %v384
      %v1067 = vunpack.c.h.b16 %v384
      %v1068 = vunpack.c.l.b16 %v385
      %v1069 = vunpack.c.h.b16 %v385
      %v1070 = vunpack.c.l.b16 %v386
      %v1071 = vunpack.c.h.b16 %v386
      %v1072 = vunpack.c.l.b16 %v387
      %v1073 = vunpack.c.h.b16 %v387
      %v1074 = vunpack.c.l.b16 %v388
      %v1075 = vunpack.c.h.b16 %v388
      %v1076 = vunpack.c.l.b16 %v389
      %v1077 = vunpack.c.h.b16 %v389
      %v1078 = vunpack.c.l.b16 %v390
      %v1079 = vunpack.c.h.b16 %v390
      %v1080 = vunpack.c.l.b16 %v391
      %v1081 = vunpack.c.h.b16 %v391
      %v1082 = vunpack.c.l.b16 %v392
      %v1083 = vunpack.c.h.b16 %v392
      %v1084 = vunpack.c.l.b16 %v393
      %v1085 = vunpack.c.h.b16 %v393
      %v1086 = vunpack.c.l.b16 %v394
      %v1087 = vunpack.c.h.b16 %v394
      %v1088 = vunpack.c.l.b16 %v395
      %v1089 = vunpack.c.h.b16 %v395
      %v1090 = vunpack.c.l.b16 %v396
      %v1091 = vunpack.c.h.b16 %v396
      %v1092 = vunpack.c.l.b16 %v397
      %v1093 = vunpack.c.h.b16 %v397
      %v1094 = vunpack.c.l.b16 %v398
      %v1095 = vunpack.c.h.b16 %v398
      %v1096 = vunpack.c.l.b16 %v399
      %v1097 = vunpack.c.h.b16 %v399
      %v1098 = vunpack.c.l.b16 %v400
      %v1099 = vunpack.c.h.b16 %v400
      %v1100 = vunpack.c.l.b16 %v401
      %v1101 = vunpack.c.h.b16 %v401
      %v1102 = vunpack.c.l.b16 %v402
      %v1103 = vunpack.c.h.b16 %v402
      %v1104 = vunpack.c.l.b16 %v403
      %v1105 = vunpack.c.h.b16 %v403
      %v1106 = vunpack.c.l.b16 %v404
      %v1107 = vunpack.c.h.b16 %v404
      %v1108 = vunpack.c.l.b16 %v405
      %v1109 = vunpack.c.h.b16 %v405
      %v1110 = vunpack.c.l.b16 %v406
      %v1111 = vunpack.c.h.b16 %v406
      %v1112 = vunpack.c.l.b16 %v407
      %v1113 = vunpack.c.h.b16 %v407
      %v1114 = vunpack.c.l.b16 %v408
      %v1115 = vunpack.c.h.b16 %v408
      %v1116 = vunpack.c.l.b16 %v409
      %v1117 = vunpack.c.h.b16 %v409
      %v1118 = vunpack.c.l.b16 %v410
      %v1119 = vunpack.c.h.b16 %v410
      %v1120 = vunpack.c.l.b16 %v411
      %v1121 = vunpack.c.h.b16 %v411
      %v1122 = vunpack.c.l.b16 %v412
      %v1123 = vunpack.c.h.b16 %v412
      %v1124 = vunpack.c.l.b16 %v413
      %v1125 = vunpack.c.h.b16 %v413
      %v1126 = vunpack.c.l.b16 %v414
      %v1127 = vunpack.c.h.b16 %v414
      %v1128 = vunpack.c.l.b16 %v415
      %v1129 = vunpack.c.h.b16 %v415
      %v1130 = vunpack.c.l.b16 %v416
      %v1131 = vunpack.c.h.b16 %v416
      %v1132 = vunpack.c.l.b16 %v417
      %v1133 = vunpack.c.h.b16 %v417
      %v1134 = vunpack.c.l.b16 %v418
      %v1135 = vunpack.c.h.b16 %v418
      %v1136 = vunpack.c.l.b16 %v419
      %v1137 = vunpack.c.h.b16 %v419
      %v1138 = vunpack.c.l.b16 %v420
      %v1139 = vunpack.c.h.b16 %v420
      %v1140 = vunpack.c.l.b16 %v421
      %v1141 = vunpack.c.h.b16 %v421
      %v1142 = vunpack.c.l.b16 %v422
      %v1143 = vunpack.c.h.b16 %v422
      %v1144 = vunpack.c.l.b16 %v423
      %v1145 = vunpack.c.h.b16 %v423
      %v1146 = vunpack.c.l.b16 %v424
      %v1147 = vunpack.c.h.b16 %v424
      %v1148 = vunpack.c.l.b16 %v425
      %v1149 = vunpack.c.h.b16 %v425
      %v1150 = vunpack.c.l.b16 %v426
      %v1151 = vunpack.c.h.b16 %v426
      %v1152 = vunpack.c.l.b16 %v427
      %v1153 = vunpack.c.h.b16 %v427
      %v1154 = vunpack.c.l.b16 %v428
      %v1155 = vunpack.c.h.b16 %v428
      %v1156 = vunpack.c.l.b16 %v429
      %v1157 = vunpack.c.h.b16 %v429
      %v1158 = vunpack.c.l.b16 %v430
      %v1159 = vunpack.c.h.b16 %v430
      %v1160 = vunpack.c.l.b16 %v431
      %v1161 = vunpack.c.h.b16 %v431
      %v1162 = vunpack.c.l.b16 %v432
      %v1163 = vunpack.c.h.b16 %v432
      %v1164 = vunpack.c.l.b16 %v433
      %v1165 = vunpack.c.h.b16 %v433
      %v1166 = vpack.c.b16 %v896, %v878
      %v1167 = vpack.c.b16 %v897, %v879
      %v1168 = vpack.c.b16 %v898, %v880
      %v1169 = vpack.c.b16 %v899, %v881
      %v1170 = vpack.c.b16 %v900, %v882
      %v1171 = vpack.c.b16 %v901, %v883
      %v1172 = vpack.c.b16 %v902, %v884
      %v1173 = vpack.c.b16 %v903, %v885
      %v1174 = vpack.c.b16 %v904, %v886
      %v1175 = vpack.c.b16 %v905, %v887
      %v1176 = vpack.c.b16 %v906, %v888
      %v1177 = vpack.c.b16 %v907, %v889
      %v1178 = vpack.c.b16 %v908, %v890
      %v1179 = vpack.c.b16 %v909, %v891
      %v1180 = vpack.c.b16 %v910, %v892
      %v1181 = vpack.c.b16 %v911, %v893
      %v1182 = vpack.c.b16 %v912, %v894
      %v1183 = vpack.c.b16 %v913, %v895
      %v1184 = vpack.c.b16 %v932, %v914
      %v1185 = vpack.c.b16 %v933, %v915
      %v1186 = vpack.c.b16 %v934, %v916
      %v1187 = vpack.c.b16 %v935, %v917
      %v1188 = vpack.c.b16 %v936, %v918
      %v1189 = vpack.c.b16 %v937, %v919
      %v1190 = vpack.c.b16 %v938, %v920
      %v1191 = vpack.c.b16 %v939, %v921
      %v1192 = vpack.c.b16 %v940, %v922
      %v1193 = vpack.c.b16 %v941, %v923
      %v1194 = vpack.c.b16 %v942, %v924
      %v1195 = vpack.c.b16 %v943, %v925
      %v1196 = vpack.c.b16 %v944, %v926
      %v1197 = vpack.c.b16 %v945, %v927
      %v1198 = vpack.c.b16 %v946, %v928
      %v1199 = vpack.c.b16 %v947, %v929
      %v1200 = vpack.c.b16 %v948, %v930
      %v1201 = vpack.c.b16 %v949, %v931
      %v1202 = vpack.c.b16 %v968, %v950
      %v1203 = vpack.c.b16 %v969, %v951
      %v1204 = vpack.c.b16 %v970, %v952
      %v1205 = vpack.c.b16 %v971, %v953
      %v1206 = vpack.c.b16 %v972, %v954
      %v1207 = vpack.c.b16 %v973, %v955
      %v1208 = vpack.c.b16 %v974, %v956
      %v1209 = vpack.c.b16 %v975, %v957
      %v1210 = vpack.c.b16 %v976, %v958
      %v1211 = vpack.c.b16 %v977, %v959
      %v1212 = vpack.c.b16 %v978, %v960
      %v1213 = vpack.c.b16 %v979, %v961
      %v1214 = vpack.c.b16 %v980, %v962
      %v1215 = vpack.c.b16 %v981, %v963
      %v1216 = vpack.c.b16 %v982, %v964
      %v1217 = vpack.c.b16 %v983, %v965
      %v1218 = vpack.c.b16 %v984, %v966
      %v1219 = vpack.c.b16 %v985, %v967
      %v1220 = vpack.c.b16 %v1004, %v986
      %v1221 = vpack.c.b16 %v1005, %v987
      %v1222 = vpack.c.b16 %v1006, %v988
      %v1223 = vpack.c.b16 %v1007, %v989
      %v1224 = vpack.c.b16 %v1008, %v990
      %v1225 = vpack.c.b16 %v1009, %v991
      %v1226 = vpack.c.b16 %v1010, %v992
      %v1227 = vpack.c.b16 %v1011, %v993
      %v1228 = vpack.c.b16 %v1012, %v994
      %v1229 = vpack.c.b16 %v1013, %v995
      %v1230 = vpack.c.b16 %v1014, %v996
      %v1231 = vpack.c.b16 %v1015, %v997
      %v1232 = vpack.c.b16 %v1016, %v998
      %v1233 = vpack.c.b16 %v1017, %v999
      %v1234 = vpack.c.b16 %v1018, %v1000
      %v1235 = vpack.c.b16 %v1019, %v1001
      %v1236 = vpack.c.b16 %v1020, %v1002
      %v1237 = vpack.c.b16 %v1021, %v1003
      %v1238 = vpack.c.b16 %v1040, %v1022
      %v1239 = vpack.c.b16 %v1041, %v1023
      %v1240 = vpack.c.b16 %v1042, %v1024
      %v1241 = vpack.c.b16 %v1043, %v1025
      %v1242 = vpack.c.b16 %v1044, %v1026
      %v1243 = vpack.c.b16 %v1045, %v1027
      %v1244 = vpack.c.b16 %v1046, %v1028
      %v1245 = vpack.c.b16 %v1047, %v1029
      %v1246 = vpack.c.b16 %v1048, %v1030
      %v1247 = vpack.c.b16 %v1049, %v1031
      %v1248 = vpack.c.b16 %v1050, %v1032
      %v1249 = vpack.c.b16 %v1051, %v1033
      %v1250 = vpack.c.b16 %v1052, %v1034
      %v1251 = vpack.c.b16 %v1053, %v1035
      %v1252 = vpack.c.b16 %v1054, %v1036
      %v1253 = vpack.c.b16 %v1055, %v1037
      %v1254 = vpack.c.b16 %v1056, %v1038
      %v1255 = vpack.c.b16 %v1057, %v1039
      %v1256 = vpack.c.b16 %v1076, %v1058
      %v1257 = vpack.c.b16 %v1077, %v1059
      %v1258 = vpack.c.b16 %v1078, %v1060
      %v1259 = vpack.c.b16 %v1079, %v1061
      %v1260 = vpack.c.b16 %v1080, %v1062
      %v1261 = vpack.c.b16 %v1081, %v1063
      %v1262 = vpack.c.b16 %v1082, %v1064
      %v1263 = vpack.c.b16 %v1083, %v1065
      %v1264 = vpack.c.b16 %v1084, %v1066
      %v1265 = vpack.c.b16 %v1085, %v1067
      %v1266 = vpack.c.b16 %v1086, %v1068
      %v1267 = vpack.c.b16 %v1087, %v1069
      %v1268 = vpack.c.b16 %v1088, %v1070
      %v1269 = vpack.c.b16 %v1089, %v1071
      %v1270 = vpack.c.b16 %v1090, %v1072
      %v1271 = vpack.c.b16 %v1091, %v1073
      %v1272 = vpack.c.b16 %v1092, %v1074
      %v1273 = vpack.c.b16 %v1093, %v1075
      %v1274 = vpack.c.b16 %v1112, %v1094
      %v1275 = vpack.c.b16 %v1113, %v1095
      %v1276 = vpack.c.b16 %v1114, %v1096
      %v1277 = vpack.c.b16 %v1115, %v1097
      %v1278 = vpack.c.b16 %v1116, %v1098
      %v1279 = vpack.c.b16 %v1117, %v1099
      %v1280 = vpack.c.b16 %v1118, %v1100
      %v1281 = vpack.c.b16 %v1119, %v1101
      %v1282 = vpack.c.b16 %v1120, %v1102
      %v1283 = vpack.c.b16 %v1121, %v1103
      %v1284 = vpack.c.b16 %v1122, %v1104
      %v1285 = vpack.c.b16 %v1123, %v1105
      %v1286 = vpack.c.b16 %v1124, %v1106
      %v1287 = vpack.c.b16 %v1125, %v1107
      %v1288 = vpack.c.b16 %v1126, %v1108
      %v1289 = vpack.c.b16 %v1127, %v1109
      %v1290 = vpack.c.b16 %v1128, %v1110
      %v1291 = vpack.c.b16 %v1129, %v1111
      %v1292 = vpack.c.b16 %v1148, %v1130
      %v1293 = vpack.c.b16 %v1149, %v1131
      %v1294 = vpack.c.b16 %v1150, %v1132
      %v1295 = vpack.c.b16 %v1151, %v1133
      %v1296 = vpack.c.b16 %v1152, %v1134
      %v1297 = vpack.c.b16 %v1153, %v1135
      %v1298 = vpack.c.b16 %v1154, %v1136
      %v1299 = vpack.c.b16 %v1155, %v1137
      %v1300 = vpack.c.b16 %v1156, %v1138
      %v1301 = vpack.c.b16 %v1157, %v1139
      %v1302 = vpack.c.b16 %v1158, %v1140
      %v1303 = vpack.c.b16 %v1159, %v1141
      %v1304 = vpack.c.b16 %v1160, %v1142
      %v1305 = vpack.c.b16 %v1161, %v1143
      %v1306 = vpack.c.b16 %v1162, %v1144
      %v1307 = vpack.c.b16 %v1163, %v1145
      %v1308 = vpack.c.b16 %v1164, %v1146
      %v1309 = vpack.c.b16 %v1165, %v1147
      %v1742 = vunpack.c.l.b16 %v434
      %v1743 = vunpack.c.h.b16 %v434
      %v1744 = vunpack.c.l.b16 %v435
      %v1745 = vunpack.c.h.b16 %v435
      %v1746 = vunpack.c.l.b16 %v436
      %v1747 = vunpack.c.h.b16 %v436
      %v1748 = vunpack.c.l.b16 %v437
      %v1749 = vunpack.c.h.b16 %v437
      %v1750 = vunpack.c.l.b16 %v438
      %v1751 = vunpack.c.h.b16 %v438
      %v1752 = vunpack.c.l.b16 %v439
      %v1753 = vunpack.c.h.b16 %v439
      %v1754 = vunpack.c.l.b16 %v440
      %v1755 = vunpack.c.h.b16 %v440
      %v1756 = vunpack.c.l.b16 %v441
      %v1757 = vunpack.c.h.b16 %v441
      %v1758 = vunpack.c.l.b16 %v442
      %v1759 = vunpack.c.h.b16 %v442
      %v1760 = vunpack.c.l.b16 %v443
      %v1761 = vunpack.c.h.b16 %v443
      %v1762 = vunpack.c.l.b16 %v444
      %v1763 = vunpack.c.h.b16 %v444
      %v1764 = vunpack.c.l.b16 %v445
      %v1765 = vunpack.c.h.b16 %v445
      %v1766 = vunpack.c.l.b16 %v446
      %v1767 = vunpack.c.h.b16 %v446
      %v1768 = vunpack.c.l.b16 %v447
      %v1769 = vunpack.c.h.b16 %v447
      %v1770 = vunpack.c.l.b16 %v448
      %v1771 = vunpack.c.h.b16 %v448
      %v1772 = vunpack.c.l.b16 %v449
      %v1773 = vunpack.c.h.b16 %v449
      %v1774 = vunpack.c.l.b16 %v450
      %v1775 = vunpack.c.h.b16 %v450
      %v1776 = vunpack.c.l.b16 %v451
      %v1777 = vunpack.c.h.b16 %v451
      %v1778 = vunpack.c.l.b16 %v452
      %v1779 = vunpack.c.h.b16 %v452
      %v1780 = vunpack.c.l.b16 %v453
      %v1781 = vunpack.c.h.b16 %v453
      %v1782 = vunpack.c.l.b16 %v454
      %v1783 = vunpack.c.h.b16 %v454
      %v1784 = vunpack.c.l.b16 %v455
      %v1785 = vunpack.c.h.b16 %v455
      %v1786 = vunpack.c.l.b16 %v456
      %v1787 = vunpack.c.h.b16 %v456
      %v1788 = vunpack.c.l.b16 %v457
      %v1789 = vunpack.c.h.b16 %v457
      %v1790 = vunpack.c.l.b16 %v458
      %v1791 = vunpack.c.h.b16 %v458
      %v1792 = vunpack.c.l.b16 %v459
      %v1793 = vunpack.c.h.b16 %v459
      %v1794 = vunpack.c.l.b16 %v460
      %v1795 = vunpack.c.h.b16 %v460
      %v1796 = vunpack.c.l.b16 %v461
      %v1797 = vunpack.c.h.b16 %v461
      %v1798 = vunpack.c.l.b16 %v462
      %v1799 = vunpack.c.h.b16 %v462
      %v1800 = vunpack.c.l.b16 %v463
      %v1801 = vunpack.c.h.b16 %v463
      %v1802 = vunpack.c.l.b16 %v464
      %v1803 = vunpack.c.h.b16 %v464
      %v1804 = vunpack.c.l.b16 %v465
      %v1805 = vunpack.c.h.b16 %v465
      %v1806 = vunpack.c.l.b16 %v466
      %v1807 = vunpack.c.h.b16 %v466
      %v1808 = vunpack.c.l.b16 %v467
      %v1809 = vunpack.c.h.b16 %v467
      %v1810 = vunpack.c.l.b16 %v468
      %v1811 = vunpack.c.h.b16 %v468
      %v1812 = vunpack.c.l.b16 %v469
      %v1813 = vunpack.c.h.b16 %v469
      %v1814 = vunpack.c.l.b16 %v470
      %v1815 = vunpack.c.h.b16 %v470
      %v1816 = vunpack.c.l.b16 %v471
      %v1817 = vunpack.c.h.b16 %v471
      %v1818 = vunpack.c.l.b16 %v472
      %v1819 = vunpack.c.h.b16 %v472
      %v1820 = vunpack.c.l.b16 %v473
      %v1821 = vunpack.c.h.b16 %v473
      %v1822 = vunpack.c.l.b16 %v474
      %v1823 = vunpack.c.h.b16 %v474
      %v1824 = vunpack.c.l.b16 %v475
      %v1825 = vunpack.c.h.b16 %v475
      %v1826 = vunpack.c.l.b16 %v476
      %v1827 = vunpack.c.h.b16 %v476
      %v1828 = vunpack.c.l.b16 %v477
      %v1829 = vunpack.c.h.b16 %v477
      %v1830 = vunpack.c.l.b16 %v478
      %v1831 = vunpack.c.h.b16 %v478
      %v1832 = vunpack.c.l.b16 %v479
      %v1833 = vunpack.c.h.b16 %v479
      %v1834 = vunpack.c.l.b16 %v480
      %v1835 = vunpack.c.h.b16 %v480
      %v1836 = vunpack.c.l.b16 %v481
      %v1837 = vunpack.c.h.b16 %v481
      %v1838 = vunpack.c.l.b16 %v482
      %v1839 = vunpack.c.h.b16 %v482
      %v1840 = vunpack.c.l.b16 %v483
      %v1841 = vunpack.c.h.b16 %v483
      %v1842 = vunpack.c.l.b16 %v484
      %v1843 = vunpack.c.h.b16 %v484
      %v1844 = vunpack.c.l.b16 %v485
      %v1845 = vunpack.c.h.b16 %v485
      %v1846 = vunpack.c.l.b16 %v486
      %v1847 = vunpack.c.h.b16 %v486
      %v1848 = vunpack.c.l.b16 %v487
      %v1849 = vunpack.c.h.b16 %v487
      %v1850 = vunpack.c.l.b16 %v488
      %v1851 = vunpack.c.h.b16 %v488
      %v1852 = vunpack.c.l.b16 %v489
      %v1853 = vunpack.c.h.b16 %v489
      %v1854 = vunpack.c.l.b16 %v490
      %v1855 = vunpack.c.h.b16 %v490
      %v1856 = vunpack.c.l.b16 %v491
      %v1857 = vunpack.c.h.b16 %v491
      %v1858 = vunpack.c.l.b16 %v492
      %v1859 = vunpack.c.h.b16 %v492
      %v1860 = vunpack.c.l.b16 %v493
      %v1861 = vunpack.c.h.b16 %v493
      %v1862 = vunpack.c.l.b16 %v494
      %v1863 = vunpack.c.h.b16 %v494
      %v1864 = vunpack.c.l.b16 %v495
      %v1865 = vunpack.c.h.b16 %v495
      %v1866 = vunpack.c.l.b16 %v496
      %v1867 = vunpack.c.h.b16 %v496
      %v1868 = vunpack.c.l.b16 %v497
      %v1869 = vunpack.c.h.b16 %v497
      %v1870 = vunpack.c.l.b16 %v498
      %v1871 = vunpack.c.h.b16 %v498
      %v1872 = vunpack.c.l.b16 %v499
      %v1873 = vunpack.c.h.b16 %v499
      %v1874 = vunpack.c.l.b16 %v500
      %v1875 = vunpack.c.h.b16 %v500
      %v1876 = vunpack.c.l.b16 %v501
      %v1877 = vunpack.c.h.b16 %v501
      %v1878 = vunpack.c.l.b16 %v502
      %v1879 = vunpack.c.h.b16 %v502
      %v1880 = vunpack.c.l.b16 %v503
      %v1881 = vunpack.c.h.b16 %v503
      %v1882 = vunpack.c.l.b16 %v504
      %v1883 = vunpack.c.h.b16 %v504
      %v1884 = vunpack.c.l.b16 %v505
      %v1885 = vunpack.c.h.b16 %v505
      %v1886 = vunpack.c.l.b16 %v506
      %v1887 = vunpack.c.h.b16 %v506
      %v1888 = vunpack.c.l.b16 %v507
      %v1889 = vunpack.c.h.b16 %v507
      %v1890 = vunpack.c.l.b16 %v508
      %v1891 = vunpack.c.h.b16 %v508
      %v1892 = vunpack.c.l.b16 %v509
      %v1893 = vunpack.c.h.b16 %v509
      %v1894 = vunpack.c.l.b16 %v510
      %v1895 = vunpack.c.h.b16 %v510
      %v1896 = vunpack.c.l.b16 %v511
      %v1897 = vunpack.c.h.b16 %v511
      %v1898 = vunpack.c.l.b16 %v512
      %v1899 = vunpack.c.h.b16 %v512
      %v1900 = vunpack.c.l.b16 %v513
      %v1901 = vunpack.c.h.b16 %v513
      %v1902 = vunpack.c.l.b16 %v514
      %v1903 = vunpack.c.h.b16 %v514
      %v1904 = vunpack.c.l.b16 %v515
      %v1905 = vunpack.c.h.b16 %v515
      %v1906 = vunpack.c.l.b16 %v516
      %v1907 = vunpack.c.h.b16 %v516
      %v1908 = vunpack.c.l.b16 %v517
      %v1909 = vunpack.c.h.b16 %v517
      %v1910 = vunpack.c.l.b16 %v518
      %v1911 = vunpack.c.h.b16 %v518
      %v1912 = vunpack.c.l.b16 %v519
      %v1913 = vunpack.c.h.b16 %v519
      %v1914 = vunpack.c.l.b16 %v520
      %v1915 = vunpack.c.h.b16 %v520
      %v1916 = vunpack.c.l.b16 %v521
      %v1917 = vunpack.c.h.b16 %v521
      %v1918 = vunpack.c.l.b16 %v522
      %v1919 = vunpack.c.h.b16 %v522
      %v1920 = vunpack.c.l.b16 %v523
      %v1921 = vunpack.c.h.b16 %v523
      %v1922 = vunpack.c.l.b16 %v524
      %v1923 = vunpack.c.h.b16 %v524
      %v1924 = vunpack.c.l.b16 %v525
      %v1925 = vunpack.c.h.b16 %v525
      %v1926 = vunpack.c.l.b16 %v526
      %v1927 = vunpack.c.h.b16 %v526
      %v1928 = vunpack.c.l.b16 %v527
      %v1929 = vunpack.c.h.b16 %v527
      %v1930 = vunpack.c.l.b16 %v528
      %v1931 = vunpack.c.h.b16 %v528
      %v1932 = vunpack.c.l.b16 %v529
      %v1933 = vunpack.c.h.b16 %v529
      %v1934 = vunpack.c.l.b16 %v530
      %v1935 = vunpack.c.h.b16 %v530
      %v1936 = vunpack.c.l.b16 %v531
      %v1937 = vunpack.c.h.b16 %v531
      %v1938 = vunpack.c.l.b16 %v532
      %v1939 = vunpack.c.h.b16 %v532
      %v1940 = vunpack.c.l.b16 %v533
      %v1941 = vunpack.c.h.b16 %v533
      %v1942 = vunpack.c.l.b16 %v534
      %v1943 = vunpack.c.h.b16 %v534
      %v1944 = vunpack.c.l.b16 %v535
      %v1945 = vunpack.c.h.b16 %v535
      %v1946 = vunpack.c.l.b16 %v536
      %v1947 = vunpack.c.h.b16 %v536
      %v1948 = vunpack.c.l.b16 %v537
      %v1949 = vunpack.c.h.b16 %v537
      %v1950 = vunpack.c.l.b16 %v538
      %v1951 = vunpack.c.h.b16 %v538
      %v1952 = vunpack.c.l.b16 %v539
      %v1953 = vunpack.c.h.b16 %v539
      %v1954 = vunpack.c.l.b16 %v540
      %v1955 = vunpack.c.h.b16 %v540
      %v1956 = vunpack.c.l.b16 %v541
      %v1957 = vunpack.c.h.b16 %v541
      %v1958 = vunpack.c.l.b16 %v542
      %v1959 = vunpack.c.h.b16 %v542
      %v1960 = vunpack.c.l.b16 %v543
      %v1961 = vunpack.c.h.b16 %v543
      %v1962 = vunpack.c.l.b16 %v544
      %v1963 = vunpack.c.h.b16 %v544
      %v1964 = vunpack.c.l.b16 %v545
      %v1965 = vunpack.c.h.b16 %v545
      %v1966 = vunpack.c.l.b16 %v546
      %v1967 = vunpack.c.h.b16 %v546
      %v1968 = vunpack.c.l.b16 %v547
      %v1969 = vunpack.c.h.b16 %v547
      %v1970 = vunpack.c.l.b16 %v548
      %v1971 = vunpack.c.h.b16 %v548
      %v1972 = vunpack.c.l.b16 %v549
      %v1973 = vunpack.c.h.b16 %v549
      %v1974 = vunpack.c.l.b16 %v550
      %v1975 = vunpack.c.h.b16 %v550
      %v1976 = vunpack.c.l.b16 %v551
      %v1977 = vunpack.c.h.b16 %v551
      %v1978 = vunpack.c.l.b16 %v552
      %v1979 = vunpack.c.h.b16 %v552
      %v1980 = vunpack.c.l.b16 %v553
      %v1981 = vunpack.c.h.b16 %v553
      %v1982 = vunpack.c.l.b16 %v554
      %v1983 = vunpack.c.h.b16 %v554
      %v1984 = vunpack.c.l.b16 %v555
      %v1985 = vunpack.c.h.b16 %v555
      %v1986 = vunpack.c.l.b16 %v556
      %v1987 = vunpack.c.h.b16 %v556
      %v1988 = vunpack.c.l.b16 %v557
      %v1989 = vunpack.c.h.b16 %v557
      %v1990 = vunpack.c.l.b16 %v558
      %v1991 = vunpack.c.h.b16 %v558
      %v1992 = vunpack.c.l.b16 %v559
      %v1993 = vunpack.c.h.b16 %v559
      %v1994 = vunpack.c.l.b16 %v560
      %v1995 = vunpack.c.h.b16 %v560
      %v1996 = vunpack.c.l.b16 %v561
      %v1997 = vunpack.c.h.b16 %v561
      %v1998 = vunpack.c.l.b16 %v562
      %v1999 = vunpack.c.h.b16 %v562
      %v2000 = vunpack.c.l.b16 %v563
      %v2001 = vunpack.c.h.b16 %v563
      %v2002 = vunpack.c.l.b16 %v564
      %v2003 = vunpack.c.h.b16 %v564
      %v2004 = vunpack.c.l.b16 %v565
      %v2005 = vunpack.c.h.b16 %v565
      %v2006 = vunpack.c.l.b16 %v566
      %v2007 = vunpack.c.h.b16 %v566
      %v2008 = vunpack.c.l.b16 %v567
      %v2009 = vunpack.c.h.b16 %v567
      %v2010 = vunpack.c.l.b16 %v568
      %v2011 = vunpack.c.h.b16 %v568
      %v2012 = vunpack.c.l.b16 %v569
      %v2013 = vunpack.c.h.b16 %v569
      %v2014 = vunpack.c.l.b16 %v570
      %v2015 = vunpack.c.h.b16 %v570
      %v2016 = vunpack.c.l.b16 %v571
      %v2017 = vunpack.c.h.b16 %v571
      %v2018 = vunpack.c.l.b16 %v572
      %v2019 = vunpack.c.h.b16 %v572
      %v2020 = vunpack.c.l.b16 %v573
      %v2021 = vunpack.c.h.b16 %v573
      %v2022 = vunpack.c.l.b16 %v574
      %v2023 = vunpack.c.h.b16 %v574
      %v2024 = vunpack.c.l.b16 %v575
      %v2025 = vunpack.c.h.b16 %v575
      %v2026 = vunpack.c.l.b16 %v576
      %v2027 = vunpack.c.h.b16 %v576
      %v2028 = vunpack.c.l.b16 %v577
      %v2029 = vunpack.c.h.b16 %v577
      %v2030 = vunpack.c.l.b16 %v578
      %v2031 = vunpack.c.h.b16 %v578
      %v2032 = vunpack.c.l.b16 %v579
      %v2033 = vunpack.c.h.b16 %v579
      %v2034 = vunpack.c.l.b16 %v580
      %v2035 = vunpack.c.h.b16 %v580
      %v2036 = vunpack.c.l.b16 %v581
      %v2037 = vunpack.c.h.b16 %v581
      %v2038 = vunpack.c.l.b16 %v582
      %v2039 = vunpack.c.h.b16 %v582
      %v2040 = vunpack.c.l.b16 %v583
      %v2041 = vunpack.c.h.b16 %v583
      %v2042 = vunpack.c.l.b16 %v584
      %v2043 = vunpack.c.h.b16 %v584
      %v2044 = vunpack.c.l.b16 %v585
      %v2045 = vunpack.c.h.b16 %v585
      %v2046 = vunpack.c.l.b16 %v586
      %v2047 = vunpack.c.h.b16 %v586
      %v2048 = vunpack.c.l.b16 %v587
      %v2049 = vunpack.c.h.b16 %v587
      %v2050 = vunpack.c.l.b16 %v588
      %v2051 = vunpack.c.h.b16 %v588
      %v2052 = vunpack.c.l.b16 %v589
      %v2053 = vunpack.c.h.b16 %v589
      %v2054 = vunpack.c.l.b16 %v590
      %v2055 = vunpack.c.h.b16 %v590
      %v2056 = vunpack.c.l.b16 %v591
      %v2057 = vunpack.c.h.b16 %v591
      %v2058 = vunpack.c.l.b16 %v592
      %v2059 = vunpack.c.h.b16 %v592
      %v2060 = vunpack.c.l.b16 %v593
      %v2061 = vunpack.c.h.b16 %v593
      %v2062 = vunpack.c.l.b16 %v594
      %v2063 = vunpack.c.h.b16 %v594
      %v2064 = vunpack.c.l.b16 %v595
      %v2065 = vunpack.c.h.b16 %v595
      %v2066 = vunpack.c.l.b16 %v596
      %v2067 = vunpack.c.h.b16 %v596
      %v2068 = vunpack.c.l.b16 %v597
      %v2069 = vunpack.c.h.b16 %v597
      %v2070 = vunpack.c.l.b16 %v598
      %v2071 = vunpack.c.h.b16 %v598
      %v2072 = vunpack.c.l.b16 %v599
      %v2073 = vunpack.c.h.b16 %v599
      %v2074 = vunpack.c.l.b16 %v600
      %v2075 = vunpack.c.h.b16 %v600
      %v2076 = vunpack.c.l.b16 %v601
      %v2077 = vunpack.c.h.b16 %v601
      %v2078 = vunpack.c.l.b16 %v602
      %v2079 = vunpack.c.h.b16 %v602
      %v2080 = vunpack.c.l.b16 %v603
      %v2081 = vunpack.c.h.b16 %v603
      %v2082 = vunpack.c.l.b16 %v604
      %v2083 = vunpack.c.h.b16 %v604
      %v2084 = vunpack.c.l.b16 %v605
      %v2085 = vunpack.c.h.b16 %v605
      %v2086 = vunpack.c.l.b16 %v606
      %v2087 = vunpack.c.h.b16 %v606
      %v2088 = vunpack.c.l.b16 %v607
      %v2089 = vunpack.c.h.b16 %v607
      %v2090 = vunpack.c.l.b16 %v608
      %v2091 = vunpack.c.h.b16 %v608
      %v2092 = vunpack.c.l.b16 %v609
      %v2093 = vunpack.c.h.b16 %v609
      %v2094 = vunpack.c.l.b16 %v610
      %v2095 = vunpack.c.h.b16 %v610
      %v2096 = vunpack.c.l.b16 %v611
      %v2097 = vunpack.c.h.b16 %v611
      %v2098 = vunpack.c.l.b16 %v612
      %v2099 = vunpack.c.h.b16 %v612
      %v2100 = vunpack.c.l.b16 %v613
      %v2101 = vunpack.c.h.b16 %v613
      %v2102 = vunpack.c.l.b16 %v614
      %v2103 = vunpack.c.h.b16 %v614
      %v2104 = vunpack.c.l.b16 %v615
      %v2105 = vunpack.c.h.b16 %v615
      %v2106 = vunpack.c.l.b16 %v616
      %v2107 = vunpack.c.h.b16 %v616
      %v2108 = vunpack.c.l.b16 %v617
      %v2109 = vunpack.c.h.b16 %v617
      %v2110 = vunpack.c.l.b16 %v618
      %v2111 = vunpack.c.h.b16 %v618
      %v2112 = vunpack.c.l.b16 %v619
      %v2113 = vunpack.c.h.b16 %v619
      %v2114 = vunpack.c.l.b16 %v620
      %v2115 = vunpack.c.h.b16 %v620
      %v2116 = vunpack.c.l.b16 %v621
      %v2117 = vunpack.c.h.b16 %v621
      %v2118 = vunpack.c.l.b16 %v622
      %v2119 = vunpack.c.h.b16 %v622
      %v2120 = vunpack.c.l.b16 %v623
      %v2121 = vunpack.c.h.b16 %v623
      %v2122 = vunpack.c.l.b16 %v624
      %v2123 = vunpack.c.h.b16 %v624
      %v2124 = vunpack.c.l.b16 %v625
      %v2125 = vunpack.c.h.b16 %v625
      %v2126 = vunpack.c.l.b16 %v626
      %v2127 = vunpack.c.h.b16 %v626
      %v2128 = vunpack.c.l.b16 %v627
      %v2129 = vunpack.c.h.b16 %v627
      %v2130 = vunpack.c.l.b16 %v628
      %v2131 = vunpack.c.h.b16 %v628
      %v2132 = vunpack.c.l.b16 %v629
      %v2133 = vunpack.c.h.b16 %v629
      %v2134 = vunpack.c.l.b16 %v630
      %v2135 = vunpack.c.h.b16 %v630
      %v2136 = vunpack.c.l.b16 %v631
      %v2137 = vunpack.c.h.b16 %v631
      %v2138 = vunpack.c.l.b16 %v632
      %v2139 = vunpack.c.h.b16 %v632
      %v2140 = vunpack.c.l.b16 %v633
      %v2141 = vunpack.c.h.b16 %v633
      %v2142 = vunpack.c.l.b16 %v634
      %v2143 = vunpack.c.h.b16 %v634
      %v2144 = vunpack.c.l.b16 %v635
      %v2145 = vunpack.c.h.b16 %v635
      %v2146 = vunpack.c.l.b16 %v636
      %v2147 = vunpack.c.h.b16 %v636
      %v2148 = vunpack.c.l.b16 %v637
      %v2149 = vunpack.c.h.b16 %v637
      %v2150 = vunpack.c.l.b16 %v638
      %v2151 = vunpack.c.h.b16 %v638
      %v2152 = vunpack.c.l.b16 %v639
      %v2153 = vunpack.c.h.b16 %v639
      %v2154 = vunpack.c.l.b16 %v640
      %v2155 = vunpack.c.h.b16 %v640
      %v2156 = vunpack.c.l.b16 %v641
      %v2157 = vunpack.c.h.b16 %v641
      %v2158 = vunpack.c.l.b16 %v642
      %v2159 = vunpack.c.h.b16 %v642
      %v2160 = vunpack.c.l.b16 %v643
      %v2161 = vunpack.c.h.b16 %v643
      %v2162 = vunpack.c.l.b16 %v644
      %v2163 = vunpack.c.h.b16 %v644
      %v2164 = vunpack.c.l.b16 %v645
      %v2165 = vunpack.c.h.b16 %v645
      %v2166 = vunpack.c.l.b16 %v646
      %v2167 = vunpack.c.h.b16 %v646
      %v2168 = vunpack.c.l.b16 %v647
      %v2169 = vunpack.c.h.b16 %v647
      %v2170 = vunpack.c.l.b16 %v648
      %v2171 = vunpack.c.h.b16 %v648
      %v2172 = vunpack.c.l.b16 %v649
      %v2173 = vunpack.c.h.b16 %v649
      %v2174 = vunpack.c.l.b16 %v650
      %v2175 = vunpack.c.h.b16 %v650
      %v2176 = vunpack.c.l.b16 %v651
      %v2177 = vunpack.c.h.b16 %v651
      %v2178 = vunpack.c.l.b16 %v652
      %v2179 = vunpack.c.h.b16 %v652
      %v2180 = vunpack.c.l.b16 %v653
      %v2181 = vunpack.c.h.b16 %v653
      %v2182 = vunpack.c.l.b16 %v654
      %v2183 = vunpack.c.h.b16 %v654
      %v2184 = vunpack.c.l.b16 %v655
      %v2185 = vunpack.c.h.b16 %v655
      %v2186 = vunpack.c.l.b16 %v656
      %v2187 = vunpack.c.h.b16 %v656
      %v2188 = vunpack.c.l.b16 %v657
      %v2189 = vunpack.c.h.b16 %v657
      %v2190 = vunpack.c.l.b16 %v658
      %v2191 = vunpack.c.h.b16 %v658
      %v2192 = vunpack.c.l.b16 %v659
      %v2193 = vunpack.c.h.b16 %v659
      %v2194 = vunpack.c.l.b16 %v660
      %v2195 = vunpack.c.h.b16 %v660
      %v2196 = vunpack.c.l.b16 %v661
      %v2197 = vunpack.c.h.b16 %v661
      %v2198 = vunpack.c.l.b16 %v662
      %v2199 = vunpack.c.h.b16 %v662
      %v2200 = vunpack.c.l.b16 %v663
      %v2201 = vunpack.c.h.b16 %v663
      %v2202 = vunpack.c.l.b16 %v664
      %v2203 = vunpack.c.h.b16 %v664
      %v2204 = vunpack.c.l.b16 %v665
      %v2205 = vunpack.c.h.b16 %v665
      %v2206 = vunpack.c.l.b16 %v666
      %v2207 = vunpack.c.h.b16 %v666
      %v2208 = vunpack.c.l.b16 %v667
      %v2209 = vunpack.c.h.b16 %v667
      %v2210 = vunpack.c.l.b16 %v668
      %v2211 = vunpack.c.h.b16 %v668
      %v2212 = vunpack.c.l.b16 %v669
      %v2213 = vunpack.c.h.b16 %v669
      %v2214 = vunpack.c.l.b16 %v670
      %v2215 = vunpack.c.h.b16 %v670
      %v2216 = vunpack.c.l.b16 %v671
      %v2217 = vunpack.c.h.b16 %v671
      %v2218 = vunpack.c.l.b16 %v672
      %v2219 = vunpack.c.h.b16 %v672
      %v2220 = vunpack.c.l.b16 %v673
      %v2221 = vunpack.c.h.b16 %v673
      %v2222 = vunpack.c.l.b16 %v674
      %v2223 = vunpack.c.h.b16 %v674
      %v2224 = vunpack.c.l.b16 %v675
      %v2225 = vunpack.c.h.b16 %v675
      %v2226 = vunpack.c.l.b16 %v676
      %v2227 = vunpack.c.h.b16 %v676
      %v2228 = vunpack.c.l.b16 %v677
      %v2229 = vunpack.c.h.b16 %v677
      %v2230 = vunpack.c.l.b16 %v678
      %v2231 = vunpack.c.h.b16 %v678
      %v2232 = vunpack.c.l.b16 %v679
      %v2233 = vunpack.c.h.b16 %v679
      %v2234 = vunpack.c.l.b16 %v680
      %v2235 = vunpack.c.h.b16 %v680
      %v2236 = vunpack.c.l.b16 %v681
      %v2237 = vunpack.c.h.b16 %v681
      %v2238 = vunpack.c.l.b16 %v682
      %v2239 = vunpack.c.h.b16 %v682
      %v2240 = vunpack.c.l.b16 %v683
      %v2241 = vunpack.c.h.b16 %v683
      %v2242 = vunpack.c.l.b16 %v684
      %v2243 = vunpack.c.h.b16 %v684
      %v2244 = vunpack.c.l.b16 %v685
      %v2245 = vunpack.c.h.b16 %v685
      %v2246 = vunpack.c.l.b16 %v686
      %v2247 = vunpack.c.h.b16 %v686
      %v2248 = vunpack.c.l.b16 %v687
      %v2249 = vunpack.c.h.b16 %v687
      %v2250 = vunpack.c.l.b16 %v688
      %v2251 = vunpack.c.h.b16 %v688
      %v2252 = vunpack.c.l.b16 %v689
      %v2253 = vunpack.c.h.b16 %v689
      %v2254 = vunpack.c.l.b16 %v690
      %v2255 = vunpack.c.h.b16 %v690
      %v2256 = vunpack.c.l.b16 %v691
      %v2257 = vunpack.c.h.b16 %v691
      %v2258 = vunpack.c.l.b16 %v692
      %v2259 = vunpack.c.h.b16 %v692
      %v2260 = vunpack.c.l.b16 %v693
      %v2261 = vunpack.c.h.b16 %v693
      %v2262 = vunpack.c.l.b16 %v694
      %v2263 = vunpack.c.h.b16 %v694
      %v2264 = vunpack.c.l.b16 %v695
      %v2265 = vunpack.c.h.b16 %v695
      %v2266 = vunpack.c.l.b16 %v696
      %v2267 = vunpack.c.h.b16 %v696
      %v2268 = vunpack.c.l.b16 %v697
      %v2269 = vunpack.c.h.b16 %v697
      %v2270 = vunpack.c.l.b16 %v698
      %v2271 = vunpack.c.h.b16 %v698
      %v2272 = vunpack.c.l.b16 %v699
      %v2273 = vunpack.c.h.b16 %v699
      %v2274 = vunpack.c.l.b16 %v700
      %v2275 = vunpack.c.h.b16 %v700
      %v2276 = vunpack.c.l.b16 %v701
      %v2277 = vunpack.c.h.b16 %v701
      %v2278 = vunpack.c.l.b16 %v702
      %v2279 = vunpack.c.h.b16 %v702
      %v2280 = vunpack.c.l.b16 %v703
      %v2281 = vunpack.c.h.b16 %v703
      %v2282 = vunpack.c.l.b16 %v704
      %v2283 = vunpack.c.h.b16 %v704
      %v2284 = vunpack.c.l.b16 %v705
      %v2285 = vunpack.c.h.b16 %v705
      %v2286 = vunpack.c.l.b16 %v706
      %v2287 = vunpack.c.h.b16 %v706
      %v2288 = vunpack.c.l.b16 %v707
      %v2289 = vunpack.c.h.b16 %v707
      %v2290 = vunpack.c.l.b16 %v708
      %v2291 = vunpack.c.h.b16 %v708
      %v2292 = vunpack.c.l.b16 %v709
      %v2293 = vunpack.c.h.b16 %v709
      %v2294 = vunpack.c.l.b16 %v710
      %v2295 = vunpack.c.h.b16 %v710
      %v2296 = vunpack.c.l.b16 %v711
      %v2297 = vunpack.c.h.b16 %v711
      %v2298 = vunpack.c.l.b16 %v712
      %v2299 = vunpack.c.h.b16 %v712
      %v2300 = vunpack.c.l.b16 %v713
      %v2301 = vunpack.c.h.b16 %v713
      %v2302 = vunpack.c.l.b16 %v714
      %v2303 = vunpack.c.h.b16 %v714
      %v2304 = vunpack.c.l.b16 %v715
      %v2305 = vunpack.c.h.b16 %v715
      %v2306 = vunpack.c.l.b16 %v716
      %v2307 = vunpack.c.h.b16 %v716
      %v2308 = vunpack.c.l.b16 %v717
      %v2309 = vunpack.c.h.b16 %v717
      %v2310 = vunpack.c.l.b16 %v718
      %v2311 = vunpack.c.h.b16 %v718
      %v2312 = vunpack.c.l.b16 %v719
      %v2313 = vunpack.c.h.b16 %v719
      %v2314 = vunpack.c.l.b16 %v720
      %v2315 = vunpack.c.h.b16 %v720
      %v2316 = vunpack.c.l.b16 %v721
      %v2317 = vunpack.c.h.b16 %v721
      %v2318 = vpack.c.b16 %v1744, %v1742
      %v2319 = vpack.c.b16 %v1745, %v1743
      %v2320 = vpack.c.b16 %v1748, %v1746
      %v2321 = vpack.c.b16 %v1749, %v1747
      %v2322 = vpack.c.b16 %v1752, %v1750
      %v2323 = vpack.c.b16 %v1753, %v1751
      %v2324 = vpack.c.b16 %v1756, %v1754
      %v2325 = vpack.c.b16 %v1757, %v1755
      %v2326 = vpack.c.b16 %v1760, %v1758
      %v2327 = vpack.c.b16 %v1761, %v1759
      %v2328 = vpack.c.b16 %v1764, %v1762
      %v2329 = vpack.c.b16 %v1765, %v1763
      %v2330 = vpack.c.b16 %v1768, %v1766
      %v2331 = vpack.c.b16 %v1769, %v1767
      %v2332 = vpack.c.b16 %v1772, %v1770
      %v2333 = vpack.c.b16 %v1773, %v1771
      %v2334 = vpack.c.b16 %v1776, %v1774
      %v2335 = vpack.c.b16 %v1777, %v1775
      %v2336 = vpack.c.b16 %v1780, %v1778
      %v2337 = vpack.c.b16 %v1781, %v1779
      %v2338 = vpack.c.b16 %v1784, %v1782
      %v2339 = vpack.c.b16 %v1785, %v1783
      %v2340 = vpack.c.b16 %v1788, %v1786
      %v2341 = vpack.c.b16 %v1789, %v1787
      %v2342 = vpack.c.b16 %v1792, %v1790
      %v2343 = vpack.c.b16 %v1793, %v1791
      %v2344 = vpack.c.b16 %v1796, %v1794
      %v2345 = vpack.c.b16 %v1797, %v1795
      %v2346 = vpack.c.b16 %v1800, %v1798
      %v2347 = vpack.c.b16 %v1801, %v1799
      %v2348 = vpack.c.b16 %v1804, %v1802
      %v2349 = vpack.c.b16 %v1805, %v1803
      %v2350 = vpack.c.b16 %v1808, %v1806
      %v2351 = vpack.c.b16 %v1809, %v1807
      %v2352 = vpack.c.b16 %v1812, %v1810
      %v2353 = vpack.c.b16 %v1813, %v1811
      %v2354 = vpack.c.b16 %v1816, %v1814
      %v2355 = vpack.c.b16 %v1817, %v1815
      %v2356 = vpack.c.b16 %v1820, %v1818
      %v2357 = vpack.c.b16 %v1821, %v1819
      %v2358 = vpack.c.b16 %v1824, %v1822
      %v2359 = vpack.c.b16 %v1825, %v1823
      %v2360 = vpack.c.b16 %v1828, %v1826
      %v2361 = vpack.c.b16 %v1829, %v1827
      %v2362 = vpack.c.b16 %v1832, %v1830
      %v2363 = vpack.c.b16 %v1833, %v1831
      %v2364 = vpack.c.b16 %v1836, %v1834
      %v2365 = vpack.c.b16 %v1837, %v1835
      %v2366 = vpack.c.b16 %v1840, %v1838
      %v2367 = vpack.c.b16 %v1841, %v1839
      %v2368 = vpack.c.b16 %v1844, %v1842
      %v2369 = vpack.c.b16 %v1845, %v1843
      %v2370 = vpack.c.b16 %v1848, %v1846
      %v2371 = vpack.c.b16 %v1849, %v1847
      %v2372 = vpack.c.b16 %v1852, %v1850
      %v2373 = vpack.c.b16 %v1853, %v1851
      %v2374 = vpack.c.b16 %v1856, %v1854
      %v2375 = vpack.c.b16 %v1857, %v1855
      %v2376 = vpack.c.b16 %v1860, %v1858
      %v2377 = vpack.c.b16 %v1861, %v1859
      %v2378 = vpack.c.b16 %v1864, %v1862
      %v2379 = vpack.c.b16 %v1865, %v1863
      %v2380 = vpack.c.b16 %v1868, %v1866
      %v2381 = vpack.c.b16 %v1869, %v1867
      %v2382 = vpack.c.b16 %v1872, %v1870
      %v2383 = vpack.c.b16 %v1873, %v1871
      %v2384 = vpack.c.b16 %v1876, %v1874
      %v2385 = vpack.c.b16 %v1877, %v1875
      %v2386 = vpack.c.b16 %v1880, %v1878
      %v2387 = vpack.c.b16 %v1881, %v1879
      %v2388 = vpack.c.b16 %v1884, %v1882
      %v2389 = vpack.c.b16 %v1885, %v1883
      %v2390 = vpack.c.b16 %v1888, %v1886
      %v2391 = vpack.c.b16 %v1889, %v1887
      %v2392 = vpack.c.b16 %v1892, %v1890
      %v2393 = vpack.c.b16 %v1893, %v1891
      %v2394 = vpack.c.b16 %v1896, %v1894
      %v2395 = vpack.c.b16 %v1897, %v1895
      %v2396 = vpack.c.b16 %v1900, %v1898
      %v2397 = vpack.c.b16 %v1901, %v1899
      %v2398 = vpack.c.b16 %v1904, %v1902
      %v2399 = vpack.c.b16 %v1905, %v1903
      %v2400 = vpack.c.b16 %v1908, %v1906
      %v2401 = vpack.c.b16 %v1909, %v1907
      %v2402 = vpack.c.b16 %v1912, %v1910
      %v2403 = vpack.c.b16 %v1913, %v1911
      %v2404 = vpack.c.b16 %v1916, %v1914
      %v2405 = vpack.c.b16 %v1917, %v1915
      %v2406 = vpack.c.b16 %v1920, %v1918
      %v2407 = vpack.c.b16 %v1921, %v1919
      %v2408 = vpack.c.b16 %v1924, %v1922
      %v2409 = vpack.c.b16 %v1925, %v1923
      %v2410 = vpack.c.b16 %v1928, %v1926
      %v2411 = vpack.c.b16 %v1929, %v1927
      %v2412 = vpack.c.b16 %v1932, %v1930
      %v2413 = vpack.c.b16 %v1933, %v1931
      %v2414 = vpack.c.b16 %v1936, %v1934
      %v2415 = vpack.c.b16 %v1937, %v1935
      %v2416 = vpack.c.b16 %v1940, %v1938
      %v2417 = vpack.c.b16 %v1941, %v1939
      %v2418 = vpack.c.b16 %v1944, %v1942
      %v2419 = vpack.c.b16 %v1945, %v1943
      %v2420 = vpack.c.b16 %v1948, %v1946
      %v2421 = vpack.c.b16 %v1949, %v1947
      %v2422 = vpack.c.b16 %v1952, %v1950
      %v2423 = vpack.c.b16 %v1953, %v1951
      %v2424 = vpack.c.b16 %v1956, %v1954
      %v2425 = vpack.c.b16 %v1957, %v1955
      %v2426 = vpack.c.b16 %v1960, %v1958
      %v2427 = vpack.c.b16 %v1961, %v1959
      %v2428 = vpack.c.b16 %v1964, %v1962
      %v2429 = vpack.c.b16 %v1965, %v1963
      %v2430 = vpack.c.b16 %v1968, %v1966
      %v2431 = vpack.c.b16 %v1969, %v1967
      %v2432 = vpack.c.b16 %v1972, %v1970
      %v2433 = vpack.c.b16 %v1973, %v1971
      %v2434 = vpack.c.b16 %v1976, %v1974
      %v2435 = vpack.c.b16 %v1977, %v1975
      %v2436 = vpack.c.b16 %v1980, %v1978
      %v2437 = vpack.c.b16 %v1981, %v1979
      %v2438 = vpack.c.b16 %v1984, %v1982
      %v2439 = vpack.c.b16 %v1985, %v1983
      %v2440 = vpack.c.b16 %v1988, %v1986
      %v2441 = vpack.c.b16 %v1989, %v1987
      %v2442 = vpack.c.b16 %v1992, %v1990
      %v2443 = vpack.c.b16 %v1993, %v1991
      %v2444 = vpack.c.b16 %v1996, %v1994
      %v2445 = vpack.c.b16 %v1997, %v1995
      %v2446 = vpack.c.b16 %v2000, %v1998
      %v2447 = vpack.c.b16 %v2001, %v1999
      %v2448 = vpack.c.b16 %v2004, %v2002
      %v2449 = vpack.c.b16 %v2005, %v2003
      %v2450 = vpack.c.b16 %v2008, %v2006
      %v2451 = vpack.c.b16 %v2009, %v2007
      %v2452 = vpack.c.b16 %v2012, %v2010
      %v2453 = vpack.c.b16 %v2013, %v2011
      %v2454 = vpack.c.b16 %v2016, %v2014
      %v2455 = vpack.c.b16 %v2017, %v2015
      %v2456 = vpack.c.b16 %v2020, %v2018
      %v2457 = vpack.c.b16 %v2021, %v2019
      %v2458 = vpack.c.b16 %v2024, %v2022
      %v2459 = vpack.c.b16 %v2025, %v2023
      %v2460 = vpack.c.b16 %v2028, %v2026
      %v2461 = vpack.c.b16 %v2029, %v2027
      %v2462 = vpack.c.b16 %v2032, %v2030
      %v2463 = vpack.c.b16 %v2033, %v2031
      %v2464 = vpack.c.b16 %v2036, %v2034
      %v2465 = vpack.c.b16 %v2037, %v2035
      %v2466 = vpack.c.b16 %v2040, %v2038
      %v2467 = vpack.c.b16 %v2041, %v2039
      %v2468 = vpack.c.b16 %v2044, %v2042
      %v2469 = vpack.c.b16 %v2045, %v2043
      %v2470 = vpack.c.b16 %v2048, %v2046
      %v2471 = vpack.c.b16 %v2049, %v2047
      %v2472 = vpack.c.b16 %v2052, %v2050
      %v2473 = vpack.c.b16 %v2053, %v2051
      %v2474 = vpack.c.b16 %v2056, %v2054
      %v2475 = vpack.c.b16 %v2057, %v2055
      %v2476 = vpack.c.b16 %v2060, %v2058
      %v2477 = vpack.c.b16 %v2061, %v2059
      %v2478 = vpack.c.b16 %v2064, %v2062
      %v2479 = vpack.c.b16 %v2065, %v2063
      %v2480 = vpack.c.b16 %v2068, %v2066
      %v2481 = vpack.c.b16 %v2069, %v2067
      %v2482 = vpack.c.b16 %v2072, %v2070
      %v2483 = vpack.c.b16 %v2073, %v2071
      %v2484 = vpack.c.b16 %v2076, %v2074
      %v2485 = vpack.c.b16 %v2077, %v2075
      %v2486 = vpack.c.b16 %v2080, %v2078
      %v2487 = vpack.c.b16 %v2081, %v2079
      %v2488 = vpack.c.b16 %v2084, %v2082
      %v2489 = vpack.c.b16 %v2085, %v2083
      %v2490 = vpack.c.b16 %v2088, %v2086
      %v2491 = vpack.c.b16 %v2089, %v2087
      %v2492 = vpack.c.b16 %v2092, %v2090
      %v2493 = vpack.c.b16 %v2093, %v2091
      %v2494 = vpack.c.b16 %v2096, %v2094
      %v2495 = vpack.c.b16 %v2097, %v2095
      %v2496 = vpack.c.b16 %v2100, %v2098
      %v2497 = vpack.c.b16 %v2101, %v2099
      %v2498 = vpack.c.b16 %v2104, %v2102
      %v2499 = vpack.c.b16 %v2105, %v2103
      %v2500 = vpack.c.b16 %v2108, %v2106
      %v2501 = vpack.c.b16 %v2109, %v2107
      %v2502 = vpack.c.b16 %v2112, %v2110
      %v2503 = vpack.c.b16 %v2113, %v2111
      %v2504 = vpack.c.b16 %v2116, %v2114
      %v2505 = vpack.c.b16 %v2117, %v2115
      %v2506 = vpack.c.b16 %v2120, %v2118
      %v2507 = vpack.c.b16 %v2121, %v2119
      %v2508 = vpack.c.b16 %v2124, %v2122
      %v2509 = vpack.c.b16 %v2125, %v2123
      %v2510 = vpack.c.b16 %v2128, %v2126
      %v2511 = vpack.c.b16 %v2129, %v2127
      %v2512 = vpack.c.b16 %v2132, %v2130
      %v2513 = vpack.c.b16 %v2133, %v2131
      %v2514 = vpack.c.b16 %v2136, %v2134
      %v2515 = vpack.c.b16 %v2137, %v2135
      %v2516 = vpack.c.b16 %v2140, %v2138
      %v2517 = vpack.c.b16 %v2141, %v2139
      %v2518 = vpack.c.b16 %v2144, %v2142
      %v2519 = vpack.c.b16 %v2145, %v2143
      %v2520 = vpack.c.b16 %v2148, %v2146
      %v2521 = vpack.c.b16 %v2149, %v2147
      %v2522 = vpack.c.b16 %v2152, %v2150
      %v2523 = vpack.c.b16 %v2153, %v2151
      %v2524 = vpack.c.b16 %v2156, %v2154
      %v2525 = vpack.c.b16 %v2157, %v2155
      %v2526 = vpack.c.b16 %v2160, %v2158
      %v2527 = vpack.c.b16 %v2161, %v2159
      %v2528 = vpack.c.b16 %v2164, %v2162
      %v2529 = vpack.c.b16 %v2165, %v2163
      %v2530 = vpack.c.b16 %v2168, %v2166
      %v2531 = vpack.c.b16 %v2169, %v2167
      %v2532 = vpack.c.b16 %v2172, %v2170
      %v2533 = vpack.c.b16 %v2173, %v2171
      %v2534 = vpack.c.b16 %v2176, %v2174
      %v2535 = vpack.c.b16 %v2177, %v2175
      %v2536 = vpack.c.b16 %v2180, %v2178
      %v2537 = vpack.c.b16 %v2181, %v2179
      %v2538 = vpack.c.b16 %v2184, %v2182
      %v2539 = vpack.c.b16 %v2185, %v2183
      %v2540 = vpack.c.b16 %v2188, %v2186
      %v2541 = vpack.c.b16 %v2189, %v2187
      %v2542 = vpack.c.b16 %v2192, %v2190
      %v2543 = vpack.c.b16 %v2193, %v2191
      %v2544 = vpack.c.b16 %v2196, %v2194
      %v2545 = vpack.c.b16 %v2197, %v2195
      %v2546 = vpack.c.b16 %v2200, %v2198
      %v2547 = vpack.c.b16 %v2201, %v2199
      %v2548 = vpack.c.b16 %v2204, %v2202
      %v2549 = vpack.c.b16 %v2205, %v2203
      %v2550 = vpack.c.b16 %v2208, %v2206
      %v2551 = vpack.c.b16 %v2209, %v2207
      %v2552 = vpack.c.b16 %v2212, %v2210
      %v2553 = vpack.c.b16 %v2213, %v2211
      %v2554 = vpack.c.b16 %v2216, %v2214
      %v2555 = vpack.c.b16 %v2217, %v2215
      %v2556 = vpack.c.b16 %v2220, %v2218
      %v2557 = vpack.c.b16 %v2221, %v2219
      %v2558 = vpack.c.b16 %v2224, %v2222
      %v2559 = vpack.c.b16 %v2225, %v2223
      %v2560 = vpack.c.b16 %v2228, %v2226
      %v2561 = vpack.c.b16 %v2229, %v2227
      %v2562 = vpack.c.b16 %v2232, %v2230
      %v2563 = vpack.c.b16 %v2233, %v2231
      %v2564 = vpack.c.b16 %v2236, %v2234
      %v2565 = vpack.c.b16 %v2237, %v2235
      %v2566 = vpack.c.b16 %v2240, %v2238
      %v2567 = vpack.c.b16 %v2241, %v2239
      %v2568 = vpack.c.b16 %v2244, %v2242
      %v2569 = vpack.c.b16 %v2245, %v2243
      %v2570 = vpack.c.b16 %v2248, %v2246
      %v2571 = vpack.c.b16 %v2249, %v2247
      %v2572 = vpack.c.b16 %v2252, %v2250
      %v2573 = vpack.c.b16 %v2253, %v2251
      %v2574 = vpack.c.b16 %v2256, %v2254
      %v2575 = vpack.c.b16 %v2257, %v2255
      %v2576 = vpack.c.b16 %v2260, %v2258
      %v2577 = vpack.c.b16 %v2261, %v2259
      %v2578 = vpack.c.b16 %v2264, %v2262
      %v2579 = vpack.c.b16 %v2265, %v2263
      %v2580 = vpack.c.b16 %v2268, %v2266
      %v2581 = vpack.c.b16 %v2269, %v2267
      %v2582 = vpack.c.b16 %v2272, %v2270
      %v2583 = vpack.c.b16 %v2273, %v2271
      %v2584 = vpack.c.b16 %v2276, %v2274
      %v2585 = vpack.c.b16 %v2277, %v2275
      %v2586 = vpack.c.b16 %v2280, %v2278
      %v2587 = vpack.c.b16 %v2281, %v2279
      %v2588 = vpack.c.b16 %v2284, %v2282
      %v2589 = vpack.c.b16 %v2285, %v2283
      %v2590 = vpack.c.b16 %v2288, %v2286
      %v2591 = vpack.c.b16 %v2289, %v2287
      %v2592 = vpack.c.b16 %v2292, %v2290
      %v2593 = vpack.c.b16 %v2293, %v2291
      %v2594 = vpack.c.b16 %v2296, %v2294
      %v2595 = vpack.c.b16 %v2297, %v2295
      %v2596 = vpack.c.b16 %v2300, %v2298
      %v2597 = vpack.c.b16 %v2301, %v2299
      %v2598 = vpack.c.b16 %v2304, %v2302
      %v2599 = vpack.c.b16 %v2305, %v2303
      %v2600 = vpack.c.b16 %v2308, %v2306
      %v2601 = vpack.c.b16 %v2309, %v2307
      %v2602 = vpack.c.b16 %v2312, %v2310
      %v2603 = vpack.c.b16 %v2313, %v2311
      %v2604 = vpack.c.b16 %v2316, %v2314
      %v2605 = vpack.c.b16 %v2317, %v2315
      %2894 = vmatprep.subr.bf16.mxu0 %v2333
      %2895 = vmatpush1.bf16.msra.mxu0 %v2332
      %2896 = vmatprep.subr.bf16.mxu0 %v2331
      %2897 = vmatpush1.bf16.msra.mxu0 %v2330
      %2898 = vmatprep.subr.bf16.mxu0 %v2329
      %2899 = vmatpush1.bf16.msra.mxu0 %v2328
      %2900 = vmatprep.subr.bf16.mxu0 %v2327
      %2901 = vmatpush1.bf16.msra.mxu0 %v2326
      %2902 = vmatprep.subr.bf16.mxu0 %v2325
      %2903 = vmatpush1.bf16.msra.mxu0 %v2324
      %2904 = vmatprep.subr.bf16.mxu0 %v2323
      %2905 = vmatpush1.bf16.msra.mxu0 %v2322
      %2906 = vmatprep.subr.bf16.mxu0 %v2321
      %2907 = vmatpush1.bf16.msra.mxu0 %v2320
      %2908 = vmatprep.subr.bf16.mxu0 %v2319
      %2909 = vmatpush1.bf16.msra.mxu0 %v2318
      %2910 = vmatprep.subr.bf16.mxu0 %v2349
      %2911 = vmatpush2.bf16.msra.mxu0 %v2348
      %2912 = vmatprep.subr.bf16.mxu0 %v2347
      %2913 = vmatpush2.bf16.msra.mxu0 %v2346
      %2914 = vmatprep.subr.bf16.mxu0 %v2345
      %2915 = vmatpush2.bf16.msra.mxu0 %v2344
      %2916 = vmatprep.subr.bf16.mxu0 %v2343
      %2917 = vmatpush2.bf16.msra.mxu0 %v2342
      %2918 = vmatprep.subr.bf16.mxu0 %v2341
      %2919 = vmatpush2.bf16.msra.mxu0 %v2340
      %2920 = vmatprep.subr.bf16.mxu0 %v2339
      %2921 = vmatpush2.bf16.msra.mxu0 %v2338
      %2922 = vmatprep.subr.bf16.mxu0 %v2337
      %2923 = vmatpush2.bf16.msra.mxu0 %v2336
      %2924 = vmatprep.subr.bf16.mxu0 %v2335
      %2925 = vmatpush2.bf16.msra.mxu0 %v2334
      %2926 = vmatprep.mubr.bf16.mxu0 %v1167
      %2927 = vmatmul.mubr.bf16.gmra.mxu0 %v1166
      %v2928 = vpop.f32.mrf.mxu0
      %v2929 = vadd.f32 %v727, %v2928
      %v2930 = vpop.f32.mrf.mxu0
      %v2931 = vadd.f32 %v731, %v2930
      %v2932 = vpop.f32.mrf.mxu0
      %v2933 = vadd.f32 %v727, %v2932
      %v2934 = vpop.f32.mrf.mxu0
      %v2935 = vadd.f32 %v731, %v2934
      %2936 = vmatprep.mubr.bf16.mxu0 %v1185
      %2937 = vmatmul.mubr.bf16.gmra.mxu0 %v1184
      %v2938 = vpop.f32.mrf.mxu0
      %v2939 = vadd.f32 %v727, %v2938
      %v2940 = vpop.f32.mrf.mxu0
      %v2941 = vadd.f32 %v731, %v2940
      %v2942 = vpop.f32.mrf.mxu0
      %v2943 = vadd.f32 %v727, %v2942
      %v2944 = vpop.f32.mrf.mxu0
      %v2945 = vadd.f32 %v731, %v2944
      %2946 = vmatprep.mubr.bf16.mxu0 %v1203
      %2947 = vmatmul.mubr.bf16.gmra.mxu0 %v1202
      %v2948 = vpop.f32.mrf.mxu0
      %v2949 = vadd.f32 %v727, %v2948
      %v2950 = vpop.f32.mrf.mxu0
      %v2951 = vadd.f32 %v731, %v2950
      %v2952 = vpop.f32.mrf.mxu0
      %v2953 = vadd.f32 %v727, %v2952
      %v2954 = vpop.f32.mrf.mxu0
      %v2955 = vadd.f32 %v731, %v2954
      %2956 = vmatprep.mubr.bf16.mxu0 %v1221
      %2957 = vmatmul.mubr.bf16.gmra.mxu0 %v1220
      %v2958 = vpop.f32.mrf.mxu0
      %v2959 = vadd.f32 %v727, %v2958
      %v2960 = vpop.f32.mrf.mxu0
      %v2961 = vadd.f32 %v731, %v2960
      %v2962 = vpop.f32.mrf.mxu0
      %v2963 = vadd.f32 %v727, %v2962
      %v2964 = vpop.f32.mrf.mxu0
      %v2965 = vadd.f32 %v731, %v2964
      %2966 = vmatprep.mubr.bf16.mxu0 %v1239
      %2967 = vmatmul.mubr.bf16.gmra.mxu0 %v1238
      %v2968 = vpop.f32.mrf.mxu0
      %v2969 = vadd.f32 %v727, %v2968
      %v2970 = vpop.f32.mrf.mxu0
      %v2971 = vadd.f32 %v731, %v2970
      %v2972 = vpop.f32.mrf.mxu0
      %v2973 = vadd.f32 %v727, %v2972
      %v2974 = vpop.f32.mrf.mxu0
      %v2975 = vadd.f32 %v731, %v2974
      %2976 = vmatprep.mubr.bf16.mxu0 %v1257
      %2977 = vmatmul.mubr.bf16.gmra.mxu0 %v1256
      %v2978 = vpop.f32.mrf.mxu0
      %v2979 = vadd.f32 %v727, %v2978
      %v2980 = vpop.f32.mrf.mxu0
      %v2981 = vadd.f32 %v731, %v2980
      %v2982 = vpop.f32.mrf.mxu0
      %v2983 = vadd.f32 %v727, %v2982
      %v2984 = vpop.f32.mrf.mxu0
      %v2985 = vadd.f32 %v731, %v2984
      %2986 = vmatprep.mubr.bf16.mxu0 %v1275
      %2987 = vmatmul.mubr.bf16.gmra.mxu0 %v1274
      %v2988 = vpop.f32.mrf.mxu0
      %v2989 = vadd.f32 %v727, %v2988
      %v2990 = vpop.f32.mrf.mxu0
      %v2991 = vadd.f32 %v731, %v2990
      %v2992 = vpop.f32.mrf.mxu0
      %v2993 = vadd.f32 %v727, %v2992
      %v2994 = vpop.f32.mrf.mxu0
      %v2995 = vadd.f32 %v731, %v2994
      %2996 = vmatprep.mubr.bf16.mxu0 %v1293
      %2997 = vmatmul.mubr.bf16.gmra.mxu0 %v1292
      %v2998 = vpop.f32.mrf.mxu0
      %v2999 = vadd.f32 %v727, %v2998
      %v3000 = vpop.f32.mrf.mxu0
      %v3001 = vadd.f32 %v731, %v3000
      %v3002 = vpop.f32.mrf.mxu0
      %v3003 = vadd.f32 %v727, %v3002
      %v3004 = vpop.f32.mrf.mxu0
      %v3005 = vadd.f32 %v731, %v3004
      %3006 = vdwg.mxu0
      %3007 = vmatprep.subr.bf16.mxu0 %v2365
      %3008 = vmatpush1.bf16.msra.mxu0 %v2364
      %3009 = vmatprep.subr.bf16.mxu0 %v2363
      %3010 = vmatpush1.bf16.msra.mxu0 %v2362
      %3011 = vmatprep.subr.bf16.mxu0 %v2361
      %3012 = vmatpush1.bf16.msra.mxu0 %v2360
      %3013 = vmatprep.subr.bf16.mxu0 %v2359
      %3014 = vmatpush1.bf16.msra.mxu0 %v2358
      %3015 = vmatprep.subr.bf16.mxu0 %v2357
      %3016 = vmatpush1.bf16.msra.mxu0 %v2356
      %3017 = vmatprep.subr.bf16.mxu0 %v2355
      %3018 = vmatpush1.bf16.msra.mxu0 %v2354
      %3019 = vmatprep.subr.bf16.mxu0 %v2353
      %3020 = vmatpush1.bf16.msra.mxu0 %v2352
      %3021 = vmatprep.subr.bf16.mxu0 %v2351
      %3022 = vmatpush1.bf16.msra.mxu0 %v2350
      %3023 = vmatprep.subr.bf16.mxu0 %v2381
      %3024 = vmatpush2.bf16.msra.mxu0 %v2380
      %3025 = vmatprep.subr.bf16.mxu0 %v2379
      %3026 = vmatpush2.bf16.msra.mxu0 %v2378
      %3027 = vmatprep.subr.bf16.mxu0 %v2377
      %3028 = vmatpush2.bf16.msra.mxu0 %v2376
      %3029 = vmatprep.subr.bf16.mxu0 %v2375
      %3030 = vmatpush2.bf16.msra.mxu0 %v2374
      %3031 = vmatprep.subr.bf16.mxu0 %v2373
      %3032 = vmatpush2.bf16.msra.mxu0 %v2372
      %3033 = vmatprep.subr.bf16.mxu0 %v2371
      %3034 = vmatpush2.bf16.msra.mxu0 %v2370
      %3035 = vmatprep.subr.bf16.mxu0 %v2369
      %3036 = vmatpush2.bf16.msra.mxu0 %v2368
      %3037 = vmatprep.subr.bf16.mxu0 %v2367
      %3038 = vmatpush2.bf16.msra.mxu0 %v2366
      %3039 = vmatprep.mubr.bf16.mxu0 %v1169
      %3040 = vmatmul.mubr.bf16.gmra.mxu0 %v1168
      %v3041 = vpop.f32.mrf.mxu0
      %v3042 = vadd.f32 %v2929, %v3041
      %v3043 = vpop.f32.mrf.mxu0
      %v3044 = vadd.f32 %v2931, %v3043
      %v3045 = vpop.f32.mrf.mxu0
      %v3046 = vadd.f32 %v2933, %v3045
      %v3047 = vpop.f32.mrf.mxu0
      %v3048 = vadd.f32 %v2935, %v3047
      %3049 = vmatprep.mubr.bf16.mxu0 %v1187
      %3050 = vmatmul.mubr.bf16.gmra.mxu0 %v1186
      %v3051 = vpop.f32.mrf.mxu0
      %v3052 = vadd.f32 %v2939, %v3051
      %v3053 = vpop.f32.mrf.mxu0
      %v3054 = vadd.f32 %v2941, %v3053
      %v3055 = vpop.f32.mrf.mxu0
      %v3056 = vadd.f32 %v2943, %v3055
      %v3057 = vpop.f32.mrf.mxu0
      %v3058 = vadd.f32 %v2945, %v3057
      %3059 = vmatprep.mubr.bf16.mxu0 %v1205
      %3060 = vmatmul.mubr.bf16.gmra.mxu0 %v1204
      %v3061 = vpop.f32.mrf.mxu0
      %v3062 = vadd.f32 %v2949, %v3061
      %v3063 = vpop.f32.mrf.mxu0
      %v3064 = vadd.f32 %v2951, %v3063
      %v3065 = vpop.f32.mrf.mxu0
      %v3066 = vadd.f32 %v2953, %v3065
      %v3067 = vpop.f32.mrf.mxu0
      %v3068 = vadd.f32 %v2955, %v3067
      %3069 = vmatprep.mubr.bf16.mxu0 %v1223
      %3070 = vmatmul.mubr.bf16.gmra.mxu0 %v1222
      %v3071 = vpop.f32.mrf.mxu0
      %v3072 = vadd.f32 %v2959, %v3071
      %v3073 = vpop.f32.mrf.mxu0
      %v3074 = vadd.f32 %v2961, %v3073
      %v3075 = vpop.f32.mrf.mxu0
      %v3076 = vadd.f32 %v2963, %v3075
      %v3077 = vpop.f32.mrf.mxu0
      %v3078 = vadd.f32 %v2965, %v3077
      %3079 = vmatprep.mubr.bf16.mxu0 %v1241
      %3080 = vmatmul.mubr.bf16.gmra.mxu0 %v1240
      %v3081 = vpop.f32.mrf.mxu0
      %v3082 = vadd.f32 %v2969, %v3081
      %v3083 = vpop.f32.mrf.mxu0
      %v3084 = vadd.f32 %v2971, %v3083
      %v3085 = vpop.f32.mrf.mxu0
      %v3086 = vadd.f32 %v2973, %v3085
      %v3087 = vpop.f32.mrf.mxu0
      %v3088 = vadd.f32 %v2975, %v3087
      %3089 = vmatprep.mubr.bf16.mxu0 %v1259
      %3090 = vmatmul.mubr.bf16.gmra.mxu0 %v1258
      %v3091 = vpop.f32.mrf.mxu0
      %v3092 = vadd.f32 %v2979, %v3091
      %v3093 = vpop.f32.mrf.mxu0
      %v3094 = vadd.f32 %v2981, %v3093
      %v3095 = vpop.f32.mrf.mxu0
      %v3096 = vadd.f32 %v2983, %v3095
      %v3097 = vpop.f32.mrf.mxu0
      %v3098 = vadd.f32 %v2985, %v3097
      %3099 = vmatprep.mubr.bf16.mxu0 %v1277
      %3100 = vmatmul.mubr.bf16.gmra.mxu0 %v1276
      %v3101 = vpop.f32.mrf.mxu0
      %v3102 = vadd.f32 %v2989, %v3101
      %v3103 = vpop.f32.mrf.mxu0
      %v3104 = vadd.f32 %v2991, %v3103
      %v3105 = vpop.f32.mrf.mxu0
      %v3106 = vadd.f32 %v2993, %v3105
      %v3107 = vpop.f32.mrf.mxu0
      %v3108 = vadd.f32 %v2995, %v3107
      %3109 = vmatprep.mubr.bf16.mxu0 %v1295
      %3110 = vmatmul.mubr.bf16.gmra.mxu0 %v1294
      %v3111 = vpop.f32.mrf.mxu0
      %v3112 = vadd.f32 %v2999, %v3111
      %v3113 = vpop.f32.mrf.mxu0
      %v3114 = vadd.f32 %v3001, %v3113
      %v3115 = vpop.f32.mrf.mxu0
      %v3116 = vadd.f32 %v3003, %v3115
      %v3117 = vpop.f32.mrf.mxu0
      %v3118 = vadd.f32 %v3005, %v3117
      %3119 = vdwg.mxu0
      %3120 = vmatprep.subr.bf16.mxu0 %v2397
      %3121 = vmatpush1.bf16.msra.mxu0 %v2396
      %3122 = vmatprep.subr.bf16.mxu0 %v2395
      %3123 = vmatpush1.bf16.msra.mxu0 %v2394
      %3124 = vmatprep.subr.bf16.mxu0 %v2393
      %3125 = vmatpush1.bf16.msra.mxu0 %v2392
      %3126 = vmatprep.subr.bf16.mxu0 %v2391
      %3127 = vmatpush1.bf16.msra.mxu0 %v2390
      %3128 = vmatprep.subr.bf16.mxu0 %v2389
      %3129 = vmatpush1.bf16.msra.mxu0 %v2388
      %3130 = vmatprep.subr.bf16.mxu0 %v2387
      %3131 = vmatpush1.bf16.msra.mxu0 %v2386
      %3132 = vmatprep.subr.bf16.mxu0 %v2385
      %3133 = vmatpush1.bf16.msra.mxu0 %v2384
      %3134 = vmatprep.subr.bf16.mxu0 %v2383
      %3135 = vmatpush1.bf16.msra.mxu0 %v2382
      %3136 = vmatprep.subr.bf16.mxu0 %v2413
      %3137 = vmatpush2.bf16.msra.mxu0 %v2412
      %3138 = vmatprep.subr.bf16.mxu0 %v2411
      %3139 = vmatpush2.bf16.msra.mxu0 %v2410
      %3140 = vmatprep.subr.bf16.mxu0 %v2409
      %3141 = vmatpush2.bf16.msra.mxu0 %v2408
      %3142 = vmatprep.subr.bf16.mxu0 %v2407
      %3143 = vmatpush2.bf16.msra.mxu0 %v2406
      %3144 = vmatprep.subr.bf16.mxu0 %v2405
      %3145 = vmatpush2.bf16.msra.mxu0 %v2404
      %3146 = vmatprep.subr.bf16.mxu0 %v2403
      %3147 = vmatpush2.bf16.msra.mxu0 %v2402
      %3148 = vmatprep.subr.bf16.mxu0 %v2401
      %3149 = vmatpush2.bf16.msra.mxu0 %v2400
      %3150 = vmatprep.subr.bf16.mxu0 %v2399
      %3151 = vmatpush2.bf16.msra.mxu0 %v2398
      %3152 = vmatprep.mubr.bf16.mxu0 %v1171
      %3153 = vmatmul.mubr.bf16.gmra.mxu0 %v1170
      %v3154 = vpop.f32.mrf.mxu0
      %v3155 = vadd.f32 %v3042, %v3154
      %v3156 = vpop.f32.mrf.mxu0
      %v3157 = vadd.f32 %v3044, %v3156
      %v3158 = vpop.f32.mrf.mxu0
      %v3159 = vadd.f32 %v3046, %v3158
      %v3160 = vpop.f32.mrf.mxu0
      %v3161 = vadd.f32 %v3048, %v3160
      %3162 = vmatprep.mubr.bf16.mxu0 %v1189
      %3163 = vmatmul.mubr.bf16.gmra.mxu0 %v1188
      %v3164 = vpop.f32.mrf.mxu0
      %v3165 = vadd.f32 %v3052, %v3164
      %v3166 = vpop.f32.mrf.mxu0
      %v3167 = vadd.f32 %v3054, %v3166
      %v3168 = vpop.f32.mrf.mxu0
      %v3169 = vadd.f32 %v3056, %v3168
      %v3170 = vpop.f32.mrf.mxu0
      %v3171 = vadd.f32 %v3058, %v3170
      %3172 = vmatprep.mubr.bf16.mxu0 %v1207
      %3173 = vmatmul.mubr.bf16.gmra.mxu0 %v1206
      %v3174 = vpop.f32.mrf.mxu0
      %v3175 = vadd.f32 %v3062, %v3174
      %v3176 = vpop.f32.mrf.mxu0
      %v3177 = vadd.f32 %v3064, %v3176
      %v3178 = vpop.f32.mrf.mxu0
      %v3179 = vadd.f32 %v3066, %v3178
      %v3180 = vpop.f32.mrf.mxu0
      %v3181 = vadd.f32 %v3068, %v3180
      %3182 = vmatprep.mubr.bf16.mxu0 %v1225
      %3183 = vmatmul.mubr.bf16.gmra.mxu0 %v1224
      %v3184 = vpop.f32.mrf.mxu0
      %v3185 = vadd.f32 %v3072, %v3184
      %v3186 = vpop.f32.mrf.mxu0
      %v3187 = vadd.f32 %v3074, %v3186
      %v3188 = vpop.f32.mrf.mxu0
      %v3189 = vadd.f32 %v3076, %v3188
      %v3190 = vpop.f32.mrf.mxu0
      %v3191 = vadd.f32 %v3078, %v3190
      %3192 = vmatprep.mubr.bf16.mxu0 %v1243
      %3193 = vmatmul.mubr.bf16.gmra.mxu0 %v1242
      %v3194 = vpop.f32.mrf.mxu0
      %v3195 = vadd.f32 %v3082, %v3194
      %v3196 = vpop.f32.mrf.mxu0
      %v3197 = vadd.f32 %v3084, %v3196
      %v3198 = vpop.f32.mrf.mxu0
      %v3199 = vadd.f32 %v3086, %v3198
      %v3200 = vpop.f32.mrf.mxu0
      %v3201 = vadd.f32 %v3088, %v3200
      %3202 = vmatprep.mubr.bf16.mxu0 %v1261
      %3203 = vmatmul.mubr.bf16.gmra.mxu0 %v1260
      %v3204 = vpop.f32.mrf.mxu0
      %v3205 = vadd.f32 %v3092, %v3204
      %v3206 = vpop.f32.mrf.mxu0
      %v3207 = vadd.f32 %v3094, %v3206
      %v3208 = vpop.f32.mrf.mxu0
      %v3209 = vadd.f32 %v3096, %v3208
      %v3210 = vpop.f32.mrf.mxu0
      %v3211 = vadd.f32 %v3098, %v3210
      %3212 = vmatprep.mubr.bf16.mxu0 %v1279
      %3213 = vmatmul.mubr.bf16.gmra.mxu0 %v1278
      %v3214 = vpop.f32.mrf.mxu0
      %v3215 = vadd.f32 %v3102, %v3214
      %v3216 = vpop.f32.mrf.mxu0
      %v3217 = vadd.f32 %v3104, %v3216
      %v3218 = vpop.f32.mrf.mxu0
      %v3219 = vadd.f32 %v3106, %v3218
      %v3220 = vpop.f32.mrf.mxu0
      %v3221 = vadd.f32 %v3108, %v3220
      %3222 = vmatprep.mubr.bf16.mxu0 %v1297
      %3223 = vmatmul.mubr.bf16.gmra.mxu0 %v1296
      %v3224 = vpop.f32.mrf.mxu0
      %v3225 = vadd.f32 %v3112, %v3224
      %v3226 = vpop.f32.mrf.mxu0
      %v3227 = vadd.f32 %v3114, %v3226
      %v3228 = vpop.f32.mrf.mxu0
      %v3229 = vadd.f32 %v3116, %v3228
      %v3230 = vpop.f32.mrf.mxu0
      %v3231 = vadd.f32 %v3118, %v3230
      %3232 = vdwg.mxu0
      %3233 = vmatprep.subr.bf16.mxu0 %v2429
      %3234 = vmatpush1.bf16.msra.mxu0 %v2428
      %3235 = vmatprep.subr.bf16.mxu0 %v2427
      %3236 = vmatpush1.bf16.msra.mxu0 %v2426
      %3237 = vmatprep.subr.bf16.mxu0 %v2425
      %3238 = vmatpush1.bf16.msra.mxu0 %v2424
      %3239 = vmatprep.subr.bf16.mxu0 %v2423
      %3240 = vmatpush1.bf16.msra.mxu0 %v2422
      %3241 = vmatprep.subr.bf16.mxu0 %v2421
      %3242 = vmatpush1.bf16.msra.mxu0 %v2420
      %3243 = vmatprep.subr.bf16.mxu0 %v2419
      %3244 = vmatpush1.bf16.msra.mxu0 %v2418
      %3245 = vmatprep.subr.bf16.mxu0 %v2417
      %3246 = vmatpush1.bf16.msra.mxu0 %v2416
      %3247 = vmatprep.subr.bf16.mxu0 %v2415
      %3248 = vmatpush1.bf16.msra.mxu0 %v2414
      %3249 = vmatprep.subr.bf16.mxu0 %v2445
      %3250 = vmatpush2.bf16.msra.mxu0 %v2444
      %3251 = vmatprep.subr.bf16.mxu0 %v2443
      %3252 = vmatpush2.bf16.msra.mxu0 %v2442
      %3253 = vmatprep.subr.bf16.mxu0 %v2441
      %3254 = vmatpush2.bf16.msra.mxu0 %v2440
      %3255 = vmatprep.subr.bf16.mxu0 %v2439
      %3256 = vmatpush2.bf16.msra.mxu0 %v2438
      %3257 = vmatprep.subr.bf16.mxu0 %v2437
      %3258 = vmatpush2.bf16.msra.mxu0 %v2436
      %3259 = vmatprep.subr.bf16.mxu0 %v2435
      %3260 = vmatpush2.bf16.msra.mxu0 %v2434
      %3261 = vmatprep.subr.bf16.mxu0 %v2433
      %3262 = vmatpush2.bf16.msra.mxu0 %v2432
      %3263 = vmatprep.subr.bf16.mxu0 %v2431
      %3264 = vmatpush2.bf16.msra.mxu0 %v2430
      %3265 = vmatprep.mubr.bf16.mxu0 %v1173
      %3266 = vmatmul.mubr.bf16.gmra.mxu0 %v1172
      %v3267 = vpop.f32.mrf.mxu0
      %v3268 = vadd.f32 %v3155, %v3267
      %v3269 = vpop.f32.mrf.mxu0
      %v3270 = vadd.f32 %v3157, %v3269
      %v3271 = vpop.f32.mrf.mxu0
      %v3272 = vadd.f32 %v3159, %v3271
      %v3273 = vpop.f32.mrf.mxu0
      %v3274 = vadd.f32 %v3161, %v3273
      %3275 = vmatprep.mubr.bf16.mxu0 %v1191
      %3276 = vmatmul.mubr.bf16.gmra.mxu0 %v1190
      %v3277 = vpop.f32.mrf.mxu0
      %v3278 = vadd.f32 %v3165, %v3277
      %v3279 = vpop.f32.mrf.mxu0
      %v3280 = vadd.f32 %v3167, %v3279
      %v3281 = vpop.f32.mrf.mxu0
      %v3282 = vadd.f32 %v3169, %v3281
      %v3283 = vpop.f32.mrf.mxu0
      %v3284 = vadd.f32 %v3171, %v3283
      %3285 = vmatprep.mubr.bf16.mxu0 %v1209
      %3286 = vmatmul.mubr.bf16.gmra.mxu0 %v1208
      %v3287 = vpop.f32.mrf.mxu0
      %v3288 = vadd.f32 %v3175, %v3287
      %v3289 = vpop.f32.mrf.mxu0
      %v3290 = vadd.f32 %v3177, %v3289
      %v3291 = vpop.f32.mrf.mxu0
      %v3292 = vadd.f32 %v3179, %v3291
      %v3293 = vpop.f32.mrf.mxu0
      %v3294 = vadd.f32 %v3181, %v3293
      %3295 = vmatprep.mubr.bf16.mxu0 %v1227
      %3296 = vmatmul.mubr.bf16.gmra.mxu0 %v1226
      %v3297 = vpop.f32.mrf.mxu0
      %v3298 = vadd.f32 %v3185, %v3297
      %v3299 = vpop.f32.mrf.mxu0
      %v3300 = vadd.f32 %v3187, %v3299
      %v3301 = vpop.f32.mrf.mxu0
      %v3302 = vadd.f32 %v3189, %v3301
      %v3303 = vpop.f32.mrf.mxu0
      %v3304 = vadd.f32 %v3191, %v3303
      %3305 = vmatprep.mubr.bf16.mxu0 %v1245
      %3306 = vmatmul.mubr.bf16.gmra.mxu0 %v1244
      %v3307 = vpop.f32.mrf.mxu0
      %v3308 = vadd.f32 %v3195, %v3307
      %v3309 = vpop.f32.mrf.mxu0
      %v3310 = vadd.f32 %v3197, %v3309
      %v3311 = vpop.f32.mrf.mxu0
      %v3312 = vadd.f32 %v3199, %v3311
      %v3313 = vpop.f32.mrf.mxu0
      %v3314 = vadd.f32 %v3201, %v3313
      %3315 = vmatprep.mubr.bf16.mxu0 %v1263
      %3316 = vmatmul.mubr.bf16.gmra.mxu0 %v1262
      %v3317 = vpop.f32.mrf.mxu0
      %v3318 = vadd.f32 %v3205, %v3317
      %v3319 = vpop.f32.mrf.mxu0
      %v3320 = vadd.f32 %v3207, %v3319
      %v3321 = vpop.f32.mrf.mxu0
      %v3322 = vadd.f32 %v3209, %v3321
      %v3323 = vpop.f32.mrf.mxu0
      %v3324 = vadd.f32 %v3211, %v3323
      %3325 = vmatprep.mubr.bf16.mxu0 %v1281
      %3326 = vmatmul.mubr.bf16.gmra.mxu0 %v1280
      %v3327 = vpop.f32.mrf.mxu0
      %v3328 = vadd.f32 %v3215, %v3327
      %v3329 = vpop.f32.mrf.mxu0
      %v3330 = vadd.f32 %v3217, %v3329
      %v3331 = vpop.f32.mrf.mxu0
      %v3332 = vadd.f32 %v3219, %v3331
      %v3333 = vpop.f32.mrf.mxu0
      %v3334 = vadd.f32 %v3221, %v3333
      %3335 = vmatprep.mubr.bf16.mxu0 %v1299
      %3336 = vmatmul.mubr.bf16.gmra.mxu0 %v1298
      %v3337 = vpop.f32.mrf.mxu0
      %v3338 = vadd.f32 %v3225, %v3337
      %v3339 = vpop.f32.mrf.mxu0
      %v3340 = vadd.f32 %v3227, %v3339
      %v3341 = vpop.f32.mrf.mxu0
      %v3342 = vadd.f32 %v3229, %v3341
      %v3343 = vpop.f32.mrf.mxu0
      %v3344 = vadd.f32 %v3231, %v3343
      %3345 = vdwg.mxu0
      %3346 = vmatprep.subr.bf16.mxu0 %v2461
      %3347 = vmatpush1.bf16.msra.mxu0 %v2460
      %3348 = vmatprep.subr.bf16.mxu0 %v2459
      %3349 = vmatpush1.bf16.msra.mxu0 %v2458
      %3350 = vmatprep.subr.bf16.mxu0 %v2457
      %3351 = vmatpush1.bf16.msra.mxu0 %v2456
      %3352 = vmatprep.subr.bf16.mxu0 %v2455
      %3353 = vmatpush1.bf16.msra.mxu0 %v2454
      %3354 = vmatprep.subr.bf16.mxu0 %v2453
      %3355 = vmatpush1.bf16.msra.mxu0 %v2452
      %3356 = vmatprep.subr.bf16.mxu0 %v2451
      %3357 = vmatpush1.bf16.msra.mxu0 %v2450
      %3358 = vmatprep.subr.bf16.mxu0 %v2449
      %3359 = vmatpush1.bf16.msra.mxu0 %v2448
      %3360 = vmatprep.subr.bf16.mxu0 %v2447
      %3361 = vmatpush1.bf16.msra.mxu0 %v2446
      %3362 = vmatprep.subr.bf16.mxu0 %v2477
      %3363 = vmatpush2.bf16.msra.mxu0 %v2476
      %3364 = vmatprep.subr.bf16.mxu0 %v2475
      %3365 = vmatpush2.bf16.msra.mxu0 %v2474
      %3366 = vmatprep.subr.bf16.mxu0 %v2473
      %3367 = vmatpush2.bf16.msra.mxu0 %v2472
      %3368 = vmatprep.subr.bf16.mxu0 %v2471
      %3369 = vmatpush2.bf16.msra.mxu0 %v2470
      %3370 = vmatprep.subr.bf16.mxu0 %v2469
      %3371 = vmatpush2.bf16.msra.mxu0 %v2468
      %3372 = vmatprep.subr.bf16.mxu0 %v2467
      %3373 = vmatpush2.bf16.msra.mxu0 %v2466
      %3374 = vmatprep.subr.bf16.mxu0 %v2465
      %3375 = vmatpush2.bf16.msra.mxu0 %v2464
      %3376 = vmatprep.subr.bf16.mxu0 %v2463
      %3377 = vmatpush2.bf16.msra.mxu0 %v2462
      %3378 = vmatprep.mubr.bf16.mxu0 %v1175
      %3379 = vmatmul.mubr.bf16.gmra.mxu0 %v1174
      %v3380 = vpop.f32.mrf.mxu0
      %v3381 = vadd.f32 %v3268, %v3380
      %v3382 = vpop.f32.mrf.mxu0
      %v3383 = vadd.f32 %v3270, %v3382
      %v3384 = vpop.f32.mrf.mxu0
      %v3385 = vadd.f32 %v3272, %v3384
      %v3386 = vpop.f32.mrf.mxu0
      %v3387 = vadd.f32 %v3274, %v3386
      %3388 = vmatprep.mubr.bf16.mxu0 %v1193
      %3389 = vmatmul.mubr.bf16.gmra.mxu0 %v1192
      %v3390 = vpop.f32.mrf.mxu0
      %v3391 = vadd.f32 %v3278, %v3390
      %v3392 = vpop.f32.mrf.mxu0
      %v3393 = vadd.f32 %v3280, %v3392
      %v3394 = vpop.f32.mrf.mxu0
      %v3395 = vadd.f32 %v3282, %v3394
      %v3396 = vpop.f32.mrf.mxu0
      %v3397 = vadd.f32 %v3284, %v3396
      %3398 = vmatprep.mubr.bf16.mxu0 %v1211
      %3399 = vmatmul.mubr.bf16.gmra.mxu0 %v1210
      %v3400 = vpop.f32.mrf.mxu0
      %v3401 = vadd.f32 %v3288, %v3400
      %v3402 = vpop.f32.mrf.mxu0
      %v3403 = vadd.f32 %v3290, %v3402
      %v3404 = vpop.f32.mrf.mxu0
      %v3405 = vadd.f32 %v3292, %v3404
      %v3406 = vpop.f32.mrf.mxu0
      %v3407 = vadd.f32 %v3294, %v3406
      %3408 = vmatprep.mubr.bf16.mxu0 %v1229
      %3409 = vmatmul.mubr.bf16.gmra.mxu0 %v1228
      %v3410 = vpop.f32.mrf.mxu0
      %v3411 = vadd.f32 %v3298, %v3410
      %v3412 = vpop.f32.mrf.mxu0
      %v3413 = vadd.f32 %v3300, %v3412
      %v3414 = vpop.f32.mrf.mxu0
      %v3415 = vadd.f32 %v3302, %v3414
      %v3416 = vpop.f32.mrf.mxu0
      %v3417 = vadd.f32 %v3304, %v3416
      %3418 = vmatprep.mubr.bf16.mxu0 %v1247
      %3419 = vmatmul.mubr.bf16.gmra.mxu0 %v1246
      %v3420 = vpop.f32.mrf.mxu0
      %v3421 = vadd.f32 %v3308, %v3420
      %v3422 = vpop.f32.mrf.mxu0
      %v3423 = vadd.f32 %v3310, %v3422
      %v3424 = vpop.f32.mrf.mxu0
      %v3425 = vadd.f32 %v3312, %v3424
      %v3426 = vpop.f32.mrf.mxu0
      %v3427 = vadd.f32 %v3314, %v3426
      %3428 = vmatprep.mubr.bf16.mxu0 %v1265
      %3429 = vmatmul.mubr.bf16.gmra.mxu0 %v1264
      %v3430 = vpop.f32.mrf.mxu0
      %v3431 = vadd.f32 %v3318, %v3430
      %v3432 = vpop.f32.mrf.mxu0
      %v3433 = vadd.f32 %v3320, %v3432
      %v3434 = vpop.f32.mrf.mxu0
      %v3435 = vadd.f32 %v3322, %v3434
      %v3436 = vpop.f32.mrf.mxu0
      %v3437 = vadd.f32 %v3324, %v3436
      %3438 = vmatprep.mubr.bf16.mxu0 %v1283
      %3439 = vmatmul.mubr.bf16.gmra.mxu0 %v1282
      %v3440 = vpop.f32.mrf.mxu0
      %v3441 = vadd.f32 %v3328, %v3440
      %v3442 = vpop.f32.mrf.mxu0
      %v3443 = vadd.f32 %v3330, %v3442
      %v3444 = vpop.f32.mrf.mxu0
      %v3445 = vadd.f32 %v3332, %v3444
      %v3446 = vpop.f32.mrf.mxu0
      %v3447 = vadd.f32 %v3334, %v3446
      %3448 = vmatprep.mubr.bf16.mxu0 %v1301
      %3449 = vmatmul.mubr.bf16.gmra.mxu0 %v1300
      %v3450 = vpop.f32.mrf.mxu0
      %v3451 = vadd.f32 %v3338, %v3450
      %v3452 = vpop.f32.mrf.mxu0
      %v3453 = vadd.f32 %v3340, %v3452
      %v3454 = vpop.f32.mrf.mxu0
      %v3455 = vadd.f32 %v3342, %v3454
      %v3456 = vpop.f32.mrf.mxu0
      %v3457 = vadd.f32 %v3344, %v3456
      %3458 = vdwg.mxu0
      %3459 = vmatprep.subr.bf16.mxu0 %v2493
      %3460 = vmatpush1.bf16.msra.mxu0 %v2492
      %3461 = vmatprep.subr.bf16.mxu0 %v2491
      %3462 = vmatpush1.bf16.msra.mxu0 %v2490
      %3463 = vmatprep.subr.bf16.mxu0 %v2489
      %3464 = vmatpush1.bf16.msra.mxu0 %v2488
      %3465 = vmatprep.subr.bf16.mxu0 %v2487
      %3466 = vmatpush1.bf16.msra.mxu0 %v2486
      %3467 = vmatprep.subr.bf16.mxu0 %v2485
      %3468 = vmatpush1.bf16.msra.mxu0 %v2484
      %3469 = vmatprep.subr.bf16.mxu0 %v2483
      %3470 = vmatpush1.bf16.msra.mxu0 %v2482
      %3471 = vmatprep.subr.bf16.mxu0 %v2481
      %3472 = vmatpush1.bf16.msra.mxu0 %v2480
      %3473 = vmatprep.subr.bf16.mxu0 %v2479
      %3474 = vmatpush1.bf16.msra.mxu0 %v2478
      %3475 = vmatprep.subr.bf16.mxu0 %v2509
      %3476 = vmatpush2.bf16.msra.mxu0 %v2508
      %3477 = vmatprep.subr.bf16.mxu0 %v2507
      %3478 = vmatpush2.bf16.msra.mxu0 %v2506
      %3479 = vmatprep.subr.bf16.mxu0 %v2505
      %3480 = vmatpush2.bf16.msra.mxu0 %v2504
      %3481 = vmatprep.subr.bf16.mxu0 %v2503
      %3482 = vmatpush2.bf16.msra.mxu0 %v2502
      %3483 = vmatprep.subr.bf16.mxu0 %v2501
      %3484 = vmatpush2.bf16.msra.mxu0 %v2500
      %3485 = vmatprep.subr.bf16.mxu0 %v2499
      %3486 = vmatpush2.bf16.msra.mxu0 %v2498
      %3487 = vmatprep.subr.bf16.mxu0 %v2497
      %3488 = vmatpush2.bf16.msra.mxu0 %v2496
      %3489 = vmatprep.subr.bf16.mxu0 %v2495
      %3490 = vmatpush2.bf16.msra.mxu0 %v2494
      %3491 = vmatprep.mubr.bf16.mxu0 %v1177
      %3492 = vmatmul.mubr.bf16.gmra.mxu0 %v1176
      %v3493 = vpop.f32.mrf.mxu0
      %v3494 = vadd.f32 %v3381, %v3493
      %v3495 = vpop.f32.mrf.mxu0
      %v3496 = vadd.f32 %v3383, %v3495
      %v3497 = vpop.f32.mrf.mxu0
      %v3498 = vadd.f32 %v3385, %v3497
      %v3499 = vpop.f32.mrf.mxu0
      %v3500 = vadd.f32 %v3387, %v3499
      %3501 = vmatprep.mubr.bf16.mxu0 %v1195
      %3502 = vmatmul.mubr.bf16.gmra.mxu0 %v1194
      %v3503 = vpop.f32.mrf.mxu0
      %v3504 = vadd.f32 %v3391, %v3503
      %v3505 = vpop.f32.mrf.mxu0
      %v3506 = vadd.f32 %v3393, %v3505
      %v3507 = vpop.f32.mrf.mxu0
      %v3508 = vadd.f32 %v3395, %v3507
      %v3509 = vpop.f32.mrf.mxu0
      %v3510 = vadd.f32 %v3397, %v3509
      %3511 = vmatprep.mubr.bf16.mxu0 %v1213
      %3512 = vmatmul.mubr.bf16.gmra.mxu0 %v1212
      %v3513 = vpop.f32.mrf.mxu0
      %v3514 = vadd.f32 %v3401, %v3513
      %v3515 = vpop.f32.mrf.mxu0
      %v3516 = vadd.f32 %v3403, %v3515
      %v3517 = vpop.f32.mrf.mxu0
      %v3518 = vadd.f32 %v3405, %v3517
      %v3519 = vpop.f32.mrf.mxu0
      %v3520 = vadd.f32 %v3407, %v3519
      %3521 = vmatprep.mubr.bf16.mxu0 %v1231
      %3522 = vmatmul.mubr.bf16.gmra.mxu0 %v1230
      %v3523 = vpop.f32.mrf.mxu0
      %v3524 = vadd.f32 %v3411, %v3523
      %v3525 = vpop.f32.mrf.mxu0
      %v3526 = vadd.f32 %v3413, %v3525
      %v3527 = vpop.f32.mrf.mxu0
      %v3528 = vadd.f32 %v3415, %v3527
      %v3529 = vpop.f32.mrf.mxu0
      %v3530 = vadd.f32 %v3417, %v3529
      %3531 = vmatprep.mubr.bf16.mxu0 %v1249
      %3532 = vmatmul.mubr.bf16.gmra.mxu0 %v1248
      %v3533 = vpop.f32.mrf.mxu0
      %v3534 = vadd.f32 %v3421, %v3533
      %v3535 = vpop.f32.mrf.mxu0
      %v3536 = vadd.f32 %v3423, %v3535
      %v3537 = vpop.f32.mrf.mxu0
      %v3538 = vadd.f32 %v3425, %v3537
      %v3539 = vpop.f32.mrf.mxu0
      %v3540 = vadd.f32 %v3427, %v3539
      %3541 = vmatprep.mubr.bf16.mxu0 %v1267
      %3542 = vmatmul.mubr.bf16.gmra.mxu0 %v1266
      %v3543 = vpop.f32.mrf.mxu0
      %v3544 = vadd.f32 %v3431, %v3543
      %v3545 = vpop.f32.mrf.mxu0
      %v3546 = vadd.f32 %v3433, %v3545
      %v3547 = vpop.f32.mrf.mxu0
      %v3548 = vadd.f32 %v3435, %v3547
      %v3549 = vpop.f32.mrf.mxu0
      %v3550 = vadd.f32 %v3437, %v3549
      %3551 = vmatprep.mubr.bf16.mxu0 %v1285
      %3552 = vmatmul.mubr.bf16.gmra.mxu0 %v1284
      %v3553 = vpop.f32.mrf.mxu0
      %v3554 = vadd.f32 %v3441, %v3553
      %v3555 = vpop.f32.mrf.mxu0
      %v3556 = vadd.f32 %v3443, %v3555
      %v3557 = vpop.f32.mrf.mxu0
      %v3558 = vadd.f32 %v3445, %v3557
      %v3559 = vpop.f32.mrf.mxu0
      %v3560 = vadd.f32 %v3447, %v3559
      %3561 = vmatprep.mubr.bf16.mxu0 %v1303
      %3562 = vmatmul.mubr.bf16.gmra.mxu0 %v1302
      %v3563 = vpop.f32.mrf.mxu0
      %v3564 = vadd.f32 %v3451, %v3563
      %v3565 = vpop.f32.mrf.mxu0
      %v3566 = vadd.f32 %v3453, %v3565
      %v3567 = vpop.f32.mrf.mxu0
      %v3568 = vadd.f32 %v3455, %v3567
      %v3569 = vpop.f32.mrf.mxu0
      %v3570 = vadd.f32 %v3457, %v3569
      %3571 = vdwg.mxu0
      %3572 = vmatprep.subr.bf16.mxu0 %v2525
      %3573 = vmatpush1.bf16.msra.mxu0 %v2524
      %3574 = vmatprep.subr.bf16.mxu0 %v2523
      %3575 = vmatpush1.bf16.msra.mxu0 %v2522
      %3576 = vmatprep.subr.bf16.mxu0 %v2521
      %3577 = vmatpush1.bf16.msra.mxu0 %v2520
      %3578 = vmatprep.subr.bf16.mxu0 %v2519
      %3579 = vmatpush1.bf16.msra.mxu0 %v2518
      %3580 = vmatprep.subr.bf16.mxu0 %v2517
      %3581 = vmatpush1.bf16.msra.mxu0 %v2516
      %3582 = vmatprep.subr.bf16.mxu0 %v2515
      %3583 = vmatpush1.bf16.msra.mxu0 %v2514
      %3584 = vmatprep.subr.bf16.mxu0 %v2513
      %3585 = vmatpush1.bf16.msra.mxu0 %v2512
      %3586 = vmatprep.subr.bf16.mxu0 %v2511
      %3587 = vmatpush1.bf16.msra.mxu0 %v2510
      %3588 = vmatprep.subr.bf16.mxu0 %v2541
      %3589 = vmatpush2.bf16.msra.mxu0 %v2540
      %3590 = vmatprep.subr.bf16.mxu0 %v2539
      %3591 = vmatpush2.bf16.msra.mxu0 %v2538
      %3592 = vmatprep.subr.bf16.mxu0 %v2537
      %3593 = vmatpush2.bf16.msra.mxu0 %v2536
      %3594 = vmatprep.subr.bf16.mxu0 %v2535
      %3595 = vmatpush2.bf16.msra.mxu0 %v2534
      %3596 = vmatprep.subr.bf16.mxu0 %v2533
      %3597 = vmatpush2.bf16.msra.mxu0 %v2532
      %3598 = vmatprep.subr.bf16.mxu0 %v2531
      %3599 = vmatpush2.bf16.msra.mxu0 %v2530
      %3600 = vmatprep.subr.bf16.mxu0 %v2529
      %3601 = vmatpush2.bf16.msra.mxu0 %v2528
      %3602 = vmatprep.subr.bf16.mxu0 %v2527
      %3603 = vmatpush2.bf16.msra.mxu0 %v2526
      %3604 = vmatprep.mubr.bf16.mxu0 %v1179
      %3605 = vmatmul.mubr.bf16.gmra.mxu0 %v1178
      %v3606 = vpop.f32.mrf.mxu0
      %v3607 = vadd.f32 %v3494, %v3606
      %v3608 = vpop.f32.mrf.mxu0
      %v3609 = vadd.f32 %v3496, %v3608
      %v3610 = vpop.f32.mrf.mxu0
      %v3611 = vadd.f32 %v3498, %v3610
      %v3612 = vpop.f32.mrf.mxu0
      %v3613 = vadd.f32 %v3500, %v3612
      %3614 = vmatprep.mubr.bf16.mxu0 %v1197
      %3615 = vmatmul.mubr.bf16.gmra.mxu0 %v1196
      %v3616 = vpop.f32.mrf.mxu0
      %v3617 = vadd.f32 %v3504, %v3616
      %v3618 = vpop.f32.mrf.mxu0
      %v3619 = vadd.f32 %v3506, %v3618
      %v3620 = vpop.f32.mrf.mxu0
      %v3621 = vadd.f32 %v3508, %v3620
      %v3622 = vpop.f32.mrf.mxu0
      %v3623 = vadd.f32 %v3510, %v3622
      %3624 = vmatprep.mubr.bf16.mxu0 %v1215
      %3625 = vmatmul.mubr.bf16.gmra.mxu0 %v1214
      %v3626 = vpop.f32.mrf.mxu0
      %v3627 = vadd.f32 %v3514, %v3626
      %v3628 = vpop.f32.mrf.mxu0
      %v3629 = vadd.f32 %v3516, %v3628
      %v3630 = vpop.f32.mrf.mxu0
      %v3631 = vadd.f32 %v3518, %v3630
      %v3632 = vpop.f32.mrf.mxu0
      %v3633 = vadd.f32 %v3520, %v3632
      %3634 = vmatprep.mubr.bf16.mxu0 %v1233
      %3635 = vmatmul.mubr.bf16.gmra.mxu0 %v1232
      %v3636 = vpop.f32.mrf.mxu0
      %v3637 = vadd.f32 %v3524, %v3636
      %v3638 = vpop.f32.mrf.mxu0
      %v3639 = vadd.f32 %v3526, %v3638
      %v3640 = vpop.f32.mrf.mxu0
      %v3641 = vadd.f32 %v3528, %v3640
      %v3642 = vpop.f32.mrf.mxu0
      %v3643 = vadd.f32 %v3530, %v3642
      %3644 = vmatprep.mubr.bf16.mxu0 %v1251
      %3645 = vmatmul.mubr.bf16.gmra.mxu0 %v1250
      %v3646 = vpop.f32.mrf.mxu0
      %v3647 = vadd.f32 %v3534, %v3646
      %v3648 = vpop.f32.mrf.mxu0
      %v3649 = vadd.f32 %v3536, %v3648
      %v3650 = vpop.f32.mrf.mxu0
      %v3651 = vadd.f32 %v3538, %v3650
      %v3652 = vpop.f32.mrf.mxu0
      %v3653 = vadd.f32 %v3540, %v3652
      %3654 = vmatprep.mubr.bf16.mxu0 %v1269
      %3655 = vmatmul.mubr.bf16.gmra.mxu0 %v1268
      %v3656 = vpop.f32.mrf.mxu0
      %v3657 = vadd.f32 %v3544, %v3656
      %v3658 = vpop.f32.mrf.mxu0
      %v3659 = vadd.f32 %v3546, %v3658
      %v3660 = vpop.f32.mrf.mxu0
      %v3661 = vadd.f32 %v3548, %v3660
      %v3662 = vpop.f32.mrf.mxu0
      %v3663 = vadd.f32 %v3550, %v3662
      %3664 = vmatprep.mubr.bf16.mxu0 %v1287
      %3665 = vmatmul.mubr.bf16.gmra.mxu0 %v1286
      %v3666 = vpop.f32.mrf.mxu0
      %v3667 = vadd.f32 %v3554, %v3666
      %v3668 = vpop.f32.mrf.mxu0
      %v3669 = vadd.f32 %v3556, %v3668
      %v3670 = vpop.f32.mrf.mxu0
      %v3671 = vadd.f32 %v3558, %v3670
      %v3672 = vpop.f32.mrf.mxu0
      %v3673 = vadd.f32 %v3560, %v3672
      %3674 = vmatprep.mubr.bf16.mxu0 %v1305
      %3675 = vmatmul.mubr.bf16.gmra.mxu0 %v1304
      %v3676 = vpop.f32.mrf.mxu0
      %v3677 = vadd.f32 %v3564, %v3676
      %v3678 = vpop.f32.mrf.mxu0
      %v3679 = vadd.f32 %v3566, %v3678
      %v3680 = vpop.f32.mrf.mxu0
      %v3681 = vadd.f32 %v3568, %v3680
      %v3682 = vpop.f32.mrf.mxu0
      %v3683 = vadd.f32 %v3570, %v3682
      %3684 = vdwg.mxu0
      %3685 = vmatprep.subr.bf16.mxu0 %v2557
      %3686 = vmatpush1.bf16.msra.mxu0 %v2556
      %3687 = vmatprep.subr.bf16.mxu0 %v2555
      %3688 = vmatpush1.bf16.msra.mxu0 %v2554
      %3689 = vmatprep.subr.bf16.mxu0 %v2553
      %3690 = vmatpush1.bf16.msra.mxu0 %v2552
      %3691 = vmatprep.subr.bf16.mxu0 %v2551
      %3692 = vmatpush1.bf16.msra.mxu0 %v2550
      %3693 = vmatprep.subr.bf16.mxu0 %v2549
      %3694 = vmatpush1.bf16.msra.mxu0 %v2548
      %3695 = vmatprep.subr.bf16.mxu0 %v2547
      %3696 = vmatpush1.bf16.msra.mxu0 %v2546
      %3697 = vmatprep.subr.bf16.mxu0 %v2545
      %3698 = vmatpush1.bf16.msra.mxu0 %v2544
      %3699 = vmatprep.subr.bf16.mxu0 %v2543
      %3700 = vmatpush1.bf16.msra.mxu0 %v2542
      %3701 = vmatprep.subr.bf16.mxu0 %v2573
      %3702 = vmatpush2.bf16.msra.mxu0 %v2572
      %3703 = vmatprep.subr.bf16.mxu0 %v2571
      %3704 = vmatpush2.bf16.msra.mxu0 %v2570
      %3705 = vmatprep.subr.bf16.mxu0 %v2569
      %3706 = vmatpush2.bf16.msra.mxu0 %v2568
      %3707 = vmatprep.subr.bf16.mxu0 %v2567
      %3708 = vmatpush2.bf16.msra.mxu0 %v2566
      %3709 = vmatprep.subr.bf16.mxu0 %v2565
      %3710 = vmatpush2.bf16.msra.mxu0 %v2564
      %3711 = vmatprep.subr.bf16.mxu0 %v2563
      %3712 = vmatpush2.bf16.msra.mxu0 %v2562
      %3713 = vmatprep.subr.bf16.mxu0 %v2561
      %3714 = vmatpush2.bf16.msra.mxu0 %v2560
      %3715 = vmatprep.subr.bf16.mxu0 %v2559
      %3716 = vmatpush2.bf16.msra.mxu0 %v2558
      %3717 = vmatprep.mubr.bf16.mxu0 %v1181
      %3718 = vmatmul.mubr.bf16.gmra.mxu0 %v1180
      %v3719 = vpop.f32.mrf.mxu0
      %v3720 = vadd.f32 %v3607, %v3719
      %v3721 = vpop.f32.mrf.mxu0
      %v3722 = vadd.f32 %v3609, %v3721
      %v3723 = vpop.f32.mrf.mxu0
      %v3724 = vadd.f32 %v3611, %v3723
      %v3725 = vpop.f32.mrf.mxu0
      %v3726 = vadd.f32 %v3613, %v3725
      %3727 = vmatprep.mubr.bf16.mxu0 %v1199
      %3728 = vmatmul.mubr.bf16.gmra.mxu0 %v1198
      %v3729 = vpop.f32.mrf.mxu0
      %v3730 = vadd.f32 %v3617, %v3729
      %v3731 = vpop.f32.mrf.mxu0
      %v3732 = vadd.f32 %v3619, %v3731
      %v3733 = vpop.f32.mrf.mxu0
      %v3734 = vadd.f32 %v3621, %v3733
      %v3735 = vpop.f32.mrf.mxu0
      %v3736 = vadd.f32 %v3623, %v3735
      %3737 = vmatprep.mubr.bf16.mxu0 %v1217
      %3738 = vmatmul.mubr.bf16.gmra.mxu0 %v1216
      %v3739 = vpop.f32.mrf.mxu0
      %v3740 = vadd.f32 %v3627, %v3739
      %v3741 = vpop.f32.mrf.mxu0
      %v3742 = vadd.f32 %v3629, %v3741
      %v3743 = vpop.f32.mrf.mxu0
      %v3744 = vadd.f32 %v3631, %v3743
      %v3745 = vpop.f32.mrf.mxu0
      %v3746 = vadd.f32 %v3633, %v3745
      %3747 = vmatprep.mubr.bf16.mxu0 %v1235
      %3748 = vmatmul.mubr.bf16.gmra.mxu0 %v1234
      %v3749 = vpop.f32.mrf.mxu0
      %v3750 = vadd.f32 %v3637, %v3749
      %v3751 = vpop.f32.mrf.mxu0
      %v3752 = vadd.f32 %v3639, %v3751
      %v3753 = vpop.f32.mrf.mxu0
      %v3754 = vadd.f32 %v3641, %v3753
      %v3755 = vpop.f32.mrf.mxu0
      %v3756 = vadd.f32 %v3643, %v3755
      %3757 = vmatprep.mubr.bf16.mxu0 %v1253
      %3758 = vmatmul.mubr.bf16.gmra.mxu0 %v1252
      %v3759 = vpop.f32.mrf.mxu0
      %v3760 = vadd.f32 %v3647, %v3759
      %v3761 = vpop.f32.mrf.mxu0
      %v3762 = vadd.f32 %v3649, %v3761
      %v3763 = vpop.f32.mrf.mxu0
      %v3764 = vadd.f32 %v3651, %v3763
      %v3765 = vpop.f32.mrf.mxu0
      %v3766 = vadd.f32 %v3653, %v3765
      %3767 = vmatprep.mubr.bf16.mxu0 %v1271
      %3768 = vmatmul.mubr.bf16.gmra.mxu0 %v1270
      %v3769 = vpop.f32.mrf.mxu0
      %v3770 = vadd.f32 %v3657, %v3769
      %v3771 = vpop.f32.mrf.mxu0
      %v3772 = vadd.f32 %v3659, %v3771
      %v3773 = vpop.f32.mrf.mxu0
      %v3774 = vadd.f32 %v3661, %v3773
      %v3775 = vpop.f32.mrf.mxu0
      %v3776 = vadd.f32 %v3663, %v3775
      %3777 = vmatprep.mubr.bf16.mxu0 %v1289
      %3778 = vmatmul.mubr.bf16.gmra.mxu0 %v1288
      %v3779 = vpop.f32.mrf.mxu0
      %v3780 = vadd.f32 %v3667, %v3779
      %v3781 = vpop.f32.mrf.mxu0
      %v3782 = vadd.f32 %v3669, %v3781
      %v3783 = vpop.f32.mrf.mxu0
      %v3784 = vadd.f32 %v3671, %v3783
      %v3785 = vpop.f32.mrf.mxu0
      %v3786 = vadd.f32 %v3673, %v3785
      %3787 = vmatprep.mubr.bf16.mxu0 %v1307
      %3788 = vmatmul.mubr.bf16.gmra.mxu0 %v1306
      %v3789 = vpop.f32.mrf.mxu0
      %v3790 = vadd.f32 %v3677, %v3789
      %v3791 = vpop.f32.mrf.mxu0
      %v3792 = vadd.f32 %v3679, %v3791
      %v3793 = vpop.f32.mrf.mxu0
      %v3794 = vadd.f32 %v3681, %v3793
      %v3795 = vpop.f32.mrf.mxu0
      %v3796 = vadd.f32 %v3683, %v3795
      %3797 = vdwg.mxu0
      %3798 = vmatprep.subr.bf16.mxu0 %v2589
      %3799 = vmatpush1.bf16.msra.mxu0 %v2588
      %3800 = vmatprep.subr.bf16.mxu0 %v2587
      %3801 = vmatpush1.bf16.msra.mxu0 %v2586
      %3802 = vmatprep.subr.bf16.mxu0 %v2585
      %3803 = vmatpush1.bf16.msra.mxu0 %v2584
      %3804 = vmatprep.subr.bf16.mxu0 %v2583
      %3805 = vmatpush1.bf16.msra.mxu0 %v2582
      %3806 = vmatprep.subr.bf16.mxu0 %v2581
      %3807 = vmatpush1.bf16.msra.mxu0 %v2580
      %3808 = vmatprep.subr.bf16.mxu0 %v2579
      %3809 = vmatpush1.bf16.msra.mxu0 %v2578
      %3810 = vmatprep.subr.bf16.mxu0 %v2577
      %3811 = vmatpush1.bf16.msra.mxu0 %v2576
      %3812 = vmatprep.subr.bf16.mxu0 %v2575
      %3813 = vmatpush1.bf16.msra.mxu0 %v2574
      %3814 = vmatprep.subr.bf16.mxu0 %v2605
      %3815 = vmatpush2.bf16.msra.mxu0 %v2604
      %3816 = vmatprep.subr.bf16.mxu0 %v2603
      %3817 = vmatpush2.bf16.msra.mxu0 %v2602
      %3818 = vmatprep.subr.bf16.mxu0 %v2601
      %3819 = vmatpush2.bf16.msra.mxu0 %v2600
      %3820 = vmatprep.subr.bf16.mxu0 %v2599
      %3821 = vmatpush2.bf16.msra.mxu0 %v2598
      %3822 = vmatprep.subr.bf16.mxu0 %v2597
      %3823 = vmatpush2.bf16.msra.mxu0 %v2596
      %3824 = vmatprep.subr.bf16.mxu0 %v2595
      %3825 = vmatpush2.bf16.msra.mxu0 %v2594
      %3826 = vmatprep.subr.bf16.mxu0 %v2593
      %3827 = vmatpush2.bf16.msra.mxu0 %v2592
      %3828 = vmatprep.subr.bf16.mxu0 %v2591
      %3829 = vmatpush2.bf16.msra.mxu0 %v2590
      %3830 = vmatprep.mubr.bf16.mxu0 %v1183
      %3831 = vmatmul.mubr.bf16.gmra.mxu0 %v1182
      %v3832 = vpop.f32.mrf.mxu0
      %v3833 = vadd.f32 %v3720, %v3832
      %v3834 = vpop.f32.mrf.mxu0
      %v3835 = vadd.f32 %v3722, %v3834
      %v3836 = vpop.f32.mrf.mxu0
      %v3837 = vadd.f32 %v3724, %v3836
      %v3838 = vpop.f32.mrf.mxu0
      %v3839 = vadd.f32 %v3726, %v3838
      %3840 = vmatprep.mubr.bf16.mxu0 %v1201
      %3841 = vmatmul.mubr.bf16.gmra.mxu0 %v1200
      %v3842 = vpop.f32.mrf.mxu0
      %v3843 = vadd.f32 %v3730, %v3842
      %v3844 = vpop.f32.mrf.mxu0
      %v3845 = vadd.f32 %v3732, %v3844
      %v3846 = vpop.f32.mrf.mxu0
      %v3847 = vadd.f32 %v3734, %v3846
      %v3848 = vpop.f32.mrf.mxu0
      %v3849 = vadd.f32 %v3736, %v3848
      %3850 = vmatprep.mubr.bf16.mxu0 %v1219
      %3851 = vmatmul.mubr.bf16.gmra.mxu0 %v1218
      %v3852 = vpop.f32.mrf.mxu0
      %v3853 = vadd.f32 %v3740, %v3852
      %v3854 = vpop.f32.mrf.mxu0
      %v3855 = vadd.f32 %v3742, %v3854
      %v3856 = vpop.f32.mrf.mxu0
      %v3857 = vadd.f32 %v3744, %v3856
      %v3858 = vpop.f32.mrf.mxu0
      %v3859 = vadd.f32 %v3746, %v3858
      %3860 = vmatprep.mubr.bf16.mxu0 %v1237
      %3861 = vmatmul.mubr.bf16.gmra.mxu0 %v1236
      %v3862 = vpop.f32.mrf.mxu0
      %v3863 = vadd.f32 %v3750, %v3862
      %v3864 = vpop.f32.mrf.mxu0
      %v3865 = vadd.f32 %v3752, %v3864
      %v3866 = vpop.f32.mrf.mxu0
      %v3867 = vadd.f32 %v3754, %v3866
      %v3868 = vpop.f32.mrf.mxu0
      %v3869 = vadd.f32 %v3756, %v3868
      %3870 = vmatprep.mubr.bf16.mxu0 %v1255
      %3871 = vmatmul.mubr.bf16.gmra.mxu0 %v1254
      %v3872 = vpop.f32.mrf.mxu0
      %v3873 = vadd.f32 %v3760, %v3872
      %v3874 = vpop.f32.mrf.mxu0
      %v3875 = vadd.f32 %v3762, %v3874
      %v3876 = vpop.f32.mrf.mxu0
      %v3877 = vadd.f32 %v3764, %v3876
      %v3878 = vpop.f32.mrf.mxu0
      %v3879 = vadd.f32 %v3766, %v3878
      %3880 = vmatprep.mubr.bf16.mxu0 %v1273
      %3881 = vmatmul.mubr.bf16.gmra.mxu0 %v1272
      %v3882 = vpop.f32.mrf.mxu0
      %v3883 = vadd.f32 %v3770, %v3882
      %v3884 = vpop.f32.mrf.mxu0
      %v3885 = vadd.f32 %v3772, %v3884
      %v3886 = vpop.f32.mrf.mxu0
      %v3887 = vadd.f32 %v3774, %v3886
      %v3888 = vpop.f32.mrf.mxu0
      %v3889 = vadd.f32 %v3776, %v3888
      %3890 = vmatprep.mubr.bf16.mxu0 %v1291
      %3891 = vmatmul.mubr.bf16.gmra.mxu0 %v1290
      %v3892 = vpop.f32.mrf.mxu0
      %v3893 = vadd.f32 %v3780, %v3892
      %v3894 = vpop.f32.mrf.mxu0
      %v3895 = vadd.f32 %v3782, %v3894
      %v3896 = vpop.f32.mrf.mxu0
      %v3897 = vadd.f32 %v3784, %v3896
      %v3898 = vpop.f32.mrf.mxu0
      %v3899 = vadd.f32 %v3786, %v3898
      %3900 = vmatprep.mubr.bf16.mxu0 %v1309
      %3901 = vmatmul.mubr.bf16.gmra.mxu0 %v1308
      %v3902 = vpop.f32.mrf.mxu0
      %v3903 = vadd.f32 %v3790, %v3902
      %v3904 = vpop.f32.mrf.mxu0
      %v3905 = vadd.f32 %v3792, %v3904
      %v3906 = vpop.f32.mrf.mxu0
      %v3907 = vadd.f32 %v3794, %v3906
      %v3908 = vpop.f32.mrf.mxu0
      %v3909 = vadd.f32 %v3796, %v3908
      %3910 = vdwg.mxu0
      %v3911 = vpack.c.bf16 %v3837, %v3833
      %v3912 = vpack.c.bf16 %v3839, %v3835
      %v3913 = vpack.c.bf16 %v3847, %v3843
      %v3914 = vpack.c.bf16 %v3849, %v3845
      %v3915 = vpack.c.bf16 %v3857, %v3853
      %v3916 = vpack.c.bf16 %v3859, %v3855
      %v3917 = vpack.c.bf16 %v3867, %v3863
      %v3918 = vpack.c.bf16 %v3869, %v3865
      %v3919 = vpack.c.bf16 %v3877, %v3873
      %v3920 = vpack.c.bf16 %v3879, %v3875
      %v3921 = vpack.c.bf16 %v3887, %v3883
      %v3922 = vpack.c.bf16 %v3889, %v3885
      %v3923 = vpack.c.bf16 %v3897, %v3893
      %v3924 = vpack.c.bf16 %v3899, %v3895
      %v3925 = vpack.c.bf16 %v3907, %v3903
      %v3926 = vpack.c.bf16 %v3909, %v3905
      %v3927 = vld [vmem:[%s4] sm:$0xf]
      %v3928 = vld [vmem:[%s4 + $0x4] sm:$0xf]
      %v3929 = vld [vmem:[%s4 + $0x8] sm:$0xf]
      %v3930 = vld [vmem:[%s4 + $0xc] sm:$0xf]
      %v3931 = vld [vmem:[%s4 + $0x10] sm:$0xf]
      %v3932 = vld [vmem:[%s4 + $0x14] sm:$0xf]
      %v3933 = vld [vmem:[%s4 + $0x18] sm:$0xf]
      %v3934 = vld [vmem:[%s4 + $0x1c] sm:$0xf]
      %v3935 = vld [vmem:[%s4 + $0x20] sm:$0xf]
      %v3936 = vld [vmem:[%s4 + $0x24] sm:$0xf]
      %v3937 = vld [vmem:[%s4 + $0x28] sm:$0xf]
      %v3938 = vld [vmem:[%s4 + $0x2c] sm:$0xf]
      %v3939 = vld [vmem:[%s4 + $0x30] sm:$0xf]
      %v3940 = vld [vmem:[%s4 + $0x34] sm:$0xf]
      %v3941 = vld [vmem:[%s4 + $0x38] sm:$0xf]
      %v3942 = vld [vmem:[%s4 + $0x3c] sm:$0xf]
      %v3943 = vld [vmem:[%s4 + $0x40] sm:$0xf]
      %v3944 = vld [vmem:[%s4 + $0x44] sm:$0xf]
      %v3945 = vld [vmem:[%s4 + $0x48] sm:$0xf]
      %v3946 = vld [vmem:[%s4 + $0x4c] sm:$0xf]
      %v3947 = vld [vmem:[%s4 + $0x50] sm:$0xf]
      %v3948 = vld [vmem:[%s4 + $0x54] sm:$0xf]
      %v3949 = vld [vmem:[%s4 + $0x58] sm:$0xf]
      %v3950 = vld [vmem:[%s4 + $0x5c] sm:$0xf]
      %v3951 = vld [vmem:[%s4 + $0x60] sm:$0xf]
      %v3952 = vld [vmem:[%s4 + $0x64] sm:$0xf]
      %v3953 = vld [vmem:[%s4 + $0x68] sm:$0xf]
      %v3954 = vld [vmem:[%s4 + $0x6c] sm:$0xf]
      %v3955 = vld [vmem:[%s4 + $0x70] sm:$0xf]
      %v3956 = vld [vmem:[%s4 + $0x74] sm:$0xf]
      %v3957 = vld [vmem:[%s4 + $0x78] sm:$0xf]
      %v3958 = vld [vmem:[%s4 + $0x7c] sm:$0xf]
      %v3959 = vld [vmem:[%s5] sm:$0x1]
      %v3961 = vlaneseq
      %v3962 = vshrl.u32 %v3961, 7
      %v3963 = vsub.s32 0, %v3962
      %v3964 = vrot.slane %v3959, %v3963
      %v3998 = vunpack.c.l.b16 %v3927
      %v3999 = vunpack.c.l.b16 %v3928
      %v4000 = vunpack.c.l.b16 %v3929
      %v4001 = vunpack.c.l.b16 %v3930
      %v4002 = vunpack.c.l.b16 %v3931
      %v4003 = vunpack.c.l.b16 %v3932
      %v4004 = vunpack.c.l.b16 %v3933
      %v4005 = vunpack.c.l.b16 %v3934
      %v4006 = vunpack.c.l.b16 %v3935
      %v4007 = vunpack.c.l.b16 %v3936
      %v4008 = vunpack.c.l.b16 %v3937
      %v4009 = vunpack.c.l.b16 %v3938
      %v4010 = vunpack.c.l.b16 %v3939
      %v4011 = vunpack.c.l.b16 %v3940
      %v4012 = vunpack.c.l.b16 %v3941
      %v4013 = vunpack.c.l.b16 %v3942
      %v4014 = vunpack.c.l.b16 %v3943
      %v4015 = vunpack.c.l.b16 %v3944
      %v4016 = vunpack.c.l.b16 %v3945
      %v4017 = vunpack.c.l.b16 %v3946
      %v4018 = vunpack.c.l.b16 %v3947
      %v4019 = vunpack.c.l.b16 %v3948
      %v4020 = vunpack.c.l.b16 %v3949
      %v4021 = vunpack.c.l.b16 %v3950
      %v4022 = vunpack.c.l.b16 %v3951
      %v4023 = vunpack.c.l.b16 %v3952
      %v4024 = vunpack.c.l.b16 %v3953
      %v4025 = vunpack.c.l.b16 %v3954
      %v4026 = vunpack.c.l.b16 %v3955
      %v4027 = vunpack.c.l.b16 %v3956
      %v4028 = vunpack.c.l.b16 %v3957
      %v4029 = vunpack.c.l.b16 %v3958
      %v4030 = vpack.c.b16 %v3999, %v3998
      %v4031 = vpack.c.b16 %v4001, %v4000
      %v4032 = vpack.c.b16 %v4003, %v4002
      %v4033 = vpack.c.b16 %v4005, %v4004
      %v4034 = vpack.c.b16 %v4007, %v4006
      %v4035 = vpack.c.b16 %v4009, %v4008
      %v4036 = vpack.c.b16 %v4011, %v4010
      %v4037 = vpack.c.b16 %v4013, %v4012
      %v4038 = vpack.c.b16 %v4015, %v4014
      %v4039 = vpack.c.b16 %v4017, %v4016
      %v4040 = vpack.c.b16 %v4019, %v4018
      %v4041 = vpack.c.b16 %v4021, %v4020
      %v4042 = vpack.c.b16 %v4023, %v4022
      %v4043 = vpack.c.b16 %v4025, %v4024
      %v4044 = vpack.c.b16 %v4027, %v4026
      %v4045 = vpack.c.b16 %v4029, %v4028
      %4062 = vmatprep.subr.bf16.mxu0 0
      %4063 = vmatpush1.bf16.msra.mxu0 %v4037
      %4064 = vmatprep.subr.bf16.mxu0 0
      %4065 = vmatpush1.bf16.msra.mxu0 %v4036
      %4066 = vmatprep.subr.bf16.mxu0 0
      %4067 = vmatpush1.bf16.msra.mxu0 %v4035
      %4068 = vmatprep.subr.bf16.mxu0 0
      %4069 = vmatpush1.bf16.msra.mxu0 %v4034
      %4070 = vmatprep.subr.bf16.mxu0 0
      %4071 = vmatpush1.bf16.msra.mxu0 %v4033
      %4072 = vmatprep.subr.bf16.mxu0 0
      %4073 = vmatpush1.bf16.msra.mxu0 %v4032
      %4074 = vmatprep.subr.bf16.mxu0 0
      %4075 = vmatpush1.bf16.msra.mxu0 %v4031
      %4076 = vmatprep.subr.bf16.mxu0 0
      %4077 = vmatpush1.bf16.msra.mxu0 %v4030
      %4078 = vmatprep.subr.bf16.mxu0 0
      %4079 = vmatpush2.bf16.msra.mxu0 %v4045
      %4080 = vmatprep.subr.bf16.mxu0 0
      %4081 = vmatpush2.bf16.msra.mxu0 %v4044
      %4082 = vmatprep.subr.bf16.mxu0 0
      %4083 = vmatpush2.bf16.msra.mxu0 %v4043
      %4084 = vmatprep.subr.bf16.mxu0 0
      %4085 = vmatpush2.bf16.msra.mxu0 %v4042
      %4086 = vmatprep.subr.bf16.mxu0 0
      %4087 = vmatpush2.bf16.msra.mxu0 %v4041
      %4088 = vmatprep.subr.bf16.mxu0 0
      %4089 = vmatpush2.bf16.msra.mxu0 %v4040
      %4090 = vmatprep.subr.bf16.mxu0 0
      %4091 = vmatpush2.bf16.msra.mxu0 %v4039
      %4092 = vmatprep.subr.bf16.mxu0 0
      %4093 = vmatpush2.bf16.msra.mxu0 %v4038
      %4094 = vmatprep.mubr.bf16.mxu0 %v3912
      %4095 = vmatmul.mubr.bf16.gmra.mxu0 %v3911
      %v4096 = vpop.f32.mrf.mxu0
      %v4097 = vadd.f32 %v3964, %v4096
      %v4098 = vpop.f32.mrf.mxu0
      %v4099 = vpop.f32.mrf.mxu0
      %v4100 = vadd.f32 %v3964, %v4099
      %v4101 = vpop.f32.mrf.mxu0
      %4102 = vmatprep.mubr.bf16.mxu0 %v3914
      %4103 = vmatmul.mubr.bf16.gmra.mxu0 %v3913
      %v4104 = vpop.f32.mrf.mxu0
      %v4105 = vadd.f32 %v3964, %v4104
      %v4106 = vpop.f32.mrf.mxu0
      %v4107 = vpop.f32.mrf.mxu0
      %v4108 = vadd.f32 %v3964, %v4107
      %v4109 = vpop.f32.mrf.mxu0
      %4110 = vmatprep.mubr.bf16.mxu0 %v3916
      %4111 = vmatmul.mubr.bf16.gmra.mxu0 %v3915
      %v4112 = vpop.f32.mrf.mxu0
      %v4113 = vadd.f32 %v3964, %v4112
      %v4114 = vpop.f32.mrf.mxu0
      %v4115 = vpop.f32.mrf.mxu0
      %v4116 = vadd.f32 %v3964, %v4115
      %v4117 = vpop.f32.mrf.mxu0
      %4118 = vmatprep.mubr.bf16.mxu0 %v3918
      %4119 = vmatmul.mubr.bf16.gmra.mxu0 %v3917
      %v4120 = vpop.f32.mrf.mxu0
      %v4121 = vadd.f32 %v3964, %v4120
      %v4122 = vpop.f32.mrf.mxu0
      %v4123 = vpop.f32.mrf.mxu0
      %v4124 = vadd.f32 %v3964, %v4123
      %v4125 = vpop.f32.mrf.mxu0
      %4126 = vmatprep.mubr.bf16.mxu0 %v3920
      %4127 = vmatmul.mubr.bf16.gmra.mxu0 %v3919
      %v4128 = vpop.f32.mrf.mxu0
      %v4129 = vadd.f32 %v3964, %v4128
      %v4130 = vpop.f32.mrf.mxu0
      %v4131 = vpop.f32.mrf.mxu0
      %v4132 = vadd.f32 %v3964, %v4131
      %v4133 = vpop.f32.mrf.mxu0
      %4134 = vmatprep.mubr.bf16.mxu0 %v3922
      %4135 = vmatmul.mubr.bf16.gmra.mxu0 %v3921
      %v4136 = vpop.f32.mrf.mxu0
      %v4137 = vadd.f32 %v3964, %v4136
      %v4138 = vpop.f32.mrf.mxu0
      %v4139 = vpop.f32.mrf.mxu0
      %v4140 = vadd.f32 %v3964, %v4139
      %v4141 = vpop.f32.mrf.mxu0
      %4142 = vmatprep.mubr.bf16.mxu0 %v3924
      %4143 = vmatmul.mubr.bf16.gmra.mxu0 %v3923
      %v4144 = vpop.f32.mrf.mxu0
      %v4145 = vadd.f32 %v3964, %v4144
      %v4146 = vpop.f32.mrf.mxu0
      %v4147 = vpop.f32.mrf.mxu0
      %v4148 = vadd.f32 %v3964, %v4147
      %v4149 = vpop.f32.mrf.mxu0
      %4150 = vmatprep.mubr.bf16.mxu0 %v3926
      %4151 = vmatmul.mubr.bf16.gmra.mxu0 %v3925
      %v4152 = vpop.f32.mrf.mxu0
      %v4153 = vadd.f32 %v3964, %v4152
      %v4154 = vpop.f32.mrf.mxu0
      %v4155 = vpop.f32.mrf.mxu0
      %v4156 = vadd.f32 %v3964, %v4155
      %v4157 = vpop.f32.mrf.mxu0
      %4158 = vdwg.mxu0
      %4159 = vst [vmem:[%s287] sm:$0xff] %v4097
      %4160 = vst [vmem:[%s287 + $0x8] sm:$0xff] %v4100
      %4161 = vst [vmem:[%s287 + $0x10] sm:$0xff] %v4105
      %4162 = vst [vmem:[%s287 + $0x18] sm:$0xff] %v4108
      %4163 = vst [vmem:[%s287 + $0x20] sm:$0xff] %v4113
      %4164 = vst [vmem:[%s287 + $0x28] sm:$0xff] %v4116
      %4165 = vst [vmem:[%s287 + $0x30] sm:$0xff] %v4121
      %4166 = vst [vmem:[%s287 + $0x38] sm:$0xff] %v4124
      %4167 = vst [vmem:[%s287 + $0x40] sm:$0xff] %v4129
      %4168 = vst [vmem:[%s287 + $0x48] sm:$0xff] %v4132
      %4169 = vst [vmem:[%s287 + $0x50] sm:$0xff] %v4137
      %4170 = vst [vmem:[%s287 + $0x58] sm:$0xff] %v4140
      %4171 = vst [vmem:[%s287 + $0x60] sm:$0xff] %v4145
      %4172 = vst [vmem:[%s287 + $0x68] sm:$0xff] %v4148
      %4173 = vst [vmem:[%s287 + $0x70] sm:$0xff] %v4153
      %4174 = vst [vmem:[%s287 + $0x78] sm:$0xff] %v4156
      %s4175 = smul.u32 16, %s23
      %p4176 = scmp.lt.s32.totalorder %s4175, 191
      %s4177 = scalar_select %p4176, %s4175, 191
      %s4178 = smul.addr %s4177, 8
      %s4179 = scalar_lea.vmem %s6, %s4178
      // Predicated region
      $region41: #{point_correspondence_forward.17} parent=39 // pred_check
        %p4180 = pneg %p165
      $region42: #{point_correspondence_forward.17} parent=39 // pred_check_branch
        %4182 = sbr.rel (%p4180) target = $region44
      $region43: #{point_correspondence_forward.17} parent=39 // pred_region
        %s4183 = smul.u32 16, %s23
      $region44: #{point_correspondence_forward.17} parent=39 // pred_fallthru
        _
    $region40: #{point_correspondence_forward.17} parent=5 // pred_fallthru
      _
    %p4184 = scmp.le.s32.totalorder 2, %s18
    // Predicated region
    $region45: #{point_correspondence_forward.17} parent=5 // pred_check
      %p4185 = pneg %p4184
    $region46: #{point_correspondence_forward.17} parent=5 // pred_check_branch
      %4187 = sbr.rel (%p4185) target = $region48
    $region47: #{point_correspondence_forward.17} parent=5 // pred_region
      %s4188 = ssub.s32 %s18, 2
      // Predicated region
      $region49: #{point_correspondence_forward.17} parent=47 // pred_check
        %p4189 = pneg %p171
      $region50: #{point_correspondence_forward.17} parent=47 // pred_check_branch
        %4191 = sbr.rel (%p4189) target = $region52
      $region51: #{point_correspondence_forward.17} parent=47 // pred_region
        %s4192 = smul.u32 16, %s24
        %p4193 = scmp.lt.s32.totalorder %s4192, 191
        %s4194 = scalar_select %p4193, %s4192, 191
        %s4195 = smul.addr %s4194, 8
        %s4196 = scalar_lea.vmem %s6, %s4195
      $region52: #{point_correspondence_forward.17} parent=47 // pred_fallthru
        _
    $region48: #{point_correspondence_forward.17} parent=5 // pred_fallthru
      _
  $region6: #{point_correspondence_forward.17} parent=0 // loop_footer
    %s22 = sadd.s32 1, %s18
  $region7: #{point_correspondence_forward.17} parent=0 // loop_footer_branch
    %17 = sbr.rel target = $region3
  $region8: #{point_correspondence_forward.17} parent=0 // loop_exit
    _

</llo_original>
